<compile_context>
chip_gen: v7x
topology: tpu7x:2x2x1
jax: 0.10.0
libtpu: 0.0.40
codegen_flags: <defaults>
</compile_context>

<pallas_src>
import numpy as np
import jax
import jax.numpy as jnp
from jax.experimental import pallas as pl
from jax.experimental.pallas import tpu as pltpu

F32 = jnp.float32
BF16 = jnp.bfloat16
KPAD = 128  # lane-aligned padding for tiny contraction dims


# ----------------------------------------------------------------------------
# Pallas kernel 1: fused GraspNet head on the stride-32 feature grid.
#   stub:   f = relu(pool_pad @ Wstub_blockdiag)        # (R, 2048) = concat
#   stage1: x = relu(BN2048(f));  y = relu(BN64(x @ Wconv1))
#   stage2: q = BN1(y @ Wconv2)   (BN1 scale folded into Wconv2)
# pool_pad packs color (cols 0:3) and depth (cols 3:6) of the pooled image into
# one 128-lane input; Wstub_blockdiag maps them to channels [0:1024] / [1024:2048]
# respectively, so the 2048-wide concat never leaves VMEM.
# ----------------------------------------------------------------------------
def _head_kernel(pool_ref, wstub_ref, s1_ref, b1_ref, w1_ref, s2_ref, b2_ref,
                 w2_ref, b3_ref, o_ref):
  # Encoder stub (color||depth block-diagonal 128->2048 projection) + ReLU.
  f = jnp.dot(pool_ref[...], wstub_ref[...],
              preferred_element_type=jnp.float32)
  f = jnp.maximum(f, 0.0)

  # Stage 1: BN(2048) + ReLU on the (virtual) concat.
  x = jnp.maximum(f * s1_ref[...] + b1_ref[...], 0.0)          # (rows, 2048)

  # Conv1x1(2048 -> 64): bf16 operands, f32 accumulate; then BN(64) + ReLU.
  y = jnp.dot(x.astype(BF16), w1_ref[...],
              preferred_element_type=jnp.float32)
  y = jnp.maximum(y * s2_ref[...] + b2_ref[...], 0.0)          # (rows, 64)

  # Stage 2: Conv1x1(64 -> 1) with the BN(1) scale pre-folded into w2
  # (cross-lane reduce runs on the XLU slot).
  q = jnp.sum(y * w2_ref[...], axis=1, keepdims=True) + b3_ref[...]
  o_ref[...] = q.astype(o_ref.dtype)


def grasp_head(pool_pad, w_stub_big, s1, b1, w1, s2, b2, w2s, b3):
  """pool_pad: (R, 128) padded pooled pixels -> q: (R, 1) grasp logits."""
  R, K = pool_pad.shape
  C1 = w_stub_big.shape[1]                                     # 2048
  C2 = w1.shape[1]                                             # 64
  # Two "parallel" row blocks so v7x megacore can shard across both TCs.
  row_tile = R // 2 if (R % 2 == 0 and (R // 2) % 8 == 0) else R
  rows = lambda i: (i, 0)
  full = lambda i: (0, 0)
  return pl.pallas_call(
      _head_kernel,
      out_shape=jax.ShapeDtypeStruct((R, 1), F32),
      grid=(R // row_tile,),
      in_specs=[
          pl.BlockSpec((row_tile, K), rows),
          pl.BlockSpec((K, C1), full),
          pl.BlockSpec((1, C1), full), pl.BlockSpec((1, C1), full),
          pl.BlockSpec((C1, C2), full),
          pl.BlockSpec((1, C2), full), pl.BlockSpec((1, C2), full),
          pl.BlockSpec((1, C2), full),
          pl.BlockSpec((1, 1), full),
      ],
      out_specs=pl.BlockSpec((row_tile, 1), rows),
      compiler_params=pltpu.CompilerParams(dimension_semantics=("parallel",)),
  )(pool_pad.astype(F32), w_stub_big.astype(F32),
    s1.reshape(1, C1).astype(F32), b1.reshape(1, C1).astype(F32),
    w1.astype(BF16),
    s2.reshape(1, C2).astype(F32), b2.reshape(1, C2).astype(F32),
    w2s.reshape(1, C2).astype(F32), b3.reshape(1, 1).astype(F32))


# ----------------------------------------------------------------------------
# Pallas kernel 2: composed x16 bilinear upsample of the 1-channel map,
# both interpolation passes chained inside one kernel (no HBM round trip).
# Contraction dims (Hi, Wi = 20) are zero-padded to 128 lanes for alignment;
# zero rows/cols contribute exactly 0 so the result is unchanged.
# ----------------------------------------------------------------------------
def _upsample16_kernel(ah_ref, q_ref, awt_ref, o_ref):
  u = jnp.dot(ah_ref[...], q_ref[...], preferred_element_type=jnp.float32)
  o_ref[...] = jnp.dot(u, awt_ref[...],
                       preferred_element_type=jnp.float32).astype(o_ref.dtype)


def upsample_x16(q2d, a16_h, a16_w):
  """q2d: (Hi, Wi) single-channel map -> (16*Hi, 16*Wi) via A16_h @ Q @ A16_w.T."""
  Hi, Wi = q2d.shape
  Ho, Wo = a16_h.shape[0], a16_w.shape[0]
  q_pad = jnp.zeros((KPAD, KPAD), F32).at[:Hi, :Wi].set(q2d.astype(F32))
  ah_pad = jnp.zeros((Ho, KPAD), F32).at[:, :Hi].set(a16_h.astype(F32))
  awt_pad = jnp.zeros((KPAD, Wo), F32).at[:Wi, :].set(a16_w.T.astype(F32))
  row_tile = Ho // 2 if (Ho % 2 == 0 and (Ho // 2) % 8 == 0) else Ho
  return pl.pallas_call(
      _upsample16_kernel,
      out_shape=jax.ShapeDtypeStruct((Ho, Wo), F32),
      grid=(Ho // row_tile,),
      in_specs=[
          pl.BlockSpec((row_tile, KPAD), lambda i: (i, 0)),
          pl.BlockSpec((KPAD, KPAD), lambda i: (0, 0)),
          pl.BlockSpec((KPAD, Wo), lambda i: (0, 0)),
      ],
      out_specs=pl.BlockSpec((row_tile, Wo), lambda i: (i, 0)),
      compiler_params=pltpu.CompilerParams(dimension_semantics=("parallel",)),
  )(ah_pad, q_pad, awt_pad)


# ----------------------------------------------------------------------------
# Interpolation matrices (PyTorch bilinear, align_corners=False).
# ----------------------------------------------------------------------------
def _interp_matrix(in_size, scale):
  out_size = in_size * scale
  m = np.zeros((out_size, in_size), dtype=np.float64)
  for o in range(out_size):
    src = max((o + 0.5) / scale - 0.5, 0.0)
    i0 = min(int(np.floor(src)), in_size - 1)
    i1 = min(i0 + 1, in_size - 1)
    lam = src - i0
    m[o, i0] += 1.0 - lam
    m[o, i1] += lam
  return m


def _composed_x16_matrix(in_size):
  """Exact composition of the module's two successive x4 bilinear upsamples."""
  return (_interp_matrix(in_size * 4, 4) @ _interp_matrix(in_size, 4)).astype(np.float32)


# ----------------------------------------------------------------------------
# Rotation: F.affine_grid + F.grid_sample(mode='nearest', padding_mode='zeros',
# align_corners=False) -- data-dependent per-pixel gather, kept as plain-JAX
# glue but in NHWC so each gathered pixel fetches contiguous channels.
# TODO(synk): if this XLA gather dominates wall clock, move it to a Pallas
# scalar-prefetch / DMA gather kernel.
# ----------------------------------------------------------------------------
def rotate_img_nearest_nhwc(x_nhwc, theta_2x3):
  N, H, W, C = x_nhwc.shape
  u = (2.0 * jnp.arange(W, dtype=F32) + 1.0) / W - 1.0
  v = (2.0 * jnp.arange(H, dtype=F32) + 1.0) / H - 1.0
  uu, vv = jnp.meshgrid(u, v)                               # (H, W) each
  gx = theta_2x3[0, 0] * uu + theta_2x3[0, 1] * vv + theta_2x3[0, 2]
  gy = theta_2x3[1, 0] * uu + theta_2x3[1, 1] * vv + theta_2x3[1, 2]
  ix = jnp.round(((gx + 1.0) * W - 1.0) / 2.0)              # round-half-even == nearbyint
  iy = jnp.round(((gy + 1.0) * H - 1.0) / 2.0)
  valid = (ix >= 0) & (ix <= W - 1) & (iy >= 0) & (iy <= H - 1)
  ixc = jnp.clip(ix, 0, W - 1).astype(jnp.int32)
  iyc = jnp.clip(iy, 0, H - 1).astype(jnp.int32)
  flat = (iyc * W + ixc).reshape(-1)
  g = jnp.take(x_nhwc.reshape(N, H * W, C), flat, axis=1).reshape(N, H, W, C)
  return jnp.where(valid[None, :, :, None], g, 0.0)


# ----------------------------------------------------------------------------
# Parameters
# ----------------------------------------------------------------------------
def get_rot_matrix(degrees):
  theta = np.radians(np.asarray(degrees, dtype=np.float64))
  c, s = np.cos(theta), np.sin(theta)
  m = np.zeros((theta.shape[0], 2, 3), dtype=np.float32)
  m[:, 0, 0] = c
  m[:, 0, 1] = -s
  m[:, 1, 0] = s
  m[:, 1, 1] = c
  return m


def bn_affine(gamma, beta, mean, var, eps=1e-5):
  scale = gamma / jnp.sqrt(var + eps)
  shift = beta - mean * scale
  return scale, shift


def init_params(key):
  ks = jax.random.split(key, 8)

  def unif(k, shape, bound):
    return jax.random.uniform(k, shape, F32, -bound, bound)

  def bn(k, c):
    k1, k2, k3, k4 = jax.random.split(k, 4)
    return (jax.random.uniform(k1, (c,), F32, 0.5, 1.5),
            jax.random.uniform(k2, (c,), F32, -0.1, 0.1),
            jax.random.uniform(k3, (c,), F32, -0.1, 0.1),
            jax.random.uniform(k4, (c,), F32, 0.5, 1.5))

  rotations = np.array([-90, -45, 0, 45])
  full_rot = np.concatenate((rotations, 180 + rotations))
  return {
      "stub_w": unif(ks[0], (3, 1024), 1.0 / np.sqrt(3.0)),       # encoder stub
      "conv1_w": unif(ks[1], (2048, 64), 1.0 / np.sqrt(2048.0)),  # 1x1 conv 2048->64
      "conv2_w": unif(ks[2], (64, 1), 1.0 / np.sqrt(64.0)),       # 1x1 conv 64->1
      "bn2048": bn(ks[3], 2048),
      "bn64": bn(ks[4], 64),
      "bn1": bn(ks[5], 1),
      "full_rot_mat": jnp.asarray(get_rot_matrix(full_rot)),
      "full_rot_back_mat": jnp.asarray(get_rot_matrix(-full_rot)),
  }


# ----------------------------------------------------------------------------
# Forward
# ----------------------------------------------------------------------------
def network_rotate_forward(params, color, depth, theta_idx):
  rot = params["full_rot_mat"][theta_idx]
  rot_back = params["full_rot_back_mat"][theta_idx]

  N, C, H, W = color.shape
  assert N == 1, "forward() is single-image (batch 1), like the reference."

  # Rotate color+depth with one shared-index NHWC gather (6 contiguous chans).
  x = jnp.concatenate([color, depth], axis=1).transpose(0, 2, 3, 1)  # (1,H,W,6)
  x_rot = rotate_img_nearest_nhwc(x, rot)

  # Encoder stub front half: stride-32 average pool; the 3->1024 projection and
  # everything downstream is fused into the Pallas head kernel.
  Hp, Wp = H // 32, W // 32
  pooled = x_rot.reshape(N, Hp, 32, Wp, 32, 2 * C).mean(axis=(2, 4))  # (1,Hp,Wp,6)
  pool_flat = pooled.reshape(Hp * Wp, 2 * C)         # cols 0:C color, C:2C depth
  pool_pad = jnp.zeros((Hp * Wp, KPAD), F32).at[:, :2 * C].set(pool_flat)

  # Block-diagonal stub weight: color cols -> channels [0:1024],
  # depth cols -> channels [1024:2048] (matches torch.cat order).
  w_stub = params["stub_w"]
  C1 = w_stub.shape[1]
  w_stub_big = (jnp.zeros((KPAD, 2 * C1), F32)
                .at[0:C, 0:C1].set(w_stub)
                .at[C:2 * C, C1:2 * C1].set(w_stub))

  # Fold BatchNorm running stats into per-channel affines (inference mode);
  # fold the BN(1) scale into the 64->1 conv weights.
  s1, b1 = bn_affine(*params["bn2048"])
  s2, b2 = bn_affine(*params["bn64"])
  s3, b3 = bn_affine(*params["bn1"])
  w2s = params["conv2_w"][:, 0] * s3[0]

  q = grasp_head(pool_pad, w_stub_big, s1, b1, params["conv1_w"],
                 s2, b2, w2s, b3)                    # (Hp*Wp, 1)
  q2d = q.reshape(Hp, Wp)

  # Conv1x1(64->1)+BN(1) commute exactly with the (affine-preserving) bilinear
  # upsamples, so the module's Upsample(x4) -> conv -> BN -> Upsample(x4) is
  # realized as conv/BN above followed by ONE composed x16 upsample here.
  a16_h = jnp.asarray(_composed_x16_matrix(Hp))
  a16_w = jnp.asarray(_composed_x16_matrix(Wp))
  up = upsample_x16(q2d, a16_h, a16_w)               # (16*Hp, 16*Wp) = (320, 320)

  # Rotate back (nearest, zeros padding) and crop: q[0][:, 48:272, 48:272].
  q_rot = rotate_img_nearest_nhwc(up[None, :, :, None], rot_back)
  return q_rot[0, :, :, 0][None, 48:272, 48:272]


# ----------------------------------------------------------------------------
if __name__ == "__main__":
  key = jax.random.PRNGKey(0)
  k_color, k_depth, k_params = jax.random.split(key, 3)

  # forward() requires batch=1; the hard-coded 48:272 crop on the 16x-upsampled
  # stride-32 features implies 640x640 inputs (the module's intrinsic geometry).
  color = jax.random.normal(k_color, (1, 3, 640, 640), F32)
  depth = jax.random.normal(k_depth, (1, 3, 640, 640), F32)
  params = init_params(k_params)
  theta_idx = 3

  fwd = jax.jit(lambda c, d: network_rotate_forward(params, c, d, theta_idx))
  out = jax.block_until_ready(fwd(color, depth))

  assert out.shape == (1, 224, 224), out.shape
  assert bool(jnp.all(jnp.isfinite(out)))
  print("KERNEL_OK")
</pallas_src>

<mosaic_0001>
module attributes {stable_mosaic.version = 11 : i64} {
  func.func private @main(%arg0: i32) attributes {dimension_semantics = [#tpu.dimension_semantics<core_parallel>], iteration_bounds = array<i64: 2>, tpu.core_type = #tpu.core_type<sc_scalar_subcore>, window_params = []} {
    return
  }
}

module attributes {stable_mosaic.version = 11 : i64} {
  func.func private @main(%arg0: i32) attributes {dimension_semantics = [#tpu.dimension_semantics<core_parallel>], iteration_bounds = array<i64: 2>, tpu.core_type = #tpu.core_type<sc_scalar_subcore>, window_params = []} {
    return
  }
}

module attributes {stable_mosaic.version = 11 : i64} {
  func.func @_head_kernel(%arg0: i32, %arg1: memref<200x128xf32, #tpu.memory_space<vmem>>, %arg2: memref<128x2048xf32, #tpu.memory_space<vmem>>, %arg3: memref<1x2048xf32, #tpu.memory_space<vmem>>, %arg4: memref<1x2048xf32, #tpu.memory_space<vmem>>, %arg5: memref<2048x64xbf16, #tpu.memory_space<vmem>>, %arg6: memref<1x64xf32, #tpu.memory_space<vmem>>, %arg7: memref<1x64xf32, #tpu.memory_space<vmem>>, %arg8: memref<1x64xf32, #tpu.memory_space<vmem>>, %arg9: memref<1x1xf32, #tpu.memory_space<vmem>>, %arg10: memref<200x1xf32, #tpu.memory_space<vmem>>) attributes {dimension_semantics = [#tpu.dimension_semantics<parallel>], iteration_bounds = array<i64: 2>, scalar_prefetch = 0 : i64, scratch_operands = 0 : i64, tpu.core_type = #tpu.core_type<tc>, window_params = [{transform_indices = @transform_0, window_bounds = array<i64: 200, 128>}, {pipeline_mode = #tpu.pipeline_mode<synchronous>, transform_indices = @transform_1, window_bounds = array<i64: 128, 2048>}, {pipeline_mode = #tpu.pipeline_mode<synchronous>, transform_indices = @transform_2, window_bounds = array<i64: 1, 2048>}, {pipeline_mode = #tpu.pipeline_mode<synchronous>, transform_indices = @transform_3, window_bounds = array<i64: 1, 2048>}, {pipeline_mode = #tpu.pipeline_mode<synchronous>, transform_indices = @transform_4, window_bounds = array<i64: 2048, 64>}, {pipeline_mode = #tpu.pipeline_mode<synchronous>, transform_indices = @transform_5, window_bounds = array<i64: 1, 64>}, {pipeline_mode = #tpu.pipeline_mode<synchronous>, transform_indices = @transform_6, window_bounds = array<i64: 1, 64>}, {pipeline_mode = #tpu.pipeline_mode<synchronous>, transform_indices = @transform_7, window_bounds = array<i64: 1, 64>}, {pipeline_mode = #tpu.pipeline_mode<synchronous>, transform_indices = @transform_8, window_bounds = array<i64: 1, 1>}, {transform_indices = @transform_9, window_bounds = array<i64: 200, 1>}]} {
    %c0 = arith.constant 0 : index
    %c0_0 = arith.constant 0 : index
    %0 = vector.load %arg1[%c0, %c0_0] : memref<200x128xf32, #tpu.memory_space<vmem>>, vector<200x128xf32>
    %c0_1 = arith.constant 0 : index
    %c0_2 = arith.constant 0 : index
    %1 = vector.load %arg2[%c0_1, %c0_2] : memref<128x2048xf32, #tpu.memory_space<vmem>>, vector<128x2048xf32>
    %cst = arith.constant dense<0.000000e+00> : vector<200x2048xf32>
    %2 = tpu.matmul %0, %1, %cst {dimension_numbers = #tpu.dot_dimension_numbers<[1], [0], [0], [1], [0, 0, 1, 1], [], []>} : vector<200x128xf32>, vector<128x2048xf32>, vector<200x2048xf32> -> vector<200x2048xf32>
    %cst_3 = arith.constant 0.000000e+00 : f32
    %3 = vector.broadcast %cst_3 : f32 to vector<200x2048xf32>
    %4 = arith.maximumf %2, %3 : vector<200x2048xf32>
    %c0_4 = arith.constant 0 : index
    %c0_5 = arith.constant 0 : index
    %5 = vector.load %arg3[%c0_4, %c0_5] : memref<1x2048xf32, #tpu.memory_space<vmem>>, vector<1x2048xf32>
    %6 = vector.broadcast %5 : vector<1x2048xf32> to vector<200x2048xf32>
    %7 = arith.mulf %4, %6 : vector<200x2048xf32>
    %c0_6 = arith.constant 0 : index
    %c0_7 = arith.constant 0 : index
    %8 = vector.load %arg4[%c0_6, %c0_7] : memref<1x2048xf32, #tpu.memory_space<vmem>>, vector<1x2048xf32>
    %9 = vector.broadcast %8 : vector<1x2048xf32> to vector<200x2048xf32>
    %10 = arith.addf %7, %9 : vector<200x2048xf32>
    %cst_8 = arith.constant 0.000000e+00 : f32
    %11 = vector.broadcast %cst_8 : f32 to vector<200x2048xf32>
    %12 = arith.maximumf %10, %11 : vector<200x2048xf32>
    %13 = arith.truncf %12 : vector<200x2048xf32> to vector<200x2048xbf16>
    %c0_9 = arith.constant 0 : index
    %c0_10 = arith.constant 0 : index
    %14 = vector.load %arg5[%c0_9, %c0_10] : memref<2048x64xbf16, #tpu.memory_space<vmem>>, vector<2048x64xbf16>
    %cst_11 = arith.constant dense<0.000000e+00> : vector<200x64xf32>
    %15 = tpu.matmul %13, %14, %cst_11 {dimension_numbers = #tpu.dot_dimension_numbers<[1], [0], [0], [1], [0, 0, 1, 1], [], []>} : vector<200x2048xbf16>, vector<2048x64xbf16>, vector<200x64xf32> -> vector<200x64xf32>
    %c0_12 = arith.constant 0 : index
    %c0_13 = arith.constant 0 : index
    %16 = vector.load %arg6[%c0_12, %c0_13] : memref<1x64xf32, #tpu.memory_space<vmem>>, vector<1x64xf32>
    %17 = vector.broadcast %16 : vector<1x64xf32> to vector<200x64xf32>
    %18 = arith.mulf %15, %17 : vector<200x64xf32>
    %c0_14 = arith.constant 0 : index
    %c0_15 = arith.constant 0 : index
    %19 = vector.load %arg7[%c0_14, %c0_15] : memref<1x64xf32, #tpu.memory_space<vmem>>, vector<1x64xf32>
    %20 = vector.broadcast %19 : vector<1x64xf32> to vector<200x64xf32>
    %21 = arith.addf %18, %20 : vector<200x64xf32>
    %cst_16 = arith.constant 0.000000e+00 : f32
    %22 = vector.broadcast %cst_16 : f32 to vector<200x64xf32>
    %23 = arith.maximumf %21, %22 : vector<200x64xf32>
    %c0_17 = arith.constant 0 : index
    %c0_18 = arith.constant 0 : index
    %24 = vector.load %arg8[%c0_17, %c0_18] : memref<1x64xf32, #tpu.memory_space<vmem>>, vector<1x64xf32>
    %25 = vector.broadcast %24 : vector<1x64xf32> to vector<200x64xf32>
    %26 = arith.mulf %23, %25 : vector<200x64xf32>
    %cst_19 = arith.constant dense<0.000000e+00> : vector<200xf32>
    %27 = vector.multi_reduction <add>, %26, %cst_19 [1] : vector<200x64xf32> to vector<200xf32>
    %28 = vector.shape_cast %27 : vector<200xf32> to vector<200x1xf32>
    %c0_20 = arith.constant 0 : index
    %c0_21 = arith.constant 0 : index
    %29 = vector.load %arg9[%c0_20, %c0_21] : memref<1x1xf32, #tpu.memory_space<vmem>>, vector<1x1xf32>
    %30 = vector.broadcast %29 : vector<1x1xf32> to vector<200x1xf32>
    %31 = arith.addf %28, %30 : vector<200x1xf32>
    %c0_22 = arith.constant 0 : index
    %c0_23 = arith.constant 0 : index
    %32 = vector.load %arg10[%c0_22, %c0_23] : memref<200x1xf32, #tpu.memory_space<vmem>>, vector<200x1xf32>
    tpu.vector_store %arg10[%c0_22, %c0_23], %31 {strides = array<i32>} : memref<200x1xf32, #tpu.memory_space<vmem>>, vector<200x1xf32>,
    return
  }
  func.func @transform_0(%arg0: i32) -> (i32, i32) {
    %c0_i32 = arith.constant 0 : i32
    %c0_i32_0 = arith.constant 0 : i32
    return %arg0, %c0_i32 : i32, i32
  }
  func.func @transform_1(%arg0: i32) -> (i32, i32) {
    %c0_i32 = arith.constant 0 : i32
    %c0_i32_0 = arith.constant 0 : i32
    %c0_i32_1 = arith.constant 0 : i32
    return %c0_i32, %c0_i32_0 : i32, i32
  }
  func.func @transform_2(%arg0: i32) -> (i32, i32) {
    %c0_i32 = arith.constant 0 : i32
    %c0_i32_0 = arith.constant 0 : i32
    %c0_i32_1 = arith.constant 0 : i32
    return %c0_i32, %c0_i32_0 : i32, i32
  }
  func.func @transform_3(%arg0: i32) -> (i32, i32) {
    %c0_i32 = arith.constant 0 : i32
    %c0_i32_0 = arith.constant 0 : i32
    %c0_i32_1 = arith.constant 0 : i32
    return %c0_i32, %c0_i32_0 : i32, i32
  }
  func.func @transform_4(%arg0: i32) -> (i32, i32) {
    %c0_i32 = arith.constant 0 : i32
    %c0_i32_0 = arith.constant 0 : i32
    %c0_i32_1 = arith.constant 0 : i32
    return %c0_i32, %c0_i32_0 : i32, i32
  }
  func.func @transform_5(%arg0: i32) -> (i32, i32) {
    %c0_i32 = arith.constant 0 : i32
    %c0_i32_0 = arith.constant 0 : i32
    %c0_i32_1 = arith.constant 0 : i32
    return %c0_i32, %c0_i32_0 : i32, i32
  }
  func.func @transform_6(%arg0: i32) -> (i32, i32) {
    %c0_i32 = arith.constant 0 : i32
    %c0_i32_0 = arith.constant 0 : i32
    %c0_i32_1 = arith.constant 0 : i32
    return %c0_i32, %c0_i32_0 : i32, i32
  }
  func.func @transform_7(%arg0: i32) -> (i32, i32) {
    %c0_i32 = arith.constant 0 : i32
    %c0_i32_0 = arith.constant 0 : i32
    %c0_i32_1 = arith.constant 0 : i32
    return %c0_i32, %c0_i32_0 : i32, i32
  }
  func.func @transform_8(%arg0: i32) -> (i32, i32) {
    %c0_i32 = arith.constant 0 : i32
    %c0_i32_0 = arith.constant 0 : i32
    %c0_i32_1 = arith.constant 0 : i32
    return %c0_i32, %c0_i32_0 : i32, i32
  }
  func.func @transform_9(%arg0: i32) -> (i32, i32) {
    %c0_i32 = arith.constant 0 : i32
    %c0_i32_0 = arith.constant 0 : i32
    return %arg0, %c0_i32 : i32, i32
  }
}

module attributes {stable_mosaic.version = 11 : i64} {
  func.func @_upsample16_kernel(%arg0: i32, %arg1: memref<160x128xf32, #tpu.memory_space<vmem>>, %arg2: memref<128x128xf32, #tpu.memory_space<vmem>>, %arg3: memref<128x320xf32, #tpu.memory_space<vmem>>, %arg4: memref<160x320xf32, #tpu.memory_space<vmem>>) attributes {dimension_semantics = [#tpu.dimension_semantics<parallel>], iteration_bounds = array<i64: 2>, scalar_prefetch = 0 : i64, scratch_operands = 0 : i64, tpu.core_type = #tpu.core_type<tc>, window_params = [{transform_indices = @transform_0, window_bounds = array<i64: 160, 128>}, {pipeline_mode = #tpu.pipeline_mode<synchronous>, transform_indices = @transform_1, window_bounds = array<i64: 128, 128>}, {pipeline_mode = #tpu.pipeline_mode<synchronous>, transform_indices = @transform_2, window_bounds = array<i64: 128, 320>}, {transform_indices = @transform_3, window_bounds = array<i64: 160, 320>}]} {
    %c0 = arith.constant 0 : index
    %c0_0 = arith.constant 0 : index
    %0 = vector.load %arg1[%c0, %c0_0] : memref<160x128xf32, #tpu.memory_space<vmem>>, vector<160x128xf32>
    %c0_1 = arith.constant 0 : index
    %c0_2 = arith.constant 0 : index
    %1 = vector.load %arg2[%c0_1, %c0_2] : memref<128x128xf32, #tpu.memory_space<vmem>>, vector<128x128xf32>
    %cst = arith.constant dense<0.000000e+00> : vector<160x128xf32>
    %2 = tpu.matmul %0, %1, %cst {dimension_numbers = #tpu.dot_dimension_numbers<[1], [0], [0], [1], [0, 0, 1, 1], [], []>} : vector<160x128xf32>, vector<128x128xf32>, vector<160x128xf32> -> vector<160x128xf32>
    %c0_3 = arith.constant 0 : index
    %c0_4 = arith.constant 0 : index
    %3 = vector.load %arg3[%c0_3, %c0_4] : memref<128x320xf32, #tpu.memory_space<vmem>>, vector<128x320xf32>
    %cst_5 = arith.constant dense<0.000000e+00> : vector<160x320xf32>
    %4 = tpu.matmul %2, %3, %cst_5 {dimension_numbers = #tpu.dot_dimension_numbers<[1], [0], [0], [1], [0, 0, 1, 1], [], []>} : vector<160x128xf32>, vector<128x320xf32>, vector<160x320xf32> -> vector<160x320xf32>
    %c0_6 = arith.constant 0 : index
    %c0_7 = arith.constant 0 : index
    %5 = vector.load %arg4[%c0_6, %c0_7] : memref<160x320xf32, #tpu.memory_space<vmem>>, vector<160x320xf32>
    tpu.vector_store %arg4[%c0_6, %c0_7], %4 {strides = array<i32>} : memref<160x320xf32, #tpu.memory_space<vmem>>, vector<160x320xf32>,
    return
  }
  func.func @transform_0(%arg0: i32) -> (i32, i32) {
    %c0_i32 = arith.constant 0 : i32
    %c0_i32_0 = arith.constant 0 : i32
    return %arg0, %c0_i32 : i32, i32
  }
  func.func @transform_1(%arg0: i32) -> (i32, i32) {
    %c0_i32 = arith.constant 0 : i32
    %c0_i32_0 = arith.constant 0 : i32
    %c0_i32_1 = arith.constant 0 : i32
    return %c0_i32, %c0_i32_0 : i32, i32
  }
  func.func @transform_2(%arg0: i32) -> (i32, i32) {
    %c0_i32 = arith.constant 0 : i32
    %c0_i32_0 = arith.constant 0 : i32
    %c0_i32_1 = arith.constant 0 : i32
    return %c0_i32, %c0_i32_0 : i32, i32
  }
  func.func @transform_3(%arg0: i32) -> (i32, i32) {
    %c0_i32 = arith.constant 0 : i32
    %c0_i32_0 = arith.constant 0 : i32
    return %arg0, %c0_i32 : i32, i32
  }
}

</mosaic_0001>

<llo_original>
// kernel: _lambda_.2
$region0: #{_lambda_.2}
  #allocation0 [shape = 'u32[]', space=smem, size = 0x4, offset = 0x4, fixed_abs, tag = 'smem constant byte address 0x4 - core index']
  #allocation1 [shape = 'u32[144,128]{1,0:T(1,128)}', space=vmem, size = 0x12000, scoped, tag = 'internal scratch']
  #allocation2 [shape = 'f32[1,1]{1,0:T(1,128)S(1)}', space=vmem, size = 0x200, scoped, tag = 'scoped memory for _lambda_.2']
  %s0 = inlined_call_operand.vmem [shape: f32[400,128], index: 0, kind: input, shape index: {}]
  %s1 = inlined_call_operand.vmem [shape: f32[128,2048], index: 1, kind: input, shape index: {}]
  %s2 = inlined_call_operand.vmem [shape: f32[1,2048], index: 2, kind: input, shape index: {}]
  %s3 = inlined_call_operand.vmem [shape: f32[1,2048], index: 3, kind: input, shape index: {}]
  %s4 = inlined_call_operand.vmem [shape: bf16[2048,64], index: 4, kind: input, shape index: {}]
  %s5 = inlined_call_operand.vmem [shape: f32[1,64], index: 5, kind: input, shape index: {}]
  %s6 = inlined_call_operand.vmem [shape: f32[1,64], index: 6, kind: input, shape index: {}]
  %s7 = inlined_call_operand.vmem [shape: f32[1,64], index: 7, kind: input, shape index: {}]
  %s8 = inlined_call_operand.<no memory space> [shape: f32[1,1], index: 8, kind: input, shape index: {}]
  %s9 = inlined_call_operand.vmem [shape: f32[400,1], index: 9, kind: output, shape index: {}]
  %s10 = sld [smem:[#allocation0]]
  $region69: #{_lambda_.2} parent=0
    _
  %s12 = ssub.s32 1, %s10
  %s13 = scalar_select 0, %s12, %s10
  %v14 = vstv %s8
  %15 = vst [vmem:[#allocation2] sm:$0x1] %v14
  loop: start=0, step=1, limit=4
  $region2: #{_lambda_.2} parent=0 // loop_pre_header
    _
  $region3: #{_lambda_.2} parent=0 // loop_header
    %s17 = sphi 0, %s21
    %p18 = scmp.ge.s32.totalorder %s17, 4
    %s27 = sphi 0, %s29
    %s30 = sphi 0, %s27
    %s31 = sphi 0, %s30
    %s47 = sphi 0, %s31
    %s51 = sphi 0, %s51
    %s53 = sphi 0, %s51
    %s54 = sphi 0, %s53
    %s68 = sphi 0, %s54
    %s72 = sphi 0, %s72
    %s74 = sphi 0, %s72
    %s75 = sphi 0, %s74
    %s89 = sphi 0, %s75
    %s93 = sphi 0, %s93
    %s95 = sphi 0, %s93
    %s96 = sphi 0, %s95
    %s110 = sphi 0, %s96
    %s114 = sphi 0, %s114
    %s116 = sphi 0, %s114
    %s117 = sphi 0, %s116
    %s131 = sphi 0, %s117
    %s135 = sphi 0, %s135
    %s137 = sphi 0, %s135
    %s138 = sphi 0, %s137
    %s152 = sphi 0, %s138
    %s156 = sphi 0, %s156
    %s158 = sphi 0, %s156
    %s159 = sphi 0, %s158
    %s173 = sphi 0, %s159
    %s177 = sphi 0, %s177
    %s179 = sphi 0, %s177
    %s180 = sphi 0, %s179
    %s194 = sphi 0, %s180
    %s198 = sphi 0, %s198
    %s200 = sphi 0, %s198
    %s201 = sphi 0, %s200
    %s215 = sphi 0, %s201
    %s221 = sphi 0, %s223
    %s224 = sphi 0, %s221
    %s225 = sphi 0, %s224
    %s241 = sphi 0, %s225
  $region4: #{_lambda_.2} parent=0 // loop_header_branch
    %20 = sbr.rel (%p18) target = $region8
  $region5: #{_lambda_.2} parent=0 // loop_body
    %s22 = ssub.s32 %s17, 1
    %s23 = ssub.s32 %s17, 2
    %s24 = sadd.s32 %s17, 1
    %s25 = ssub.s32 %s17, %s24
    %p26 = scmp.eq.s32.totalorder %s25, 0
    %s28 = sadd.s32 %s27, 1
    %s29 = scalar_select %p26, %s27, %s28
    %p32 = pneg %p26
    %p33 = scmp.eq.s32.totalorder %s17, 1
    %p34 = por %p32, %p33
    %p35 = scmp.ne.s32.totalorder %s27, %s30
    %p36 = scmp.eq.s32.totalorder %s17, 0
    %p37 = por %p35, %p36
    %p38 = scmp.ne.s32.totalorder %s27, %s30
    %p39 = scmp.eq.s32.totalorder %s22, 1
    %p40 = por %p38, %p39
    %p41 = scmp.ne.s32.totalorder %s30, %s31
    %p42 = scmp.eq.s32.totalorder %s22, 0
    %p43 = por %p41, %p42
    %p44 = scmp.ne.s32.totalorder %s30, %s31
    %p45 = scmp.eq.s32.totalorder %s23, 1
    %p46 = por %p44, %p45
    %p48 = scmp.ne.s32.totalorder %s31, %s47
    %p49 = scmp.eq.s32.totalorder %s23, 0
    %p50 = por %p48, %p49
    %s52 = sadd.s32 %s51, 1
    %p55 = scmp.eq.s32.totalorder %s17, 1
    %p56 = scmp.ne.s32.totalorder %s51, %s53
    %p57 = scmp.eq.s32.totalorder %s17, 0
    %p58 = por %p56, %p57
    %p59 = scmp.ne.s32.totalorder %s51, %s53
    %p60 = scmp.eq.s32.totalorder %s22, 1
    %p61 = por %p59, %p60
    %p62 = scmp.ne.s32.totalorder %s53, %s54
    %p63 = scmp.eq.s32.totalorder %s22, 0
    %p64 = por %p62, %p63
    %p65 = scmp.ne.s32.totalorder %s53, %s54
    %p66 = scmp.eq.s32.totalorder %s23, 1
    %p67 = por %p65, %p66
    %p69 = scmp.ne.s32.totalorder %s54, %s68
    %p70 = scmp.eq.s32.totalorder %s23, 0
    %p71 = por %p69, %p70
    %s73 = sadd.s32 %s72, 1
    %p76 = scmp.eq.s32.totalorder %s17, 1
    %p77 = scmp.ne.s32.totalorder %s72, %s74
    %p78 = scmp.eq.s32.totalorder %s17, 0
    %p79 = por %p77, %p78
    %p80 = scmp.ne.s32.totalorder %s72, %s74
    %p81 = scmp.eq.s32.totalorder %s22, 1
    %p82 = por %p80, %p81
    %p83 = scmp.ne.s32.totalorder %s74, %s75
    %p84 = scmp.eq.s32.totalorder %s22, 0
    %p85 = por %p83, %p84
    %p86 = scmp.ne.s32.totalorder %s74, %s75
    %p87 = scmp.eq.s32.totalorder %s23, 1
    %p88 = por %p86, %p87
    %p90 = scmp.ne.s32.totalorder %s75, %s89
    %p91 = scmp.eq.s32.totalorder %s23, 0
    %p92 = por %p90, %p91
    %s94 = sadd.s32 %s93, 1
    %p97 = scmp.eq.s32.totalorder %s17, 1
    %p98 = scmp.ne.s32.totalorder %s93, %s95
    %p99 = scmp.eq.s32.totalorder %s17, 0
    %p100 = por %p98, %p99
    %p101 = scmp.ne.s32.totalorder %s93, %s95
    %p102 = scmp.eq.s32.totalorder %s22, 1
    %p103 = por %p101, %p102
    %p104 = scmp.ne.s32.totalorder %s95, %s96
    %p105 = scmp.eq.s32.totalorder %s22, 0
    %p106 = por %p104, %p105
    %p107 = scmp.ne.s32.totalorder %s95, %s96
    %p108 = scmp.eq.s32.totalorder %s23, 1
    %p109 = por %p107, %p108
    %p111 = scmp.ne.s32.totalorder %s96, %s110
    %p112 = scmp.eq.s32.totalorder %s23, 0
    %p113 = por %p111, %p112
    %s115 = sadd.s32 %s114, 1
    %p118 = scmp.eq.s32.totalorder %s17, 1
    %p119 = scmp.ne.s32.totalorder %s114, %s116
    %p120 = scmp.eq.s32.totalorder %s17, 0
    %p121 = por %p119, %p120
    %p122 = scmp.ne.s32.totalorder %s114, %s116
    %p123 = scmp.eq.s32.totalorder %s22, 1
    %p124 = por %p122, %p123
    %p125 = scmp.ne.s32.totalorder %s116, %s117
    %p126 = scmp.eq.s32.totalorder %s22, 0
    %p127 = por %p125, %p126
    %p128 = scmp.ne.s32.totalorder %s116, %s117
    %p129 = scmp.eq.s32.totalorder %s23, 1
    %p130 = por %p128, %p129
    %p132 = scmp.ne.s32.totalorder %s117, %s131
    %p133 = scmp.eq.s32.totalorder %s23, 0
    %p134 = por %p132, %p133
    %s136 = sadd.s32 %s135, 1
    %p139 = scmp.eq.s32.totalorder %s17, 1
    %p140 = scmp.ne.s32.totalorder %s135, %s137
    %p141 = scmp.eq.s32.totalorder %s17, 0
    %p142 = por %p140, %p141
    %p143 = scmp.ne.s32.totalorder %s135, %s137
    %p144 = scmp.eq.s32.totalorder %s22, 1
    %p145 = por %p143, %p144
    %p146 = scmp.ne.s32.totalorder %s137, %s138
    %p147 = scmp.eq.s32.totalorder %s22, 0
    %p148 = por %p146, %p147
    %p149 = scmp.ne.s32.totalorder %s137, %s138
    %p150 = scmp.eq.s32.totalorder %s23, 1
    %p151 = por %p149, %p150
    %p153 = scmp.ne.s32.totalorder %s138, %s152
    %p154 = scmp.eq.s32.totalorder %s23, 0
    %p155 = por %p153, %p154
    %s157 = sadd.s32 %s156, 1
    %p160 = scmp.eq.s32.totalorder %s17, 1
    %p161 = scmp.ne.s32.totalorder %s156, %s158
    %p162 = scmp.eq.s32.totalorder %s17, 0
    %p163 = por %p161, %p162
    %p164 = scmp.ne.s32.totalorder %s156, %s158
    %p165 = scmp.eq.s32.totalorder %s22, 1
    %p166 = por %p164, %p165
    %p167 = scmp.ne.s32.totalorder %s158, %s159
    %p168 = scmp.eq.s32.totalorder %s22, 0
    %p169 = por %p167, %p168
    %p170 = scmp.ne.s32.totalorder %s158, %s159
    %p171 = scmp.eq.s32.totalorder %s23, 1
    %p172 = por %p170, %p171
    %p174 = scmp.ne.s32.totalorder %s159, %s173
    %p175 = scmp.eq.s32.totalorder %s23, 0
    %p176 = por %p174, %p175
    %s178 = sadd.s32 %s177, 1
    %p181 = scmp.eq.s32.totalorder %s17, 1
    %p182 = scmp.ne.s32.totalorder %s177, %s179
    %p183 = scmp.eq.s32.totalorder %s17, 0
    %p184 = por %p182, %p183
    %p185 = scmp.ne.s32.totalorder %s177, %s179
    %p186 = scmp.eq.s32.totalorder %s22, 1
    %p187 = por %p185, %p186
    %p188 = scmp.ne.s32.totalorder %s179, %s180
    %p189 = scmp.eq.s32.totalorder %s22, 0
    %p190 = por %p188, %p189
    %p191 = scmp.ne.s32.totalorder %s179, %s180
    %p192 = scmp.eq.s32.totalorder %s23, 1
    %p193 = por %p191, %p192
    %p195 = scmp.ne.s32.totalorder %s180, %s194
    %p196 = scmp.eq.s32.totalorder %s23, 0
    %p197 = por %p195, %p196
    %s199 = sadd.s32 %s198, 1
    %p202 = scmp.eq.s32.totalorder %s17, 1
    %p203 = scmp.ne.s32.totalorder %s198, %s200
    %p204 = scmp.eq.s32.totalorder %s17, 0
    %p205 = por %p203, %p204
    %p206 = scmp.ne.s32.totalorder %s198, %s200
    %p207 = scmp.eq.s32.totalorder %s22, 1
    %p208 = por %p206, %p207
    %p209 = scmp.ne.s32.totalorder %s200, %s201
    %p210 = scmp.eq.s32.totalorder %s22, 0
    %p211 = por %p209, %p210
    %p212 = scmp.ne.s32.totalorder %s200, %s201
    %p213 = scmp.eq.s32.totalorder %s23, 1
    %p214 = por %p212, %p213
    %p216 = scmp.ne.s32.totalorder %s201, %s215
    %p217 = scmp.eq.s32.totalorder %s23, 0
    %p218 = por %p216, %p217
    %s219 = ssub.s32 %s17, %s24
    %p220 = scmp.eq.s32.totalorder %s219, 0
    %s222 = sadd.s32 %s221, 1
    %s223 = scalar_select %p220, %s221, %s222
    %p226 = pneg %p220
    %p227 = scmp.eq.s32.totalorder %s17, 1
    %p228 = por %p226, %p227
    %p229 = scmp.ne.s32.totalorder %s221, %s224
    %p230 = scmp.eq.s32.totalorder %s17, 0
    %p231 = por %p229, %p230
    %p232 = scmp.ne.s32.totalorder %s221, %s224
    %p233 = scmp.eq.s32.totalorder %s22, 1
    %p234 = por %p232, %p233
    %p235 = scmp.ne.s32.totalorder %s224, %s225
    %p236 = scmp.eq.s32.totalorder %s22, 0
    %p237 = por %p235, %p236
    %p238 = scmp.ne.s32.totalorder %s224, %s225
    %p239 = scmp.eq.s32.totalorder %s23, 1
    %p240 = por %p238, %p239
    %p242 = scmp.ne.s32.totalorder %s225, %s241
    %p243 = scmp.eq.s32.totalorder %s23, 0
    %p244 = por %p242, %p243
    %p245 = scmp.le.s32.totalorder 1, %s17
    %p246 = scmp.lt.s32.totalorder %s17, 3
    %p247 = pnand %p245, %p246
    %p248 = pneg %p247
    // Predicated region
    $region9: #{_lambda_.2} parent=5 // pred_check
      _
    $region10: #{_lambda_.2} parent=5 // pred_check_branch
      %250 = sbr.rel (%p247) target = $region12
    $region11: #{_lambda_.2} parent=5 // pred_region
      %s251 = ssub.s32 %s17, 1
      // Predicated region
      $region13: #{_lambda_.2} parent=11 // pred_check
        %p252 = pneg %p64
      $region14: #{_lambda_.2} parent=11 // pred_check_branch
        %254 = sbr.rel (%p252) target = $region16
      $region15: #{_lambda_.2} parent=11 // pred_region
        _
      $region16: #{_lambda_.2} parent=11 // pred_fallthru
        _
      // Predicated region
      $region17: #{_lambda_.2} parent=11 // pred_check
        %p255 = pneg %p85
      $region18: #{_lambda_.2} parent=11 // pred_check_branch
        %257 = sbr.rel (%p255) target = $region20
      $region19: #{_lambda_.2} parent=11 // pred_region
        _
      $region20: #{_lambda_.2} parent=11 // pred_fallthru
        _
      // Predicated region
      $region21: #{_lambda_.2} parent=11 // pred_check
        %p258 = pneg %p106
      $region22: #{_lambda_.2} parent=11 // pred_check_branch
        %260 = sbr.rel (%p258) target = $region24
      $region23: #{_lambda_.2} parent=11 // pred_region
        _
      $region24: #{_lambda_.2} parent=11 // pred_fallthru
        _
      // Predicated region
      $region25: #{_lambda_.2} parent=11 // pred_check
        %p261 = pneg %p127
      $region26: #{_lambda_.2} parent=11 // pred_check_branch
        %263 = sbr.rel (%p261) target = $region28
      $region27: #{_lambda_.2} parent=11 // pred_region
        _
      $region28: #{_lambda_.2} parent=11 // pred_fallthru
        _
      // Predicated region
      $region29: #{_lambda_.2} parent=11 // pred_check
        %p264 = pneg %p148
      $region30: #{_lambda_.2} parent=11 // pred_check_branch
        %266 = sbr.rel (%p264) target = $region32
      $region31: #{_lambda_.2} parent=11 // pred_region
        _
      $region32: #{_lambda_.2} parent=11 // pred_fallthru
        _
      // Predicated region
      $region33: #{_lambda_.2} parent=11 // pred_check
        %p267 = pneg %p169
      $region34: #{_lambda_.2} parent=11 // pred_check_branch
        %269 = sbr.rel (%p267) target = $region36
      $region35: #{_lambda_.2} parent=11 // pred_region
        _
      $region36: #{_lambda_.2} parent=11 // pred_fallthru
        _
      // Predicated region
      $region37: #{_lambda_.2} parent=11 // pred_check
        %p270 = pneg %p190
      $region38: #{_lambda_.2} parent=11 // pred_check_branch
        %272 = sbr.rel (%p270) target = $region40
      $region39: #{_lambda_.2} parent=11 // pred_region
        _
      $region40: #{_lambda_.2} parent=11 // pred_fallthru
        _
      // Predicated region
      $region41: #{_lambda_.2} parent=11 // pred_check
        %p273 = pneg %p211
      $region42: #{_lambda_.2} parent=11 // pred_check_branch
        %275 = sbr.rel (%p273) target = $region44
      $region43: #{_lambda_.2} parent=11 // pred_region
        _
      $region44: #{_lambda_.2} parent=11 // pred_fallthru
        _
    $region12: #{_lambda_.2} parent=5 // pred_fallthru
      _
    %p276 = scmp.lt.s32.totalorder %s17, 2
    // Predicated region
    $region45: #{_lambda_.2} parent=5 // pred_check
      %p277 = pneg %p276
    $region46: #{_lambda_.2} parent=5 // pred_check_branch
      %279 = sbr.rel (%p277) target = $region48
    $region47: #{_lambda_.2} parent=5 // pred_region
      // Predicated region
      $region49: #{_lambda_.2} parent=47 // pred_check
        %p280 = pneg %p37
      $region50: #{_lambda_.2} parent=47 // pred_check_branch
        %282 = sbr.rel (%p280) target = $region52
      $region51: #{_lambda_.2} parent=47 // pred_region
        %s283 = smul.u32 25, %s17
        %p284 = scmp.lt.s32.totalorder %s283, 49
        %s285 = scalar_select %p284, %s283, 49
        %s286 = smul.addr %s285, 8
        %s287 = scalar_lea.vmem %s0, %s286
        %s288 = smul.u32 25, %s17
      $region52: #{_lambda_.2} parent=47 // pred_fallthru
        _
    $region48: #{_lambda_.2} parent=5 // pred_fallthru
      _
    %p289 = scmp.le.s32.totalorder 1, %s17
    %p290 = scmp.lt.s32.totalorder %s17, 3
    %p291 = pnand %p289, %p290
    %p292 = pneg %p291
    // Predicated region
    $region53: #{_lambda_.2} parent=5 // pred_check
      _
    $region54: #{_lambda_.2} parent=5 // pred_check_branch
      %294 = sbr.rel (%p291) target = $region56
    $region55: #{_lambda_.2} parent=5 // pred_region
      %s295 = ssub.s32 %s17, 1
      %s296 = smul.u32 25, %s22
      %p297 = scmp.lt.s32.totalorder %s296, 49
      %s298 = scalar_select %p297, %s296, 49
      %s299 = smul.addr %s298, 8
      %s300 = scalar_lea.vmem %s0, %s299
      %p301 = pneg %p43
      %p302 = pneg %p40
      %p303 = pneg %p64
      %p304 = pneg %p61
      %p305 = pneg %p85
      %p306 = pneg %p82
      %p307 = pneg %p106
      %p308 = pneg %p103
      %p309 = pneg %p127
      %p310 = pneg %p124
      %p311 = pneg %p148
      %p312 = pneg %p145
      %p313 = pneg %p169
      %p314 = pneg %p166
      %p315 = pneg %p190
      %p316 = pneg %p187
      %p317 = pneg %p211
      %p318 = pneg %p208
      %p319 = pneg %p237
      %p320 = pneg %p234
      %s321 = smul.u32 25, %s22
      %p322 = scmp.lt.s32.totalorder %s321, 49
      %s323 = scalar_select %p322, %s321, 49
      %s324 = smul.addr %s323, 8
      %s325 = scalar_lea.vmem %s9, %s324
      %s326 = smul.u32 25, %s22
      %p327 = scmp.lt.s32.totalorder %s326, 49
      %s328 = scalar_select %p327, %s326, 49
      %s329 = smul.addr %s328, 8
      %s330 = scalar_lea.vmem %s0, %s329
      %s331 = smul.u32 25, %s22
      %s332 = smul.u32 25, %s22
      %p333 = scmp.lt.s32.totalorder %s332, 49
      %s334 = scalar_select %p333, %s332, 49
      %s335 = smul.addr %s334, 8
      %s336 = scalar_lea.vmem %s9, %s335
      %s337 = smul.u32 25, %s22
      %v339 = vld [vmem:[%s330] sm:$0xff]
      %v340 = vld [vmem:[%s330 + $0x8] sm:$0xff]
      %v341 = vld [vmem:[%s330 + $0x10] sm:$0xff]
      %v342 = vld [vmem:[%s330 + $0x18] sm:$0xff]
      %v343 = vld [vmem:[%s330 + $0x20] sm:$0xff]
      %v344 = vld [vmem:[%s330 + $0x28] sm:$0xff]
      %v345 = vld [vmem:[%s330 + $0x30] sm:$0xff]
      %v346 = vld [vmem:[%s330 + $0x38] sm:$0xff]
      %v347 = vld [vmem:[%s330 + $0x40] sm:$0xff]
      %v348 = vld [vmem:[%s330 + $0x48] sm:$0xff]
      %v349 = vld [vmem:[%s330 + $0x50] sm:$0xff]
      %v350 = vld [vmem:[%s330 + $0x58] sm:$0xff]
      %v351 = vld [vmem:[%s330 + $0x60] sm:$0xff]
      %v352 = vld [vmem:[%s330 + $0x68] sm:$0xff]
      %v353 = vld [vmem:[%s330 + $0x70] sm:$0xff]
      %v354 = vld [vmem:[%s330 + $0x78] sm:$0xff]
      %v355 = vld [vmem:[%s330 + $0x80] sm:$0xff]
      %v356 = vld [vmem:[%s330 + $0x88] sm:$0xff]
      %v357 = vld [vmem:[%s330 + $0x90] sm:$0xff]
      %v358 = vld [vmem:[%s330 + $0x98] sm:$0xff]
      %v359 = vld [vmem:[%s330 + $0xa0] sm:$0xff]
      %v360 = vld [vmem:[%s330 + $0xa8] sm:$0xff]
      %v361 = vld [vmem:[%s330 + $0xb0] sm:$0xff]
      %v362 = vld [vmem:[%s330 + $0xb8] sm:$0xff]
      %v363 = vld [vmem:[%s330 + $0xc0] sm:$0xff]
      %v364 = vld [vmem:[%s1] sm:$0xff]
      %v365 = vld [vmem:[%s1 + $0x8] sm:$0xff]
      %v366 = vld [vmem:[%s1 + $0x10] sm:$0xff]
      %v367 = vld [vmem:[%s1 + $0x18] sm:$0xff]
      %v368 = vld [vmem:[%s1 + $0x20] sm:$0xff]
      %v369 = vld [vmem:[%s1 + $0x28] sm:$0xff]
      %v370 = vld [vmem:[%s1 + $0x30] sm:$0xff]
      %v371 = vld [vmem:[%s1 + $0x38] sm:$0xff]
      %v372 = vld [vmem:[%s1 + $0x40] sm:$0xff]
      %v373 = vld [vmem:[%s1 + $0x48] sm:$0xff]
      %v374 = vld [vmem:[%s1 + $0x50] sm:$0xff]
      %v375 = vld [vmem:[%s1 + $0x58] sm:$0xff]
      %v376 = vld [vmem:[%s1 + $0x60] sm:$0xff]
      %v377 = vld [vmem:[%s1 + $0x68] sm:$0xff]
      %v378 = vld [vmem:[%s1 + $0x70] sm:$0xff]
      %v379 = vld [vmem:[%s1 + $0x78] sm:$0xff]
      %v380 = vld [vmem:[%s1 + $0x80] sm:$0xff]
      %v381 = vld [vmem:[%s1 + $0x88] sm:$0xff]
      %v382 = vld [vmem:[%s1 + $0x90] sm:$0xff]
      %v383 = vld [vmem:[%s1 + $0x98] sm:$0xff]
      %v384 = vld [vmem:[%s1 + $0xa0] sm:$0xff]
      %v385 = vld [vmem:[%s1 + $0xa8] sm:$0xff]
      %v386 = vld [vmem:[%s1 + $0xb0] sm:$0xff]
      %v387 = vld [vmem:[%s1 + $0xb8] sm:$0xff]
      %v388 = vld [vmem:[%s1 + $0xc0] sm:$0xff]
      %v389 = vld [vmem:[%s1 + $0xc8] sm:$0xff]
      %v390 = vld [vmem:[%s1 + $0xd0] sm:$0xff]
      %v391 = vld [vmem:[%s1 + $0xd8] sm:$0xff]
      %v392 = vld [vmem:[%s1 + $0xe0] sm:$0xff]
      %v393 = vld [vmem:[%s1 + $0xe8] sm:$0xff]
      %v394 = vld [vmem:[%s1 + $0xf0] sm:$0xff]
      %v395 = vld [vmem:[%s1 + $0xf8] sm:$0xff]
      %v396 = vld [vmem:[%s1 + $0x100] sm:$0xff]
      %v397 = vld [vmem:[%s1 + $0x108] sm:$0xff]
      %v398 = vld [vmem:[%s1 + $0x110] sm:$0xff]
      %v399 = vld [vmem:[%s1 + $0x118] sm:$0xff]
      %v400 = vld [vmem:[%s1 + $0x120] sm:$0xff]
      %v401 = vld [vmem:[%s1 + $0x128] sm:$0xff]
      %v402 = vld [vmem:[%s1 + $0x130] sm:$0xff]
      %v403 = vld [vmem:[%s1 + $0x138] sm:$0xff]
      %v404 = vld [vmem:[%s1 + $0x140] sm:$0xff]
      %v405 = vld [vmem:[%s1 + $0x148] sm:$0xff]
      %v406 = vld [vmem:[%s1 + $0x150] sm:$0xff]
      %v407 = vld [vmem:[%s1 + $0x158] sm:$0xff]
      %v408 = vld [vmem:[%s1 + $0x160] sm:$0xff]
      %v409 = vld [vmem:[%s1 + $0x168] sm:$0xff]
      %v410 = vld [vmem:[%s1 + $0x170] sm:$0xff]
      %v411 = vld [vmem:[%s1 + $0x178] sm:$0xff]
      %v412 = vld [vmem:[%s1 + $0x180] sm:$0xff]
      %v413 = vld [vmem:[%s1 + $0x188] sm:$0xff]
      %v414 = vld [vmem:[%s1 + $0x190] sm:$0xff]
      %v415 = vld [vmem:[%s1 + $0x198] sm:$0xff]
      %v416 = vld [vmem:[%s1 + $0x1a0] sm:$0xff]
      %v417 = vld [vmem:[%s1 + $0x1a8] sm:$0xff]
      %v418 = vld [vmem:[%s1 + $0x1b0] sm:$0xff]
      %v419 = vld [vmem:[%s1 + $0x1b8] sm:$0xff]
      %v420 = vld [vmem:[%s1 + $0x1c0] sm:$0xff]
      %v421 = vld [vmem:[%s1 + $0x1c8] sm:$0xff]
      %v422 = vld [vmem:[%s1 + $0x1d0] sm:$0xff]
      %v423 = vld [vmem:[%s1 + $0x1d8] sm:$0xff]
      %v424 = vld [vmem:[%s1 + $0x1e0] sm:$0xff]
      %v425 = vld [vmem:[%s1 + $0x1e8] sm:$0xff]
      %v426 = vld [vmem:[%s1 + $0x1f0] sm:$0xff]
      %v427 = vld [vmem:[%s1 + $0x1f8] sm:$0xff]
      %v428 = vld [vmem:[%s1 + $0x200] sm:$0xff]
      %v429 = vld [vmem:[%s1 + $0x208] sm:$0xff]
      %v430 = vld [vmem:[%s1 + $0x210] sm:$0xff]
      %v431 = vld [vmem:[%s1 + $0x218] sm:$0xff]
      %v432 = vld [vmem:[%s1 + $0x220] sm:$0xff]
      %v433 = vld [vmem:[%s1 + $0x228] sm:$0xff]
      %v434 = vld [vmem:[%s1 + $0x230] sm:$0xff]
      %v435 = vld [vmem:[%s1 + $0x238] sm:$0xff]
      %v436 = vld [vmem:[%s1 + $0x240] sm:$0xff]
      %v437 = vld [vmem:[%s1 + $0x248] sm:$0xff]
      %v438 = vld [vmem:[%s1 + $0x250] sm:$0xff]
      %v439 = vld [vmem:[%s1 + $0x258] sm:$0xff]
      %v440 = vld [vmem:[%s1 + $0x260] sm:$0xff]
      %v441 = vld [vmem:[%s1 + $0x268] sm:$0xff]
      %v442 = vld [vmem:[%s1 + $0x270] sm:$0xff]
      %v443 = vld [vmem:[%s1 + $0x278] sm:$0xff]
      %v444 = vld [vmem:[%s1 + $0x280] sm:$0xff]
      %v445 = vld [vmem:[%s1 + $0x288] sm:$0xff]
      %v446 = vld [vmem:[%s1 + $0x290] sm:$0xff]
      %v447 = vld [vmem:[%s1 + $0x298] sm:$0xff]
      %v448 = vld [vmem:[%s1 + $0x2a0] sm:$0xff]
      %v449 = vld [vmem:[%s1 + $0x2a8] sm:$0xff]
      %v450 = vld [vmem:[%s1 + $0x2b0] sm:$0xff]
      %v451 = vld [vmem:[%s1 + $0x2b8] sm:$0xff]
      %v452 = vld [vmem:[%s1 + $0x2c0] sm:$0xff]
      %v453 = vld [vmem:[%s1 + $0x2c8] sm:$0xff]
      %v454 = vld [vmem:[%s1 + $0x2d0] sm:$0xff]
      %v455 = vld [vmem:[%s1 + $0x2d8] sm:$0xff]
      %v456 = vld [vmem:[%s1 + $0x2e0] sm:$0xff]
      %v457 = vld [vmem:[%s1 + $0x2e8] sm:$0xff]
      %v458 = vld [vmem:[%s1 + $0x2f0] sm:$0xff]
      %v459 = vld [vmem:[%s1 + $0x2f8] sm:$0xff]
      %v460 = vld [vmem:[%s1 + $0x300] sm:$0xff]
      %v461 = vld [vmem:[%s1 + $0x308] sm:$0xff]
      %v462 = vld [vmem:[%s1 + $0x310] sm:$0xff]
      %v463 = vld [vmem:[%s1 + $0x318] sm:$0xff]
      %v464 = vld [vmem:[%s1 + $0x320] sm:$0xff]
      %v465 = vld [vmem:[%s1 + $0x328] sm:$0xff]
      %v466 = vld [vmem:[%s1 + $0x330] sm:$0xff]
      %v467 = vld [vmem:[%s1 + $0x338] sm:$0xff]
      %v468 = vld [vmem:[%s1 + $0x340] sm:$0xff]
      %v469 = vld [vmem:[%s1 + $0x348] sm:$0xff]
      %v470 = vld [vmem:[%s1 + $0x350] sm:$0xff]
      %v471 = vld [vmem:[%s1 + $0x358] sm:$0xff]
      %v472 = vld [vmem:[%s1 + $0x360] sm:$0xff]
      %v473 = vld [vmem:[%s1 + $0x368] sm:$0xff]
      %v474 = vld [vmem:[%s1 + $0x370] sm:$0xff]
      %v475 = vld [vmem:[%s1 + $0x378] sm:$0xff]
      %v476 = vld [vmem:[%s1 + $0x380] sm:$0xff]
      %v477 = vld [vmem:[%s1 + $0x388] sm:$0xff]
      %v478 = vld [vmem:[%s1 + $0x390] sm:$0xff]
      %v479 = vld [vmem:[%s1 + $0x398] sm:$0xff]
      %v480 = vld [vmem:[%s1 + $0x3a0] sm:$0xff]
      %v481 = vld [vmem:[%s1 + $0x3a8] sm:$0xff]
      %v482 = vld [vmem:[%s1 + $0x3b0] sm:$0xff]
      %v483 = vld [vmem:[%s1 + $0x3b8] sm:$0xff]
      %v484 = vld [vmem:[%s1 + $0x3c0] sm:$0xff]
      %v485 = vld [vmem:[%s1 + $0x3c8] sm:$0xff]
      %v486 = vld [vmem:[%s1 + $0x3d0] sm:$0xff]
      %v487 = vld [vmem:[%s1 + $0x3d8] sm:$0xff]
      %v488 = vld [vmem:[%s1 + $0x3e0] sm:$0xff]
      %v489 = vld [vmem:[%s1 + $0x3e8] sm:$0xff]
      %v490 = vld [vmem:[%s1 + $0x3f0] sm:$0xff]
      %v491 = vld [vmem:[%s1 + $0x3f8] sm:$0xff]
      %v492 = vld [vmem:[%s1 + $0x400] sm:$0xff]
      %v493 = vld [vmem:[%s1 + $0x408] sm:$0xff]
      %v494 = vld [vmem:[%s1 + $0x410] sm:$0xff]
      %v495 = vld [vmem:[%s1 + $0x418] sm:$0xff]
      %v496 = vld [vmem:[%s1 + $0x420] sm:$0xff]
      %v497 = vld [vmem:[%s1 + $0x428] sm:$0xff]
      %v498 = vld [vmem:[%s1 + $0x430] sm:$0xff]
      %v499 = vld [vmem:[%s1 + $0x438] sm:$0xff]
      %v500 = vld [vmem:[%s1 + $0x440] sm:$0xff]
      %v501 = vld [vmem:[%s1 + $0x448] sm:$0xff]
      %v502 = vld [vmem:[%s1 + $0x450] sm:$0xff]
      %v503 = vld [vmem:[%s1 + $0x458] sm:$0xff]
      %v504 = vld [vmem:[%s1 + $0x460] sm:$0xff]
      %v505 = vld [vmem:[%s1 + $0x468] sm:$0xff]
      %v506 = vld [vmem:[%s1 + $0x470] sm:$0xff]
      %v507 = vld [vmem:[%s1 + $0x478] sm:$0xff]
      %v508 = vld [vmem:[%s1 + $0x480] sm:$0xff]
      %v509 = vld [vmem:[%s1 + $0x488] sm:$0xff]
      %v510 = vld [vmem:[%s1 + $0x490] sm:$0xff]
      %v511 = vld [vmem:[%s1 + $0x498] sm:$0xff]
      %v512 = vld [vmem:[%s1 + $0x4a0] sm:$0xff]
      %v513 = vld [vmem:[%s1 + $0x4a8] sm:$0xff]
      %v514 = vld [vmem:[%s1 + $0x4b0] sm:$0xff]
      %v515 = vld [vmem:[%s1 + $0x4b8] sm:$0xff]
      %v516 = vld [vmem:[%s1 + $0x4c0] sm:$0xff]
      %v517 = vld [vmem:[%s1 + $0x4c8] sm:$0xff]
      %v518 = vld [vmem:[%s1 + $0x4d0] sm:$0xff]
      %v519 = vld [vmem:[%s1 + $0x4d8] sm:$0xff]
      %v520 = vld [vmem:[%s1 + $0x4e0] sm:$0xff]
      %v521 = vld [vmem:[%s1 + $0x4e8] sm:$0xff]
      %v522 = vld [vmem:[%s1 + $0x4f0] sm:$0xff]
      %v523 = vld [vmem:[%s1 + $0x4f8] sm:$0xff]
      %v524 = vld [vmem:[%s1 + $0x500] sm:$0xff]
      %v525 = vld [vmem:[%s1 + $0x508] sm:$0xff]
      %v526 = vld [vmem:[%s1 + $0x510] sm:$0xff]
      %v527 = vld [vmem:[%s1 + $0x518] sm:$0xff]
      %v528 = vld [vmem:[%s1 + $0x520] sm:$0xff]
      %v529 = vld [vmem:[%s1 + $0x528] sm:$0xff]
      %v530 = vld [vmem:[%s1 + $0x530] sm:$0xff]
      %v531 = vld [vmem:[%s1 + $0x538] sm:$0xff]
      %v532 = vld [vmem:[%s1 + $0x540] sm:$0xff]
      %v533 = vld [vmem:[%s1 + $0x548] sm:$0xff]
      %v534 = vld [vmem:[%s1 + $0x550] sm:$0xff]
      %v535 = vld [vmem:[%s1 + $0x558] sm:$0xff]
      %v536 = vld [vmem:[%s1 + $0x560] sm:$0xff]
      %v537 = vld [vmem:[%s1 + $0x568] sm:$0xff]
      %v538 = vld [vmem:[%s1 + $0x570] sm:$0xff]
      %v539 = vld [vmem:[%s1 + $0x578] sm:$0xff]
      %v540 = vld [vmem:[%s1 + $0x580] sm:$0xff]
      %v541 = vld [vmem:[%s1 + $0x588] sm:$0xff]
      %v542 = vld [vmem:[%s1 + $0x590] sm:$0xff]
      %v543 = vld [vmem:[%s1 + $0x598] sm:$0xff]
      %v544 = vld [vmem:[%s1 + $0x5a0] sm:$0xff]
      %v545 = vld [vmem:[%s1 + $0x5a8] sm:$0xff]
      %v546 = vld [vmem:[%s1 + $0x5b0] sm:$0xff]
      %v547 = vld [vmem:[%s1 + $0x5b8] sm:$0xff]
      %v548 = vld [vmem:[%s1 + $0x5c0] sm:$0xff]
      %v549 = vld [vmem:[%s1 + $0x5c8] sm:$0xff]
      %v550 = vld [vmem:[%s1 + $0x5d0] sm:$0xff]
      %v551 = vld [vmem:[%s1 + $0x5d8] sm:$0xff]
      %v552 = vld [vmem:[%s1 + $0x5e0] sm:$0xff]
      %v553 = vld [vmem:[%s1 + $0x5e8] sm:$0xff]
      %v554 = vld [vmem:[%s1 + $0x5f0] sm:$0xff]
      %v555 = vld [vmem:[%s1 + $0x5f8] sm:$0xff]
      %v556 = vld [vmem:[%s1 + $0x600] sm:$0xff]
      %v557 = vld [vmem:[%s1 + $0x608] sm:$0xff]
      %v558 = vld [vmem:[%s1 + $0x610] sm:$0xff]
      %v559 = vld [vmem:[%s1 + $0x618] sm:$0xff]
      %v560 = vld [vmem:[%s1 + $0x620] sm:$0xff]
      %v561 = vld [vmem:[%s1 + $0x628] sm:$0xff]
      %v562 = vld [vmem:[%s1 + $0x630] sm:$0xff]
      %v563 = vld [vmem:[%s1 + $0x638] sm:$0xff]
      %v564 = vld [vmem:[%s1 + $0x640] sm:$0xff]
      %v565 = vld [vmem:[%s1 + $0x648] sm:$0xff]
      %v566 = vld [vmem:[%s1 + $0x650] sm:$0xff]
      %v567 = vld [vmem:[%s1 + $0x658] sm:$0xff]
      %v568 = vld [vmem:[%s1 + $0x660] sm:$0xff]
      %v569 = vld [vmem:[%s1 + $0x668] sm:$0xff]
      %v570 = vld [vmem:[%s1 + $0x670] sm:$0xff]
      %v571 = vld [vmem:[%s1 + $0x678] sm:$0xff]
      %v572 = vld [vmem:[%s1 + $0x680] sm:$0xff]
      %v573 = vld [vmem:[%s1 + $0x688] sm:$0xff]
      %v574 = vld [vmem:[%s1 + $0x690] sm:$0xff]
      %v575 = vld [vmem:[%s1 + $0x698] sm:$0xff]
      %v576 = vld [vmem:[%s1 + $0x6a0] sm:$0xff]
      %v577 = vld [vmem:[%s1 + $0x6a8] sm:$0xff]
      %v578 = vld [vmem:[%s1 + $0x6b0] sm:$0xff]
      %v579 = vld [vmem:[%s1 + $0x6b8] sm:$0xff]
      %v580 = vld [vmem:[%s1 + $0x6c0] sm:$0xff]
      %v581 = vld [vmem:[%s1 + $0x6c8] sm:$0xff]
      %v582 = vld [vmem:[%s1 + $0x6d0] sm:$0xff]
      %v583 = vld [vmem:[%s1 + $0x6d8] sm:$0xff]
      %v584 = vld [vmem:[%s1 + $0x6e0] sm:$0xff]
      %v585 = vld [vmem:[%s1 + $0x6e8] sm:$0xff]
      %v586 = vld [vmem:[%s1 + $0x6f0] sm:$0xff]
      %v587 = vld [vmem:[%s1 + $0x6f8] sm:$0xff]
      %v588 = vld [vmem:[%s1 + $0x700] sm:$0xff]
      %v589 = vld [vmem:[%s1 + $0x708] sm:$0xff]
      %v590 = vld [vmem:[%s1 + $0x710] sm:$0xff]
      %v591 = vld [vmem:[%s1 + $0x718] sm:$0xff]
      %v592 = vld [vmem:[%s1 + $0x720] sm:$0xff]
      %v593 = vld [vmem:[%s1 + $0x728] sm:$0xff]
      %v594 = vld [vmem:[%s1 + $0x730] sm:$0xff]
      %v595 = vld [vmem:[%s1 + $0x738] sm:$0xff]
      %v596 = vld [vmem:[%s1 + $0x740] sm:$0xff]
      %v597 = vld [vmem:[%s1 + $0x748] sm:$0xff]
      %v598 = vld [vmem:[%s1 + $0x750] sm:$0xff]
      %v599 = vld [vmem:[%s1 + $0x758] sm:$0xff]
      %v600 = vld [vmem:[%s1 + $0x760] sm:$0xff]
      %v601 = vld [vmem:[%s1 + $0x768] sm:$0xff]
      %v602 = vld [vmem:[%s1 + $0x770] sm:$0xff]
      %v603 = vld [vmem:[%s1 + $0x778] sm:$0xff]
      %v604 = vld [vmem:[%s1 + $0x780] sm:$0xff]
      %v605 = vld [vmem:[%s1 + $0x788] sm:$0xff]
      %v606 = vld [vmem:[%s1 + $0x790] sm:$0xff]
      %v607 = vld [vmem:[%s1 + $0x798] sm:$0xff]
      %v608 = vld [vmem:[%s1 + $0x7a0] sm:$0xff]
      %v609 = vld [vmem:[%s1 + $0x7a8] sm:$0xff]
      %v610 = vld [vmem:[%s1 + $0x7b0] sm:$0xff]
      %v611 = vld [vmem:[%s1 + $0x7b8] sm:$0xff]
      %v612 = vld [vmem:[%s1 + $0x7c0] sm:$0xff]
      %v613 = vld [vmem:[%s1 + $0x7c8] sm:$0xff]
      %v614 = vld [vmem:[%s1 + $0x7d0] sm:$0xff]
      %v615 = vld [vmem:[%s1 + $0x7d8] sm:$0xff]
      %v616 = vld [vmem:[%s1 + $0x7e0] sm:$0xff]
      %v617 = vld [vmem:[%s1 + $0x7e8] sm:$0xff]
      %v618 = vld [vmem:[%s1 + $0x7f0] sm:$0xff]
      %v619 = vld [vmem:[%s1 + $0x7f8] sm:$0xff]
      %620 = vmatprep.subr.mxu0 %v365
      %621 = vmatpush1.msra.mxu0 %v364
      %622 = vmatprep.subr.mxu0 %v381
      %623 = vmatpush1.msra.mxu0 %v380
      %624 = vmatprep.subr.mxu0 %v397
      %625 = vmatpush1.msra.mxu0 %v396
      %626 = vmatprep.subr.mxu0 %v413
      %627 = vmatpush1.msra.mxu0 %v412
      %628 = vmatprep.subr.mxu0 %v429
      %629 = vmatpush1.msra.mxu0 %v428
      %630 = vmatprep.subr.mxu0 %v445
      %631 = vmatpush1.msra.mxu0 %v444
      %632 = vmatprep.subr.mxu0 %v461
      %633 = vmatpush1.msra.mxu0 %v460
      %634 = vmatprep.subr.mxu0 %v477
      %635 = vmatpush1.msra.mxu0 %v476
      %636 = vmatprep.subr.mxu0 %v493
      %637 = vmatpush1.msra.mxu0 %v492
      %638 = vmatprep.subr.mxu0 %v509
      %639 = vmatpush1.msra.mxu0 %v508
      %640 = vmatprep.subr.mxu0 %v525
      %641 = vmatpush1.msra.mxu0 %v524
      %642 = vmatprep.subr.mxu0 %v541
      %643 = vmatpush1.msra.mxu0 %v540
      %644 = vmatprep.subr.mxu0 %v557
      %645 = vmatpush1.msra.mxu0 %v556
      %646 = vmatprep.subr.mxu0 %v573
      %647 = vmatpush1.msra.mxu0 %v572
      %648 = vmatprep.subr.mxu0 %v589
      %649 = vmatpush1.msra.mxu0 %v588
      %650 = vmatprep.subr.mxu0 %v605
      %651 = vmatpush1.msra.mxu0 %v604
      %652 = vmatprep.subr.mxu0 0.0
      %653 = vmatpush1.msra.mxu0 0.0
      %654 = vmatprep.subr.mxu0 0.0
      %655 = vmatpush1.msra.mxu0 0.0
      %656 = vmatprep.subr.mxu0 0.0
      %657 = vmatpush1.msra.mxu0 0.0
      %658 = vmatprep.subr.mxu0 0.0
      %659 = vmatpush1.msra.mxu0 0.0
      %660 = vmatprep.subr.mxu0 0.0
      %661 = vmatpush1.msra.mxu0 0.0
      %662 = vmatprep.subr.mxu0 0.0
      %663 = vmatpush1.msra.mxu0 0.0
      %664 = vmatprep.subr.mxu0 0.0
      %665 = vmatpush1.msra.mxu0 0.0
      %666 = vmatprep.subr.mxu0 0.0
      %667 = vmatpush1.msra.mxu0 0.0
      %668 = vmatprep.subr.mxu0 0.0
      %669 = vmatpush1.msra.mxu0 0.0
      %670 = vmatprep.subr.mxu0 0.0
      %671 = vmatpush1.msra.mxu0 0.0
      %672 = vmatprep.subr.mxu0 0.0
      %673 = vmatpush1.msra.mxu0 0.0
      %674 = vmatprep.subr.mxu0 0.0
      %675 = vmatpush1.msra.mxu0 0.0
      %676 = vmatprep.subr.mxu0 0.0
      %677 = vmatpush1.msra.mxu0 0.0
      %678 = vmatprep.subr.mxu0 0.0
      %679 = vmatpush1.msra.mxu0 0.0
      %680 = vmatprep.subr.mxu0 0.0
      %681 = vmatpush1.msra.mxu0 0.0
      %682 = vmatprep.subr.mxu0 0.0
      %683 = vmatpush1.msra.mxu0 0.0
      %684 = vmatprep.mubr.f32.mxu0 0.0
      %685 = vmatmul.mubr.f32.gmra.mrb[0].mxu0 %v339
      %v686 = vpop.f32.mrb[0].mxu0
      %v687 = vadd.f32 0.0, %v686
      %v688 = vpop.f32.mrb[0].mxu0
      %v689 = vadd.f32 0.0, %v688
      %690 = vmatprep.mubr.f32.mxu0 0.0
      %691 = vmatmul.mubr.f32.gmra.mrb[0].mxu0 %v340
      %v692 = vpop.f32.mrb[0].mxu0
      %v693 = vadd.f32 0.0, %v692
      %v694 = vpop.f32.mrb[0].mxu0
      %v695 = vadd.f32 0.0, %v694
      %696 = vmatprep.mubr.f32.mxu0 0.0
      %697 = vmatmul.mubr.f32.gmra.mrb[0].mxu0 %v341
      %v698 = vpop.f32.mrb[0].mxu0
      %v699 = vadd.f32 0.0, %v698
      %v700 = vpop.f32.mrb[0].mxu0
      %v701 = vadd.f32 0.0, %v700
      %702 = vmatprep.mubr.f32.mxu0 0.0
      %703 = vmatmul.mubr.f32.gmra.mrb[0].mxu0 %v342
      %v704 = vpop.f32.mrb[0].mxu0
      %v705 = vadd.f32 0.0, %v704
      %v706 = vpop.f32.mrb[0].mxu0
      %v707 = vadd.f32 0.0, %v706
      %708 = vmatprep.mubr.f32.mxu0 0.0
      %709 = vmatmul.mubr.f32.gmra.mrb[0].mxu0 %v343
      %v710 = vpop.f32.mrb[0].mxu0
      %v711 = vadd.f32 0.0, %v710
      %v712 = vpop.f32.mrb[0].mxu0
      %v713 = vadd.f32 0.0, %v712
      %714 = vmatprep.mubr.f32.mxu0 0.0
      %715 = vmatmul.mubr.f32.gmra.mrb[0].mxu0 %v344
      %v716 = vpop.f32.mrb[0].mxu0
      %v717 = vadd.f32 0.0, %v716
      %v718 = vpop.f32.mrb[0].mxu0
      %v719 = vadd.f32 0.0, %v718
      %720 = vmatprep.mubr.f32.mxu0 0.0
      %721 = vmatmul.mubr.f32.gmra.mrb[0].mxu0 %v345
      %v722 = vpop.f32.mrb[0].mxu0
      %v723 = vadd.f32 0.0, %v722
      %v724 = vpop.f32.mrb[0].mxu0
      %v725 = vadd.f32 0.0, %v724
      %726 = vmatprep.mubr.f32.mxu0 0.0
      %727 = vmatmul.mubr.f32.gmra.mrb[0].mxu0 %v346
      %v728 = vpop.f32.mrb[0].mxu0
      %v729 = vadd.f32 0.0, %v728
      %v730 = vpop.f32.mrb[0].mxu0
      %v731 = vadd.f32 0.0, %v730
      %732 = vmatprep.mubr.f32.mxu0 0.0
      %733 = vmatmul.mubr.f32.gmra.mrb[0].mxu0 %v347
      %v734 = vpop.f32.mrb[0].mxu0
      %v735 = vadd.f32 0.0, %v734
      %v736 = vpop.f32.mrb[0].mxu0
      %v737 = vadd.f32 0.0, %v736
      %738 = vmatprep.mubr.f32.mxu0 0.0
      %739 = vmatmul.mubr.f32.gmra.mrb[0].mxu0 %v348
      %v740 = vpop.f32.mrb[0].mxu0
      %v741 = vadd.f32 0.0, %v740
      %v742 = vpop.f32.mrb[0].mxu0
      %v743 = vadd.f32 0.0, %v742
      %744 = vmatprep.mubr.f32.mxu0 0.0
      %745 = vmatmul.mubr.f32.gmra.mrb[0].mxu0 %v349
      %v746 = vpop.f32.mrb[0].mxu0
      %v747 = vadd.f32 0.0, %v746
      %v748 = vpop.f32.mrb[0].mxu0
      %v749 = vadd.f32 0.0, %v748
      %750 = vmatprep.mubr.f32.mxu0 0.0
      %751 = vmatmul.mubr.f32.gmra.mrb[0].mxu0 %v350
      %v752 = vpop.f32.mrb[0].mxu0
      %v753 = vadd.f32 0.0, %v752
      %v754 = vpop.f32.mrb[0].mxu0
      %v755 = vadd.f32 0.0, %v754
      %756 = vmatprep.mubr.f32.mxu0 0.0
      %757 = vmatmul.mubr.f32.gmra.mrb[0].mxu0 %v351
      %v758 = vpop.f32.mrb[0].mxu0
      %v759 = vadd.f32 0.0, %v758
      %v760 = vpop.f32.mrb[0].mxu0
      %v761 = vadd.f32 0.0, %v760
      %762 = vmatprep.mubr.f32.mxu0 0.0
      %763 = vmatmul.mubr.f32.gmra.mrb[0].mxu0 %v352
      %v764 = vpop.f32.mrb[0].mxu0
      %v765 = vadd.f32 0.0, %v764
      %v766 = vpop.f32.mrb[0].mxu0
      %v767 = vadd.f32 0.0, %v766
      %768 = vmatprep.mubr.f32.mxu0 0.0
      %769 = vmatmul.mubr.f32.gmra.mrb[0].mxu0 %v353
      %v770 = vpop.f32.mrb[0].mxu0
      %v771 = vadd.f32 0.0, %v770
      %v772 = vpop.f32.mrb[0].mxu0
      %v773 = vadd.f32 0.0, %v772
      %774 = vmatprep.mubr.f32.mxu0 0.0
      %775 = vmatmul.mubr.f32.gmra.mrb[0].mxu0 %v354
      %v776 = vpop.f32.mrb[0].mxu0
      %v777 = vadd.f32 0.0, %v776
      %v778 = vpop.f32.mrb[0].mxu0
      %v779 = vadd.f32 0.0, %v778
      %780 = vmatprep.mubr.f32.mxu0 0.0
      %781 = vmatmul.mubr.f32.gmra.mrb[0].mxu0 %v355
      %v782 = vpop.f32.mrb[0].mxu0
      %v783 = vadd.f32 0.0, %v782
      %v784 = vpop.f32.mrb[0].mxu0
      %v785 = vadd.f32 0.0, %v784
      %786 = vmatprep.mubr.f32.mxu0 0.0
      %787 = vmatmul.mubr.f32.gmra.mrb[0].mxu0 %v356
      %v788 = vpop.f32.mrb[0].mxu0
      %v789 = vadd.f32 0.0, %v788
      %v790 = vpop.f32.mrb[0].mxu0
      %v791 = vadd.f32 0.0, %v790
      %792 = vmatprep.mubr.f32.mxu0 0.0
      %793 = vmatmul.mubr.f32.gmra.mrb[0].mxu0 %v357
      %v794 = vpop.f32.mrb[0].mxu0
      %v795 = vadd.f32 0.0, %v794
      %v796 = vpop.f32.mrb[0].mxu0
      %v797 = vadd.f32 0.0, %v796
      %798 = vmatprep.mubr.f32.mxu0 0.0
      %799 = vmatmul.mubr.f32.gmra.mrb[0].mxu0 %v358
      %v800 = vpop.f32.mrb[0].mxu0
      %v801 = vadd.f32 0.0, %v800
      %v802 = vpop.f32.mrb[0].mxu0
      %v803 = vadd.f32 0.0, %v802
      %804 = vmatprep.mubr.f32.mxu0 0.0
      %805 = vmatmul.mubr.f32.gmra.mrb[0].mxu0 %v359
      %v806 = vpop.f32.mrb[0].mxu0
      %v807 = vadd.f32 0.0, %v806
      %v808 = vpop.f32.mrb[0].mxu0
      %v809 = vadd.f32 0.0, %v808
      %810 = vmatprep.mubr.f32.mxu0 0.0
      %811 = vmatmul.mubr.f32.gmra.mrb[0].mxu0 %v360
      %v812 = vpop.f32.mrb[0].mxu0
      %v813 = vadd.f32 0.0, %v812
      %v814 = vpop.f32.mrb[0].mxu0
      %v815 = vadd.f32 0.0, %v814
      %816 = vmatprep.mubr.f32.mxu0 0.0
      %817 = vmatmul.mubr.f32.gmra.mrb[0].mxu0 %v361
      %v818 = vpop.f32.mrb[0].mxu0
      %v819 = vadd.f32 0.0, %v818
      %v820 = vpop.f32.mrb[0].mxu0
      %v821 = vadd.f32 0.0, %v820
      %822 = vmatprep.mubr.f32.mxu0 0.0
      %823 = vmatmul.mubr.f32.gmra.mrb[0].mxu0 %v362
      %v824 = vpop.f32.mrb[0].mxu0
      %v825 = vadd.f32 0.0, %v824
      %v826 = vpop.f32.mrb[0].mxu0
      %v827 = vadd.f32 0.0, %v826
      %828 = vmatprep.mubr.f32.mxu0 0.0
      %829 = vmatmul.mubr.f32.gmra.mrb[0].mxu0 %v363
      %v830 = vpop.f32.mrb[0].mxu0
      %v831 = vadd.f32 0.0, %v830
      %v832 = vpop.f32.mrb[0].mxu0
      %v833 = vadd.f32 0.0, %v832
      %834 = vdwg.mxu0
      %835 = vmatprep.subr.mxu0 %v367
      %836 = vmatpush1.msra.mxu0 %v366
      %837 = vmatprep.subr.mxu0 %v383
      %838 = vmatpush1.msra.mxu0 %v382
      %839 = vmatprep.subr.mxu0 %v399
      %840 = vmatpush1.msra.mxu0 %v398
      %841 = vmatprep.subr.mxu0 %v415
      %842 = vmatpush1.msra.mxu0 %v414
      %843 = vmatprep.subr.mxu0 %v431
      %844 = vmatpush1.msra.mxu0 %v430
      %845 = vmatprep.subr.mxu0 %v447
      %846 = vmatpush1.msra.mxu0 %v446
      %847 = vmatprep.subr.mxu0 %v463
      %848 = vmatpush1.msra.mxu0 %v462
      %849 = vmatprep.subr.mxu0 %v479
      %850 = vmatpush1.msra.mxu0 %v478
      %851 = vmatprep.subr.mxu0 %v495
      %852 = vmatpush1.msra.mxu0 %v494
      %853 = vmatprep.subr.mxu0 %v511
      %854 = vmatpush1.msra.mxu0 %v510
      %855 = vmatprep.subr.mxu0 %v527
      %856 = vmatpush1.msra.mxu0 %v526
      %857 = vmatprep.subr.mxu0 %v543
      %858 = vmatpush1.msra.mxu0 %v542
      %859 = vmatprep.subr.mxu0 %v559
      %860 = vmatpush1.msra.mxu0 %v558
      %861 = vmatprep.subr.mxu0 %v575
      %862 = vmatpush1.msra.mxu0 %v574
      %863 = vmatprep.subr.mxu0 %v591
      %864 = vmatpush1.msra.mxu0 %v590
      %865 = vmatprep.subr.mxu0 %v607
      %866 = vmatpush1.msra.mxu0 %v606
      %867 = vmatprep.subr.mxu0 0.0
      %868 = vmatpush1.msra.mxu0 0.0
      %869 = vmatprep.subr.mxu0 0.0
      %870 = vmatpush1.msra.mxu0 0.0
      %871 = vmatprep.subr.mxu0 0.0
      %872 = vmatpush1.msra.mxu0 0.0
      %873 = vmatprep.subr.mxu0 0.0
      %874 = vmatpush1.msra.mxu0 0.0
      %875 = vmatprep.subr.mxu0 0.0
      %876 = vmatpush1.msra.mxu0 0.0
      %877 = vmatprep.subr.mxu0 0.0
      %878 = vmatpush1.msra.mxu0 0.0
      %879 = vmatprep.subr.mxu0 0.0
      %880 = vmatpush1.msra.mxu0 0.0
      %881 = vmatprep.subr.mxu0 0.0
      %882 = vmatpush1.msra.mxu0 0.0
      %883 = vmatprep.subr.mxu0 0.0
      %884 = vmatpush1.msra.mxu0 0.0
      %885 = vmatprep.subr.mxu0 0.0
      %886 = vmatpush1.msra.mxu0 0.0
      %887 = vmatprep.subr.mxu0 0.0
      %888 = vmatpush1.msra.mxu0 0.0
      %889 = vmatprep.subr.mxu0 0.0
      %890 = vmatpush1.msra.mxu0 0.0
      %891 = vmatprep.subr.mxu0 0.0
      %892 = vmatpush1.msra.mxu0 0.0
      %893 = vmatprep.subr.mxu0 0.0
      %894 = vmatpush1.msra.mxu0 0.0
      %895 = vmatprep.subr.mxu0 0.0
      %896 = vmatpush1.msra.mxu0 0.0
      %897 = vmatprep.subr.mxu0 0.0
      %898 = vmatpush1.msra.mxu0 0.0
      %899 = vmatprep.mubr.f32.mxu0 0.0
      %900 = vmatmul.mubr.f32.gmra.mrb[0].mxu0 %v339
      %v901 = vpop.f32.mrb[0].mxu0
      %v902 = vadd.f32 0.0, %v901
      %v903 = vpop.f32.mrb[0].mxu0
      %v904 = vadd.f32 0.0, %v903
      %905 = vmatprep.mubr.f32.mxu0 0.0
      %906 = vmatmul.mubr.f32.gmra.mrb[0].mxu0 %v340
      %v907 = vpop.f32.mrb[0].mxu0
      %v908 = vadd.f32 0.0, %v907
      %v909 = vpop.f32.mrb[0].mxu0
      %v910 = vadd.f32 0.0, %v909
      %911 = vmatprep.mubr.f32.mxu0 0.0
      %912 = vmatmul.mubr.f32.gmra.mrb[0].mxu0 %v341
      %v913 = vpop.f32.mrb[0].mxu0
      %v914 = vadd.f32 0.0, %v913
      %v915 = vpop.f32.mrb[0].mxu0
      %v916 = vadd.f32 0.0, %v915
      %917 = vmatprep.mubr.f32.mxu0 0.0
      %918 = vmatmul.mubr.f32.gmra.mrb[0].mxu0 %v342
      %v919 = vpop.f32.mrb[0].mxu0
      %v920 = vadd.f32 0.0, %v919
      %v921 = vpop.f32.mrb[0].mxu0
      %v922 = vadd.f32 0.0, %v921
      %923 = vmatprep.mubr.f32.mxu0 0.0
      %924 = vmatmul.mubr.f32.gmra.mrb[0].mxu0 %v343
      %v925 = vpop.f32.mrb[0].mxu0
      %v926 = vadd.f32 0.0, %v925
      %v927 = vpop.f32.mrb[0].mxu0
      %v928 = vadd.f32 0.0, %v927
      %929 = vmatprep.mubr.f32.mxu0 0.0
      %930 = vmatmul.mubr.f32.gmra.mrb[0].mxu0 %v344
      %v931 = vpop.f32.mrb[0].mxu0
      %v932 = vadd.f32 0.0, %v931
      %v933 = vpop.f32.mrb[0].mxu0
      %v934 = vadd.f32 0.0, %v933
      %935 = vmatprep.mubr.f32.mxu0 0.0
      %936 = vmatmul.mubr.f32.gmra.mrb[0].mxu0 %v345
      %v937 = vpop.f32.mrb[0].mxu0
      %v938 = vadd.f32 0.0, %v937
      %v939 = vpop.f32.mrb[0].mxu0
      %v940 = vadd.f32 0.0, %v939
      %941 = vmatprep.mubr.f32.mxu0 0.0
      %942 = vmatmul.mubr.f32.gmra.mrb[0].mxu0 %v346
      %v943 = vpop.f32.mrb[0].mxu0
      %v944 = vadd.f32 0.0, %v943
      %v945 = vpop.f32.mrb[0].mxu0
      %v946 = vadd.f32 0.0, %v945
      %947 = vmatprep.mubr.f32.mxu0 0.0
      %948 = vmatmul.mubr.f32.gmra.mrb[0].mxu0 %v347
      %v949 = vpop.f32.mrb[0].mxu0
      %v950 = vadd.f32 0.0, %v949
      %v951 = vpop.f32.mrb[0].mxu0
      %v952 = vadd.f32 0.0, %v951
      %953 = vmatprep.mubr.f32.mxu0 0.0
      %954 = vmatmul.mubr.f32.gmra.mrb[0].mxu0 %v348
      %v955 = vpop.f32.mrb[0].mxu0
      %v956 = vadd.f32 0.0, %v955
      %v957 = vpop.f32.mrb[0].mxu0
      %v958 = vadd.f32 0.0, %v957
      %959 = vmatprep.mubr.f32.mxu0 0.0
      %960 = vmatmul.mubr.f32.gmra.mrb[0].mxu0 %v349
      %v961 = vpop.f32.mrb[0].mxu0
      %v962 = vadd.f32 0.0, %v961
      %v963 = vpop.f32.mrb[0].mxu0
      %v964 = vadd.f32 0.0, %v963
      %965 = vmatprep.mubr.f32.mxu0 0.0
      %966 = vmatmul.mubr.f32.gmra.mrb[0].mxu0 %v350
      %v967 = vpop.f32.mrb[0].mxu0
      %v968 = vadd.f32 0.0, %v967
      %v969 = vpop.f32.mrb[0].mxu0
      %v970 = vadd.f32 0.0, %v969
      %971 = vmatprep.mubr.f32.mxu0 0.0
      %972 = vmatmul.mubr.f32.gmra.mrb[0].mxu0 %v351
      %v973 = vpop.f32.mrb[0].mxu0
      %v974 = vadd.f32 0.0, %v973
      %v975 = vpop.f32.mrb[0].mxu0
      %v976 = vadd.f32 0.0, %v975
      %977 = vmatprep.mubr.f32.mxu0 0.0
      %978 = vmatmul.mubr.f32.gmra.mrb[0].mxu0 %v352
      %v979 = vpop.f32.mrb[0].mxu0
      %v980 = vadd.f32 0.0, %v979
      %v981 = vpop.f32.mrb[0].mxu0
      %v982 = vadd.f32 0.0, %v981
      %983 = vmatprep.mubr.f32.mxu0 0.0
      %984 = vmatmul.mubr.f32.gmra.mrb[0].mxu0 %v353
      %v985 = vpop.f32.mrb[0].mxu0
      %v986 = vadd.f32 0.0, %v985
      %v987 = vpop.f32.mrb[0].mxu0
      %v988 = vadd.f32 0.0, %v987
      %989 = vmatprep.mubr.f32.mxu0 0.0
      %990 = vmatmul.mubr.f32.gmra.mrb[0].mxu0 %v354
      %v991 = vpop.f32.mrb[0].mxu0
      %v992 = vadd.f32 0.0, %v991
      %v993 = vpop.f32.mrb[0].mxu0
      %v994 = vadd.f32 0.0, %v993
      %995 = vmatprep.mubr.f32.mxu0 0.0
      %996 = vmatmul.mubr.f32.gmra.mrb[0].mxu0 %v355
      %v997 = vpop.f32.mrb[0].mxu0
      %v998 = vadd.f32 0.0, %v997
      %v999 = vpop.f32.mrb[0].mxu0
      %v1000 = vadd.f32 0.0, %v999
      %1001 = vmatprep.mubr.f32.mxu0 0.0
      %1002 = vmatmul.mubr.f32.gmra.mrb[0].mxu0 %v356
      %v1003 = vpop.f32.mrb[0].mxu0
      %v1004 = vadd.f32 0.0, %v1003
      %v1005 = vpop.f32.mrb[0].mxu0
      %v1006 = vadd.f32 0.0, %v1005
      %1007 = vmatprep.mubr.f32.mxu0 0.0
      %1008 = vmatmul.mubr.f32.gmra.mrb[0].mxu0 %v357
      %v1009 = vpop.f32.mrb[0].mxu0
      %v1010 = vadd.f32 0.0, %v1009
      %v1011 = vpop.f32.mrb[0].mxu0
      %v1012 = vadd.f32 0.0, %v1011
      %1013 = vmatprep.mubr.f32.mxu0 0.0
      %1014 = vmatmul.mubr.f32.gmra.mrb[0].mxu0 %v358
      %v1015 = vpop.f32.mrb[0].mxu0
      %v1016 = vadd.f32 0.0, %v1015
      %v1017 = vpop.f32.mrb[0].mxu0
      %v1018 = vadd.f32 0.0, %v1017
      %1019 = vmatprep.mubr.f32.mxu0 0.0
      %1020 = vmatmul.mubr.f32.gmra.mrb[0].mxu0 %v359
      %v1021 = vpop.f32.mrb[0].mxu0
      %v1022 = vadd.f32 0.0, %v1021
      %v1023 = vpop.f32.mrb[0].mxu0
      %v1024 = vadd.f32 0.0, %v1023
      %1025 = vmatprep.mubr.f32.mxu0 0.0
      %1026 = vmatmul.mubr.f32.gmra.mrb[0].mxu0 %v360
      %v1027 = vpop.f32.mrb[0].mxu0
      %v1028 = vadd.f32 0.0, %v1027
      %v1029 = vpop.f32.mrb[0].mxu0
      %v1030 = vadd.f32 0.0, %v1029
      %1031 = vmatprep.mubr.f32.mxu0 0.0
      %1032 = vmatmul.mubr.f32.gmra.mrb[0].mxu0 %v361
      %v1033 = vpop.f32.mrb[0].mxu0
      %v1034 = vadd.f32 0.0, %v1033
      %v1035 = vpop.f32.mrb[0].mxu0
      %v1036 = vadd.f32 0.0, %v1035
      %1037 = vmatprep.mubr.f32.mxu0 0.0
      %1038 = vmatmul.mubr.f32.gmra.mrb[0].mxu0 %v362
      %v1039 = vpop.f32.mrb[0].mxu0
      %v1040 = vadd.f32 0.0, %v1039
      %v1041 = vpop.f32.mrb[0].mxu0
      %v1042 = vadd.f32 0.0, %v1041
      %1043 = vmatprep.mubr.f32.mxu0 0.0
      %1044 = vmatmul.mubr.f32.gmra.mrb[0].mxu0 %v363
      %v1045 = vpop.f32.mrb[0].mxu0
      %v1046 = vadd.f32 0.0, %v1045
      %v1047 = vpop.f32.mrb[0].mxu0
      %v1048 = vadd.f32 0.0, %v1047
      %1049 = vdwg.mxu0
      %1050 = vmatprep.subr.mxu0 %v369
      %1051 = vmatpush1.msra.mxu0 %v368
      %1052 = vmatprep.subr.mxu0 %v385
      %1053 = vmatpush1.msra.mxu0 %v384
      %1054 = vmatprep.subr.mxu0 %v401
      %1055 = vmatpush1.msra.mxu0 %v400
      %1056 = vmatprep.subr.mxu0 %v417
      %1057 = vmatpush1.msra.mxu0 %v416
      %1058 = vmatprep.subr.mxu0 %v433
      %1059 = vmatpush1.msra.mxu0 %v432
      %1060 = vmatprep.subr.mxu0 %v449
      %1061 = vmatpush1.msra.mxu0 %v448
      %1062 = vmatprep.subr.mxu0 %v465
      %1063 = vmatpush1.msra.mxu0 %v464
      %1064 = vmatprep.subr.mxu0 %v481
      %1065 = vmatpush1.msra.mxu0 %v480
      %1066 = vmatprep.subr.mxu0 %v497
      %1067 = vmatpush1.msra.mxu0 %v496
      %1068 = vmatprep.subr.mxu0 %v513
      %1069 = vmatpush1.msra.mxu0 %v512
      %1070 = vmatprep.subr.mxu0 %v529
      %1071 = vmatpush1.msra.mxu0 %v528
      %1072 = vmatprep.subr.mxu0 %v545
      %1073 = vmatpush1.msra.mxu0 %v544
      %1074 = vmatprep.subr.mxu0 %v561
      %1075 = vmatpush1.msra.mxu0 %v560
      %1076 = vmatprep.subr.mxu0 %v577
      %1077 = vmatpush1.msra.mxu0 %v576
      %1078 = vmatprep.subr.mxu0 %v593
      %1079 = vmatpush1.msra.mxu0 %v592
      %1080 = vmatprep.subr.mxu0 %v609
      %1081 = vmatpush1.msra.mxu0 %v608
      %1082 = vmatprep.subr.mxu0 0.0
      %1083 = vmatpush1.msra.mxu0 0.0
      %1084 = vmatprep.subr.mxu0 0.0
      %1085 = vmatpush1.msra.mxu0 0.0
      %1086 = vmatprep.subr.mxu0 0.0
      %1087 = vmatpush1.msra.mxu0 0.0
      %1088 = vmatprep.subr.mxu0 0.0
      %1089 = vmatpush1.msra.mxu0 0.0
      %1090 = vmatprep.subr.mxu0 0.0
      %1091 = vmatpush1.msra.mxu0 0.0
      %1092 = vmatprep.subr.mxu0 0.0
      %1093 = vmatpush1.msra.mxu0 0.0
      %1094 = vmatprep.subr.mxu0 0.0
      %1095 = vmatpush1.msra.mxu0 0.0
      %1096 = vmatprep.subr.mxu0 0.0
      %1097 = vmatpush1.msra.mxu0 0.0
      %1098 = vmatprep.subr.mxu0 0.0
      %1099 = vmatpush1.msra.mxu0 0.0
      %1100 = vmatprep.subr.mxu0 0.0
      %1101 = vmatpush1.msra.mxu0 0.0
      %1102 = vmatprep.subr.mxu0 0.0
      %1103 = vmatpush1.msra.mxu0 0.0
      %1104 = vmatprep.subr.mxu0 0.0
      %1105 = vmatpush1.msra.mxu0 0.0
      %1106 = vmatprep.subr.mxu0 0.0
      %1107 = vmatpush1.msra.mxu0 0.0
      %1108 = vmatprep.subr.mxu0 0.0
      %1109 = vmatpush1.msra.mxu0 0.0
      %1110 = vmatprep.subr.mxu0 0.0
      %1111 = vmatpush1.msra.mxu0 0.0
      %1112 = vmatprep.subr.mxu0 0.0
      %1113 = vmatpush1.msra.mxu0 0.0
      %1114 = vmatprep.mubr.f32.mxu0 0.0
      %1115 = vmatmul.mubr.f32.gmra.mrb[0].mxu0 %v339
      %v1116 = vpop.f32.mrb[0].mxu0
      %v1117 = vadd.f32 0.0, %v1116
      %v1118 = vpop.f32.mrb[0].mxu0
      %v1119 = vadd.f32 0.0, %v1118
      %1120 = vmatprep.mubr.f32.mxu0 0.0
      %1121 = vmatmul.mubr.f32.gmra.mrb[0].mxu0 %v340
      %v1122 = vpop.f32.mrb[0].mxu0
      %v1123 = vadd.f32 0.0, %v1122
      %v1124 = vpop.f32.mrb[0].mxu0
      %v1125 = vadd.f32 0.0, %v1124
      %1126 = vmatprep.mubr.f32.mxu0 0.0
      %1127 = vmatmul.mubr.f32.gmra.mrb[0].mxu0 %v341
      %v1128 = vpop.f32.mrb[0].mxu0
      %v1129 = vadd.f32 0.0, %v1128
      %v1130 = vpop.f32.mrb[0].mxu0
      %v1131 = vadd.f32 0.0, %v1130
      %1132 = vmatprep.mubr.f32.mxu0 0.0
      %1133 = vmatmul.mubr.f32.gmra.mrb[0].mxu0 %v342
      %v1134 = vpop.f32.mrb[0].mxu0
      %v1135 = vadd.f32 0.0, %v1134
      %v1136 = vpop.f32.mrb[0].mxu0
      %v1137 = vadd.f32 0.0, %v1136
      %1138 = vmatprep.mubr.f32.mxu0 0.0
      %1139 = vmatmul.mubr.f32.gmra.mrb[0].mxu0 %v343
      %v1140 = vpop.f32.mrb[0].mxu0
      %v1141 = vadd.f32 0.0, %v1140
      %v1142 = vpop.f32.mrb[0].mxu0
      %v1143 = vadd.f32 0.0, %v1142
      %1144 = vmatprep.mubr.f32.mxu0 0.0
      %1145 = vmatmul.mubr.f32.gmra.mrb[0].mxu0 %v344
      %v1146 = vpop.f32.mrb[0].mxu0
      %v1147 = vadd.f32 0.0, %v1146
      %v1148 = vpop.f32.mrb[0].mxu0
      %v1149 = vadd.f32 0.0, %v1148
      %1150 = vmatprep.mubr.f32.mxu0 0.0
      %1151 = vmatmul.mubr.f32.gmra.mrb[0].mxu0 %v345
      %v1152 = vpop.f32.mrb[0].mxu0
      %v1153 = vadd.f32 0.0, %v1152
      %v1154 = vpop.f32.mrb[0].mxu0
      %v1155 = vadd.f32 0.0, %v1154
      %1156 = vmatprep.mubr.f32.mxu0 0.0
      %1157 = vmatmul.mubr.f32.gmra.mrb[0].mxu0 %v346
      %v1158 = vpop.f32.mrb[0].mxu0
      %v1159 = vadd.f32 0.0, %v1158
      %v1160 = vpop.f32.mrb[0].mxu0
      %v1161 = vadd.f32 0.0, %v1160
      %1162 = vmatprep.mubr.f32.mxu0 0.0
      %1163 = vmatmul.mubr.f32.gmra.mrb[0].mxu0 %v347
      %v1164 = vpop.f32.mrb[0].mxu0
      %v1165 = vadd.f32 0.0, %v1164
      %v1166 = vpop.f32.mrb[0].mxu0
      %v1167 = vadd.f32 0.0, %v1166
      %1168 = vmatprep.mubr.f32.mxu0 0.0
      %1169 = vmatmul.mubr.f32.gmra.mrb[0].mxu0 %v348
      %v1170 = vpop.f32.mrb[0].mxu0
      %v1171 = vadd.f32 0.0, %v1170
      %v1172 = vpop.f32.mrb[0].mxu0
      %v1173 = vadd.f32 0.0, %v1172
      %1174 = vmatprep.mubr.f32.mxu0 0.0
      %1175 = vmatmul.mubr.f32.gmra.mrb[0].mxu0 %v349
      %v1176 = vpop.f32.mrb[0].mxu0
      %v1177 = vadd.f32 0.0, %v1176
      %v1178 = vpop.f32.mrb[0].mxu0
      %v1179 = vadd.f32 0.0, %v1178
      %1180 = vmatprep.mubr.f32.mxu0 0.0
      %1181 = vmatmul.mubr.f32.gmra.mrb[0].mxu0 %v350
      %v1182 = vpop.f32.mrb[0].mxu0
      %v1183 = vadd.f32 0.0, %v1182
      %v1184 = vpop.f32.mrb[0].mxu0
      %v1185 = vadd.f32 0.0, %v1184
      %1186 = vmatprep.mubr.f32.mxu0 0.0
      %1187 = vmatmul.mubr.f32.gmra.mrb[0].mxu0 %v351
      %v1188 = vpop.f32.mrb[0].mxu0
      %v1189 = vadd.f32 0.0, %v1188
      %v1190 = vpop.f32.mrb[0].mxu0
      %v1191 = vadd.f32 0.0, %v1190
      %1192 = vmatprep.mubr.f32.mxu0 0.0
      %1193 = vmatmul.mubr.f32.gmra.mrb[0].mxu0 %v352
      %v1194 = vpop.f32.mrb[0].mxu0
      %v1195 = vadd.f32 0.0, %v1194
      %v1196 = vpop.f32.mrb[0].mxu0
      %v1197 = vadd.f32 0.0, %v1196
      %1198 = vmatprep.mubr.f32.mxu0 0.0
      %1199 = vmatmul.mubr.f32.gmra.mrb[0].mxu0 %v353
      %v1200 = vpop.f32.mrb[0].mxu0
      %v1201 = vadd.f32 0.0, %v1200
      %v1202 = vpop.f32.mrb[0].mxu0
      %v1203 = vadd.f32 0.0, %v1202
      %1204 = vmatprep.mubr.f32.mxu0 0.0
      %1205 = vmatmul.mubr.f32.gmra.mrb[0].mxu0 %v354
      %v1206 = vpop.f32.mrb[0].mxu0
      %v1207 = vadd.f32 0.0, %v1206
      %v1208 = vpop.f32.mrb[0].mxu0
      %v1209 = vadd.f32 0.0, %v1208
      %1210 = vmatprep.mubr.f32.mxu0 0.0
      %1211 = vmatmul.mubr.f32.gmra.mrb[0].mxu0 %v355
      %v1212 = vpop.f32.mrb[0].mxu0
      %v1213 = vadd.f32 0.0, %v1212
      %v1214 = vpop.f32.mrb[0].mxu0
      %v1215 = vadd.f32 0.0, %v1214
      %1216 = vmatprep.mubr.f32.mxu0 0.0
      %1217 = vmatmul.mubr.f32.gmra.mrb[0].mxu0 %v356
      %v1218 = vpop.f32.mrb[0].mxu0
      %v1219 = vadd.f32 0.0, %v1218
      %v1220 = vpop.f32.mrb[0].mxu0
      %v1221 = vadd.f32 0.0, %v1220
      %1222 = vmatprep.mubr.f32.mxu0 0.0
      %1223 = vmatmul.mubr.f32.gmra.mrb[0].mxu0 %v357
      %v1224 = vpop.f32.mrb[0].mxu0
      %v1225 = vadd.f32 0.0, %v1224
      %v1226 = vpop.f32.mrb[0].mxu0
      %v1227 = vadd.f32 0.0, %v1226
      %1228 = vmatprep.mubr.f32.mxu0 0.0
      %1229 = vmatmul.mubr.f32.gmra.mrb[0].mxu0 %v358
      %v1230 = vpop.f32.mrb[0].mxu0
      %v1231 = vadd.f32 0.0, %v1230
      %v1232 = vpop.f32.mrb[0].mxu0
      %v1233 = vadd.f32 0.0, %v1232
      %1234 = vmatprep.mubr.f32.mxu0 0.0
      %1235 = vmatmul.mubr.f32.gmra.mrb[0].mxu0 %v359
      %v1236 = vpop.f32.mrb[0].mxu0
      %v1237 = vadd.f32 0.0, %v1236
      %v1238 = vpop.f32.mrb[0].mxu0
      %v1239 = vadd.f32 0.0, %v1238
      %1240 = vmatprep.mubr.f32.mxu0 0.0
      %1241 = vmatmul.mubr.f32.gmra.mrb[0].mxu0 %v360
      %v1242 = vpop.f32.mrb[0].mxu0
      %v1243 = vadd.f32 0.0, %v1242
      %v1244 = vpop.f32.mrb[0].mxu0
      %v1245 = vadd.f32 0.0, %v1244
      %1246 = vmatprep.mubr.f32.mxu0 0.0
      %1247 = vmatmul.mubr.f32.gmra.mrb[0].mxu0 %v361
      %v1248 = vpop.f32.mrb[0].mxu0
      %v1249 = vadd.f32 0.0, %v1248
      %v1250 = vpop.f32.mrb[0].mxu0
      %v1251 = vadd.f32 0.0, %v1250
      %1252 = vmatprep.mubr.f32.mxu0 0.0
      %1253 = vmatmul.mubr.f32.gmra.mrb[0].mxu0 %v362
      %v1254 = vpop.f32.mrb[0].mxu0
      %v1255 = vadd.f32 0.0, %v1254
      %v1256 = vpop.f32.mrb[0].mxu0
      %v1257 = vadd.f32 0.0, %v1256
      %1258 = vmatprep.mubr.f32.mxu0 0.0
      %1259 = vmatmul.mubr.f32.gmra.mrb[0].mxu0 %v363
      %v1260 = vpop.f32.mrb[0].mxu0
      %v1261 = vadd.f32 0.0, %v1260
      %v1262 = vpop.f32.mrb[0].mxu0
      %v1263 = vadd.f32 0.0, %v1262
      %1264 = vdwg.mxu0
      %1265 = vmatprep.subr.mxu0 %v371
      %1266 = vmatpush1.msra.mxu0 %v370
      %1267 = vmatprep.subr.mxu0 %v387
      %1268 = vmatpush1.msra.mxu0 %v386
      %1269 = vmatprep.subr.mxu0 %v403
      %1270 = vmatpush1.msra.mxu0 %v402
      %1271 = vmatprep.subr.mxu0 %v419
      %1272 = vmatpush1.msra.mxu0 %v418
      %1273 = vmatprep.subr.mxu0 %v435
      %1274 = vmatpush1.msra.mxu0 %v434
      %1275 = vmatprep.subr.mxu0 %v451
      %1276 = vmatpush1.msra.mxu0 %v450
      %1277 = vmatprep.subr.mxu0 %v467
      %1278 = vmatpush1.msra.mxu0 %v466
      %1279 = vmatprep.subr.mxu0 %v483
      %1280 = vmatpush1.msra.mxu0 %v482
      %1281 = vmatprep.subr.mxu0 %v499
      %1282 = vmatpush1.msra.mxu0 %v498
      %1283 = vmatprep.subr.mxu0 %v515
      %1284 = vmatpush1.msra.mxu0 %v514
      %1285 = vmatprep.subr.mxu0 %v531
      %1286 = vmatpush1.msra.mxu0 %v530
      %1287 = vmatprep.subr.mxu0 %v547
      %1288 = vmatpush1.msra.mxu0 %v546
      %1289 = vmatprep.subr.mxu0 %v563
      %1290 = vmatpush1.msra.mxu0 %v562
      %1291 = vmatprep.subr.mxu0 %v579
      %1292 = vmatpush1.msra.mxu0 %v578
      %1293 = vmatprep.subr.mxu0 %v595
      %1294 = vmatpush1.msra.mxu0 %v594
      %1295 = vmatprep.subr.mxu0 %v611
      %1296 = vmatpush1.msra.mxu0 %v610
      %1297 = vmatprep.subr.mxu0 0.0
      %1298 = vmatpush1.msra.mxu0 0.0
      %1299 = vmatprep.subr.mxu0 0.0
      %1300 = vmatpush1.msra.mxu0 0.0
      %1301 = vmatprep.subr.mxu0 0.0
      %1302 = vmatpush1.msra.mxu0 0.0
      %1303 = vmatprep.subr.mxu0 0.0
      %1304 = vmatpush1.msra.mxu0 0.0
      %1305 = vmatprep.subr.mxu0 0.0
      %1306 = vmatpush1.msra.mxu0 0.0
      %1307 = vmatprep.subr.mxu0 0.0
      %1308 = vmatpush1.msra.mxu0 0.0
      %1309 = vmatprep.subr.mxu0 0.0
      %1310 = vmatpush1.msra.mxu0 0.0
      %1311 = vmatprep.subr.mxu0 0.0
      %1312 = vmatpush1.msra.mxu0 0.0
      %1313 = vmatprep.subr.mxu0 0.0
      %1314 = vmatpush1.msra.mxu0 0.0
      %1315 = vmatprep.subr.mxu0 0.0
      %1316 = vmatpush1.msra.mxu0 0.0
      %1317 = vmatprep.subr.mxu0 0.0
      %1318 = vmatpush1.msra.mxu0 0.0
      %1319 = vmatprep.subr.mxu0 0.0
      %1320 = vmatpush1.msra.mxu0 0.0
      %1321 = vmatprep.subr.mxu0 0.0
      %1322 = vmatpush1.msra.mxu0 0.0
      %1323 = vmatprep.subr.mxu0 0.0
      %1324 = vmatpush1.msra.mxu0 0.0
      %1325 = vmatprep.subr.mxu0 0.0
      %1326 = vmatpush1.msra.mxu0 0.0
      %1327 = vmatprep.subr.mxu0 0.0
      %1328 = vmatpush1.msra.mxu0 0.0
      %1329 = vmatprep.mubr.f32.mxu0 0.0
      %1330 = vmatmul.mubr.f32.gmra.mrb[0].mxu0 %v339
      %v1331 = vpop.f32.mrb[0].mxu0
      %v1332 = vadd.f32 0.0, %v1331
      %v1333 = vpop.f32.mrb[0].mxu0
      %v1334 = vadd.f32 0.0, %v1333
      %1335 = vmatprep.mubr.f32.mxu0 0.0
      %1336 = vmatmul.mubr.f32.gmra.mrb[0].mxu0 %v340
      %v1337 = vpop.f32.mrb[0].mxu0
      %v1338 = vadd.f32 0.0, %v1337
      %v1339 = vpop.f32.mrb[0].mxu0
      %v1340 = vadd.f32 0.0, %v1339
      %1341 = vmatprep.mubr.f32.mxu0 0.0
      %1342 = vmatmul.mubr.f32.gmra.mrb[0].mxu0 %v341
      %v1343 = vpop.f32.mrb[0].mxu0
      %v1344 = vadd.f32 0.0, %v1343
      %v1345 = vpop.f32.mrb[0].mxu0
      %v1346 = vadd.f32 0.0, %v1345
      %1347 = vmatprep.mubr.f32.mxu0 0.0
      %1348 = vmatmul.mubr.f32.gmra.mrb[0].mxu0 %v342
      %v1349 = vpop.f32.mrb[0].mxu0
      %v1350 = vadd.f32 0.0, %v1349
      %v1351 = vpop.f32.mrb[0].mxu0
      %v1352 = vadd.f32 0.0, %v1351
      %1353 = vmatprep.mubr.f32.mxu0 0.0
      %1354 = vmatmul.mubr.f32.gmra.mrb[0].mxu0 %v343
      %v1355 = vpop.f32.mrb[0].mxu0
      %v1356 = vadd.f32 0.0, %v1355
      %v1357 = vpop.f32.mrb[0].mxu0
      %v1358 = vadd.f32 0.0, %v1357
      %1359 = vmatprep.mubr.f32.mxu0 0.0
      %1360 = vmatmul.mubr.f32.gmra.mrb[0].mxu0 %v344
      %v1361 = vpop.f32.mrb[0].mxu0
      %v1362 = vadd.f32 0.0, %v1361
      %v1363 = vpop.f32.mrb[0].mxu0
      %v1364 = vadd.f32 0.0, %v1363
      %1365 = vmatprep.mubr.f32.mxu0 0.0
      %1366 = vmatmul.mubr.f32.gmra.mrb[0].mxu0 %v345
      %v1367 = vpop.f32.mrb[0].mxu0
      %v1368 = vadd.f32 0.0, %v1367
      %v1369 = vpop.f32.mrb[0].mxu0
      %v1370 = vadd.f32 0.0, %v1369
      %1371 = vmatprep.mubr.f32.mxu0 0.0
      %1372 = vmatmul.mubr.f32.gmra.mrb[0].mxu0 %v346
      %v1373 = vpop.f32.mrb[0].mxu0
      %v1374 = vadd.f32 0.0, %v1373
      %v1375 = vpop.f32.mrb[0].mxu0
      %v1376 = vadd.f32 0.0, %v1375
      %1377 = vmatprep.mubr.f32.mxu0 0.0
      %1378 = vmatmul.mubr.f32.gmra.mrb[0].mxu0 %v347
      %v1379 = vpop.f32.mrb[0].mxu0
      %v1380 = vadd.f32 0.0, %v1379
      %v1381 = vpop.f32.mrb[0].mxu0
      %v1382 = vadd.f32 0.0, %v1381
      %1383 = vmatprep.mubr.f32.mxu0 0.0
      %1384 = vmatmul.mubr.f32.gmra.mrb[0].mxu0 %v348
      %v1385 = vpop.f32.mrb[0].mxu0
      %v1386 = vadd.f32 0.0, %v1385
      %v1387 = vpop.f32.mrb[0].mxu0
      %v1388 = vadd.f32 0.0, %v1387
      %1389 = vmatprep.mubr.f32.mxu0 0.0
      %1390 = vmatmul.mubr.f32.gmra.mrb[0].mxu0 %v349
      %v1391 = vpop.f32.mrb[0].mxu0
      %v1392 = vadd.f32 0.0, %v1391
      %v1393 = vpop.f32.mrb[0].mxu0
      %v1394 = vadd.f32 0.0, %v1393
      %1395 = vmatprep.mubr.f32.mxu0 0.0
      %1396 = vmatmul.mubr.f32.gmra.mrb[0].mxu0 %v350
      %v1397 = vpop.f32.mrb[0].mxu0
      %v1398 = vadd.f32 0.0, %v1397
      %v1399 = vpop.f32.mrb[0].mxu0
      %v1400 = vadd.f32 0.0, %v1399
      %1401 = vmatprep.mubr.f32.mxu0 0.0
      %1402 = vmatmul.mubr.f32.gmra.mrb[0].mxu0 %v351
      %v1403 = vpop.f32.mrb[0].mxu0
      %v1404 = vadd.f32 0.0, %v1403
      %v1405 = vpop.f32.mrb[0].mxu0
      %v1406 = vadd.f32 0.0, %v1405
      %1407 = vmatprep.mubr.f32.mxu0 0.0
      %1408 = vmatmul.mubr.f32.gmra.mrb[0].mxu0 %v352
      %v1409 = vpop.f32.mrb[0].mxu0
      %v1410 = vadd.f32 0.0, %v1409
      %v1411 = vpop.f32.mrb[0].mxu0
      %v1412 = vadd.f32 0.0, %v1411
      %1413 = vmatprep.mubr.f32.mxu0 0.0
      %1414 = vmatmul.mubr.f32.gmra.mrb[0].mxu0 %v353
      %v1415 = vpop.f32.mrb[0].mxu0
      %v1416 = vadd.f32 0.0, %v1415
      %v1417 = vpop.f32.mrb[0].mxu0
      %v1418 = vadd.f32 0.0, %v1417
      %1419 = vmatprep.mubr.f32.mxu0 0.0
      %1420 = vmatmul.mubr.f32.gmra.mrb[0].mxu0 %v354
      %v1421 = vpop.f32.mrb[0].mxu0
      %v1422 = vadd.f32 0.0, %v1421
      %v1423 = vpop.f32.mrb[0].mxu0
      %v1424 = vadd.f32 0.0, %v1423
      %1425 = vmatprep.mubr.f32.mxu0 0.0
      %1426 = vmatmul.mubr.f32.gmra.mrb[0].mxu0 %v355
      %v1427 = vpop.f32.mrb[0].mxu0
      %v1428 = vadd.f32 0.0, %v1427
      %v1429 = vpop.f32.mrb[0].mxu0
      %v1430 = vadd.f32 0.0, %v1429
      %1431 = vmatprep.mubr.f32.mxu0 0.0
      %1432 = vmatmul.mubr.f32.gmra.mrb[0].mxu0 %v356
      %v1433 = vpop.f32.mrb[0].mxu0
      %v1434 = vadd.f32 0.0, %v1433
      %v1435 = vpop.f32.mrb[0].mxu0
      %v1436 = vadd.f32 0.0, %v1435
      %1437 = vmatprep.mubr.f32.mxu0 0.0
      %1438 = vmatmul.mubr.f32.gmra.mrb[0].mxu0 %v357
      %v1439 = vpop.f32.mrb[0].mxu0
      %v1440 = vadd.f32 0.0, %v1439
      %v1441 = vpop.f32.mrb[0].mxu0
      %v1442 = vadd.f32 0.0, %v1441
      %1443 = vmatprep.mubr.f32.mxu0 0.0
      %1444 = vmatmul.mubr.f32.gmra.mrb[0].mxu0 %v358
      %v1445 = vpop.f32.mrb[0].mxu0
      %v1446 = vadd.f32 0.0, %v1445
      %v1447 = vpop.f32.mrb[0].mxu0
      %v1448 = vadd.f32 0.0, %v1447
      %1449 = vmatprep.mubr.f32.mxu0 0.0
      %1450 = vmatmul.mubr.f32.gmra.mrb[0].mxu0 %v359
      %v1451 = vpop.f32.mrb[0].mxu0
      %v1452 = vadd.f32 0.0, %v1451
      %v1453 = vpop.f32.mrb[0].mxu0
      %v1454 = vadd.f32 0.0, %v1453
      %1455 = vmatprep.mubr.f32.mxu0 0.0
      %1456 = vmatmul.mubr.f32.gmra.mrb[0].mxu0 %v360
      %v1457 = vpop.f32.mrb[0].mxu0
      %v1458 = vadd.f32 0.0, %v1457
      %v1459 = vpop.f32.mrb[0].mxu0
      %v1460 = vadd.f32 0.0, %v1459
      %1461 = vmatprep.mubr.f32.mxu0 0.0
      %1462 = vmatmul.mubr.f32.gmra.mrb[0].mxu0 %v361
      %v1463 = vpop.f32.mrb[0].mxu0
      %v1464 = vadd.f32 0.0, %v1463
      %v1465 = vpop.f32.mrb[0].mxu0
      %v1466 = vadd.f32 0.0, %v1465
      %1467 = vmatprep.mubr.f32.mxu0 0.0
      %1468 = vmatmul.mubr.f32.gmra.mrb[0].mxu0 %v362
      %v1469 = vpop.f32.mrb[0].mxu0
      %v1470 = vadd.f32 0.0, %v1469
      %v1471 = vpop.f32.mrb[0].mxu0
      %v1472 = vadd.f32 0.0, %v1471
      %1473 = vmatprep.mubr.f32.mxu0 0.0
      %1474 = vmatmul.mubr.f32.gmra.mrb[0].mxu0 %v363
      %v1475 = vpop.f32.mrb[0].mxu0
      %v1476 = vadd.f32 0.0, %v1475
      %v1477 = vpop.f32.mrb[0].mxu0
      %v1478 = vadd.f32 0.0, %v1477
      %1479 = vdwg.mxu0
      %1480 = vmatprep.subr.mxu0 %v373
      %1481 = vmatpush1.msra.mxu0 %v372
      %1482 = vmatprep.subr.mxu0 %v389
      %1483 = vmatpush1.msra.mxu0 %v388
      %1484 = vmatprep.subr.mxu0 %v405
      %1485 = vmatpush1.msra.mxu0 %v404
      %1486 = vmatprep.subr.mxu0 %v421
      %1487 = vmatpush1.msra.mxu0 %v420
      %1488 = vmatprep.subr.mxu0 %v437
      %1489 = vmatpush1.msra.mxu0 %v436
      %1490 = vmatprep.subr.mxu0 %v453
      %1491 = vmatpush1.msra.mxu0 %v452
      %1492 = vmatprep.subr.mxu0 %v469
      %1493 = vmatpush1.msra.mxu0 %v468
      %1494 = vmatprep.subr.mxu0 %v485
      %1495 = vmatpush1.msra.mxu0 %v484
      %1496 = vmatprep.subr.mxu0 %v501
      %1497 = vmatpush1.msra.mxu0 %v500
      %1498 = vmatprep.subr.mxu0 %v517
      %1499 = vmatpush1.msra.mxu0 %v516
      %1500 = vmatprep.subr.mxu0 %v533
      %1501 = vmatpush1.msra.mxu0 %v532
      %1502 = vmatprep.subr.mxu0 %v549
      %1503 = vmatpush1.msra.mxu0 %v548
      %1504 = vmatprep.subr.mxu0 %v565
      %1505 = vmatpush1.msra.mxu0 %v564
      %1506 = vmatprep.subr.mxu0 %v581
      %1507 = vmatpush1.msra.mxu0 %v580
      %1508 = vmatprep.subr.mxu0 %v597
      %1509 = vmatpush1.msra.mxu0 %v596
      %1510 = vmatprep.subr.mxu0 %v613
      %1511 = vmatpush1.msra.mxu0 %v612
      %1512 = vmatprep.subr.mxu0 0.0
      %1513 = vmatpush1.msra.mxu0 0.0
      %1514 = vmatprep.subr.mxu0 0.0
      %1515 = vmatpush1.msra.mxu0 0.0
      %1516 = vmatprep.subr.mxu0 0.0
      %1517 = vmatpush1.msra.mxu0 0.0
      %1518 = vmatprep.subr.mxu0 0.0
      %1519 = vmatpush1.msra.mxu0 0.0
      %1520 = vmatprep.subr.mxu0 0.0
      %1521 = vmatpush1.msra.mxu0 0.0
      %1522 = vmatprep.subr.mxu0 0.0
      %1523 = vmatpush1.msra.mxu0 0.0
      %1524 = vmatprep.subr.mxu0 0.0
      %1525 = vmatpush1.msra.mxu0 0.0
      %1526 = vmatprep.subr.mxu0 0.0
      %1527 = vmatpush1.msra.mxu0 0.0
      %1528 = vmatprep.subr.mxu0 0.0
      %1529 = vmatpush1.msra.mxu0 0.0
      %1530 = vmatprep.subr.mxu0 0.0
      %1531 = vmatpush1.msra.mxu0 0.0
      %1532 = vmatprep.subr.mxu0 0.0
      %1533 = vmatpush1.msra.mxu0 0.0
      %1534 = vmatprep.subr.mxu0 0.0
      %1535 = vmatpush1.msra.mxu0 0.0
      %1536 = vmatprep.subr.mxu0 0.0
      %1537 = vmatpush1.msra.mxu0 0.0
      %1538 = vmatprep.subr.mxu0 0.0
      %1539 = vmatpush1.msra.mxu0 0.0
      %1540 = vmatprep.subr.mxu0 0.0
      %1541 = vmatpush1.msra.mxu0 0.0
      %1542 = vmatprep.subr.mxu0 0.0
      %1543 = vmatpush1.msra.mxu0 0.0
      %1544 = vmatprep.mubr.f32.mxu0 0.0
      %1545 = vmatmul.mubr.f32.gmra.mrb[0].mxu0 %v339
      %v1546 = vpop.f32.mrb[0].mxu0
      %v1547 = vadd.f32 0.0, %v1546
      %v1548 = vpop.f32.mrb[0].mxu0
      %v1549 = vadd.f32 0.0, %v1548
      %1550 = vmatprep.mubr.f32.mxu0 0.0
      %1551 = vmatmul.mubr.f32.gmra.mrb[0].mxu0 %v340
      %v1552 = vpop.f32.mrb[0].mxu0
      %v1553 = vadd.f32 0.0, %v1552
      %v1554 = vpop.f32.mrb[0].mxu0
      %v1555 = vadd.f32 0.0, %v1554
      %1556 = vmatprep.mubr.f32.mxu0 0.0
      %1557 = vmatmul.mubr.f32.gmra.mrb[0].mxu0 %v341
      %v1558 = vpop.f32.mrb[0].mxu0
      %v1559 = vadd.f32 0.0, %v1558
      %v1560 = vpop.f32.mrb[0].mxu0
      %v1561 = vadd.f32 0.0, %v1560
      %1562 = vmatprep.mubr.f32.mxu0 0.0
      %1563 = vmatmul.mubr.f32.gmra.mrb[0].mxu0 %v342
      %v1564 = vpop.f32.mrb[0].mxu0
      %v1565 = vadd.f32 0.0, %v1564
      %v1566 = vpop.f32.mrb[0].mxu0
      %v1567 = vadd.f32 0.0, %v1566
      %1568 = vmatprep.mubr.f32.mxu0 0.0
      %1569 = vmatmul.mubr.f32.gmra.mrb[0].mxu0 %v343
      %v1570 = vpop.f32.mrb[0].mxu0
      %v1571 = vadd.f32 0.0, %v1570
      %v1572 = vpop.f32.mrb[0].mxu0
      %v1573 = vadd.f32 0.0, %v1572
      %1574 = vmatprep.mubr.f32.mxu0 0.0
      %1575 = vmatmul.mubr.f32.gmra.mrb[0].mxu0 %v344
      %v1576 = vpop.f32.mrb[0].mxu0
      %v1577 = vadd.f32 0.0, %v1576
      %v1578 = vpop.f32.mrb[0].mxu0
      %v1579 = vadd.f32 0.0, %v1578
      %1580 = vmatprep.mubr.f32.mxu0 0.0
      %1581 = vmatmul.mubr.f32.gmra.mrb[0].mxu0 %v345
      %v1582 = vpop.f32.mrb[0].mxu0
      %v1583 = vadd.f32 0.0, %v1582
      %v1584 = vpop.f32.mrb[0].mxu0
      %v1585 = vadd.f32 0.0, %v1584
      %1586 = vmatprep.mubr.f32.mxu0 0.0
      %1587 = vmatmul.mubr.f32.gmra.mrb[0].mxu0 %v346
      %v1588 = vpop.f32.mrb[0].mxu0
      %v1589 = vadd.f32 0.0, %v1588
      %v1590 = vpop.f32.mrb[0].mxu0
      %v1591 = vadd.f32 0.0, %v1590
      %1592 = vmatprep.mubr.f32.mxu0 0.0
      %1593 = vmatmul.mubr.f32.gmra.mrb[0].mxu0 %v347
      %v1594 = vpop.f32.mrb[0].mxu0
      %v1595 = vadd.f32 0.0, %v1594
      %v1596 = vpop.f32.mrb[0].mxu0
      %v1597 = vadd.f32 0.0, %v1596
      %1598 = vmatprep.mubr.f32.mxu0 0.0
      %1599 = vmatmul.mubr.f32.gmra.mrb[0].mxu0 %v348
      %v1600 = vpop.f32.mrb[0].mxu0
      %v1601 = vadd.f32 0.0, %v1600
      %v1602 = vpop.f32.mrb[0].mxu0
      %v1603 = vadd.f32 0.0, %v1602
      %1604 = vmatprep.mubr.f32.mxu0 0.0
      %1605 = vmatmul.mubr.f32.gmra.mrb[0].mxu0 %v349
      %v1606 = vpop.f32.mrb[0].mxu0
      %v1607 = vadd.f32 0.0, %v1606
      %v1608 = vpop.f32.mrb[0].mxu0
      %v1609 = vadd.f32 0.0, %v1608
      %1610 = vmatprep.mubr.f32.mxu0 0.0
      %1611 = vmatmul.mubr.f32.gmra.mrb[0].mxu0 %v350
      %v1612 = vpop.f32.mrb[0].mxu0
      %v1613 = vadd.f32 0.0, %v1612
      %v1614 = vpop.f32.mrb[0].mxu0
      %v1615 = vadd.f32 0.0, %v1614
      %1616 = vmatprep.mubr.f32.mxu0 0.0
      %1617 = vmatmul.mubr.f32.gmra.mrb[0].mxu0 %v351
      %v1618 = vpop.f32.mrb[0].mxu0
      %v1619 = vadd.f32 0.0, %v1618
      %v1620 = vpop.f32.mrb[0].mxu0
      %v1621 = vadd.f32 0.0, %v1620
      %1622 = vmatprep.mubr.f32.mxu0 0.0
      %1623 = vmatmul.mubr.f32.gmra.mrb[0].mxu0 %v352
      %v1624 = vpop.f32.mrb[0].mxu0
      %v1625 = vadd.f32 0.0, %v1624
      %v1626 = vpop.f32.mrb[0].mxu0
      %v1627 = vadd.f32 0.0, %v1626
      %1628 = vmatprep.mubr.f32.mxu0 0.0
      %1629 = vmatmul.mubr.f32.gmra.mrb[0].mxu0 %v353
      %v1630 = vpop.f32.mrb[0].mxu0
      %v1631 = vadd.f32 0.0, %v1630
      %v1632 = vpop.f32.mrb[0].mxu0
      %v1633 = vadd.f32 0.0, %v1632
      %1634 = vmatprep.mubr.f32.mxu0 0.0
      %1635 = vmatmul.mubr.f32.gmra.mrb[0].mxu0 %v354
      %v1636 = vpop.f32.mrb[0].mxu0
      %v1637 = vadd.f32 0.0, %v1636
      %v1638 = vpop.f32.mrb[0].mxu0
      %v1639 = vadd.f32 0.0, %v1638
      %1640 = vmatprep.mubr.f32.mxu0 0.0
      %1641 = vmatmul.mubr.f32.gmra.mrb[0].mxu0 %v355
      %v1642 = vpop.f32.mrb[0].mxu0
      %v1643 = vadd.f32 0.0, %v1642
      %v1644 = vpop.f32.mrb[0].mxu0
      %v1645 = vadd.f32 0.0, %v1644
      %1646 = vmatprep.mubr.f32.mxu0 0.0
      %1647 = vmatmul.mubr.f32.gmra.mrb[0].mxu0 %v356
      %v1648 = vpop.f32.mrb[0].mxu0
      %v1649 = vadd.f32 0.0, %v1648
      %v1650 = vpop.f32.mrb[0].mxu0
      %v1651 = vadd.f32 0.0, %v1650
      %1652 = vmatprep.mubr.f32.mxu0 0.0
      %1653 = vmatmul.mubr.f32.gmra.mrb[0].mxu0 %v357
      %v1654 = vpop.f32.mrb[0].mxu0
      %v1655 = vadd.f32 0.0, %v1654
      %v1656 = vpop.f32.mrb[0].mxu0
      %v1657 = vadd.f32 0.0, %v1656
      %1658 = vmatprep.mubr.f32.mxu0 0.0
      %1659 = vmatmul.mubr.f32.gmra.mrb[0].mxu0 %v358
      %v1660 = vpop.f32.mrb[0].mxu0
      %v1661 = vadd.f32 0.0, %v1660
      %v1662 = vpop.f32.mrb[0].mxu0
      %v1663 = vadd.f32 0.0, %v1662
      %1664 = vmatprep.mubr.f32.mxu0 0.0
      %1665 = vmatmul.mubr.f32.gmra.mrb[0].mxu0 %v359
      %v1666 = vpop.f32.mrb[0].mxu0
      %v1667 = vadd.f32 0.0, %v1666
      %v1668 = vpop.f32.mrb[0].mxu0
      %v1669 = vadd.f32 0.0, %v1668
      %1670 = vmatprep.mubr.f32.mxu0 0.0
      %1671 = vmatmul.mubr.f32.gmra.mrb[0].mxu0 %v360
      %v1672 = vpop.f32.mrb[0].mxu0
      %v1673 = vadd.f32 0.0, %v1672
      %v1674 = vpop.f32.mrb[0].mxu0
      %v1675 = vadd.f32 0.0, %v1674
      %1676 = vmatprep.mubr.f32.mxu0 0.0
      %1677 = vmatmul.mubr.f32.gmra.mrb[0].mxu0 %v361
      %v1678 = vpop.f32.mrb[0].mxu0
      %v1679 = vadd.f32 0.0, %v1678
      %v1680 = vpop.f32.mrb[0].mxu0
      %v1681 = vadd.f32 0.0, %v1680
      %1682 = vmatprep.mubr.f32.mxu0 0.0
      %1683 = vmatmul.mubr.f32.gmra.mrb[0].mxu0 %v362
      %v1684 = vpop.f32.mrb[0].mxu0
      %v1685 = vadd.f32 0.0, %v1684
      %v1686 = vpop.f32.mrb[0].mxu0
      %v1687 = vadd.f32 0.0, %v1686
      %1688 = vmatprep.mubr.f32.mxu0 0.0
      %1689 = vmatmul.mubr.f32.gmra.mrb[0].mxu0 %v363
      %v1690 = vpop.f32.mrb[0].mxu0
      %v1691 = vadd.f32 0.0, %v1690
      %v1692 = vpop.f32.mrb[0].mxu0
      %v1693 = vadd.f32 0.0, %v1692
      %1694 = vdwg.mxu0
      %1695 = vmatprep.subr.mxu0 %v375
      %1696 = vmatpush1.msra.mxu0 %v374
      %1697 = vmatprep.subr.mxu0 %v391
      %1698 = vmatpush1.msra.mxu0 %v390
      %1699 = vmatprep.subr.mxu0 %v407
      %1700 = vmatpush1.msra.mxu0 %v406
      %1701 = vmatprep.subr.mxu0 %v423
      %1702 = vmatpush1.msra.mxu0 %v422
      %1703 = vmatprep.subr.mxu0 %v439
      %1704 = vmatpush1.msra.mxu0 %v438
      %1705 = vmatprep.subr.mxu0 %v455
      %1706 = vmatpush1.msra.mxu0 %v454
      %1707 = vmatprep.subr.mxu0 %v471
      %1708 = vmatpush1.msra.mxu0 %v470
      %1709 = vmatprep.subr.mxu0 %v487
      %1710 = vmatpush1.msra.mxu0 %v486
      %1711 = vmatprep.subr.mxu0 %v503
      %1712 = vmatpush1.msra.mxu0 %v502
      %1713 = vmatprep.subr.mxu0 %v519
      %1714 = vmatpush1.msra.mxu0 %v518
      %1715 = vmatprep.subr.mxu0 %v535
      %1716 = vmatpush1.msra.mxu0 %v534
      %1717 = vmatprep.subr.mxu0 %v551
      %1718 = vmatpush1.msra.mxu0 %v550
      %1719 = vmatprep.subr.mxu0 %v567
      %1720 = vmatpush1.msra.mxu0 %v566
      %1721 = vmatprep.subr.mxu0 %v583
      %1722 = vmatpush1.msra.mxu0 %v582
      %1723 = vmatprep.subr.mxu0 %v599
      %1724 = vmatpush1.msra.mxu0 %v598
      %1725 = vmatprep.subr.mxu0 %v615
      %1726 = vmatpush1.msra.mxu0 %v614
      %1727 = vmatprep.subr.mxu0 0.0
      %1728 = vmatpush1.msra.mxu0 0.0
      %1729 = vmatprep.subr.mxu0 0.0
      %1730 = vmatpush1.msra.mxu0 0.0
      %1731 = vmatprep.subr.mxu0 0.0
      %1732 = vmatpush1.msra.mxu0 0.0
      %1733 = vmatprep.subr.mxu0 0.0
      %1734 = vmatpush1.msra.mxu0 0.0
      %1735 = vmatprep.subr.mxu0 0.0
      %1736 = vmatpush1.msra.mxu0 0.0
      %1737 = vmatprep.subr.mxu0 0.0
      %1738 = vmatpush1.msra.mxu0 0.0
      %1739 = vmatprep.subr.mxu0 0.0
      %1740 = vmatpush1.msra.mxu0 0.0
      %1741 = vmatprep.subr.mxu0 0.0
      %1742 = vmatpush1.msra.mxu0 0.0
      %1743 = vmatprep.subr.mxu0 0.0
      %1744 = vmatpush1.msra.mxu0 0.0
      %1745 = vmatprep.subr.mxu0 0.0
      %1746 = vmatpush1.msra.mxu0 0.0
      %1747 = vmatprep.subr.mxu0 0.0
      %1748 = vmatpush1.msra.mxu0 0.0
      %1749 = vmatprep.subr.mxu0 0.0
      %1750 = vmatpush1.msra.mxu0 0.0
      %1751 = vmatprep.subr.mxu0 0.0
      %1752 = vmatpush1.msra.mxu0 0.0
      %1753 = vmatprep.subr.mxu0 0.0
      %1754 = vmatpush1.msra.mxu0 0.0
      %1755 = vmatprep.subr.mxu0 0.0
      %1756 = vmatpush1.msra.mxu0 0.0
      %1757 = vmatprep.subr.mxu0 0.0
      %1758 = vmatpush1.msra.mxu0 0.0
      %1759 = vmatprep.mubr.f32.mxu0 0.0
      %1760 = vmatmul.mubr.f32.gmra.mrb[0].mxu0 %v339
      %v1761 = vpop.f32.mrb[0].mxu0
      %v1762 = vadd.f32 0.0, %v1761
      %v1763 = vpop.f32.mrb[0].mxu0
      %v1764 = vadd.f32 0.0, %v1763
      %1765 = vmatprep.mubr.f32.mxu0 0.0
      %1766 = vmatmul.mubr.f32.gmra.mrb[0].mxu0 %v340
      %v1767 = vpop.f32.mrb[0].mxu0
      %v1768 = vadd.f32 0.0, %v1767
      %v1769 = vpop.f32.mrb[0].mxu0
      %v1770 = vadd.f32 0.0, %v1769
      %1771 = vmatprep.mubr.f32.mxu0 0.0
      %1772 = vmatmul.mubr.f32.gmra.mrb[0].mxu0 %v341
      %v1773 = vpop.f32.mrb[0].mxu0
      %v1774 = vadd.f32 0.0, %v1773
      %v1775 = vpop.f32.mrb[0].mxu0
      %v1776 = vadd.f32 0.0, %v1775
      %1777 = vmatprep.mubr.f32.mxu0 0.0
      %1778 = vmatmul.mubr.f32.gmra.mrb[0].mxu0 %v342
      %v1779 = vpop.f32.mrb[0].mxu0
      %v1780 = vadd.f32 0.0, %v1779
      %v1781 = vpop.f32.mrb[0].mxu0
      %v1782 = vadd.f32 0.0, %v1781
      %1783 = vmatprep.mubr.f32.mxu0 0.0
      %1784 = vmatmul.mubr.f32.gmra.mrb[0].mxu0 %v343
      %v1785 = vpop.f32.mrb[0].mxu0
      %v1786 = vadd.f32 0.0, %v1785
      %v1787 = vpop.f32.mrb[0].mxu0
      %v1788 = vadd.f32 0.0, %v1787
      %1789 = vmatprep.mubr.f32.mxu0 0.0
      %1790 = vmatmul.mubr.f32.gmra.mrb[0].mxu0 %v344
      %v1791 = vpop.f32.mrb[0].mxu0
      %v1792 = vadd.f32 0.0, %v1791
      %v1793 = vpop.f32.mrb[0].mxu0
      %v1794 = vadd.f32 0.0, %v1793
      %1795 = vmatprep.mubr.f32.mxu0 0.0
      %1796 = vmatmul.mubr.f32.gmra.mrb[0].mxu0 %v345
      %v1797 = vpop.f32.mrb[0].mxu0
      %v1798 = vadd.f32 0.0, %v1797
      %v1799 = vpop.f32.mrb[0].mxu0
      %v1800 = vadd.f32 0.0, %v1799
      %1801 = vmatprep.mubr.f32.mxu0 0.0
      %1802 = vmatmul.mubr.f32.gmra.mrb[0].mxu0 %v346
      %v1803 = vpop.f32.mrb[0].mxu0
      %v1804 = vadd.f32 0.0, %v1803
      %v1805 = vpop.f32.mrb[0].mxu0
      %v1806 = vadd.f32 0.0, %v1805
      %1807 = vmatprep.mubr.f32.mxu0 0.0
      %1808 = vmatmul.mubr.f32.gmra.mrb[0].mxu0 %v347
      %v1809 = vpop.f32.mrb[0].mxu0
      %v1810 = vadd.f32 0.0, %v1809
      %v1811 = vpop.f32.mrb[0].mxu0
      %v1812 = vadd.f32 0.0, %v1811
      %1813 = vmatprep.mubr.f32.mxu0 0.0
      %1814 = vmatmul.mubr.f32.gmra.mrb[0].mxu0 %v348
      %v1815 = vpop.f32.mrb[0].mxu0
      %v1816 = vadd.f32 0.0, %v1815
      %v1817 = vpop.f32.mrb[0].mxu0
      %v1818 = vadd.f32 0.0, %v1817
      %1819 = vmatprep.mubr.f32.mxu0 0.0
      %1820 = vmatmul.mubr.f32.gmra.mrb[0].mxu0 %v349
      %v1821 = vpop.f32.mrb[0].mxu0
      %v1822 = vadd.f32 0.0, %v1821
      %v1823 = vpop.f32.mrb[0].mxu0
      %v1824 = vadd.f32 0.0, %v1823
      %1825 = vmatprep.mubr.f32.mxu0 0.0
      %1826 = vmatmul.mubr.f32.gmra.mrb[0].mxu0 %v350
      %v1827 = vpop.f32.mrb[0].mxu0
      %v1828 = vadd.f32 0.0, %v1827
      %v1829 = vpop.f32.mrb[0].mxu0
      %v1830 = vadd.f32 0.0, %v1829
      %1831 = vmatprep.mubr.f32.mxu0 0.0
      %1832 = vmatmul.mubr.f32.gmra.mrb[0].mxu0 %v351
      %v1833 = vpop.f32.mrb[0].mxu0
      %v1834 = vadd.f32 0.0, %v1833
      %v1835 = vpop.f32.mrb[0].mxu0
      %v1836 = vadd.f32 0.0, %v1835
      %1837 = vmatprep.mubr.f32.mxu0 0.0
      %1838 = vmatmul.mubr.f32.gmra.mrb[0].mxu0 %v352
      %v1839 = vpop.f32.mrb[0].mxu0
      %v1840 = vadd.f32 0.0, %v1839
      %v1841 = vpop.f32.mrb[0].mxu0
      %v1842 = vadd.f32 0.0, %v1841
      %1843 = vmatprep.mubr.f32.mxu0 0.0
      %1844 = vmatmul.mubr.f32.gmra.mrb[0].mxu0 %v353
      %v1845 = vpop.f32.mrb[0].mxu0
      %v1846 = vadd.f32 0.0, %v1845
      %v1847 = vpop.f32.mrb[0].mxu0
      %v1848 = vadd.f32 0.0, %v1847
      %1849 = vmatprep.mubr.f32.mxu0 0.0
      %1850 = vmatmul.mubr.f32.gmra.mrb[0].mxu0 %v354
      %v1851 = vpop.f32.mrb[0].mxu0
      %v1852 = vadd.f32 0.0, %v1851
      %v1853 = vpop.f32.mrb[0].mxu0
      %v1854 = vadd.f32 0.0, %v1853
      %1855 = vmatprep.mubr.f32.mxu0 0.0
      %1856 = vmatmul.mubr.f32.gmra.mrb[0].mxu0 %v355
      %v1857 = vpop.f32.mrb[0].mxu0
      %v1858 = vadd.f32 0.0, %v1857
      %v1859 = vpop.f32.mrb[0].mxu0
      %v1860 = vadd.f32 0.0, %v1859
      %1861 = vmatprep.mubr.f32.mxu0 0.0
      %1862 = vmatmul.mubr.f32.gmra.mrb[0].mxu0 %v356
      %v1863 = vpop.f32.mrb[0].mxu0
      %v1864 = vadd.f32 0.0, %v1863
      %v1865 = vpop.f32.mrb[0].mxu0
      %v1866 = vadd.f32 0.0, %v1865
      %1867 = vmatprep.mubr.f32.mxu0 0.0
      %1868 = vmatmul.mubr.f32.gmra.mrb[0].mxu0 %v357
      %v1869 = vpop.f32.mrb[0].mxu0
      %v1870 = vadd.f32 0.0, %v1869
      %v1871 = vpop.f32.mrb[0].mxu0
      %v1872 = vadd.f32 0.0, %v1871
      %1873 = vmatprep.mubr.f32.mxu0 0.0
      %1874 = vmatmul.mubr.f32.gmra.mrb[0].mxu0 %v358
      %v1875 = vpop.f32.mrb[0].mxu0
      %v1876 = vadd.f32 0.0, %v1875
      %v1877 = vpop.f32.mrb[0].mxu0
      %v1878 = vadd.f32 0.0, %v1877
      %1879 = vmatprep.mubr.f32.mxu0 0.0
      %1880 = vmatmul.mubr.f32.gmra.mrb[0].mxu0 %v359
      %v1881 = vpop.f32.mrb[0].mxu0
      %v1882 = vadd.f32 0.0, %v1881
      %v1883 = vpop.f32.mrb[0].mxu0
      %v1884 = vadd.f32 0.0, %v1883
      %1885 = vmatprep.mubr.f32.mxu0 0.0
      %1886 = vmatmul.mubr.f32.gmra.mrb[0].mxu0 %v360
      %v1887 = vpop.f32.mrb[0].mxu0
      %v1888 = vadd.f32 0.0, %v1887
      %v1889 = vpop.f32.mrb[0].mxu0
      %v1890 = vadd.f32 0.0, %v1889
      %1891 = vmatprep.mubr.f32.mxu0 0.0
      %1892 = vmatmul.mubr.f32.gmra.mrb[0].mxu0 %v361
      %v1893 = vpop.f32.mrb[0].mxu0
      %v1894 = vadd.f32 0.0, %v1893
      %v1895 = vpop.f32.mrb[0].mxu0
      %v1896 = vadd.f32 0.0, %v1895
      %1897 = vmatprep.mubr.f32.mxu0 0.0
      %1898 = vmatmul.mubr.f32.gmra.mrb[0].mxu0 %v362
      %v1899 = vpop.f32.mrb[0].mxu0
      %v1900 = vadd.f32 0.0, %v1899
      %v1901 = vpop.f32.mrb[0].mxu0
      %v1902 = vadd.f32 0.0, %v1901
      %1903 = vmatprep.mubr.f32.mxu0 0.0
      %1904 = vmatmul.mubr.f32.gmra.mrb[0].mxu0 %v363
      %v1905 = vpop.f32.mrb[0].mxu0
      %v1906 = vadd.f32 0.0, %v1905
      %v1907 = vpop.f32.mrb[0].mxu0
      %v1908 = vadd.f32 0.0, %v1907
      %1909 = vdwg.mxu0
      %1910 = vmatprep.subr.mxu0 %v377
      %1911 = vmatpush1.msra.mxu0 %v376
      %1912 = vmatprep.subr.mxu0 %v393
      %1913 = vmatpush1.msra.mxu0 %v392
      %1914 = vmatprep.subr.mxu0 %v409
      %1915 = vmatpush1.msra.mxu0 %v408
      %1916 = vmatprep.subr.mxu0 %v425
      %1917 = vmatpush1.msra.mxu0 %v424
      %1918 = vmatprep.subr.mxu0 %v441
      %1919 = vmatpush1.msra.mxu0 %v440
      %1920 = vmatprep.subr.mxu0 %v457
      %1921 = vmatpush1.msra.mxu0 %v456
      %1922 = vmatprep.subr.mxu0 %v473
      %1923 = vmatpush1.msra.mxu0 %v472
      %1924 = vmatprep.subr.mxu0 %v489
      %1925 = vmatpush1.msra.mxu0 %v488
      %1926 = vmatprep.subr.mxu0 %v505
      %1927 = vmatpush1.msra.mxu0 %v504
      %1928 = vmatprep.subr.mxu0 %v521
      %1929 = vmatpush1.msra.mxu0 %v520
      %1930 = vmatprep.subr.mxu0 %v537
      %1931 = vmatpush1.msra.mxu0 %v536
      %1932 = vmatprep.subr.mxu0 %v553
      %1933 = vmatpush1.msra.mxu0 %v552
      %1934 = vmatprep.subr.mxu0 %v569
      %1935 = vmatpush1.msra.mxu0 %v568
      %1936 = vmatprep.subr.mxu0 %v585
      %1937 = vmatpush1.msra.mxu0 %v584
      %1938 = vmatprep.subr.mxu0 %v601
      %1939 = vmatpush1.msra.mxu0 %v600
      %1940 = vmatprep.subr.mxu0 %v617
      %1941 = vmatpush1.msra.mxu0 %v616
      %1942 = vmatprep.subr.mxu0 0.0
      %1943 = vmatpush1.msra.mxu0 0.0
      %1944 = vmatprep.subr.mxu0 0.0
      %1945 = vmatpush1.msra.mxu0 0.0
      %1946 = vmatprep.subr.mxu0 0.0
      %1947 = vmatpush1.msra.mxu0 0.0
      %1948 = vmatprep.subr.mxu0 0.0
      %1949 = vmatpush1.msra.mxu0 0.0
      %1950 = vmatprep.subr.mxu0 0.0
      %1951 = vmatpush1.msra.mxu0 0.0
      %1952 = vmatprep.subr.mxu0 0.0
      %1953 = vmatpush1.msra.mxu0 0.0
      %1954 = vmatprep.subr.mxu0 0.0
      %1955 = vmatpush1.msra.mxu0 0.0
      %1956 = vmatprep.subr.mxu0 0.0
      %1957 = vmatpush1.msra.mxu0 0.0
      %1958 = vmatprep.subr.mxu0 0.0
      %1959 = vmatpush1.msra.mxu0 0.0
      %1960 = vmatprep.subr.mxu0 0.0
      %1961 = vmatpush1.msra.mxu0 0.0
      %1962 = vmatprep.subr.mxu0 0.0
      %1963 = vmatpush1.msra.mxu0 0.0
      %1964 = vmatprep.subr.mxu0 0.0
      %1965 = vmatpush1.msra.mxu0 0.0
      %1966 = vmatprep.subr.mxu0 0.0
      %1967 = vmatpush1.msra.mxu0 0.0
      %1968 = vmatprep.subr.mxu0 0.0
      %1969 = vmatpush1.msra.mxu0 0.0
      %1970 = vmatprep.subr.mxu0 0.0
      %1971 = vmatpush1.msra.mxu0 0.0
      %1972 = vmatprep.subr.mxu0 0.0
      %1973 = vmatpush1.msra.mxu0 0.0
      %1974 = vmatprep.mubr.f32.mxu0 0.0
      %1975 = vmatmul.mubr.f32.gmra.mrb[0].mxu0 %v339
      %v1976 = vpop.f32.mrb[0].mxu0
      %v1977 = vadd.f32 0.0, %v1976
      %v1978 = vpop.f32.mrb[0].mxu0
      %v1979 = vadd.f32 0.0, %v1978
      %1980 = vmatprep.mubr.f32.mxu0 0.0
      %1981 = vmatmul.mubr.f32.gmra.mrb[0].mxu0 %v340
      %v1982 = vpop.f32.mrb[0].mxu0
      %v1983 = vadd.f32 0.0, %v1982
      %v1984 = vpop.f32.mrb[0].mxu0
      %v1985 = vadd.f32 0.0, %v1984
      %1986 = vmatprep.mubr.f32.mxu0 0.0
      %1987 = vmatmul.mubr.f32.gmra.mrb[0].mxu0 %v341
      %v1988 = vpop.f32.mrb[0].mxu0
      %v1989 = vadd.f32 0.0, %v1988
      %v1990 = vpop.f32.mrb[0].mxu0
      %v1991 = vadd.f32 0.0, %v1990
      %1992 = vmatprep.mubr.f32.mxu0 0.0
      %1993 = vmatmul.mubr.f32.gmra.mrb[0].mxu0 %v342
      %v1994 = vpop.f32.mrb[0].mxu0
      %v1995 = vadd.f32 0.0, %v1994
      %v1996 = vpop.f32.mrb[0].mxu0
      %v1997 = vadd.f32 0.0, %v1996
      %1998 = vmatprep.mubr.f32.mxu0 0.0
      %1999 = vmatmul.mubr.f32.gmra.mrb[0].mxu0 %v343
      %v2000 = vpop.f32.mrb[0].mxu0
      %v2001 = vadd.f32 0.0, %v2000
      %v2002 = vpop.f32.mrb[0].mxu0
      %v2003 = vadd.f32 0.0, %v2002
      %2004 = vmatprep.mubr.f32.mxu0 0.0
      %2005 = vmatmul.mubr.f32.gmra.mrb[0].mxu0 %v344
      %v2006 = vpop.f32.mrb[0].mxu0
      %v2007 = vadd.f32 0.0, %v2006
      %v2008 = vpop.f32.mrb[0].mxu0
      %v2009 = vadd.f32 0.0, %v2008
      %2010 = vmatprep.mubr.f32.mxu0 0.0
      %2011 = vmatmul.mubr.f32.gmra.mrb[0].mxu0 %v345
      %v2012 = vpop.f32.mrb[0].mxu0
      %v2013 = vadd.f32 0.0, %v2012
      %v2014 = vpop.f32.mrb[0].mxu0
      %v2015 = vadd.f32 0.0, %v2014
      %2016 = vmatprep.mubr.f32.mxu0 0.0
      %2017 = vmatmul.mubr.f32.gmra.mrb[0].mxu0 %v346
      %v2018 = vpop.f32.mrb[0].mxu0
      %v2019 = vadd.f32 0.0, %v2018
      %v2020 = vpop.f32.mrb[0].mxu0
      %v2021 = vadd.f32 0.0, %v2020
      %2022 = vmatprep.mubr.f32.mxu0 0.0
      %2023 = vmatmul.mubr.f32.gmra.mrb[0].mxu0 %v347
      %v2024 = vpop.f32.mrb[0].mxu0
      %v2025 = vadd.f32 0.0, %v2024
      %v2026 = vpop.f32.mrb[0].mxu0
      %v2027 = vadd.f32 0.0, %v2026
      %2028 = vmatprep.mubr.f32.mxu0 0.0
      %2029 = vmatmul.mubr.f32.gmra.mrb[0].mxu0 %v348
      %v2030 = vpop.f32.mrb[0].mxu0
      %v2031 = vadd.f32 0.0, %v2030
      %v2032 = vpop.f32.mrb[0].mxu0
      %v2033 = vadd.f32 0.0, %v2032
      %2034 = vmatprep.mubr.f32.mxu0 0.0
      %2035 = vmatmul.mubr.f32.gmra.mrb[0].mxu0 %v349
      %v2036 = vpop.f32.mrb[0].mxu0
      %v2037 = vadd.f32 0.0, %v2036
      %v2038 = vpop.f32.mrb[0].mxu0
      %v2039 = vadd.f32 0.0, %v2038
      %2040 = vmatprep.mubr.f32.mxu0 0.0
      %2041 = vmatmul.mubr.f32.gmra.mrb[0].mxu0 %v350
      %v2042 = vpop.f32.mrb[0].mxu0
      %v2043 = vadd.f32 0.0, %v2042
      %v2044 = vpop.f32.mrb[0].mxu0
      %v2045 = vadd.f32 0.0, %v2044
      %2046 = vmatprep.mubr.f32.mxu0 0.0
      %2047 = vmatmul.mubr.f32.gmra.mrb[0].mxu0 %v351
      %v2048 = vpop.f32.mrb[0].mxu0
      %v2049 = vadd.f32 0.0, %v2048
      %v2050 = vpop.f32.mrb[0].mxu0
      %v2051 = vadd.f32 0.0, %v2050
      %2052 = vmatprep.mubr.f32.mxu0 0.0
      %2053 = vmatmul.mubr.f32.gmra.mrb[0].mxu0 %v352
      %v2054 = vpop.f32.mrb[0].mxu0
      %v2055 = vadd.f32 0.0, %v2054
      %v2056 = vpop.f32.mrb[0].mxu0
      %v2057 = vadd.f32 0.0, %v2056
      %2058 = vmatprep.mubr.f32.mxu0 0.0
      %2059 = vmatmul.mubr.f32.gmra.mrb[0].mxu0 %v353
      %v2060 = vpop.f32.mrb[0].mxu0
      %v2061 = vadd.f32 0.0, %v2060
      %v2062 = vpop.f32.mrb[0].mxu0
      %v2063 = vadd.f32 0.0, %v2062
      %2064 = vmatprep.mubr.f32.mxu0 0.0
      %2065 = vmatmul.mubr.f32.gmra.mrb[0].mxu0 %v354
      %v2066 = vpop.f32.mrb[0].mxu0
      %v2067 = vadd.f32 0.0, %v2066
      %v2068 = vpop.f32.mrb[0].mxu0
      %v2069 = vadd.f32 0.0, %v2068
      %2070 = vmatprep.mubr.f32.mxu0 0.0
      %2071 = vmatmul.mubr.f32.gmra.mrb[0].mxu0 %v355
      %v2072 = vpop.f32.mrb[0].mxu0
      %v2073 = vadd.f32 0.0, %v2072
      %v2074 = vpop.f32.mrb[0].mxu0
      %v2075 = vadd.f32 0.0, %v2074
      %2076 = vmatprep.mubr.f32.mxu0 0.0
      %2077 = vmatmul.mubr.f32.gmra.mrb[0].mxu0 %v356
      %v2078 = vpop.f32.mrb[0].mxu0
      %v2079 = vadd.f32 0.0, %v2078
      %v2080 = vpop.f32.mrb[0].mxu0
      %v2081 = vadd.f32 0.0, %v2080
      %2082 = vmatprep.mubr.f32.mxu0 0.0
      %2083 = vmatmul.mubr.f32.gmra.mrb[0].mxu0 %v357
      %v2084 = vpop.f32.mrb[0].mxu0
      %v2085 = vadd.f32 0.0, %v2084
      %v2086 = vpop.f32.mrb[0].mxu0
      %v2087 = vadd.f32 0.0, %v2086
      %2088 = vmatprep.mubr.f32.mxu0 0.0
      %2089 = vmatmul.mubr.f32.gmra.mrb[0].mxu0 %v358
      %v2090 = vpop.f32.mrb[0].mxu0
      %v2091 = vadd.f32 0.0, %v2090
      %v2092 = vpop.f32.mrb[0].mxu0
      %v2093 = vadd.f32 0.0, %v2092
      %2094 = vmatprep.mubr.f32.mxu0 0.0
      %2095 = vmatmul.mubr.f32.gmra.mrb[0].mxu0 %v359
      %v2096 = vpop.f32.mrb[0].mxu0
      %v2097 = vadd.f32 0.0, %v2096
      %v2098 = vpop.f32.mrb[0].mxu0
      %v2099 = vadd.f32 0.0, %v2098
      %2100 = vmatprep.mubr.f32.mxu0 0.0
      %2101 = vmatmul.mubr.f32.gmra.mrb[0].mxu0 %v360
      %v2102 = vpop.f32.mrb[0].mxu0
      %v2103 = vadd.f32 0.0, %v2102
      %v2104 = vpop.f32.mrb[0].mxu0
      %v2105 = vadd.f32 0.0, %v2104
      %2106 = vmatprep.mubr.f32.mxu0 0.0
      %2107 = vmatmul.mubr.f32.gmra.mrb[0].mxu0 %v361
      %v2108 = vpop.f32.mrb[0].mxu0
      %v2109 = vadd.f32 0.0, %v2108
      %v2110 = vpop.f32.mrb[0].mxu0
      %v2111 = vadd.f32 0.0, %v2110
      %2112 = vmatprep.mubr.f32.mxu0 0.0
      %2113 = vmatmul.mubr.f32.gmra.mrb[0].mxu0 %v362
      %v2114 = vpop.f32.mrb[0].mxu0
      %v2115 = vadd.f32 0.0, %v2114
      %v2116 = vpop.f32.mrb[0].mxu0
      %v2117 = vadd.f32 0.0, %v2116
      %2118 = vmatprep.mubr.f32.mxu0 0.0
      %2119 = vmatmul.mubr.f32.gmra.mrb[0].mxu0 %v363
      %v2120 = vpop.f32.mrb[0].mxu0
      %v2121 = vadd.f32 0.0, %v2120
      %v2122 = vpop.f32.mrb[0].mxu0
      %v2123 = vadd.f32 0.0, %v2122
      %2124 = vdwg.mxu0
      %2125 = vmatprep.subr.mxu0 %v379
      %2126 = vmatpush1.msra.mxu0 %v378
      %2127 = vmatprep.subr.mxu0 %v395
      %2128 = vmatpush1.msra.mxu0 %v394
      %2129 = vmatprep.subr.mxu0 %v411
      %2130 = vmatpush1.msra.mxu0 %v410
      %2131 = vmatprep.subr.mxu0 %v427
      %2132 = vmatpush1.msra.mxu0 %v426
      %2133 = vmatprep.subr.mxu0 %v443
      %2134 = vmatpush1.msra.mxu0 %v442
      %2135 = vmatprep.subr.mxu0 %v459
      %2136 = vmatpush1.msra.mxu0 %v458
      %2137 = vmatprep.subr.mxu0 %v475
      %2138 = vmatpush1.msra.mxu0 %v474
      %2139 = vmatprep.subr.mxu0 %v491
      %2140 = vmatpush1.msra.mxu0 %v490
      %2141 = vmatprep.subr.mxu0 %v507
      %2142 = vmatpush1.msra.mxu0 %v506
      %2143 = vmatprep.subr.mxu0 %v523
      %2144 = vmatpush1.msra.mxu0 %v522
      %2145 = vmatprep.subr.mxu0 %v539
      %2146 = vmatpush1.msra.mxu0 %v538
      %2147 = vmatprep.subr.mxu0 %v555
      %2148 = vmatpush1.msra.mxu0 %v554
      %2149 = vmatprep.subr.mxu0 %v571
      %2150 = vmatpush1.msra.mxu0 %v570
      %2151 = vmatprep.subr.mxu0 %v587
      %2152 = vmatpush1.msra.mxu0 %v586
      %2153 = vmatprep.subr.mxu0 %v603
      %2154 = vmatpush1.msra.mxu0 %v602
      %2155 = vmatprep.subr.mxu0 %v619
      %2156 = vmatpush1.msra.mxu0 %v618
      %2157 = vmatprep.subr.mxu0 0.0
      %2158 = vmatpush1.msra.mxu0 0.0
      %2159 = vmatprep.subr.mxu0 0.0
      %2160 = vmatpush1.msra.mxu0 0.0
      %2161 = vmatprep.subr.mxu0 0.0
      %2162 = vmatpush1.msra.mxu0 0.0
      %2163 = vmatprep.subr.mxu0 0.0
      %2164 = vmatpush1.msra.mxu0 0.0
      %2165 = vmatprep.subr.mxu0 0.0
      %2166 = vmatpush1.msra.mxu0 0.0
      %2167 = vmatprep.subr.mxu0 0.0
      %2168 = vmatpush1.msra.mxu0 0.0
      %2169 = vmatprep.subr.mxu0 0.0
      %2170 = vmatpush1.msra.mxu0 0.0
      %2171 = vmatprep.subr.mxu0 0.0
      %2172 = vmatpush1.msra.mxu0 0.0
      %2173 = vmatprep.subr.mxu0 0.0
      %2174 = vmatpush1.msra.mxu0 0.0
      %2175 = vmatprep.subr.mxu0 0.0
      %2176 = vmatpush1.msra.mxu0 0.0
      %2177 = vmatprep.subr.mxu0 0.0
      %2178 = vmatpush1.msra.mxu0 0.0
      %2179 = vmatprep.subr.mxu0 0.0
      %2180 = vmatpush1.msra.mxu0 0.0
      %2181 = vmatprep.subr.mxu0 0.0
      %2182 = vmatpush1.msra.mxu0 0.0
      %2183 = vmatprep.subr.mxu0 0.0
      %2184 = vmatpush1.msra.mxu0 0.0
      %2185 = vmatprep.subr.mxu0 0.0
      %2186 = vmatpush1.msra.mxu0 0.0
      %2187 = vmatprep.subr.mxu0 0.0
      %2188 = vmatpush1.msra.mxu0 0.0
      %2189 = vmatprep.mubr.f32.mxu0 0.0
      %2190 = vmatmul.mubr.f32.gmra.mrb[0].mxu0 %v339
      %v2191 = vpop.f32.mrb[0].mxu0
      %v2192 = vadd.f32 0.0, %v2191
      %v2193 = vpop.f32.mrb[0].mxu0
      %v2194 = vadd.f32 0.0, %v2193
      %2195 = vmatprep.mubr.f32.mxu0 0.0
      %2196 = vmatmul.mubr.f32.gmra.mrb[0].mxu0 %v340
      %v2197 = vpop.f32.mrb[0].mxu0
      %v2198 = vadd.f32 0.0, %v2197
      %v2199 = vpop.f32.mrb[0].mxu0
      %v2200 = vadd.f32 0.0, %v2199
      %2201 = vmatprep.mubr.f32.mxu0 0.0
      %2202 = vmatmul.mubr.f32.gmra.mrb[0].mxu0 %v341
      %v2203 = vpop.f32.mrb[0].mxu0
      %v2204 = vadd.f32 0.0, %v2203
      %v2205 = vpop.f32.mrb[0].mxu0
      %v2206 = vadd.f32 0.0, %v2205
      %2207 = vmatprep.mubr.f32.mxu0 0.0
      %2208 = vmatmul.mubr.f32.gmra.mrb[0].mxu0 %v342
      %v2209 = vpop.f32.mrb[0].mxu0
      %v2210 = vadd.f32 0.0, %v2209
      %v2211 = vpop.f32.mrb[0].mxu0
      %v2212 = vadd.f32 0.0, %v2211
      %2213 = vmatprep.mubr.f32.mxu0 0.0
      %2214 = vmatmul.mubr.f32.gmra.mrb[0].mxu0 %v343
      %v2215 = vpop.f32.mrb[0].mxu0
      %v2216 = vadd.f32 0.0, %v2215
      %v2217 = vpop.f32.mrb[0].mxu0
      %v2218 = vadd.f32 0.0, %v2217
      %2219 = vmatprep.mubr.f32.mxu0 0.0
      %2220 = vmatmul.mubr.f32.gmra.mrb[0].mxu0 %v344
      %v2221 = vpop.f32.mrb[0].mxu0
      %v2222 = vadd.f32 0.0, %v2221
      %v2223 = vpop.f32.mrb[0].mxu0
      %v2224 = vadd.f32 0.0, %v2223
      %2225 = vmatprep.mubr.f32.mxu0 0.0
      %2226 = vmatmul.mubr.f32.gmra.mrb[0].mxu0 %v345
      %v2227 = vpop.f32.mrb[0].mxu0
      %v2228 = vadd.f32 0.0, %v2227
      %v2229 = vpop.f32.mrb[0].mxu0
      %v2230 = vadd.f32 0.0, %v2229
      %2231 = vmatprep.mubr.f32.mxu0 0.0
      %2232 = vmatmul.mubr.f32.gmra.mrb[0].mxu0 %v346
      %v2233 = vpop.f32.mrb[0].mxu0
      %v2234 = vadd.f32 0.0, %v2233
      %v2235 = vpop.f32.mrb[0].mxu0
      %v2236 = vadd.f32 0.0, %v2235
      %2237 = vmatprep.mubr.f32.mxu0 0.0
      %2238 = vmatmul.mubr.f32.gmra.mrb[0].mxu0 %v347
      %v2239 = vpop.f32.mrb[0].mxu0
      %v2240 = vadd.f32 0.0, %v2239
      %v2241 = vpop.f32.mrb[0].mxu0
      %v2242 = vadd.f32 0.0, %v2241
      %2243 = vmatprep.mubr.f32.mxu0 0.0
      %2244 = vmatmul.mubr.f32.gmra.mrb[0].mxu0 %v348
      %v2245 = vpop.f32.mrb[0].mxu0
      %v2246 = vadd.f32 0.0, %v2245
      %v2247 = vpop.f32.mrb[0].mxu0
      %v2248 = vadd.f32 0.0, %v2247
      %2249 = vmatprep.mubr.f32.mxu0 0.0
      %2250 = vmatmul.mubr.f32.gmra.mrb[0].mxu0 %v349
      %v2251 = vpop.f32.mrb[0].mxu0
      %v2252 = vadd.f32 0.0, %v2251
      %v2253 = vpop.f32.mrb[0].mxu0
      %v2254 = vadd.f32 0.0, %v2253
      %2255 = vmatprep.mubr.f32.mxu0 0.0
      %2256 = vmatmul.mubr.f32.gmra.mrb[0].mxu0 %v350
      %v2257 = vpop.f32.mrb[0].mxu0
      %v2258 = vadd.f32 0.0, %v2257
      %v2259 = vpop.f32.mrb[0].mxu0
      %v2260 = vadd.f32 0.0, %v2259
      %2261 = vmatprep.mubr.f32.mxu0 0.0
      %2262 = vmatmul.mubr.f32.gmra.mrb[0].mxu0 %v351
      %v2263 = vpop.f32.mrb[0].mxu0
      %v2264 = vadd.f32 0.0, %v2263
      %v2265 = vpop.f32.mrb[0].mxu0
      %v2266 = vadd.f32 0.0, %v2265
      %2267 = vmatprep.mubr.f32.mxu0 0.0
      %2268 = vmatmul.mubr.f32.gmra.mrb[0].mxu0 %v352
      %v2269 = vpop.f32.mrb[0].mxu0
      %v2270 = vadd.f32 0.0, %v2269
      %v2271 = vpop.f32.mrb[0].mxu0
      %v2272 = vadd.f32 0.0, %v2271
      %2273 = vmatprep.mubr.f32.mxu0 0.0
      %2274 = vmatmul.mubr.f32.gmra.mrb[0].mxu0 %v353
      %v2275 = vpop.f32.mrb[0].mxu0
      %v2276 = vadd.f32 0.0, %v2275
      %v2277 = vpop.f32.mrb[0].mxu0
      %v2278 = vadd.f32 0.0, %v2277
      %2279 = vmatprep.mubr.f32.mxu0 0.0
      %2280 = vmatmul.mubr.f32.gmra.mrb[0].mxu0 %v354
      %v2281 = vpop.f32.mrb[0].mxu0
      %v2282 = vadd.f32 0.0, %v2281
      %v2283 = vpop.f32.mrb[0].mxu0
      %v2284 = vadd.f32 0.0, %v2283
      %2285 = vmatprep.mubr.f32.mxu0 0.0
      %2286 = vmatmul.mubr.f32.gmra.mrb[0].mxu0 %v355
      %v2287 = vpop.f32.mrb[0].mxu0
      %v2288 = vadd.f32 0.0, %v2287
      %v2289 = vpop.f32.mrb[0].mxu0
      %v2290 = vadd.f32 0.0, %v2289
      %2291 = vmatprep.mubr.f32.mxu0 0.0
      %2292 = vmatmul.mubr.f32.gmra.mrb[0].mxu0 %v356
      %v2293 = vpop.f32.mrb[0].mxu0
      %v2294 = vadd.f32 0.0, %v2293
      %v2295 = vpop.f32.mrb[0].mxu0
      %v2296 = vadd.f32 0.0, %v2295
      %2297 = vmatprep.mubr.f32.mxu0 0.0
      %2298 = vmatmul.mubr.f32.gmra.mrb[0].mxu0 %v357
      %v2299 = vpop.f32.mrb[0].mxu0
      %v2300 = vadd.f32 0.0, %v2299
      %v2301 = vpop.f32.mrb[0].mxu0
      %v2302 = vadd.f32 0.0, %v2301
      %2303 = vmatprep.mubr.f32.mxu0 0.0
      %2304 = vmatmul.mubr.f32.gmra.mrb[0].mxu0 %v358
      %v2305 = vpop.f32.mrb[0].mxu0
      %v2306 = vadd.f32 0.0, %v2305
      %v2307 = vpop.f32.mrb[0].mxu0
      %v2308 = vadd.f32 0.0, %v2307
      %2309 = vmatprep.mubr.f32.mxu0 0.0
      %2310 = vmatmul.mubr.f32.gmra.mrb[0].mxu0 %v359
      %v2311 = vpop.f32.mrb[0].mxu0
      %v2312 = vadd.f32 0.0, %v2311
      %v2313 = vpop.f32.mrb[0].mxu0
      %v2314 = vadd.f32 0.0, %v2313
      %2315 = vmatprep.mubr.f32.mxu0 0.0
      %2316 = vmatmul.mubr.f32.gmra.mrb[0].mxu0 %v360
      %v2317 = vpop.f32.mrb[0].mxu0
      %v2318 = vadd.f32 0.0, %v2317
      %v2319 = vpop.f32.mrb[0].mxu0
      %v2320 = vadd.f32 0.0, %v2319
      %2321 = vmatprep.mubr.f32.mxu0 0.0
      %2322 = vmatmul.mubr.f32.gmra.mrb[0].mxu0 %v361
      %v2323 = vpop.f32.mrb[0].mxu0
      %v2324 = vadd.f32 0.0, %v2323
      %v2325 = vpop.f32.mrb[0].mxu0
      %v2326 = vadd.f32 0.0, %v2325
      %2327 = vmatprep.mubr.f32.mxu0 0.0
      %2328 = vmatmul.mubr.f32.gmra.mrb[0].mxu0 %v362
      %v2329 = vpop.f32.mrb[0].mxu0
      %v2330 = vadd.f32 0.0, %v2329
      %v2331 = vpop.f32.mrb[0].mxu0
      %v2332 = vadd.f32 0.0, %v2331
      %2333 = vmatprep.mubr.f32.mxu0 0.0
      %2334 = vmatmul.mubr.f32.gmra.mrb[0].mxu0 %v363
      %v2335 = vpop.f32.mrb[0].mxu0
      %v2336 = vadd.f32 0.0, %v2335
      %v2337 = vpop.f32.mrb[0].mxu0
      %v2338 = vadd.f32 0.0, %v2337
      %2339 = vdwg.mxu0
      %v2340 = vmax.f32 %v687, 0.0
      %v2341 = vmax.f32 %v689, 0.0
      %v2342 = vmax.f32 %v902, 0.0
      %v2343 = vmax.f32 %v904, 0.0
      %v2344 = vmax.f32 %v1117, 0.0
      %v2345 = vmax.f32 %v1119, 0.0
      %v2346 = vmax.f32 %v1332, 0.0
      %v2347 = vmax.f32 %v1334, 0.0
      %v2348 = vmax.f32 %v1547, 0.0
      %v2349 = vmax.f32 %v1549, 0.0
      %v2350 = vmax.f32 %v1762, 0.0
      %v2351 = vmax.f32 %v1764, 0.0
      %v2352 = vmax.f32 %v1977, 0.0
      %v2353 = vmax.f32 %v1979, 0.0
      %v2354 = vmax.f32 %v2192, 0.0
      %v2355 = vmax.f32 %v2194, 0.0
      %v2356 = vmax.f32 %v693, 0.0
      %v2357 = vmax.f32 %v695, 0.0
      %v2358 = vmax.f32 %v908, 0.0
      %v2359 = vmax.f32 %v910, 0.0
      %v2360 = vmax.f32 %v1123, 0.0
      %v2361 = vmax.f32 %v1125, 0.0
      %v2362 = vmax.f32 %v1338, 0.0
      %v2363 = vmax.f32 %v1340, 0.0
      %v2364 = vmax.f32 %v1553, 0.0
      %v2365 = vmax.f32 %v1555, 0.0
      %v2366 = vmax.f32 %v1768, 0.0
      %v2367 = vmax.f32 %v1770, 0.0
      %v2368 = vmax.f32 %v1983, 0.0
      %v2369 = vmax.f32 %v1985, 0.0
      %v2370 = vmax.f32 %v2198, 0.0
      %v2371 = vmax.f32 %v2200, 0.0
      %v2372 = vmax.f32 %v699, 0.0
      %v2373 = vmax.f32 %v701, 0.0
      %v2374 = vmax.f32 %v914, 0.0
      %v2375 = vmax.f32 %v916, 0.0
      %v2376 = vmax.f32 %v1129, 0.0
      %v2377 = vmax.f32 %v1131, 0.0
      %v2378 = vmax.f32 %v1344, 0.0
      %v2379 = vmax.f32 %v1346, 0.0
      %v2380 = vmax.f32 %v1559, 0.0
      %v2381 = vmax.f32 %v1561, 0.0
      %v2382 = vmax.f32 %v1774, 0.0
      %v2383 = vmax.f32 %v1776, 0.0
      %v2384 = vmax.f32 %v1989, 0.0
      %v2385 = vmax.f32 %v1991, 0.0
      %v2386 = vmax.f32 %v2204, 0.0
      %v2387 = vmax.f32 %v2206, 0.0
      %v2388 = vmax.f32 %v705, 0.0
      %v2389 = vmax.f32 %v707, 0.0
      %v2390 = vmax.f32 %v920, 0.0
      %v2391 = vmax.f32 %v922, 0.0
      %v2392 = vmax.f32 %v1135, 0.0
      %v2393 = vmax.f32 %v1137, 0.0
      %v2394 = vmax.f32 %v1350, 0.0
      %v2395 = vmax.f32 %v1352, 0.0
      %v2396 = vmax.f32 %v1565, 0.0
      %v2397 = vmax.f32 %v1567, 0.0
      %v2398 = vmax.f32 %v1780, 0.0
      %v2399 = vmax.f32 %v1782, 0.0
      %v2400 = vmax.f32 %v1995, 0.0
      %v2401 = vmax.f32 %v1997, 0.0
      %v2402 = vmax.f32 %v2210, 0.0
      %v2403 = vmax.f32 %v2212, 0.0
      %v2404 = vmax.f32 %v711, 0.0
      %v2405 = vmax.f32 %v713, 0.0
      %v2406 = vmax.f32 %v926, 0.0
      %v2407 = vmax.f32 %v928, 0.0
      %v2408 = vmax.f32 %v1141, 0.0
      %v2409 = vmax.f32 %v1143, 0.0
      %v2410 = vmax.f32 %v1356, 0.0
      %v2411 = vmax.f32 %v1358, 0.0
      %v2412 = vmax.f32 %v1571, 0.0
      %v2413 = vmax.f32 %v1573, 0.0
      %v2414 = vmax.f32 %v1786, 0.0
      %v2415 = vmax.f32 %v1788, 0.0
      %v2416 = vmax.f32 %v2001, 0.0
      %v2417 = vmax.f32 %v2003, 0.0
      %v2418 = vmax.f32 %v2216, 0.0
      %v2419 = vmax.f32 %v2218, 0.0
      %v2420 = vmax.f32 %v717, 0.0
      %v2421 = vmax.f32 %v719, 0.0
      %v2422 = vmax.f32 %v932, 0.0
      %v2423 = vmax.f32 %v934, 0.0
      %v2424 = vmax.f32 %v1147, 0.0
      %v2425 = vmax.f32 %v1149, 0.0
      %v2426 = vmax.f32 %v1362, 0.0
      %v2427 = vmax.f32 %v1364, 0.0
      %v2428 = vmax.f32 %v1577, 0.0
      %v2429 = vmax.f32 %v1579, 0.0
      %v2430 = vmax.f32 %v1792, 0.0
      %v2431 = vmax.f32 %v1794, 0.0
      %v2432 = vmax.f32 %v2007, 0.0
      %v2433 = vmax.f32 %v2009, 0.0
      %v2434 = vmax.f32 %v2222, 0.0
      %v2435 = vmax.f32 %v2224, 0.0
      %v2436 = vmax.f32 %v723, 0.0
      %v2437 = vmax.f32 %v725, 0.0
      %v2438 = vmax.f32 %v938, 0.0
      %v2439 = vmax.f32 %v940, 0.0
      %v2440 = vmax.f32 %v1153, 0.0
      %v2441 = vmax.f32 %v1155, 0.0
      %v2442 = vmax.f32 %v1368, 0.0
      %v2443 = vmax.f32 %v1370, 0.0
      %v2444 = vmax.f32 %v1583, 0.0
      %v2445 = vmax.f32 %v1585, 0.0
      %v2446 = vmax.f32 %v1798, 0.0
      %v2447 = vmax.f32 %v1800, 0.0
      %v2448 = vmax.f32 %v2013, 0.0
      %v2449 = vmax.f32 %v2015, 0.0
      %v2450 = vmax.f32 %v2228, 0.0
      %v2451 = vmax.f32 %v2230, 0.0
      %v2452 = vmax.f32 %v729, 0.0
      %v2453 = vmax.f32 %v731, 0.0
      %v2454 = vmax.f32 %v944, 0.0
      %v2455 = vmax.f32 %v946, 0.0
      %v2456 = vmax.f32 %v1159, 0.0
      %v2457 = vmax.f32 %v1161, 0.0
      %v2458 = vmax.f32 %v1374, 0.0
      %v2459 = vmax.f32 %v1376, 0.0
      %v2460 = vmax.f32 %v1589, 0.0
      %v2461 = vmax.f32 %v1591, 0.0
      %v2462 = vmax.f32 %v1804, 0.0
      %v2463 = vmax.f32 %v1806, 0.0
      %v2464 = vmax.f32 %v2019, 0.0
      %v2465 = vmax.f32 %v2021, 0.0
      %v2466 = vmax.f32 %v2234, 0.0
      %v2467 = vmax.f32 %v2236, 0.0
      %v2468 = vmax.f32 %v735, 0.0
      %v2469 = vmax.f32 %v737, 0.0
      %v2470 = vmax.f32 %v950, 0.0
      %v2471 = vmax.f32 %v952, 0.0
      %v2472 = vmax.f32 %v1165, 0.0
      %v2473 = vmax.f32 %v1167, 0.0
      %v2474 = vmax.f32 %v1380, 0.0
      %v2475 = vmax.f32 %v1382, 0.0
      %v2476 = vmax.f32 %v1595, 0.0
      %v2477 = vmax.f32 %v1597, 0.0
      %v2478 = vmax.f32 %v1810, 0.0
      %v2479 = vmax.f32 %v1812, 0.0
      %v2480 = vmax.f32 %v2025, 0.0
      %v2481 = vmax.f32 %v2027, 0.0
      %v2482 = vmax.f32 %v2240, 0.0
      %v2483 = vmax.f32 %v2242, 0.0
      %v2484 = vmax.f32 %v741, 0.0
      %v2485 = vmax.f32 %v743, 0.0
      %v2486 = vmax.f32 %v956, 0.0
      %v2487 = vmax.f32 %v958, 0.0
      %v2488 = vmax.f32 %v1171, 0.0
      %v2489 = vmax.f32 %v1173, 0.0
      %v2490 = vmax.f32 %v1386, 0.0
      %v2491 = vmax.f32 %v1388, 0.0
      %v2492 = vmax.f32 %v1601, 0.0
      %v2493 = vmax.f32 %v1603, 0.0
      %v2494 = vmax.f32 %v1816, 0.0
      %v2495 = vmax.f32 %v1818, 0.0
      %v2496 = vmax.f32 %v2031, 0.0
      %v2497 = vmax.f32 %v2033, 0.0
      %v2498 = vmax.f32 %v2246, 0.0
      %v2499 = vmax.f32 %v2248, 0.0
      %v2500 = vmax.f32 %v747, 0.0
      %v2501 = vmax.f32 %v749, 0.0
      %v2502 = vmax.f32 %v962, 0.0
      %v2503 = vmax.f32 %v964, 0.0
      %v2504 = vmax.f32 %v1177, 0.0
      %v2505 = vmax.f32 %v1179, 0.0
      %v2506 = vmax.f32 %v1392, 0.0
      %v2507 = vmax.f32 %v1394, 0.0
      %v2508 = vmax.f32 %v1607, 0.0
      %v2509 = vmax.f32 %v1609, 0.0
      %v2510 = vmax.f32 %v1822, 0.0
      %v2511 = vmax.f32 %v1824, 0.0
      %v2512 = vmax.f32 %v2037, 0.0
      %v2513 = vmax.f32 %v2039, 0.0
      %v2514 = vmax.f32 %v2252, 0.0
      %v2515 = vmax.f32 %v2254, 0.0
      %v2516 = vmax.f32 %v753, 0.0
      %v2517 = vmax.f32 %v755, 0.0
      %v2518 = vmax.f32 %v968, 0.0
      %v2519 = vmax.f32 %v970, 0.0
      %v2520 = vmax.f32 %v1183, 0.0
      %v2521 = vmax.f32 %v1185, 0.0
      %v2522 = vmax.f32 %v1398, 0.0
      %v2523 = vmax.f32 %v1400, 0.0
      %v2524 = vmax.f32 %v1613, 0.0
      %v2525 = vmax.f32 %v1615, 0.0
      %v2526 = vmax.f32 %v1828, 0.0
      %v2527 = vmax.f32 %v1830, 0.0
      %v2528 = vmax.f32 %v2043, 0.0
      %v2529 = vmax.f32 %v2045, 0.0
      %v2530 = vmax.f32 %v2258, 0.0
      %v2531 = vmax.f32 %v2260, 0.0
      %v2532 = vmax.f32 %v759, 0.0
      %v2533 = vmax.f32 %v761, 0.0
      %v2534 = vmax.f32 %v974, 0.0
      %v2535 = vmax.f32 %v976, 0.0
      %v2536 = vmax.f32 %v1189, 0.0
      %v2537 = vmax.f32 %v1191, 0.0
      %v2538 = vmax.f32 %v1404, 0.0
      %v2539 = vmax.f32 %v1406, 0.0
      %v2540 = vmax.f32 %v1619, 0.0
      %v2541 = vmax.f32 %v1621, 0.0
      %v2542 = vmax.f32 %v1834, 0.0
      %v2543 = vmax.f32 %v1836, 0.0
      %v2544 = vmax.f32 %v2049, 0.0
      %v2545 = vmax.f32 %v2051, 0.0
      %v2546 = vmax.f32 %v2264, 0.0
      %v2547 = vmax.f32 %v2266, 0.0
      %v2548 = vmax.f32 %v765, 0.0
      %v2549 = vmax.f32 %v767, 0.0
      %v2550 = vmax.f32 %v980, 0.0
      %v2551 = vmax.f32 %v982, 0.0
      %v2552 = vmax.f32 %v1195, 0.0
      %v2553 = vmax.f32 %v1197, 0.0
      %v2554 = vmax.f32 %v1410, 0.0
      %v2555 = vmax.f32 %v1412, 0.0
      %v2556 = vmax.f32 %v1625, 0.0
      %v2557 = vmax.f32 %v1627, 0.0
      %v2558 = vmax.f32 %v1840, 0.0
      %v2559 = vmax.f32 %v1842, 0.0
      %v2560 = vmax.f32 %v2055, 0.0
      %v2561 = vmax.f32 %v2057, 0.0
      %v2562 = vmax.f32 %v2270, 0.0
      %v2563 = vmax.f32 %v2272, 0.0
      %v2564 = vmax.f32 %v771, 0.0
      %v2565 = vmax.f32 %v773, 0.0
      %v2566 = vmax.f32 %v986, 0.0
      %v2567 = vmax.f32 %v988, 0.0
      %v2568 = vmax.f32 %v1201, 0.0
      %v2569 = vmax.f32 %v1203, 0.0
      %v2570 = vmax.f32 %v1416, 0.0
      %v2571 = vmax.f32 %v1418, 0.0
      %v2572 = vmax.f32 %v1631, 0.0
      %v2573 = vmax.f32 %v1633, 0.0
      %v2574 = vmax.f32 %v1846, 0.0
      %v2575 = vmax.f32 %v1848, 0.0
      %v2576 = vmax.f32 %v2061, 0.0
      %v2577 = vmax.f32 %v2063, 0.0
      %v2578 = vmax.f32 %v2276, 0.0
      %v2579 = vmax.f32 %v2278, 0.0
      %v2580 = vmax.f32 %v777, 0.0
      %v2581 = vmax.f32 %v779, 0.0
      %v2582 = vmax.f32 %v992, 0.0
      %v2583 = vmax.f32 %v994, 0.0
      %v2584 = vmax.f32 %v1207, 0.0
      %v2585 = vmax.f32 %v1209, 0.0
      %v2586 = vmax.f32 %v1422, 0.0
      %v2587 = vmax.f32 %v1424, 0.0
      %v2588 = vmax.f32 %v1637, 0.0
      %v2589 = vmax.f32 %v1639, 0.0
      %v2590 = vmax.f32 %v1852, 0.0
      %v2591 = vmax.f32 %v1854, 0.0
      %v2592 = vmax.f32 %v2067, 0.0
      %v2593 = vmax.f32 %v2069, 0.0
      %v2594 = vmax.f32 %v2282, 0.0
      %v2595 = vmax.f32 %v2284, 0.0
      %v2596 = vmax.f32 %v783, 0.0
      %v2597 = vmax.f32 %v785, 0.0
      %v2598 = vmax.f32 %v998, 0.0
      %v2599 = vmax.f32 %v1000, 0.0
      %v2600 = vmax.f32 %v1213, 0.0
      %v2601 = vmax.f32 %v1215, 0.0
      %v2602 = vmax.f32 %v1428, 0.0
      %v2603 = vmax.f32 %v1430, 0.0
      %v2604 = vmax.f32 %v1643, 0.0
      %v2605 = vmax.f32 %v1645, 0.0
      %v2606 = vmax.f32 %v1858, 0.0
      %v2607 = vmax.f32 %v1860, 0.0
      %v2608 = vmax.f32 %v2073, 0.0
      %v2609 = vmax.f32 %v2075, 0.0
      %v2610 = vmax.f32 %v2288, 0.0
      %v2611 = vmax.f32 %v2290, 0.0
      %v2612 = vmax.f32 %v789, 0.0
      %v2613 = vmax.f32 %v791, 0.0
      %v2614 = vmax.f32 %v1004, 0.0
      %v2615 = vmax.f32 %v1006, 0.0
      %v2616 = vmax.f32 %v1219, 0.0
      %v2617 = vmax.f32 %v1221, 0.0
      %v2618 = vmax.f32 %v1434, 0.0
      %v2619 = vmax.f32 %v1436, 0.0
      %v2620 = vmax.f32 %v1649, 0.0
      %v2621 = vmax.f32 %v1651, 0.0
      %v2622 = vmax.f32 %v1864, 0.0
      %v2623 = vmax.f32 %v1866, 0.0
      %v2624 = vmax.f32 %v2079, 0.0
      %v2625 = vmax.f32 %v2081, 0.0
      %v2626 = vmax.f32 %v2294, 0.0
      %v2627 = vmax.f32 %v2296, 0.0
      %v2628 = vmax.f32 %v795, 0.0
      %v2629 = vmax.f32 %v797, 0.0
      %v2630 = vmax.f32 %v1010, 0.0
      %v2631 = vmax.f32 %v1012, 0.0
      %v2632 = vmax.f32 %v1225, 0.0
      %v2633 = vmax.f32 %v1227, 0.0
      %v2634 = vmax.f32 %v1440, 0.0
      %v2635 = vmax.f32 %v1442, 0.0
      %v2636 = vmax.f32 %v1655, 0.0
      %v2637 = vmax.f32 %v1657, 0.0
      %v2638 = vmax.f32 %v1870, 0.0
      %v2639 = vmax.f32 %v1872, 0.0
      %v2640 = vmax.f32 %v2085, 0.0
      %v2641 = vmax.f32 %v2087, 0.0
      %v2642 = vmax.f32 %v2300, 0.0
      %v2643 = vmax.f32 %v2302, 0.0
      %v2644 = vmax.f32 %v801, 0.0
      %v2645 = vmax.f32 %v803, 0.0
      %v2646 = vmax.f32 %v1016, 0.0
      %v2647 = vmax.f32 %v1018, 0.0
      %v2648 = vmax.f32 %v1231, 0.0
      %v2649 = vmax.f32 %v1233, 0.0
      %v2650 = vmax.f32 %v1446, 0.0
      %v2651 = vmax.f32 %v1448, 0.0
      %v2652 = vmax.f32 %v1661, 0.0
      %v2653 = vmax.f32 %v1663, 0.0
      %v2654 = vmax.f32 %v1876, 0.0
      %v2655 = vmax.f32 %v1878, 0.0
      %v2656 = vmax.f32 %v2091, 0.0
      %v2657 = vmax.f32 %v2093, 0.0
      %v2658 = vmax.f32 %v2306, 0.0
      %v2659 = vmax.f32 %v2308, 0.0
      %v2660 = vmax.f32 %v807, 0.0
      %v2661 = vmax.f32 %v809, 0.0
      %v2662 = vmax.f32 %v1022, 0.0
      %v2663 = vmax.f32 %v1024, 0.0
      %v2664 = vmax.f32 %v1237, 0.0
      %v2665 = vmax.f32 %v1239, 0.0
      %v2666 = vmax.f32 %v1452, 0.0
      %v2667 = vmax.f32 %v1454, 0.0
      %v2668 = vmax.f32 %v1667, 0.0
      %v2669 = vmax.f32 %v1669, 0.0
      %v2670 = vmax.f32 %v1882, 0.0
      %v2671 = vmax.f32 %v1884, 0.0
      %v2672 = vmax.f32 %v2097, 0.0
      %v2673 = vmax.f32 %v2099, 0.0
      %v2674 = vmax.f32 %v2312, 0.0
      %v2675 = vmax.f32 %v2314, 0.0
      %v2676 = vmax.f32 %v813, 0.0
      %v2677 = vmax.f32 %v815, 0.0
      %v2678 = vmax.f32 %v1028, 0.0
      %v2679 = vmax.f32 %v1030, 0.0
      %v2680 = vmax.f32 %v1243, 0.0
      %v2681 = vmax.f32 %v1245, 0.0
      %v2682 = vmax.f32 %v1458, 0.0
      %v2683 = vmax.f32 %v1460, 0.0
      %v2684 = vmax.f32 %v1673, 0.0
      %v2685 = vmax.f32 %v1675, 0.0
      %v2686 = vmax.f32 %v1888, 0.0
      %v2687 = vmax.f32 %v1890, 0.0
      %v2688 = vmax.f32 %v2103, 0.0
      %v2689 = vmax.f32 %v2105, 0.0
      %v2690 = vmax.f32 %v2318, 0.0
      %v2691 = vmax.f32 %v2320, 0.0
      %v2692 = vmax.f32 %v819, 0.0
      %v2693 = vmax.f32 %v821, 0.0
      %v2694 = vmax.f32 %v1034, 0.0
      %v2695 = vmax.f32 %v1036, 0.0
      %v2696 = vmax.f32 %v1249, 0.0
      %v2697 = vmax.f32 %v1251, 0.0
      %v2698 = vmax.f32 %v1464, 0.0
      %v2699 = vmax.f32 %v1466, 0.0
      %v2700 = vmax.f32 %v1679, 0.0
      %v2701 = vmax.f32 %v1681, 0.0
      %v2702 = vmax.f32 %v1894, 0.0
      %v2703 = vmax.f32 %v1896, 0.0
      %v2704 = vmax.f32 %v2109, 0.0
      %v2705 = vmax.f32 %v2111, 0.0
      %v2706 = vmax.f32 %v2324, 0.0
      %v2707 = vmax.f32 %v2326, 0.0
      %v2708 = vmax.f32 %v825, 0.0
      %v2709 = vmax.f32 %v827, 0.0
      %v2710 = vmax.f32 %v1040, 0.0
      %v2711 = vmax.f32 %v1042, 0.0
      %v2712 = vmax.f32 %v1255, 0.0
      %v2713 = vmax.f32 %v1257, 0.0
      %v2714 = vmax.f32 %v1470, 0.0
      %v2715 = vmax.f32 %v1472, 0.0
      %v2716 = vmax.f32 %v1685, 0.0
      %v2717 = vmax.f32 %v1687, 0.0
      %v2718 = vmax.f32 %v1900, 0.0
      %v2719 = vmax.f32 %v1902, 0.0
      %v2720 = vmax.f32 %v2115, 0.0
      %v2721 = vmax.f32 %v2117, 0.0
      %v2722 = vmax.f32 %v2330, 0.0
      %v2723 = vmax.f32 %v2332, 0.0
      %v2724 = vmax.f32 %v831, 0.0
      %v2725 = vmax.f32 %v833, 0.0
      %v2726 = vmax.f32 %v1046, 0.0
      %v2727 = vmax.f32 %v1048, 0.0
      %v2728 = vmax.f32 %v1261, 0.0
      %v2729 = vmax.f32 %v1263, 0.0
      %v2730 = vmax.f32 %v1476, 0.0
      %v2731 = vmax.f32 %v1478, 0.0
      %v2732 = vmax.f32 %v1691, 0.0
      %v2733 = vmax.f32 %v1693, 0.0
      %v2734 = vmax.f32 %v1906, 0.0
      %v2735 = vmax.f32 %v1908, 0.0
      %v2736 = vmax.f32 %v2121, 0.0
      %v2737 = vmax.f32 %v2123, 0.0
      %v2738 = vmax.f32 %v2336, 0.0
      %v2739 = vmax.f32 %v2338, 0.0
      %v2740 = vld [vmem:[%s2] sm:$0xff]
      %v2741 = vld [vmem:[%s2 + $0x8] sm:$0xff]
      %v2744 = vlaneseq
      %v2745 = vshrl.u32 %v2744, 7
      %v2746 = vsub.s32 0, %v2745
      %v2747 = vrot.slane %v2740, %v2746
      %v2748 = vlaneseq
      %v2749 = vshrl.u32 %v2748, 7
      %v2750 = vsub.s32 1, %v2749
      %v2751 = vrot.slane %v2740, %v2750
      %v2752 = vlaneseq
      %v2753 = vshrl.u32 %v2752, 7
      %v2754 = vsub.s32 2, %v2753
      %v2755 = vrot.slane %v2740, %v2754
      %v2756 = vlaneseq
      %v2757 = vshrl.u32 %v2756, 7
      %v2758 = vsub.s32 3, %v2757
      %v2759 = vrot.slane %v2740, %v2758
      %v2760 = vlaneseq
      %v2761 = vshrl.u32 %v2760, 7
      %v2762 = vsub.s32 4, %v2761
      %v2763 = vrot.slane %v2740, %v2762
      %v2764 = vlaneseq
      %v2765 = vshrl.u32 %v2764, 7
      %v2766 = vsub.s32 5, %v2765
      %v2767 = vrot.slane %v2740, %v2766
      %v2768 = vlaneseq
      %v2769 = vshrl.u32 %v2768, 7
      %v2770 = vsub.s32 6, %v2769
      %v2771 = vrot.slane %v2740, %v2770
      %v2772 = vlaneseq
      %v2773 = vshrl.u32 %v2772, 7
      %v2774 = vsub.s32 7, %v2773
      %v2775 = vrot.slane %v2740, %v2774
      %v2776 = vlaneseq
      %v2777 = vshrl.u32 %v2776, 7
      %v2778 = vsub.s32 0, %v2777
      %v2779 = vrot.slane %v2741, %v2778
      %v2780 = vlaneseq
      %v2781 = vshrl.u32 %v2780, 7
      %v2782 = vsub.s32 1, %v2781
      %v2783 = vrot.slane %v2741, %v2782
      %v2784 = vlaneseq
      %v2785 = vshrl.u32 %v2784, 7
      %v2786 = vsub.s32 2, %v2785
      %v2787 = vrot.slane %v2741, %v2786
      %v2788 = vlaneseq
      %v2789 = vshrl.u32 %v2788, 7
      %v2790 = vsub.s32 3, %v2789
      %v2791 = vrot.slane %v2741, %v2790
      %v2792 = vlaneseq
      %v2793 = vshrl.u32 %v2792, 7
      %v2794 = vsub.s32 4, %v2793
      %v2795 = vrot.slane %v2741, %v2794
      %v2796 = vlaneseq
      %v2797 = vshrl.u32 %v2796, 7
      %v2798 = vsub.s32 5, %v2797
      %v2799 = vrot.slane %v2741, %v2798
      %v2800 = vlaneseq
      %v2801 = vshrl.u32 %v2800, 7
      %v2802 = vsub.s32 6, %v2801
      %v2803 = vrot.slane %v2741, %v2802
      %v2804 = vlaneseq
      %v2805 = vshrl.u32 %v2804, 7
      %v2806 = vsub.s32 7, %v2805
      %v2807 = vrot.slane %v2741, %v2806
      %v2824 = vmul.f32 %v2340, %v2747
      %v2825 = vmul.f32 %v2341, %v2751
      %v2826 = vmul.f32 %v2342, %v2755
      %v2827 = vmul.f32 %v2343, %v2759
      %v2828 = vmul.f32 %v2344, %v2763
      %v2829 = vmul.f32 %v2345, %v2767
      %v2830 = vmul.f32 %v2346, %v2771
      %v2831 = vmul.f32 %v2347, %v2775
      %v2832 = vmul.f32 %v2348, %v2779
      %v2833 = vmul.f32 %v2349, %v2783
      %v2834 = vmul.f32 %v2350, %v2787
      %v2835 = vmul.f32 %v2351, %v2791
      %v2836 = vmul.f32 %v2352, %v2795
      %v2837 = vmul.f32 %v2353, %v2799
      %v2838 = vmul.f32 %v2354, %v2803
      %v2839 = vmul.f32 %v2355, %v2807
      %v2840 = vmul.f32 %v2356, %v2747
      %v2841 = vmul.f32 %v2357, %v2751
      %v2842 = vmul.f32 %v2358, %v2755
      %v2843 = vmul.f32 %v2359, %v2759
      %v2844 = vmul.f32 %v2360, %v2763
      %v2845 = vmul.f32 %v2361, %v2767
      %v2846 = vmul.f32 %v2362, %v2771
      %v2847 = vmul.f32 %v2363, %v2775
      %v2848 = vmul.f32 %v2364, %v2779
      %v2849 = vmul.f32 %v2365, %v2783
      %v2850 = vmul.f32 %v2366, %v2787
      %v2851 = vmul.f32 %v2367, %v2791
      %v2852 = vmul.f32 %v2368, %v2795
      %v2853 = vmul.f32 %v2369, %v2799
      %v2854 = vmul.f32 %v2370, %v2803
      %v2855 = vmul.f32 %v2371, %v2807
      %v2856 = vmul.f32 %v2372, %v2747
      %v2857 = vmul.f32 %v2373, %v2751
      %v2858 = vmul.f32 %v2374, %v2755
      %v2859 = vmul.f32 %v2375, %v2759
      %v2860 = vmul.f32 %v2376, %v2763
      %v2861 = vmul.f32 %v2377, %v2767
      %v2862 = vmul.f32 %v2378, %v2771
      %v2863 = vmul.f32 %v2379, %v2775
      %v2864 = vmul.f32 %v2380, %v2779
      %v2865 = vmul.f32 %v2381, %v2783
      %v2866 = vmul.f32 %v2382, %v2787
      %v2867 = vmul.f32 %v2383, %v2791
      %v2868 = vmul.f32 %v2384, %v2795
      %v2869 = vmul.f32 %v2385, %v2799
      %v2870 = vmul.f32 %v2386, %v2803
      %v2871 = vmul.f32 %v2387, %v2807
      %v2872 = vmul.f32 %v2388, %v2747
      %v2873 = vmul.f32 %v2389, %v2751
      %v2874 = vmul.f32 %v2390, %v2755
      %v2875 = vmul.f32 %v2391, %v2759
      %v2876 = vmul.f32 %v2392, %v2763
      %v2877 = vmul.f32 %v2393, %v2767
      %v2878 = vmul.f32 %v2394, %v2771
      %v2879 = vmul.f32 %v2395, %v2775
      %v2880 = vmul.f32 %v2396, %v2779
      %v2881 = vmul.f32 %v2397, %v2783
      %v2882 = vmul.f32 %v2398, %v2787
      %v2883 = vmul.f32 %v2399, %v2791
      %v2884 = vmul.f32 %v2400, %v2795
      %v2885 = vmul.f32 %v2401, %v2799
      %v2886 = vmul.f32 %v2402, %v2803
      %v2887 = vmul.f32 %v2403, %v2807
      %v2888 = vmul.f32 %v2404, %v2747
      %v2889 = vmul.f32 %v2405, %v2751
      %v2890 = vmul.f32 %v2406, %v2755
      %v2891 = vmul.f32 %v2407, %v2759
      %v2892 = vmul.f32 %v2408, %v2763
      %v2893 = vmul.f32 %v2409, %v2767
      %v2894 = vmul.f32 %v2410, %v2771
      %v2895 = vmul.f32 %v2411, %v2775
      %v2896 = vmul.f32 %v2412, %v2779
      %v2897 = vmul.f32 %v2413, %v2783
      %v2898 = vmul.f32 %v2414, %v2787
      %v2899 = vmul.f32 %v2415, %v2791
      %v2900 = vmul.f32 %v2416, %v2795
      %v2901 = vmul.f32 %v2417, %v2799
      %v2902 = vmul.f32 %v2418, %v2803
      %v2903 = vmul.f32 %v2419, %v2807
      %v2904 = vmul.f32 %v2420, %v2747
      %v2905 = vmul.f32 %v2421, %v2751
      %v2906 = vmul.f32 %v2422, %v2755
      %v2907 = vmul.f32 %v2423, %v2759
      %v2908 = vmul.f32 %v2424, %v2763
      %v2909 = vmul.f32 %v2425, %v2767
      %v2910 = vmul.f32 %v2426, %v2771
      %v2911 = vmul.f32 %v2427, %v2775
      %v2912 = vmul.f32 %v2428, %v2779
      %v2913 = vmul.f32 %v2429, %v2783
      %v2914 = vmul.f32 %v2430, %v2787
      %v2915 = vmul.f32 %v2431, %v2791
      %v2916 = vmul.f32 %v2432, %v2795
      %v2917 = vmul.f32 %v2433, %v2799
      %v2918 = vmul.f32 %v2434, %v2803
      %v2919 = vmul.f32 %v2435, %v2807
      %v2920 = vmul.f32 %v2436, %v2747
      %v2921 = vmul.f32 %v2437, %v2751
      %v2922 = vmul.f32 %v2438, %v2755
      %v2923 = vmul.f32 %v2439, %v2759
      %v2924 = vmul.f32 %v2440, %v2763
      %v2925 = vmul.f32 %v2441, %v2767
      %v2926 = vmul.f32 %v2442, %v2771
      %v2927 = vmul.f32 %v2443, %v2775
      %v2928 = vmul.f32 %v2444, %v2779
      %v2929 = vmul.f32 %v2445, %v2783
      %v2930 = vmul.f32 %v2446, %v2787
      %v2931 = vmul.f32 %v2447, %v2791
      %v2932 = vmul.f32 %v2448, %v2795
      %v2933 = vmul.f32 %v2449, %v2799
      %v2934 = vmul.f32 %v2450, %v2803
      %v2935 = vmul.f32 %v2451, %v2807
      %v2936 = vmul.f32 %v2452, %v2747
      %v2937 = vmul.f32 %v2453, %v2751
      %v2938 = vmul.f32 %v2454, %v2755
      %v2939 = vmul.f32 %v2455, %v2759
      %v2940 = vmul.f32 %v2456, %v2763
      %v2941 = vmul.f32 %v2457, %v2767
      %v2942 = vmul.f32 %v2458, %v2771
      %v2943 = vmul.f32 %v2459, %v2775
      %v2944 = vmul.f32 %v2460, %v2779
      %v2945 = vmul.f32 %v2461, %v2783
      %v2946 = vmul.f32 %v2462, %v2787
      %v2947 = vmul.f32 %v2463, %v2791
      %v2948 = vmul.f32 %v2464, %v2795
      %v2949 = vmul.f32 %v2465, %v2799
      %v2950 = vmul.f32 %v2466, %v2803
      %v2951 = vmul.f32 %v2467, %v2807
      %v2952 = vmul.f32 %v2468, %v2747
      %v2953 = vmul.f32 %v2469, %v2751
      %v2954 = vmul.f32 %v2470, %v2755
      %v2955 = vmul.f32 %v2471, %v2759
      %v2956 = vmul.f32 %v2472, %v2763
      %v2957 = vmul.f32 %v2473, %v2767
      %v2958 = vmul.f32 %v2474, %v2771
      %v2959 = vmul.f32 %v2475, %v2775
      %v2960 = vmul.f32 %v2476, %v2779
      %v2961 = vmul.f32 %v2477, %v2783
      %v2962 = vmul.f32 %v2478, %v2787
      %v2963 = vmul.f32 %v2479, %v2791
      %v2964 = vmul.f32 %v2480, %v2795
      %v2965 = vmul.f32 %v2481, %v2799
      %v2966 = vmul.f32 %v2482, %v2803
      %v2967 = vmul.f32 %v2483, %v2807
      %v2968 = vmul.f32 %v2484, %v2747
      %v2969 = vmul.f32 %v2485, %v2751
      %v2970 = vmul.f32 %v2486, %v2755
      %v2971 = vmul.f32 %v2487, %v2759
      %v2972 = vmul.f32 %v2488, %v2763
      %v2973 = vmul.f32 %v2489, %v2767
      %v2974 = vmul.f32 %v2490, %v2771
      %v2975 = vmul.f32 %v2491, %v2775
      %v2976 = vmul.f32 %v2492, %v2779
      %v2977 = vmul.f32 %v2493, %v2783
      %v2978 = vmul.f32 %v2494, %v2787
      %v2979 = vmul.f32 %v2495, %v2791
      %v2980 = vmul.f32 %v2496, %v2795
      %v2981 = vmul.f32 %v2497, %v2799
      %v2982 = vmul.f32 %v2498, %v2803
      %v2983 = vmul.f32 %v2499, %v2807
      %v2984 = vmul.f32 %v2500, %v2747
      %v2985 = vmul.f32 %v2501, %v2751
      %v2986 = vmul.f32 %v2502, %v2755
      %v2987 = vmul.f32 %v2503, %v2759
      %v2988 = vmul.f32 %v2504, %v2763
      %v2989 = vmul.f32 %v2505, %v2767
      %v2990 = vmul.f32 %v2506, %v2771
      %v2991 = vmul.f32 %v2507, %v2775
      %v2992 = vmul.f32 %v2508, %v2779
      %v2993 = vmul.f32 %v2509, %v2783
      %v2994 = vmul.f32 %v2510, %v2787
      %v2995 = vmul.f32 %v2511, %v2791
      %v2996 = vmul.f32 %v2512, %v2795
      %v2997 = vmul.f32 %v2513, %v2799
      %v2998 = vmul.f32 %v2514, %v2803
      %v2999 = vmul.f32 %v2515, %v2807
      %v3000 = vmul.f32 %v2516, %v2747
      %v3001 = vmul.f32 %v2517, %v2751
      %v3002 = vmul.f32 %v2518, %v2755
      %v3003 = vmul.f32 %v2519, %v2759
      %v3004 = vmul.f32 %v2520, %v2763
      %v3005 = vmul.f32 %v2521, %v2767
      %v3006 = vmul.f32 %v2522, %v2771
      %v3007 = vmul.f32 %v2523, %v2775
      %v3008 = vmul.f32 %v2524, %v2779
      %v3009 = vmul.f32 %v2525, %v2783
      %v3010 = vmul.f32 %v2526, %v2787
      %v3011 = vmul.f32 %v2527, %v2791
      %v3012 = vmul.f32 %v2528, %v2795
      %v3013 = vmul.f32 %v2529, %v2799
      %v3014 = vmul.f32 %v2530, %v2803
      %v3015 = vmul.f32 %v2531, %v2807
      %v3016 = vmul.f32 %v2532, %v2747
      %v3017 = vmul.f32 %v2533, %v2751
      %v3018 = vmul.f32 %v2534, %v2755
      %v3019 = vmul.f32 %v2535, %v2759
      %v3020 = vmul.f32 %v2536, %v2763
      %v3021 = vmul.f32 %v2537, %v2767
      %v3022 = vmul.f32 %v2538, %v2771
      %v3023 = vmul.f32 %v2539, %v2775
      %v3024 = vmul.f32 %v2540, %v2779
      %v3025 = vmul.f32 %v2541, %v2783
      %v3026 = vmul.f32 %v2542, %v2787
      %v3027 = vmul.f32 %v2543, %v2791
      %v3028 = vmul.f32 %v2544, %v2795
      %v3029 = vmul.f32 %v2545, %v2799
      %v3030 = vmul.f32 %v2546, %v2803
      %v3031 = vmul.f32 %v2547, %v2807
      %v3032 = vmul.f32 %v2548, %v2747
      %v3033 = vmul.f32 %v2549, %v2751
      %v3034 = vmul.f32 %v2550, %v2755
      %v3035 = vmul.f32 %v2551, %v2759
      %v3036 = vmul.f32 %v2552, %v2763
      %v3037 = vmul.f32 %v2553, %v2767
      %v3038 = vmul.f32 %v2554, %v2771
      %v3039 = vmul.f32 %v2555, %v2775
      %v3040 = vmul.f32 %v2556, %v2779
      %v3041 = vmul.f32 %v2557, %v2783
      %v3042 = vmul.f32 %v2558, %v2787
      %v3043 = vmul.f32 %v2559, %v2791
      %v3044 = vmul.f32 %v2560, %v2795
      %v3045 = vmul.f32 %v2561, %v2799
      %v3046 = vmul.f32 %v2562, %v2803
      %v3047 = vmul.f32 %v2563, %v2807
      %v3048 = vmul.f32 %v2564, %v2747
      %v3049 = vmul.f32 %v2565, %v2751
      %v3050 = vmul.f32 %v2566, %v2755
      %v3051 = vmul.f32 %v2567, %v2759
      %v3052 = vmul.f32 %v2568, %v2763
      %v3053 = vmul.f32 %v2569, %v2767
      %v3054 = vmul.f32 %v2570, %v2771
      %v3055 = vmul.f32 %v2571, %v2775
      %v3056 = vmul.f32 %v2572, %v2779
      %v3057 = vmul.f32 %v2573, %v2783
      %v3058 = vmul.f32 %v2574, %v2787
      %v3059 = vmul.f32 %v2575, %v2791
      %v3060 = vmul.f32 %v2576, %v2795
      %v3061 = vmul.f32 %v2577, %v2799
      %v3062 = vmul.f32 %v2578, %v2803
      %v3063 = vmul.f32 %v2579, %v2807
      %v3064 = vmul.f32 %v2580, %v2747
      %v3065 = vmul.f32 %v2581, %v2751
      %v3066 = vmul.f32 %v2582, %v2755
      %v3067 = vmul.f32 %v2583, %v2759
      %v3068 = vmul.f32 %v2584, %v2763
      %v3069 = vmul.f32 %v2585, %v2767
      %v3070 = vmul.f32 %v2586, %v2771
      %v3071 = vmul.f32 %v2587, %v2775
      %v3072 = vmul.f32 %v2588, %v2779
      %v3073 = vmul.f32 %v2589, %v2783
      %v3074 = vmul.f32 %v2590, %v2787
      %v3075 = vmul.f32 %v2591, %v2791
      %v3076 = vmul.f32 %v2592, %v2795
      %v3077 = vmul.f32 %v2593, %v2799
      %v3078 = vmul.f32 %v2594, %v2803
      %v3079 = vmul.f32 %v2595, %v2807
      %v3080 = vmul.f32 %v2596, %v2747
      %v3081 = vmul.f32 %v2597, %v2751
      %v3082 = vmul.f32 %v2598, %v2755
      %v3083 = vmul.f32 %v2599, %v2759
      %v3084 = vmul.f32 %v2600, %v2763
      %v3085 = vmul.f32 %v2601, %v2767
      %v3086 = vmul.f32 %v2602, %v2771
      %v3087 = vmul.f32 %v2603, %v2775
      %v3088 = vmul.f32 %v2604, %v2779
      %v3089 = vmul.f32 %v2605, %v2783
      %v3090 = vmul.f32 %v2606, %v2787
      %v3091 = vmul.f32 %v2607, %v2791
      %v3092 = vmul.f32 %v2608, %v2795
      %v3093 = vmul.f32 %v2609, %v2799
      %v3094 = vmul.f32 %v2610, %v2803
      %v3095 = vmul.f32 %v2611, %v2807
      %v3096 = vmul.f32 %v2612, %v2747
      %v3097 = vmul.f32 %v2613, %v2751
      %v3098 = vmul.f32 %v2614, %v2755
      %v3099 = vmul.f32 %v2615, %v2759
      %v3100 = vmul.f32 %v2616, %v2763
      %v3101 = vmul.f32 %v2617, %v2767
      %v3102 = vmul.f32 %v2618, %v2771
      %v3103 = vmul.f32 %v2619, %v2775
      %v3104 = vmul.f32 %v2620, %v2779
      %v3105 = vmul.f32 %v2621, %v2783
      %v3106 = vmul.f32 %v2622, %v2787
      %v3107 = vmul.f32 %v2623, %v2791
      %v3108 = vmul.f32 %v2624, %v2795
      %v3109 = vmul.f32 %v2625, %v2799
      %v3110 = vmul.f32 %v2626, %v2803
      %v3111 = vmul.f32 %v2627, %v2807
      %v3112 = vmul.f32 %v2628, %v2747
      %v3113 = vmul.f32 %v2629, %v2751
      %v3114 = vmul.f32 %v2630, %v2755
      %v3115 = vmul.f32 %v2631, %v2759
      %v3116 = vmul.f32 %v2632, %v2763
      %v3117 = vmul.f32 %v2633, %v2767
      %v3118 = vmul.f32 %v2634, %v2771
      %v3119 = vmul.f32 %v2635, %v2775
      %v3120 = vmul.f32 %v2636, %v2779
      %v3121 = vmul.f32 %v2637, %v2783
      %v3122 = vmul.f32 %v2638, %v2787
      %v3123 = vmul.f32 %v2639, %v2791
      %v3124 = vmul.f32 %v2640, %v2795
      %v3125 = vmul.f32 %v2641, %v2799
      %v3126 = vmul.f32 %v2642, %v2803
      %v3127 = vmul.f32 %v2643, %v2807
      %v3128 = vmul.f32 %v2644, %v2747
      %v3129 = vmul.f32 %v2645, %v2751
      %v3130 = vmul.f32 %v2646, %v2755
      %v3131 = vmul.f32 %v2647, %v2759
      %v3132 = vmul.f32 %v2648, %v2763
      %v3133 = vmul.f32 %v2649, %v2767
      %v3134 = vmul.f32 %v2650, %v2771
      %v3135 = vmul.f32 %v2651, %v2775
      %v3136 = vmul.f32 %v2652, %v2779
      %v3137 = vmul.f32 %v2653, %v2783
      %v3138 = vmul.f32 %v2654, %v2787
      %v3139 = vmul.f32 %v2655, %v2791
      %v3140 = vmul.f32 %v2656, %v2795
      %v3141 = vmul.f32 %v2657, %v2799
      %v3142 = vmul.f32 %v2658, %v2803
      %v3143 = vmul.f32 %v2659, %v2807
      %v3144 = vmul.f32 %v2660, %v2747
      %v3145 = vmul.f32 %v2661, %v2751
      %v3146 = vmul.f32 %v2662, %v2755
      %v3147 = vmul.f32 %v2663, %v2759
      %v3148 = vmul.f32 %v2664, %v2763
      %v3149 = vmul.f32 %v2665, %v2767
      %v3150 = vmul.f32 %v2666, %v2771
      %v3151 = vmul.f32 %v2667, %v2775
      %v3152 = vmul.f32 %v2668, %v2779
      %v3153 = vmul.f32 %v2669, %v2783
      %v3154 = vmul.f32 %v2670, %v2787
      %v3155 = vmul.f32 %v2671, %v2791
      %v3156 = vmul.f32 %v2672, %v2795
      %v3157 = vmul.f32 %v2673, %v2799
      %v3158 = vmul.f32 %v2674, %v2803
      %v3159 = vmul.f32 %v2675, %v2807
      %v3160 = vmul.f32 %v2676, %v2747
      %v3161 = vmul.f32 %v2677, %v2751
      %v3162 = vmul.f32 %v2678, %v2755
      %v3163 = vmul.f32 %v2679, %v2759
      %v3164 = vmul.f32 %v2680, %v2763
      %v3165 = vmul.f32 %v2681, %v2767
      %v3166 = vmul.f32 %v2682, %v2771
      %v3167 = vmul.f32 %v2683, %v2775
      %v3168 = vmul.f32 %v2684, %v2779
      %v3169 = vmul.f32 %v2685, %v2783
      %v3170 = vmul.f32 %v2686, %v2787
      %v3171 = vmul.f32 %v2687, %v2791
      %v3172 = vmul.f32 %v2688, %v2795
      %v3173 = vmul.f32 %v2689, %v2799
      %v3174 = vmul.f32 %v2690, %v2803
      %v3175 = vmul.f32 %v2691, %v2807
      %v3176 = vmul.f32 %v2692, %v2747
      %v3177 = vmul.f32 %v2693, %v2751
      %v3178 = vmul.f32 %v2694, %v2755
      %v3179 = vmul.f32 %v2695, %v2759
      %v3180 = vmul.f32 %v2696, %v2763
      %v3181 = vmul.f32 %v2697, %v2767
      %v3182 = vmul.f32 %v2698, %v2771
      %v3183 = vmul.f32 %v2699, %v2775
      %v3184 = vmul.f32 %v2700, %v2779
      %v3185 = vmul.f32 %v2701, %v2783
      %v3186 = vmul.f32 %v2702, %v2787
      %v3187 = vmul.f32 %v2703, %v2791
      %v3188 = vmul.f32 %v2704, %v2795
      %v3189 = vmul.f32 %v2705, %v2799
      %v3190 = vmul.f32 %v2706, %v2803
      %v3191 = vmul.f32 %v2707, %v2807
      %v3192 = vmul.f32 %v2708, %v2747
      %v3193 = vmul.f32 %v2709, %v2751
      %v3194 = vmul.f32 %v2710, %v2755
      %v3195 = vmul.f32 %v2711, %v2759
      %v3196 = vmul.f32 %v2712, %v2763
      %v3197 = vmul.f32 %v2713, %v2767
      %v3198 = vmul.f32 %v2714, %v2771
      %v3199 = vmul.f32 %v2715, %v2775
      %v3200 = vmul.f32 %v2716, %v2779
      %v3201 = vmul.f32 %v2717, %v2783
      %v3202 = vmul.f32 %v2718, %v2787
      %v3203 = vmul.f32 %v2719, %v2791
      %v3204 = vmul.f32 %v2720, %v2795
      %v3205 = vmul.f32 %v2721, %v2799
      %v3206 = vmul.f32 %v2722, %v2803
      %v3207 = vmul.f32 %v2723, %v2807
      %v3208 = vmul.f32 %v2724, %v2747
      %v3209 = vmul.f32 %v2725, %v2751
      %v3210 = vmul.f32 %v2726, %v2755
      %v3211 = vmul.f32 %v2727, %v2759
      %v3212 = vmul.f32 %v2728, %v2763
      %v3213 = vmul.f32 %v2729, %v2767
      %v3214 = vmul.f32 %v2730, %v2771
      %v3215 = vmul.f32 %v2731, %v2775
      %v3216 = vmul.f32 %v2732, %v2779
      %v3217 = vmul.f32 %v2733, %v2783
      %v3218 = vmul.f32 %v2734, %v2787
      %v3219 = vmul.f32 %v2735, %v2791
      %v3220 = vmul.f32 %v2736, %v2795
      %v3221 = vmul.f32 %v2737, %v2799
      %v3222 = vmul.f32 %v2738, %v2803
      %v3223 = vmul.f32 %v2739, %v2807
      %v3224 = vld [vmem:[%s3] sm:$0xff]
      %v3225 = vld [vmem:[%s3 + $0x8] sm:$0xff]
      %v3228 = vlaneseq
      %v3229 = vshrl.u32 %v3228, 7
      %v3230 = vsub.s32 0, %v3229
      %v3231 = vrot.slane %v3224, %v3230
      %v3232 = vlaneseq
      %v3233 = vshrl.u32 %v3232, 7
      %v3234 = vsub.s32 1, %v3233
      %v3235 = vrot.slane %v3224, %v3234
      %v3236 = vlaneseq
      %v3237 = vshrl.u32 %v3236, 7
      %v3238 = vsub.s32 2, %v3237
      %v3239 = vrot.slane %v3224, %v3238
      %v3240 = vlaneseq
      %v3241 = vshrl.u32 %v3240, 7
      %v3242 = vsub.s32 3, %v3241
      %v3243 = vrot.slane %v3224, %v3242
      %v3244 = vlaneseq
      %v3245 = vshrl.u32 %v3244, 7
      %v3246 = vsub.s32 4, %v3245
      %v3247 = vrot.slane %v3224, %v3246
      %v3248 = vlaneseq
      %v3249 = vshrl.u32 %v3248, 7
      %v3250 = vsub.s32 5, %v3249
      %v3251 = vrot.slane %v3224, %v3250
      %v3252 = vlaneseq
      %v3253 = vshrl.u32 %v3252, 7
      %v3254 = vsub.s32 6, %v3253
      %v3255 = vrot.slane %v3224, %v3254
      %v3256 = vlaneseq
      %v3257 = vshrl.u32 %v3256, 7
      %v3258 = vsub.s32 7, %v3257
      %v3259 = vrot.slane %v3224, %v3258
      %v3260 = vlaneseq
      %v3261 = vshrl.u32 %v3260, 7
      %v3262 = vsub.s32 0, %v3261
      %v3263 = vrot.slane %v3225, %v3262
      %v3264 = vlaneseq
      %v3265 = vshrl.u32 %v3264, 7
      %v3266 = vsub.s32 1, %v3265
      %v3267 = vrot.slane %v3225, %v3266
      %v3268 = vlaneseq
      %v3269 = vshrl.u32 %v3268, 7
      %v3270 = vsub.s32 2, %v3269
      %v3271 = vrot.slane %v3225, %v3270
      %v3272 = vlaneseq
      %v3273 = vshrl.u32 %v3272, 7
      %v3274 = vsub.s32 3, %v3273
      %v3275 = vrot.slane %v3225, %v3274
      %v3276 = vlaneseq
      %v3277 = vshrl.u32 %v3276, 7
      %v3278 = vsub.s32 4, %v3277
      %v3279 = vrot.slane %v3225, %v3278
      %v3280 = vlaneseq
      %v3281 = vshrl.u32 %v3280, 7
      %v3282 = vsub.s32 5, %v3281
      %v3283 = vrot.slane %v3225, %v3282
      %v3284 = vlaneseq
      %v3285 = vshrl.u32 %v3284, 7
      %v3286 = vsub.s32 6, %v3285
      %v3287 = vrot.slane %v3225, %v3286
      %v3288 = vlaneseq
      %v3289 = vshrl.u32 %v3288, 7
      %v3290 = vsub.s32 7, %v3289
      %v3291 = vrot.slane %v3225, %v3290
      %v3308 = vadd.f32 %v2824, %v3231
      %v3309 = vadd.f32 %v2825, %v3235
      %v3310 = vadd.f32 %v2826, %v3239
      %v3311 = vadd.f32 %v2827, %v3243
      %v3312 = vadd.f32 %v2828, %v3247
      %v3313 = vadd.f32 %v2829, %v3251
      %v3314 = vadd.f32 %v2830, %v3255
      %v3315 = vadd.f32 %v2831, %v3259
      %v3316 = vadd.f32 %v2832, %v3263
      %v3317 = vadd.f32 %v2833, %v3267
      %v3318 = vadd.f32 %v2834, %v3271
      %v3319 = vadd.f32 %v2835, %v3275
      %v3320 = vadd.f32 %v2836, %v3279
      %v3321 = vadd.f32 %v2837, %v3283
      %v3322 = vadd.f32 %v2838, %v3287
      %v3323 = vadd.f32 %v2839, %v3291
      %v3324 = vadd.f32 %v2840, %v3231
      %v3325 = vadd.f32 %v2841, %v3235
      %v3326 = vadd.f32 %v2842, %v3239
      %v3327 = vadd.f32 %v2843, %v3243
      %v3328 = vadd.f32 %v2844, %v3247
      %v3329 = vadd.f32 %v2845, %v3251
      %v3330 = vadd.f32 %v2846, %v3255
      %v3331 = vadd.f32 %v2847, %v3259
      %v3332 = vadd.f32 %v2848, %v3263
      %v3333 = vadd.f32 %v2849, %v3267
      %v3334 = vadd.f32 %v2850, %v3271
      %v3335 = vadd.f32 %v2851, %v3275
      %v3336 = vadd.f32 %v2852, %v3279
      %v3337 = vadd.f32 %v2853, %v3283
      %v3338 = vadd.f32 %v2854, %v3287
      %v3339 = vadd.f32 %v2855, %v3291
      %v3340 = vadd.f32 %v2856, %v3231
      %v3341 = vadd.f32 %v2857, %v3235
      %v3342 = vadd.f32 %v2858, %v3239
      %v3343 = vadd.f32 %v2859, %v3243
      %v3344 = vadd.f32 %v2860, %v3247
      %v3345 = vadd.f32 %v2861, %v3251
      %v3346 = vadd.f32 %v2862, %v3255
      %v3347 = vadd.f32 %v2863, %v3259
      %v3348 = vadd.f32 %v2864, %v3263
      %v3349 = vadd.f32 %v2865, %v3267
      %v3350 = vadd.f32 %v2866, %v3271
      %v3351 = vadd.f32 %v2867, %v3275
      %v3352 = vadd.f32 %v2868, %v3279
      %v3353 = vadd.f32 %v2869, %v3283
      %v3354 = vadd.f32 %v2870, %v3287
      %v3355 = vadd.f32 %v2871, %v3291
      %v3356 = vadd.f32 %v2872, %v3231
      %v3357 = vadd.f32 %v2873, %v3235
      %v3358 = vadd.f32 %v2874, %v3239
      %v3359 = vadd.f32 %v2875, %v3243
      %v3360 = vadd.f32 %v2876, %v3247
      %v3361 = vadd.f32 %v2877, %v3251
      %v3362 = vadd.f32 %v2878, %v3255
      %v3363 = vadd.f32 %v2879, %v3259
      %v3364 = vadd.f32 %v2880, %v3263
      %v3365 = vadd.f32 %v2881, %v3267
      %v3366 = vadd.f32 %v2882, %v3271
      %v3367 = vadd.f32 %v2883, %v3275
      %v3368 = vadd.f32 %v2884, %v3279
      %v3369 = vadd.f32 %v2885, %v3283
      %v3370 = vadd.f32 %v2886, %v3287
      %v3371 = vadd.f32 %v2887, %v3291
      %v3372 = vadd.f32 %v2888, %v3231
      %v3373 = vadd.f32 %v2889, %v3235
      %v3374 = vadd.f32 %v2890, %v3239
      %v3375 = vadd.f32 %v2891, %v3243
      %v3376 = vadd.f32 %v2892, %v3247
      %v3377 = vadd.f32 %v2893, %v3251
      %v3378 = vadd.f32 %v2894, %v3255
      %v3379 = vadd.f32 %v2895, %v3259
      %v3380 = vadd.f32 %v2896, %v3263
      %v3381 = vadd.f32 %v2897, %v3267
      %v3382 = vadd.f32 %v2898, %v3271
      %v3383 = vadd.f32 %v2899, %v3275
      %v3384 = vadd.f32 %v2900, %v3279
      %v3385 = vadd.f32 %v2901, %v3283
      %v3386 = vadd.f32 %v2902, %v3287
      %v3387 = vadd.f32 %v2903, %v3291
      %v3388 = vadd.f32 %v2904, %v3231
      %v3389 = vadd.f32 %v2905, %v3235
      %v3390 = vadd.f32 %v2906, %v3239
      %v3391 = vadd.f32 %v2907, %v3243
      %v3392 = vadd.f32 %v2908, %v3247
      %v3393 = vadd.f32 %v2909, %v3251
      %v3394 = vadd.f32 %v2910, %v3255
      %v3395 = vadd.f32 %v2911, %v3259
      %v3396 = vadd.f32 %v2912, %v3263
      %v3397 = vadd.f32 %v2913, %v3267
      %v3398 = vadd.f32 %v2914, %v3271
      %v3399 = vadd.f32 %v2915, %v3275
      %v3400 = vadd.f32 %v2916, %v3279
      %v3401 = vadd.f32 %v2917, %v3283
      %v3402 = vadd.f32 %v2918, %v3287
      %v3403 = vadd.f32 %v2919, %v3291
      %v3404 = vadd.f32 %v2920, %v3231
      %v3405 = vadd.f32 %v2921, %v3235
      %v3406 = vadd.f32 %v2922, %v3239
      %v3407 = vadd.f32 %v2923, %v3243
      %v3408 = vadd.f32 %v2924, %v3247
      %v3409 = vadd.f32 %v2925, %v3251
      %v3410 = vadd.f32 %v2926, %v3255
      %v3411 = vadd.f32 %v2927, %v3259
      %v3412 = vadd.f32 %v2928, %v3263
      %v3413 = vadd.f32 %v2929, %v3267
      %v3414 = vadd.f32 %v2930, %v3271
      %v3415 = vadd.f32 %v2931, %v3275
      %v3416 = vadd.f32 %v2932, %v3279
      %v3417 = vadd.f32 %v2933, %v3283
      %v3418 = vadd.f32 %v2934, %v3287
      %v3419 = vadd.f32 %v2935, %v3291
      %v3420 = vadd.f32 %v2936, %v3231
      %v3421 = vadd.f32 %v2937, %v3235
      %v3422 = vadd.f32 %v2938, %v3239
      %v3423 = vadd.f32 %v2939, %v3243
      %v3424 = vadd.f32 %v2940, %v3247
      %v3425 = vadd.f32 %v2941, %v3251
      %v3426 = vadd.f32 %v2942, %v3255
      %v3427 = vadd.f32 %v2943, %v3259
      %v3428 = vadd.f32 %v2944, %v3263
      %v3429 = vadd.f32 %v2945, %v3267
      %v3430 = vadd.f32 %v2946, %v3271
      %v3431 = vadd.f32 %v2947, %v3275
      %v3432 = vadd.f32 %v2948, %v3279
      %v3433 = vadd.f32 %v2949, %v3283
      %v3434 = vadd.f32 %v2950, %v3287
      %v3435 = vadd.f32 %v2951, %v3291
      %v3436 = vadd.f32 %v2952, %v3231
      %v3437 = vadd.f32 %v2953, %v3235
      %v3438 = vadd.f32 %v2954, %v3239
      %v3439 = vadd.f32 %v2955, %v3243
      %v3440 = vadd.f32 %v2956, %v3247
      %v3441 = vadd.f32 %v2957, %v3251
      %v3442 = vadd.f32 %v2958, %v3255
      %v3443 = vadd.f32 %v2959, %v3259
      %v3444 = vadd.f32 %v2960, %v3263
      %v3445 = vadd.f32 %v2961, %v3267
      %v3446 = vadd.f32 %v2962, %v3271
      %v3447 = vadd.f32 %v2963, %v3275
      %v3448 = vadd.f32 %v2964, %v3279
      %v3449 = vadd.f32 %v2965, %v3283
      %v3450 = vadd.f32 %v2966, %v3287
      %v3451 = vadd.f32 %v2967, %v3291
      %v3452 = vadd.f32 %v2968, %v3231
      %v3453 = vadd.f32 %v2969, %v3235
      %v3454 = vadd.f32 %v2970, %v3239
      %v3455 = vadd.f32 %v2971, %v3243
      %v3456 = vadd.f32 %v2972, %v3247
      %v3457 = vadd.f32 %v2973, %v3251
      %v3458 = vadd.f32 %v2974, %v3255
      %v3459 = vadd.f32 %v2975, %v3259
      %v3460 = vadd.f32 %v2976, %v3263
      %v3461 = vadd.f32 %v2977, %v3267
      %v3462 = vadd.f32 %v2978, %v3271
      %v3463 = vadd.f32 %v2979, %v3275
      %v3464 = vadd.f32 %v2980, %v3279
      %v3465 = vadd.f32 %v2981, %v3283
      %v3466 = vadd.f32 %v2982, %v3287
      %v3467 = vadd.f32 %v2983, %v3291
      %v3468 = vadd.f32 %v2984, %v3231
      %v3469 = vadd.f32 %v2985, %v3235
      %v3470 = vadd.f32 %v2986, %v3239
      %v3471 = vadd.f32 %v2987, %v3243
      %v3472 = vadd.f32 %v2988, %v3247
      %v3473 = vadd.f32 %v2989, %v3251
      %v3474 = vadd.f32 %v2990, %v3255
      %v3475 = vadd.f32 %v2991, %v3259
      %v3476 = vadd.f32 %v2992, %v3263
      %v3477 = vadd.f32 %v2993, %v3267
      %v3478 = vadd.f32 %v2994, %v3271
      %v3479 = vadd.f32 %v2995, %v3275
      %v3480 = vadd.f32 %v2996, %v3279
      %v3481 = vadd.f32 %v2997, %v3283
      %v3482 = vadd.f32 %v2998, %v3287
      %v3483 = vadd.f32 %v2999, %v3291
      %v3484 = vadd.f32 %v3000, %v3231
      %v3485 = vadd.f32 %v3001, %v3235
      %v3486 = vadd.f32 %v3002, %v3239
      %v3487 = vadd.f32 %v3003, %v3243
      %v3488 = vadd.f32 %v3004, %v3247
      %v3489 = vadd.f32 %v3005, %v3251
      %v3490 = vadd.f32 %v3006, %v3255
      %v3491 = vadd.f32 %v3007, %v3259
      %v3492 = vadd.f32 %v3008, %v3263
      %v3493 = vadd.f32 %v3009, %v3267
      %v3494 = vadd.f32 %v3010, %v3271
      %v3495 = vadd.f32 %v3011, %v3275
      %v3496 = vadd.f32 %v3012, %v3279
      %v3497 = vadd.f32 %v3013, %v3283
      %v3498 = vadd.f32 %v3014, %v3287
      %v3499 = vadd.f32 %v3015, %v3291
      %v3500 = vadd.f32 %v3016, %v3231
      %v3501 = vadd.f32 %v3017, %v3235
      %v3502 = vadd.f32 %v3018, %v3239
      %v3503 = vadd.f32 %v3019, %v3243
      %v3504 = vadd.f32 %v3020, %v3247
      %v3505 = vadd.f32 %v3021, %v3251
      %v3506 = vadd.f32 %v3022, %v3255
      %v3507 = vadd.f32 %v3023, %v3259
      %v3508 = vadd.f32 %v3024, %v3263
      %v3509 = vadd.f32 %v3025, %v3267
      %v3510 = vadd.f32 %v3026, %v3271
      %v3511 = vadd.f32 %v3027, %v3275
      %v3512 = vadd.f32 %v3028, %v3279
      %v3513 = vadd.f32 %v3029, %v3283
      %v3514 = vadd.f32 %v3030, %v3287
      %v3515 = vadd.f32 %v3031, %v3291
      %v3516 = vadd.f32 %v3032, %v3231
      %v3517 = vadd.f32 %v3033, %v3235
      %v3518 = vadd.f32 %v3034, %v3239
      %v3519 = vadd.f32 %v3035, %v3243
      %v3520 = vadd.f32 %v3036, %v3247
      %v3521 = vadd.f32 %v3037, %v3251
      %v3522 = vadd.f32 %v3038, %v3255
      %v3523 = vadd.f32 %v3039, %v3259
      %v3524 = vadd.f32 %v3040, %v3263
      %v3525 = vadd.f32 %v3041, %v3267
      %v3526 = vadd.f32 %v3042, %v3271
      %v3527 = vadd.f32 %v3043, %v3275
      %v3528 = vadd.f32 %v3044, %v3279
      %v3529 = vadd.f32 %v3045, %v3283
      %v3530 = vadd.f32 %v3046, %v3287
      %v3531 = vadd.f32 %v3047, %v3291
      %v3532 = vadd.f32 %v3048, %v3231
      %v3533 = vadd.f32 %v3049, %v3235
      %v3534 = vadd.f32 %v3050, %v3239
      %v3535 = vadd.f32 %v3051, %v3243
      %v3536 = vadd.f32 %v3052, %v3247
      %v3537 = vadd.f32 %v3053, %v3251
      %v3538 = vadd.f32 %v3054, %v3255
      %v3539 = vadd.f32 %v3055, %v3259
      %v3540 = vadd.f32 %v3056, %v3263
      %v3541 = vadd.f32 %v3057, %v3267
      %v3542 = vadd.f32 %v3058, %v3271
      %v3543 = vadd.f32 %v3059, %v3275
      %v3544 = vadd.f32 %v3060, %v3279
      %v3545 = vadd.f32 %v3061, %v3283
      %v3546 = vadd.f32 %v3062, %v3287
      %v3547 = vadd.f32 %v3063, %v3291
      %v3548 = vadd.f32 %v3064, %v3231
      %v3549 = vadd.f32 %v3065, %v3235
      %v3550 = vadd.f32 %v3066, %v3239
      %v3551 = vadd.f32 %v3067, %v3243
      %v3552 = vadd.f32 %v3068, %v3247
      %v3553 = vadd.f32 %v3069, %v3251
      %v3554 = vadd.f32 %v3070, %v3255
      %v3555 = vadd.f32 %v3071, %v3259
      %v3556 = vadd.f32 %v3072, %v3263
      %v3557 = vadd.f32 %v3073, %v3267
      %v3558 = vadd.f32 %v3074, %v3271
      %v3559 = vadd.f32 %v3075, %v3275
      %v3560 = vadd.f32 %v3076, %v3279
      %v3561 = vadd.f32 %v3077, %v3283
      %v3562 = vadd.f32 %v3078, %v3287
      %v3563 = vadd.f32 %v3079, %v3291
      %v3564 = vadd.f32 %v3080, %v3231
      %v3565 = vadd.f32 %v3081, %v3235
      %v3566 = vadd.f32 %v3082, %v3239
      %v3567 = vadd.f32 %v3083, %v3243
      %v3568 = vadd.f32 %v3084, %v3247
      %v3569 = vadd.f32 %v3085, %v3251
      %v3570 = vadd.f32 %v3086, %v3255
      %v3571 = vadd.f32 %v3087, %v3259
      %v3572 = vadd.f32 %v3088, %v3263
      %v3573 = vadd.f32 %v3089, %v3267
      %v3574 = vadd.f32 %v3090, %v3271
      %v3575 = vadd.f32 %v3091, %v3275
      %v3576 = vadd.f32 %v3092, %v3279
      %v3577 = vadd.f32 %v3093, %v3283
      %v3578 = vadd.f32 %v3094, %v3287
      %v3579 = vadd.f32 %v3095, %v3291
      %v3580 = vadd.f32 %v3096, %v3231
      %v3581 = vadd.f32 %v3097, %v3235
      %v3582 = vadd.f32 %v3098, %v3239
      %v3583 = vadd.f32 %v3099, %v3243
      %v3584 = vadd.f32 %v3100, %v3247
      %v3585 = vadd.f32 %v3101, %v3251
      %v3586 = vadd.f32 %v3102, %v3255
      %v3587 = vadd.f32 %v3103, %v3259
      %v3588 = vadd.f32 %v3104, %v3263
      %v3589 = vadd.f32 %v3105, %v3267
      %v3590 = vadd.f32 %v3106, %v3271
      %v3591 = vadd.f32 %v3107, %v3275
      %v3592 = vadd.f32 %v3108, %v3279
      %v3593 = vadd.f32 %v3109, %v3283
      %v3594 = vadd.f32 %v3110, %v3287
      %v3595 = vadd.f32 %v3111, %v3291
      %v3596 = vadd.f32 %v3112, %v3231
      %v3597 = vadd.f32 %v3113, %v3235
      %v3598 = vadd.f32 %v3114, %v3239
      %v3599 = vadd.f32 %v3115, %v3243
      %v3600 = vadd.f32 %v3116, %v3247
      %v3601 = vadd.f32 %v3117, %v3251
      %v3602 = vadd.f32 %v3118, %v3255
      %v3603 = vadd.f32 %v3119, %v3259
      %v3604 = vadd.f32 %v3120, %v3263
      %v3605 = vadd.f32 %v3121, %v3267
      %v3606 = vadd.f32 %v3122, %v3271
      %v3607 = vadd.f32 %v3123, %v3275
      %v3608 = vadd.f32 %v3124, %v3279
      %v3609 = vadd.f32 %v3125, %v3283
      %v3610 = vadd.f32 %v3126, %v3287
      %v3611 = vadd.f32 %v3127, %v3291
      %v3612 = vadd.f32 %v3128, %v3231
      %v3613 = vadd.f32 %v3129, %v3235
      %v3614 = vadd.f32 %v3130, %v3239
      %v3615 = vadd.f32 %v3131, %v3243
      %v3616 = vadd.f32 %v3132, %v3247
      %v3617 = vadd.f32 %v3133, %v3251
      %v3618 = vadd.f32 %v3134, %v3255
      %v3619 = vadd.f32 %v3135, %v3259
      %v3620 = vadd.f32 %v3136, %v3263
      %v3621 = vadd.f32 %v3137, %v3267
      %v3622 = vadd.f32 %v3138, %v3271
      %v3623 = vadd.f32 %v3139, %v3275
      %v3624 = vadd.f32 %v3140, %v3279
      %v3625 = vadd.f32 %v3141, %v3283
      %v3626 = vadd.f32 %v3142, %v3287
      %v3627 = vadd.f32 %v3143, %v3291
      %v3628 = vadd.f32 %v3144, %v3231
      %v3629 = vadd.f32 %v3145, %v3235
      %v3630 = vadd.f32 %v3146, %v3239
      %v3631 = vadd.f32 %v3147, %v3243
      %v3632 = vadd.f32 %v3148, %v3247
      %v3633 = vadd.f32 %v3149, %v3251
      %v3634 = vadd.f32 %v3150, %v3255
      %v3635 = vadd.f32 %v3151, %v3259
      %v3636 = vadd.f32 %v3152, %v3263
      %v3637 = vadd.f32 %v3153, %v3267
      %v3638 = vadd.f32 %v3154, %v3271
      %v3639 = vadd.f32 %v3155, %v3275
      %v3640 = vadd.f32 %v3156, %v3279
      %v3641 = vadd.f32 %v3157, %v3283
      %v3642 = vadd.f32 %v3158, %v3287
      %v3643 = vadd.f32 %v3159, %v3291
      %v3644 = vadd.f32 %v3160, %v3231
      %v3645 = vadd.f32 %v3161, %v3235
      %v3646 = vadd.f32 %v3162, %v3239
      %v3647 = vadd.f32 %v3163, %v3243
      %v3648 = vadd.f32 %v3164, %v3247
      %v3649 = vadd.f32 %v3165, %v3251
      %v3650 = vadd.f32 %v3166, %v3255
      %v3651 = vadd.f32 %v3167, %v3259
      %v3652 = vadd.f32 %v3168, %v3263
      %v3653 = vadd.f32 %v3169, %v3267
      %v3654 = vadd.f32 %v3170, %v3271
      %v3655 = vadd.f32 %v3171, %v3275
      %v3656 = vadd.f32 %v3172, %v3279
      %v3657 = vadd.f32 %v3173, %v3283
      %v3658 = vadd.f32 %v3174, %v3287
      %v3659 = vadd.f32 %v3175, %v3291
      %v3660 = vadd.f32 %v3176, %v3231
      %v3661 = vadd.f32 %v3177, %v3235
      %v3662 = vadd.f32 %v3178, %v3239
      %v3663 = vadd.f32 %v3179, %v3243
      %v3664 = vadd.f32 %v3180, %v3247
      %v3665 = vadd.f32 %v3181, %v3251
      %v3666 = vadd.f32 %v3182, %v3255
      %v3667 = vadd.f32 %v3183, %v3259
      %v3668 = vadd.f32 %v3184, %v3263
      %v3669 = vadd.f32 %v3185, %v3267
      %v3670 = vadd.f32 %v3186, %v3271
      %v3671 = vadd.f32 %v3187, %v3275
      %v3672 = vadd.f32 %v3188, %v3279
      %v3673 = vadd.f32 %v3189, %v3283
      %v3674 = vadd.f32 %v3190, %v3287
      %v3675 = vadd.f32 %v3191, %v3291
      %v3676 = vadd.f32 %v3192, %v3231
      %v3677 = vadd.f32 %v3193, %v3235
      %v3678 = vadd.f32 %v3194, %v3239
      %v3679 = vadd.f32 %v3195, %v3243
      %v3680 = vadd.f32 %v3196, %v3247
      %v3681 = vadd.f32 %v3197, %v3251
      %v3682 = vadd.f32 %v3198, %v3255
      %v3683 = vadd.f32 %v3199, %v3259
      %v3684 = vadd.f32 %v3200, %v3263
      %v3685 = vadd.f32 %v3201, %v3267
      %v3686 = vadd.f32 %v3202, %v3271
      %v3687 = vadd.f32 %v3203, %v3275
      %v3688 = vadd.f32 %v3204, %v3279
      %v3689 = vadd.f32 %v3205, %v3283
      %v3690 = vadd.f32 %v3206, %v3287
      %v3691 = vadd.f32 %v3207, %v3291
      %v3692 = vadd.f32 %v3208, %v3231
      %v3693 = vadd.f32 %v3209, %v3235
      %v3694 = vadd.f32 %v3210, %v3239
      %v3695 = vadd.f32 %v3211, %v3243
      %v3696 = vadd.f32 %v3212, %v3247
      %v3697 = vadd.f32 %v3213, %v3251
      %v3698 = vadd.f32 %v3214, %v3255
      %v3699 = vadd.f32 %v3215, %v3259
      %v3700 = vadd.f32 %v3216, %v3263
      %v3701 = vadd.f32 %v3217, %v3267
      %v3702 = vadd.f32 %v3218, %v3271
      %v3703 = vadd.f32 %v3219, %v3275
      %v3704 = vadd.f32 %v3220, %v3279
      %v3705 = vadd.f32 %v3221, %v3283
      %v3706 = vadd.f32 %v3222, %v3287
      %v3707 = vadd.f32 %v3223, %v3291
      %v3708 = vmax.f32 %v3308, 0.0
      %v3709 = vmax.f32 %v3309, 0.0
      %v3710 = vmax.f32 %v3310, 0.0
      %v3711 = vmax.f32 %v3311, 0.0
      %v3712 = vmax.f32 %v3312, 0.0
      %v3713 = vmax.f32 %v3313, 0.0
      %v3714 = vmax.f32 %v3314, 0.0
      %v3715 = vmax.f32 %v3315, 0.0
      %v3716 = vmax.f32 %v3316, 0.0
      %v3717 = vmax.f32 %v3317, 0.0
      %v3718 = vmax.f32 %v3318, 0.0
      %v3719 = vmax.f32 %v3319, 0.0
      %v3720 = vmax.f32 %v3320, 0.0
      %v3721 = vmax.f32 %v3321, 0.0
      %v3722 = vmax.f32 %v3322, 0.0
      %v3723 = vmax.f32 %v3323, 0.0
      %v3724 = vmax.f32 %v3324, 0.0
      %v3725 = vmax.f32 %v3325, 0.0
      %v3726 = vmax.f32 %v3326, 0.0
      %v3727 = vmax.f32 %v3327, 0.0
      %v3728 = vmax.f32 %v3328, 0.0
      %v3729 = vmax.f32 %v3329, 0.0
      %v3730 = vmax.f32 %v3330, 0.0
      %v3731 = vmax.f32 %v3331, 0.0
      %v3732 = vmax.f32 %v3332, 0.0
      %v3733 = vmax.f32 %v3333, 0.0
      %v3734 = vmax.f32 %v3334, 0.0
      %v3735 = vmax.f32 %v3335, 0.0
      %v3736 = vmax.f32 %v3336, 0.0
      %v3737 = vmax.f32 %v3337, 0.0
      %v3738 = vmax.f32 %v3338, 0.0
      %v3739 = vmax.f32 %v3339, 0.0
      %v3740 = vmax.f32 %v3340, 0.0
      %v3741 = vmax.f32 %v3341, 0.0
      %v3742 = vmax.f32 %v3342, 0.0
      %v3743 = vmax.f32 %v3343, 0.0
      %v3744 = vmax.f32 %v3344, 0.0
      %v3745 = vmax.f32 %v3345, 0.0
      %v3746 = vmax.f32 %v3346, 0.0
      %v3747 = vmax.f32 %v3347, 0.0
      %v3748 = vmax.f32 %v3348, 0.0
      %v3749 = vmax.f32 %v3349, 0.0
      %v3750 = vmax.f32 %v3350, 0.0
      %v3751 = vmax.f32 %v3351, 0.0
      %v3752 = vmax.f32 %v3352, 0.0
      %v3753 = vmax.f32 %v3353, 0.0
      %v3754 = vmax.f32 %v3354, 0.0
      %v3755 = vmax.f32 %v3355, 0.0
      %v3756 = vmax.f32 %v3356, 0.0
      %v3757 = vmax.f32 %v3357, 0.0
      %v3758 = vmax.f32 %v3358, 0.0
      %v3759 = vmax.f32 %v3359, 0.0
      %v3760 = vmax.f32 %v3360, 0.0
      %v3761 = vmax.f32 %v3361, 0.0
      %v3762 = vmax.f32 %v3362, 0.0
      %v3763 = vmax.f32 %v3363, 0.0
      %v3764 = vmax.f32 %v3364, 0.0
      %v3765 = vmax.f32 %v3365, 0.0
      %v3766 = vmax.f32 %v3366, 0.0
      %v3767 = vmax.f32 %v3367, 0.0
      %v3768 = vmax.f32 %v3368, 0.0
      %v3769 = vmax.f32 %v3369, 0.0
      %v3770 = vmax.f32 %v3370, 0.0
      %v3771 = vmax.f32 %v3371, 0.0
      %v3772 = vmax.f32 %v3372, 0.0
      %v3773 = vmax.f32 %v3373, 0.0
      %v3774 = vmax.f32 %v3374, 0.0
      %v3775 = vmax.f32 %v3375, 0.0
      %v3776 = vmax.f32 %v3376, 0.0
      %v3777 = vmax.f32 %v3377, 0.0
      %v3778 = vmax.f32 %v3378, 0.0
      %v3779 = vmax.f32 %v3379, 0.0
      %v3780 = vmax.f32 %v3380, 0.0
      %v3781 = vmax.f32 %v3381, 0.0
      %v3782 = vmax.f32 %v3382, 0.0
      %v3783 = vmax.f32 %v3383, 0.0
      %v3784 = vmax.f32 %v3384, 0.0
      %v3785 = vmax.f32 %v3385, 0.0
      %v3786 = vmax.f32 %v3386, 0.0
      %v3787 = vmax.f32 %v3387, 0.0
      %v3788 = vmax.f32 %v3388, 0.0
      %v3789 = vmax.f32 %v3389, 0.0
      %v3790 = vmax.f32 %v3390, 0.0
      %v3791 = vmax.f32 %v3391, 0.0
      %v3792 = vmax.f32 %v3392, 0.0
      %v3793 = vmax.f32 %v3393, 0.0
      %v3794 = vmax.f32 %v3394, 0.0
      %v3795 = vmax.f32 %v3395, 0.0
      %v3796 = vmax.f32 %v3396, 0.0
      %v3797 = vmax.f32 %v3397, 0.0
      %v3798 = vmax.f32 %v3398, 0.0
      %v3799 = vmax.f32 %v3399, 0.0
      %v3800 = vmax.f32 %v3400, 0.0
      %v3801 = vmax.f32 %v3401, 0.0
      %v3802 = vmax.f32 %v3402, 0.0
      %v3803 = vmax.f32 %v3403, 0.0
      %v3804 = vmax.f32 %v3404, 0.0
      %v3805 = vmax.f32 %v3405, 0.0
      %v3806 = vmax.f32 %v3406, 0.0
      %v3807 = vmax.f32 %v3407, 0.0
      %v3808 = vmax.f32 %v3408, 0.0
      %v3809 = vmax.f32 %v3409, 0.0
      %v3810 = vmax.f32 %v3410, 0.0
      %v3811 = vmax.f32 %v3411, 0.0
      %v3812 = vmax.f32 %v3412, 0.0
      %v3813 = vmax.f32 %v3413, 0.0
      %v3814 = vmax.f32 %v3414, 0.0
      %v3815 = vmax.f32 %v3415, 0.0
      %v3816 = vmax.f32 %v3416, 0.0
      %v3817 = vmax.f32 %v3417, 0.0
      %v3818 = vmax.f32 %v3418, 0.0
      %v3819 = vmax.f32 %v3419, 0.0
      %v3820 = vmax.f32 %v3420, 0.0
      %v3821 = vmax.f32 %v3421, 0.0
      %v3822 = vmax.f32 %v3422, 0.0
      %v3823 = vmax.f32 %v3423, 0.0
      %v3824 = vmax.f32 %v3424, 0.0
      %v3825 = vmax.f32 %v3425, 0.0
      %v3826 = vmax.f32 %v3426, 0.0
      %v3827 = vmax.f32 %v3427, 0.0
      %v3828 = vmax.f32 %v3428, 0.0
      %v3829 = vmax.f32 %v3429, 0.0
      %v3830 = vmax.f32 %v3430, 0.0
      %v3831 = vmax.f32 %v3431, 0.0
      %v3832 = vmax.f32 %v3432, 0.0
      %v3833 = vmax.f32 %v3433, 0.0
      %v3834 = vmax.f32 %v3434, 0.0
      %v3835 = vmax.f32 %v3435, 0.0
      %v3836 = vmax.f32 %v3436, 0.0
      %v3837 = vmax.f32 %v3437, 0.0
      %v3838 = vmax.f32 %v3438, 0.0
      %v3839 = vmax.f32 %v3439, 0.0
      %v3840 = vmax.f32 %v3440, 0.0
      %v3841 = vmax.f32 %v3441, 0.0
      %v3842 = vmax.f32 %v3442, 0.0
      %v3843 = vmax.f32 %v3443, 0.0
      %v3844 = vmax.f32 %v3444, 0.0
      %v3845 = vmax.f32 %v3445, 0.0
      %v3846 = vmax.f32 %v3446, 0.0
      %v3847 = vmax.f32 %v3447, 0.0
      %v3848 = vmax.f32 %v3448, 0.0
      %v3849 = vmax.f32 %v3449, 0.0
      %v3850 = vmax.f32 %v3450, 0.0
      %v3851 = vmax.f32 %v3451, 0.0
      %v3852 = vmax.f32 %v3452, 0.0
      %v3853 = vmax.f32 %v3453, 0.0
      %v3854 = vmax.f32 %v3454, 0.0
      %v3855 = vmax.f32 %v3455, 0.0
      %v3856 = vmax.f32 %v3456, 0.0
      %v3857 = vmax.f32 %v3457, 0.0
      %v3858 = vmax.f32 %v3458, 0.0
      %v3859 = vmax.f32 %v3459, 0.0
      %v3860 = vmax.f32 %v3460, 0.0
      %v3861 = vmax.f32 %v3461, 0.0
      %v3862 = vmax.f32 %v3462, 0.0
      %v3863 = vmax.f32 %v3463, 0.0
      %v3864 = vmax.f32 %v3464, 0.0
      %v3865 = vmax.f32 %v3465, 0.0
      %v3866 = vmax.f32 %v3466, 0.0
      %v3867 = vmax.f32 %v3467, 0.0
      %v3868 = vmax.f32 %v3468, 0.0
      %v3869 = vmax.f32 %v3469, 0.0
      %v3870 = vmax.f32 %v3470, 0.0
      %v3871 = vmax.f32 %v3471, 0.0
      %v3872 = vmax.f32 %v3472, 0.0
      %v3873 = vmax.f32 %v3473, 0.0
      %v3874 = vmax.f32 %v3474, 0.0
      %v3875 = vmax.f32 %v3475, 0.0
      %v3876 = vmax.f32 %v3476, 0.0
      %v3877 = vmax.f32 %v3477, 0.0
      %v3878 = vmax.f32 %v3478, 0.0
      %v3879 = vmax.f32 %v3479, 0.0
      %v3880 = vmax.f32 %v3480, 0.0
      %v3881 = vmax.f32 %v3481, 0.0
      %v3882 = vmax.f32 %v3482, 0.0
      %v3883 = vmax.f32 %v3483, 0.0
      %v3884 = vmax.f32 %v3484, 0.0
      %v3885 = vmax.f32 %v3485, 0.0
      %v3886 = vmax.f32 %v3486, 0.0
      %v3887 = vmax.f32 %v3487, 0.0
      %v3888 = vmax.f32 %v3488, 0.0
      %v3889 = vmax.f32 %v3489, 0.0
      %v3890 = vmax.f32 %v3490, 0.0
      %v3891 = vmax.f32 %v3491, 0.0
      %v3892 = vmax.f32 %v3492, 0.0
      %v3893 = vmax.f32 %v3493, 0.0
      %v3894 = vmax.f32 %v3494, 0.0
      %v3895 = vmax.f32 %v3495, 0.0
      %v3896 = vmax.f32 %v3496, 0.0
      %v3897 = vmax.f32 %v3497, 0.0
      %v3898 = vmax.f32 %v3498, 0.0
      %v3899 = vmax.f32 %v3499, 0.0
      %v3900 = vmax.f32 %v3500, 0.0
      %v3901 = vmax.f32 %v3501, 0.0
      %v3902 = vmax.f32 %v3502, 0.0
      %v3903 = vmax.f32 %v3503, 0.0
      %v3904 = vmax.f32 %v3504, 0.0
      %v3905 = vmax.f32 %v3505, 0.0
      %v3906 = vmax.f32 %v3506, 0.0
      %v3907 = vmax.f32 %v3507, 0.0
      %v3908 = vmax.f32 %v3508, 0.0
      %v3909 = vmax.f32 %v3509, 0.0
      %v3910 = vmax.f32 %v3510, 0.0
      %v3911 = vmax.f32 %v3511, 0.0
      %v3912 = vmax.f32 %v3512, 0.0
      %v3913 = vmax.f32 %v3513, 0.0
      %v3914 = vmax.f32 %v3514, 0.0
      %v3915 = vmax.f32 %v3515, 0.0
      %v3916 = vmax.f32 %v3516, 0.0
      %v3917 = vmax.f32 %v3517, 0.0
      %v3918 = vmax.f32 %v3518, 0.0
      %v3919 = vmax.f32 %v3519, 0.0
      %v3920 = vmax.f32 %v3520, 0.0
      %v3921 = vmax.f32 %v3521, 0.0
      %v3922 = vmax.f32 %v3522, 0.0
      %v3923 = vmax.f32 %v3523, 0.0
      %v3924 = vmax.f32 %v3524, 0.0
      %v3925 = vmax.f32 %v3525, 0.0
      %v3926 = vmax.f32 %v3526, 0.0
      %v3927 = vmax.f32 %v3527, 0.0
      %v3928 = vmax.f32 %v3528, 0.0
      %v3929 = vmax.f32 %v3529, 0.0
      %v3930 = vmax.f32 %v3530, 0.0
      %v3931 = vmax.f32 %v3531, 0.0
      %v3932 = vmax.f32 %v3532, 0.0
      %v3933 = vmax.f32 %v3533, 0.0
      %v3934 = vmax.f32 %v3534, 0.0
      %v3935 = vmax.f32 %v3535, 0.0
      %v3936 = vmax.f32 %v3536, 0.0
      %v3937 = vmax.f32 %v3537, 0.0
      %v3938 = vmax.f32 %v3538, 0.0
      %v3939 = vmax.f32 %v3539, 0.0
      %v3940 = vmax.f32 %v3540, 0.0
      %v3941 = vmax.f32 %v3541, 0.0
      %v3942 = vmax.f32 %v3542, 0.0
      %v3943 = vmax.f32 %v3543, 0.0
      %v3944 = vmax.f32 %v3544, 0.0
      %v3945 = vmax.f32 %v3545, 0.0
      %v3946 = vmax.f32 %v3546, 0.0
      %v3947 = vmax.f32 %v3547, 0.0
      %v3948 = vmax.f32 %v3548, 0.0
      %v3949 = vmax.f32 %v3549, 0.0
      %v3950 = vmax.f32 %v3550, 0.0
      %v3951 = vmax.f32 %v3551, 0.0
      %v3952 = vmax.f32 %v3552, 0.0
      %v3953 = vmax.f32 %v3553, 0.0
      %v3954 = vmax.f32 %v3554, 0.0
      %v3955 = vmax.f32 %v3555, 0.0
      %v3956 = vmax.f32 %v3556, 0.0
      %v3957 = vmax.f32 %v3557, 0.0
      %v3958 = vmax.f32 %v3558, 0.0
      %v3959 = vmax.f32 %v3559, 0.0
      %v3960 = vmax.f32 %v3560, 0.0
      %v3961 = vmax.f32 %v3561, 0.0
      %v3962 = vmax.f32 %v3562, 0.0
      %v3963 = vmax.f32 %v3563, 0.0
      %v3964 = vmax.f32 %v3564, 0.0
      %v3965 = vmax.f32 %v3565, 0.0
      %v3966 = vmax.f32 %v3566, 0.0
      %v3967 = vmax.f32 %v3567, 0.0
      %v3968 = vmax.f32 %v3568, 0.0
      %v3969 = vmax.f32 %v3569, 0.0
      %v3970 = vmax.f32 %v3570, 0.0
      %v3971 = vmax.f32 %v3571, 0.0
      %v3972 = vmax.f32 %v3572, 0.0
      %v3973 = vmax.f32 %v3573, 0.0
      %v3974 = vmax.f32 %v3574, 0.0
      %v3975 = vmax.f32 %v3575, 0.0
      %v3976 = vmax.f32 %v3576, 0.0
      %v3977 = vmax.f32 %v3577, 0.0
      %v3978 = vmax.f32 %v3578, 0.0
      %v3979 = vmax.f32 %v3579, 0.0
      %v3980 = vmax.f32 %v3580, 0.0
      %v3981 = vmax.f32 %v3581, 0.0
      %v3982 = vmax.f32 %v3582, 0.0
      %v3983 = vmax.f32 %v3583, 0.0
      %v3984 = vmax.f32 %v3584, 0.0
      %v3985 = vmax.f32 %v3585, 0.0
      %v3986 = vmax.f32 %v3586, 0.0
      %v3987 = vmax.f32 %v3587, 0.0
      %v3988 = vmax.f32 %v3588, 0.0
      %v3989 = vmax.f32 %v3589, 0.0
      %v3990 = vmax.f32 %v3590, 0.0
      %v3991 = vmax.f32 %v3591, 0.0
      %v3992 = vmax.f32 %v3592, 0.0
      %v3993 = vmax.f32 %v3593, 0.0
      %v3994 = vmax.f32 %v3594, 0.0
      %v3995 = vmax.f32 %v3595, 0.0
      %v3996 = vmax.f32 %v3596, 0.0
      %v3997 = vmax.f32 %v3597, 0.0
      %v3998 = vmax.f32 %v3598, 0.0
      %v3999 = vmax.f32 %v3599, 0.0
      %v4000 = vmax.f32 %v3600, 0.0
      %v4001 = vmax.f32 %v3601, 0.0
      %v4002 = vmax.f32 %v3602, 0.0
      %v4003 = vmax.f32 %v3603, 0.0
      %v4004 = vmax.f32 %v3604, 0.0
      %v4005 = vmax.f32 %v3605, 0.0
      %v4006 = vmax.f32 %v3606, 0.0
      %v4007 = vmax.f32 %v3607, 0.0
      %v4008 = vmax.f32 %v3608, 0.0
      %v4009 = vmax.f32 %v3609, 0.0
      %v4010 = vmax.f32 %v3610, 0.0
      %v4011 = vmax.f32 %v3611, 0.0
      %v4012 = vmax.f32 %v3612, 0.0
      %v4013 = vmax.f32 %v3613, 0.0
      %v4014 = vmax.f32 %v3614, 0.0
      %v4015 = vmax.f32 %v3615, 0.0
      %v4016 = vmax.f32 %v3616, 0.0
      %v4017 = vmax.f32 %v3617, 0.0
      %v4018 = vmax.f32 %v3618, 0.0
      %v4019 = vmax.f32 %v3619, 0.0
      %v4020 = vmax.f32 %v3620, 0.0
      %v4021 = vmax.f32 %v3621, 0.0
      %v4022 = vmax.f32 %v3622, 0.0
      %v4023 = vmax.f32 %v3623, 0.0
      %v4024 = vmax.f32 %v3624, 0.0
      %v4025 = vmax.f32 %v3625, 0.0
      %v4026 = vmax.f32 %v3626, 0.0
      %v4027 = vmax.f32 %v3627, 0.0
      %v4028 = vmax.f32 %v3628, 0.0
      %v4029 = vmax.f32 %v3629, 0.0
      %v4030 = vmax.f32 %v3630, 0.0
      %v4031 = vmax.f32 %v3631, 0.0
      %v4032 = vmax.f32 %v3632, 0.0
      %v4033 = vmax.f32 %v3633, 0.0
      %v4034 = vmax.f32 %v3634, 0.0
      %v4035 = vmax.f32 %v3635, 0.0
      %v4036 = vmax.f32 %v3636, 0.0
      %v4037 = vmax.f32 %v3637, 0.0
      %v4038 = vmax.f32 %v3638, 0.0
      %v4039 = vmax.f32 %v3639, 0.0
      %v4040 = vmax.f32 %v3640, 0.0
      %v4041 = vmax.f32 %v3641, 0.0
      %v4042 = vmax.f32 %v3642, 0.0
      %v4043 = vmax.f32 %v3643, 0.0
      %v4044 = vmax.f32 %v3644, 0.0
      %v4045 = vmax.f32 %v3645, 0.0
      %v4046 = vmax.f32 %v3646, 0.0
      %v4047 = vmax.f32 %v3647, 0.0
      %v4048 = vmax.f32 %v3648, 0.0
      %v4049 = vmax.f32 %v3649, 0.0
      %v4050 = vmax.f32 %v3650, 0.0
      %v4051 = vmax.f32 %v3651, 0.0
      %v4052 = vmax.f32 %v3652, 0.0
      %v4053 = vmax.f32 %v3653, 0.0
      %v4054 = vmax.f32 %v3654, 0.0
      %v4055 = vmax.f32 %v3655, 0.0
      %v4056 = vmax.f32 %v3656, 0.0
      %v4057 = vmax.f32 %v3657, 0.0
      %v4058 = vmax.f32 %v3658, 0.0
      %v4059 = vmax.f32 %v3659, 0.0
      %v4060 = vmax.f32 %v3660, 0.0
      %v4061 = vmax.f32 %v3661, 0.0
      %v4062 = vmax.f32 %v3662, 0.0
      %v4063 = vmax.f32 %v3663, 0.0
      %v4064 = vmax.f32 %v3664, 0.0
      %v4065 = vmax.f32 %v3665, 0.0
      %v4066 = vmax.f32 %v3666, 0.0
      %v4067 = vmax.f32 %v3667, 0.0
      %v4068 = vmax.f32 %v3668, 0.0
      %v4069 = vmax.f32 %v3669, 0.0
      %v4070 = vmax.f32 %v3670, 0.0
      %v4071 = vmax.f32 %v3671, 0.0
      %v4072 = vmax.f32 %v3672, 0.0
      %v4073 = vmax.f32 %v3673, 0.0
      %v4074 = vmax.f32 %v3674, 0.0
      %v4075 = vmax.f32 %v3675, 0.0
      %v4076 = vmax.f32 %v3676, 0.0
      %v4077 = vmax.f32 %v3677, 0.0
      %v4078 = vmax.f32 %v3678, 0.0
      %v4079 = vmax.f32 %v3679, 0.0
      %v4080 = vmax.f32 %v3680, 0.0
      %v4081 = vmax.f32 %v3681, 0.0
      %v4082 = vmax.f32 %v3682, 0.0
      %v4083 = vmax.f32 %v3683, 0.0
      %v4084 = vmax.f32 %v3684, 0.0
      %v4085 = vmax.f32 %v3685, 0.0
      %v4086 = vmax.f32 %v3686, 0.0
      %v4087 = vmax.f32 %v3687, 0.0
      %v4088 = vmax.f32 %v3688, 0.0
      %v4089 = vmax.f32 %v3689, 0.0
      %v4090 = vmax.f32 %v3690, 0.0
      %v4091 = vmax.f32 %v3691, 0.0
      %v4092 = vmax.f32 %v3692, 0.0
      %v4093 = vmax.f32 %v3693, 0.0
      %v4094 = vmax.f32 %v3694, 0.0
      %v4095 = vmax.f32 %v3695, 0.0
      %v4096 = vmax.f32 %v3696, 0.0
      %v4097 = vmax.f32 %v3697, 0.0
      %v4098 = vmax.f32 %v3698, 0.0
      %v4099 = vmax.f32 %v3699, 0.0
      %v4100 = vmax.f32 %v3700, 0.0
      %v4101 = vmax.f32 %v3701, 0.0
      %v4102 = vmax.f32 %v3702, 0.0
      %v4103 = vmax.f32 %v3703, 0.0
      %v4104 = vmax.f32 %v3704, 0.0
      %v4105 = vmax.f32 %v3705, 0.0
      %v4106 = vmax.f32 %v3706, 0.0
      %v4107 = vmax.f32 %v3707, 0.0
      %v4108 = vpack.c.bf16 %v3724, %v3708
      %v4109 = vpack.c.bf16 %v3725, %v3709
      %v4110 = vpack.c.bf16 %v3726, %v3710
      %v4111 = vpack.c.bf16 %v3727, %v3711
      %v4112 = vpack.c.bf16 %v3728, %v3712
      %v4113 = vpack.c.bf16 %v3729, %v3713
      %v4114 = vpack.c.bf16 %v3730, %v3714
      %v4115 = vpack.c.bf16 %v3731, %v3715
      %v4116 = vpack.c.bf16 %v3732, %v3716
      %v4117 = vpack.c.bf16 %v3733, %v3717
      %v4118 = vpack.c.bf16 %v3734, %v3718
      %v4119 = vpack.c.bf16 %v3735, %v3719
      %v4120 = vpack.c.bf16 %v3736, %v3720
      %v4121 = vpack.c.bf16 %v3737, %v3721
      %v4122 = vpack.c.bf16 %v3738, %v3722
      %v4123 = vpack.c.bf16 %v3739, %v3723
      %v4124 = vpack.c.bf16 %v3756, %v3740
      %v4125 = vpack.c.bf16 %v3757, %v3741
      %v4126 = vpack.c.bf16 %v3758, %v3742
      %v4127 = vpack.c.bf16 %v3759, %v3743
      %v4128 = vpack.c.bf16 %v3760, %v3744
      %v4129 = vpack.c.bf16 %v3761, %v3745
      %v4130 = vpack.c.bf16 %v3762, %v3746
      %v4131 = vpack.c.bf16 %v3763, %v3747
      %v4132 = vpack.c.bf16 %v3764, %v3748
      %v4133 = vpack.c.bf16 %v3765, %v3749
      %v4134 = vpack.c.bf16 %v3766, %v3750
      %v4135 = vpack.c.bf16 %v3767, %v3751
      %v4136 = vpack.c.bf16 %v3768, %v3752
      %v4137 = vpack.c.bf16 %v3769, %v3753
      %v4138 = vpack.c.bf16 %v3770, %v3754
      %v4139 = vpack.c.bf16 %v3771, %v3755
      %v4140 = vpack.c.bf16 %v3788, %v3772
      %v4141 = vpack.c.bf16 %v3789, %v3773
      %v4142 = vpack.c.bf16 %v3790, %v3774
      %v4143 = vpack.c.bf16 %v3791, %v3775
      %v4144 = vpack.c.bf16 %v3792, %v3776
      %v4145 = vpack.c.bf16 %v3793, %v3777
      %v4146 = vpack.c.bf16 %v3794, %v3778
      %v4147 = vpack.c.bf16 %v3795, %v3779
      %v4148 = vpack.c.bf16 %v3796, %v3780
      %v4149 = vpack.c.bf16 %v3797, %v3781
      %v4150 = vpack.c.bf16 %v3798, %v3782
      %v4151 = vpack.c.bf16 %v3799, %v3783
      %v4152 = vpack.c.bf16 %v3800, %v3784
      %v4153 = vpack.c.bf16 %v3801, %v3785
      %v4154 = vpack.c.bf16 %v3802, %v3786
      %v4155 = vpack.c.bf16 %v3803, %v3787
      %v4156 = vpack.c.bf16 %v3820, %v3804
      %v4157 = vpack.c.bf16 %v3821, %v3805
      %v4158 = vpack.c.bf16 %v3822, %v3806
      %v4159 = vpack.c.bf16 %v3823, %v3807
      %v4160 = vpack.c.bf16 %v3824, %v3808
      %v4161 = vpack.c.bf16 %v3825, %v3809
      %v4162 = vpack.c.bf16 %v3826, %v3810
      %v4163 = vpack.c.bf16 %v3827, %v3811
      %v4164 = vpack.c.bf16 %v3828, %v3812
      %v4165 = vpack.c.bf16 %v3829, %v3813
      %v4166 = vpack.c.bf16 %v3830, %v3814
      %v4167 = vpack.c.bf16 %v3831, %v3815
      %v4168 = vpack.c.bf16 %v3832, %v3816
      %v4169 = vpack.c.bf16 %v3833, %v3817
      %v4170 = vpack.c.bf16 %v3834, %v3818
      %v4171 = vpack.c.bf16 %v3835, %v3819
      %v4172 = vpack.c.bf16 %v3852, %v3836
      %v4173 = vpack.c.bf16 %v3853, %v3837
      %v4174 = vpack.c.bf16 %v3854, %v3838
      %v4175 = vpack.c.bf16 %v3855, %v3839
      %v4176 = vpack.c.bf16 %v3856, %v3840
      %v4177 = vpack.c.bf16 %v3857, %v3841
      %v4178 = vpack.c.bf16 %v3858, %v3842
      %v4179 = vpack.c.bf16 %v3859, %v3843
      %v4180 = vpack.c.bf16 %v3860, %v3844
      %v4181 = vpack.c.bf16 %v3861, %v3845
      %v4182 = vpack.c.bf16 %v3862, %v3846
      %v4183 = vpack.c.bf16 %v3863, %v3847
      %v4184 = vpack.c.bf16 %v3864, %v3848
      %v4185 = vpack.c.bf16 %v3865, %v3849
      %v4186 = vpack.c.bf16 %v3866, %v3850
      %v4187 = vpack.c.bf16 %v3867, %v3851
      %v4188 = vpack.c.bf16 %v3884, %v3868
      %v4189 = vpack.c.bf16 %v3885, %v3869
      %v4190 = vpack.c.bf16 %v3886, %v3870
      %v4191 = vpack.c.bf16 %v3887, %v3871
      %v4192 = vpack.c.bf16 %v3888, %v3872
      %v4193 = vpack.c.bf16 %v3889, %v3873
      %v4194 = vpack.c.bf16 %v3890, %v3874
      %v4195 = vpack.c.bf16 %v3891, %v3875
      %v4196 = vpack.c.bf16 %v3892, %v3876
      %v4197 = vpack.c.bf16 %v3893, %v3877
      %v4198 = vpack.c.bf16 %v3894, %v3878
      %v4199 = vpack.c.bf16 %v3895, %v3879
      %v4200 = vpack.c.bf16 %v3896, %v3880
      %v4201 = vpack.c.bf16 %v3897, %v3881
      %v4202 = vpack.c.bf16 %v3898, %v3882
      %v4203 = vpack.c.bf16 %v3899, %v3883
      %v4204 = vpack.c.bf16 %v3916, %v3900
      %v4205 = vpack.c.bf16 %v3917, %v3901
      %v4206 = vpack.c.bf16 %v3918, %v3902
      %v4207 = vpack.c.bf16 %v3919, %v3903
      %v4208 = vpack.c.bf16 %v3920, %v3904
      %v4209 = vpack.c.bf16 %v3921, %v3905
      %v4210 = vpack.c.bf16 %v3922, %v3906
      %v4211 = vpack.c.bf16 %v3923, %v3907
      %v4212 = vpack.c.bf16 %v3924, %v3908
      %v4213 = vpack.c.bf16 %v3925, %v3909
      %v4214 = vpack.c.bf16 %v3926, %v3910
      %v4215 = vpack.c.bf16 %v3927, %v3911
      %v4216 = vpack.c.bf16 %v3928, %v3912
      %v4217 = vpack.c.bf16 %v3929, %v3913
      %v4218 = vpack.c.bf16 %v3930, %v3914
      %v4219 = vpack.c.bf16 %v3931, %v3915
      %v4220 = vpack.c.bf16 %v3948, %v3932
      %v4221 = vpack.c.bf16 %v3949, %v3933
      %v4222 = vpack.c.bf16 %v3950, %v3934
      %v4223 = vpack.c.bf16 %v3951, %v3935
      %v4224 = vpack.c.bf16 %v3952, %v3936
      %v4225 = vpack.c.bf16 %v3953, %v3937
      %v4226 = vpack.c.bf16 %v3954, %v3938
      %v4227 = vpack.c.bf16 %v3955, %v3939
      %v4228 = vpack.c.bf16 %v3956, %v3940
      %v4229 = vpack.c.bf16 %v3957, %v3941
      %v4230 = vpack.c.bf16 %v3958, %v3942
      %v4231 = vpack.c.bf16 %v3959, %v3943
      %v4232 = vpack.c.bf16 %v3960, %v3944
      %v4233 = vpack.c.bf16 %v3961, %v3945
      %v4234 = vpack.c.bf16 %v3962, %v3946
      %v4235 = vpack.c.bf16 %v3963, %v3947
      %v4236 = vpack.c.bf16 %v3980, %v3964
      %v4237 = vpack.c.bf16 %v3981, %v3965
      %v4238 = vpack.c.bf16 %v3982, %v3966
      %v4239 = vpack.c.bf16 %v3983, %v3967
      %v4240 = vpack.c.bf16 %v3984, %v3968
      %v4241 = vpack.c.bf16 %v3985, %v3969
      %v4242 = vpack.c.bf16 %v3986, %v3970
      %v4243 = vpack.c.bf16 %v3987, %v3971
      %v4244 = vpack.c.bf16 %v3988, %v3972
      %v4245 = vpack.c.bf16 %v3989, %v3973
      %v4246 = vpack.c.bf16 %v3990, %v3974
      %v4247 = vpack.c.bf16 %v3991, %v3975
      %v4248 = vpack.c.bf16 %v3992, %v3976
      %v4249 = vpack.c.bf16 %v3993, %v3977
      %v4250 = vpack.c.bf16 %v3994, %v3978
      %v4251 = vpack.c.bf16 %v3995, %v3979
      %v4252 = vpack.c.bf16 %v4012, %v3996
      %v4253 = vpack.c.bf16 %v4013, %v3997
      %v4254 = vpack.c.bf16 %v4014, %v3998
      %v4255 = vpack.c.bf16 %v4015, %v3999
      %v4256 = vpack.c.bf16 %v4016, %v4000
      %v4257 = vpack.c.bf16 %v4017, %v4001
      %v4258 = vpack.c.bf16 %v4018, %v4002
      %v4259 = vpack.c.bf16 %v4019, %v4003
      %v4260 = vpack.c.bf16 %v4020, %v4004
      %v4261 = vpack.c.bf16 %v4021, %v4005
      %v4262 = vpack.c.bf16 %v4022, %v4006
      %v4263 = vpack.c.bf16 %v4023, %v4007
      %v4264 = vpack.c.bf16 %v4024, %v4008
      %v4265 = vpack.c.bf16 %v4025, %v4009
      %v4266 = vpack.c.bf16 %v4026, %v4010
      %v4267 = vpack.c.bf16 %v4027, %v4011
      %v4268 = vpack.c.bf16 %v4044, %v4028
      %v4269 = vpack.c.bf16 %v4045, %v4029
      %v4270 = vpack.c.bf16 %v4046, %v4030
      %v4271 = vpack.c.bf16 %v4047, %v4031
      %v4272 = vpack.c.bf16 %v4048, %v4032
      %v4273 = vpack.c.bf16 %v4049, %v4033
      %v4274 = vpack.c.bf16 %v4050, %v4034
      %v4275 = vpack.c.bf16 %v4051, %v4035
      %v4276 = vpack.c.bf16 %v4052, %v4036
      %v4277 = vpack.c.bf16 %v4053, %v4037
      %v4278 = vpack.c.bf16 %v4054, %v4038
      %v4279 = vpack.c.bf16 %v4055, %v4039
      %v4280 = vpack.c.bf16 %v4056, %v4040
      %v4281 = vpack.c.bf16 %v4057, %v4041
      %v4282 = vpack.c.bf16 %v4058, %v4042
      %v4283 = vpack.c.bf16 %v4059, %v4043
      %v4284 = vpack.c.bf16 %v4076, %v4060
      %v4285 = vpack.c.bf16 %v4077, %v4061
      %v4286 = vpack.c.bf16 %v4078, %v4062
      %v4287 = vpack.c.bf16 %v4079, %v4063
      %v4288 = vpack.c.bf16 %v4080, %v4064
      %v4289 = vpack.c.bf16 %v4081, %v4065
      %v4290 = vpack.c.bf16 %v4082, %v4066
      %v4291 = vpack.c.bf16 %v4083, %v4067
      %v4292 = vpack.c.bf16 %v4084, %v4068
      %v4293 = vpack.c.bf16 %v4085, %v4069
      %v4294 = vpack.c.bf16 %v4086, %v4070
      %v4295 = vpack.c.bf16 %v4087, %v4071
      %v4296 = vpack.c.bf16 %v4088, %v4072
      %v4297 = vpack.c.bf16 %v4089, %v4073
      %v4298 = vpack.c.bf16 %v4090, %v4074
      %v4299 = vpack.c.bf16 %v4091, %v4075
      %v4300 = vpack.c.bf16 %v4092, %v4092
      %v4301 = vpack.c.bf16 %v4093, %v4093
      %v4302 = vpack.c.bf16 %v4094, %v4094
      %v4303 = vpack.c.bf16 %v4095, %v4095
      %v4304 = vpack.c.bf16 %v4096, %v4096
      %v4305 = vpack.c.bf16 %v4097, %v4097
      %v4306 = vpack.c.bf16 %v4098, %v4098
      %v4307 = vpack.c.bf16 %v4099, %v4099
      %v4308 = vpack.c.bf16 %v4100, %v4100
      %v4309 = vpack.c.bf16 %v4101, %v4101
      %v4310 = vpack.c.bf16 %v4102, %v4102
      %v4311 = vpack.c.bf16 %v4103, %v4103
      %v4312 = vpack.c.bf16 %v4104, %v4104
      %v4313 = vpack.c.bf16 %v4105, %v4105
      %v4314 = vpack.c.bf16 %v4106, %v4106
      %v4315 = vpack.c.bf16 %v4107, %v4107
      %v4316 = vld [vmem:[%s4] sm:$0xf]
      %v4317 = vld [vmem:[%s4 + $0x4] sm:$0xf]
      %v4318 = vld [vmem:[%s4 + $0x8] sm:$0xf]
      %v4319 = vld [vmem:[%s4 + $0xc] sm:$0xf]
      %v4320 = vld [vmem:[%s4 + $0x10] sm:$0xf]
      %v4321 = vld [vmem:[%s4 + $0x14] sm:$0xf]
      %v4322 = vld [vmem:[%s4 + $0x18] sm:$0xf]
      %v4323 = vld [vmem:[%s4 + $0x1c] sm:$0xf]
      %v4324 = vld [vmem:[%s4 + $0x20] sm:$0xf]
      %v4325 = vld [vmem:[%s4 + $0x24] sm:$0xf]
      %v4326 = vld [vmem:[%s4 + $0x28] sm:$0xf]
      %v4327 = vld [vmem:[%s4 + $0x2c] sm:$0xf]
      %v4328 = vld [vmem:[%s4 + $0x30] sm:$0xf]
      %v4329 = vld [vmem:[%s4 + $0x34] sm:$0xf]
      %v4330 = vld [vmem:[%s4 + $0x38] sm:$0xf]
      %v4331 = vld [vmem:[%s4 + $0x3c] sm:$0xf]
      %v4332 = vld [vmem:[%s4 + $0x40] sm:$0xf]
      %v4333 = vld [vmem:[%s4 + $0x44] sm:$0xf]
      %v4334 = vld [vmem:[%s4 + $0x48] sm:$0xf]
      %v4335 = vld [vmem:[%s4 + $0x4c] sm:$0xf]
      %v4336 = vld [vmem:[%s4 + $0x50] sm:$0xf]
      %v4337 = vld [vmem:[%s4 + $0x54] sm:$0xf]
      %v4338 = vld [vmem:[%s4 + $0x58] sm:$0xf]
      %v4339 = vld [vmem:[%s4 + $0x5c] sm:$0xf]
      %v4340 = vld [vmem:[%s4 + $0x60] sm:$0xf]
      %v4341 = vld [vmem:[%s4 + $0x64] sm:$0xf]
      %v4342 = vld [vmem:[%s4 + $0x68] sm:$0xf]
      %v4343 = vld [vmem:[%s4 + $0x6c] sm:$0xf]
      %v4344 = vld [vmem:[%s4 + $0x70] sm:$0xf]
      %v4345 = vld [vmem:[%s4 + $0x74] sm:$0xf]
      %v4346 = vld [vmem:[%s4 + $0x78] sm:$0xf]
      %v4347 = vld [vmem:[%s4 + $0x7c] sm:$0xf]
      %v4348 = vld [vmem:[%s4 + $0x80] sm:$0xf]
      %v4349 = vld [vmem:[%s4 + $0x84] sm:$0xf]
      %v4350 = vld [vmem:[%s4 + $0x88] sm:$0xf]
      %v4351 = vld [vmem:[%s4 + $0x8c] sm:$0xf]
      %v4352 = vld [vmem:[%s4 + $0x90] sm:$0xf]
      %v4353 = vld [vmem:[%s4 + $0x94] sm:$0xf]
      %v4354 = vld [vmem:[%s4 + $0x98] sm:$0xf]
      %v4355 = vld [vmem:[%s4 + $0x9c] sm:$0xf]
      %v4356 = vld [vmem:[%s4 + $0xa0] sm:$0xf]
      %v4357 = vld [vmem:[%s4 + $0xa4] sm:$0xf]
      %v4358 = vld [vmem:[%s4 + $0xa8] sm:$0xf]
      %v4359 = vld [vmem:[%s4 + $0xac] sm:$0xf]
      %v4360 = vld [vmem:[%s4 + $0xb0] sm:$0xf]
      %v4361 = vld [vmem:[%s4 + $0xb4] sm:$0xf]
      %v4362 = vld [vmem:[%s4 + $0xb8] sm:$0xf]
      %v4363 = vld [vmem:[%s4 + $0xbc] sm:$0xf]
      %v4364 = vld [vmem:[%s4 + $0xc0] sm:$0xf]
      %v4365 = vld [vmem:[%s4 + $0xc4] sm:$0xf]
      %v4366 = vld [vmem:[%s4 + $0xc8] sm:$0xf]
      %v4367 = vld [vmem:[%s4 + $0xcc] sm:$0xf]
      %v4368 = vld [vmem:[%s4 + $0xd0] sm:$0xf]
      %v4369 = vld [vmem:[%s4 + $0xd4] sm:$0xf]
      %v4370 = vld [vmem:[%s4 + $0xd8] sm:$0xf]
      %v4371 = vld [vmem:[%s4 + $0xdc] sm:$0xf]
      %v4372 = vld [vmem:[%s4 + $0xe0] sm:$0xf]
      %v4373 = vld [vmem:[%s4 + $0xe4] sm:$0xf]
      %v4374 = vld [vmem:[%s4 + $0xe8] sm:$0xf]
      %v4375 = vld [vmem:[%s4 + $0xec] sm:$0xf]
      %v4376 = vld [vmem:[%s4 + $0xf0] sm:$0xf]
      %v4377 = vld [vmem:[%s4 + $0xf4] sm:$0xf]
      %v4378 = vld [vmem:[%s4 + $0xf8] sm:$0xf]
      %v4379 = vld [vmem:[%s4 + $0xfc] sm:$0xf]
      %v4380 = vld [vmem:[%s4 + $0x100] sm:$0xf]
      %v4381 = vld [vmem:[%s4 + $0x104] sm:$0xf]
      %v4382 = vld [vmem:[%s4 + $0x108] sm:$0xf]
      %v4383 = vld [vmem:[%s4 + $0x10c] sm:$0xf]
      %v4384 = vld [vmem:[%s4 + $0x110] sm:$0xf]
      %v4385 = vld [vmem:[%s4 + $0x114] sm:$0xf]
      %v4386 = vld [vmem:[%s4 + $0x118] sm:$0xf]
      %v4387 = vld [vmem:[%s4 + $0x11c] sm:$0xf]
      %v4388 = vld [vmem:[%s4 + $0x120] sm:$0xf]
      %v4389 = vld [vmem:[%s4 + $0x124] sm:$0xf]
      %v4390 = vld [vmem:[%s4 + $0x128] sm:$0xf]
      %v4391 = vld [vmem:[%s4 + $0x12c] sm:$0xf]
      %v4392 = vld [vmem:[%s4 + $0x130] sm:$0xf]
      %v4393 = vld [vmem:[%s4 + $0x134] sm:$0xf]
      %v4394 = vld [vmem:[%s4 + $0x138] sm:$0xf]
      %v4395 = vld [vmem:[%s4 + $0x13c] sm:$0xf]
      %v4396 = vld [vmem:[%s4 + $0x140] sm:$0xf]
      %v4397 = vld [vmem:[%s4 + $0x144] sm:$0xf]
      %v4398 = vld [vmem:[%s4 + $0x148] sm:$0xf]
      %v4399 = vld [vmem:[%s4 + $0x14c] sm:$0xf]
      %v4400 = vld [vmem:[%s4 + $0x150] sm:$0xf]
      %v4401 = vld [vmem:[%s4 + $0x154] sm:$0xf]
      %v4402 = vld [vmem:[%s4 + $0x158] sm:$0xf]
      %v4403 = vld [vmem:[%s4 + $0x15c] sm:$0xf]
      %v4404 = vld [vmem:[%s4 + $0x160] sm:$0xf]
      %v4405 = vld [vmem:[%s4 + $0x164] sm:$0xf]
      %v4406 = vld [vmem:[%s4 + $0x168] sm:$0xf]
      %v4407 = vld [vmem:[%s4 + $0x16c] sm:$0xf]
      %v4408 = vld [vmem:[%s4 + $0x170] sm:$0xf]
      %v4409 = vld [vmem:[%s4 + $0x174] sm:$0xf]
      %v4410 = vld [vmem:[%s4 + $0x178] sm:$0xf]
      %v4411 = vld [vmem:[%s4 + $0x17c] sm:$0xf]
      %v4412 = vld [vmem:[%s4 + $0x180] sm:$0xf]
      %v4413 = vld [vmem:[%s4 + $0x184] sm:$0xf]
      %v4414 = vld [vmem:[%s4 + $0x188] sm:$0xf]
      %v4415 = vld [vmem:[%s4 + $0x18c] sm:$0xf]
      %v4416 = vld [vmem:[%s4 + $0x190] sm:$0xf]
      %v4417 = vld [vmem:[%s4 + $0x194] sm:$0xf]
      %v4418 = vld [vmem:[%s4 + $0x198] sm:$0xf]
      %v4419 = vld [vmem:[%s4 + $0x19c] sm:$0xf]
      %v4420 = vld [vmem:[%s4 + $0x1a0] sm:$0xf]
      %v4421 = vld [vmem:[%s4 + $0x1a4] sm:$0xf]
      %v4422 = vld [vmem:[%s4 + $0x1a8] sm:$0xf]
      %v4423 = vld [vmem:[%s4 + $0x1ac] sm:$0xf]
      %v4424 = vld [vmem:[%s4 + $0x1b0] sm:$0xf]
      %v4425 = vld [vmem:[%s4 + $0x1b4] sm:$0xf]
      %v4426 = vld [vmem:[%s4 + $0x1b8] sm:$0xf]
      %v4427 = vld [vmem:[%s4 + $0x1bc] sm:$0xf]
      %v4428 = vld [vmem:[%s4 + $0x1c0] sm:$0xf]
      %v4429 = vld [vmem:[%s4 + $0x1c4] sm:$0xf]
      %v4430 = vld [vmem:[%s4 + $0x1c8] sm:$0xf]
      %v4431 = vld [vmem:[%s4 + $0x1cc] sm:$0xf]
      %v4432 = vld [vmem:[%s4 + $0x1d0] sm:$0xf]
      %v4433 = vld [vmem:[%s4 + $0x1d4] sm:$0xf]
      %v4434 = vld [vmem:[%s4 + $0x1d8] sm:$0xf]
      %v4435 = vld [vmem:[%s4 + $0x1dc] sm:$0xf]
      %v4436 = vld [vmem:[%s4 + $0x1e0] sm:$0xf]
      %v4437 = vld [vmem:[%s4 + $0x1e4] sm:$0xf]
      %v4438 = vld [vmem:[%s4 + $0x1e8] sm:$0xf]
      %v4439 = vld [vmem:[%s4 + $0x1ec] sm:$0xf]
      %v4440 = vld [vmem:[%s4 + $0x1f0] sm:$0xf]
      %v4441 = vld [vmem:[%s4 + $0x1f4] sm:$0xf]
      %v4442 = vld [vmem:[%s4 + $0x1f8] sm:$0xf]
      %v4443 = vld [vmem:[%s4 + $0x1fc] sm:$0xf]
      %v4444 = vld [vmem:[%s4 + $0x200] sm:$0xf]
      %v4445 = vld [vmem:[%s4 + $0x204] sm:$0xf]
      %v4446 = vld [vmem:[%s4 + $0x208] sm:$0xf]
      %v4447 = vld [vmem:[%s4 + $0x20c] sm:$0xf]
      %v4448 = vld [vmem:[%s4 + $0x210] sm:$0xf]
      %v4449 = vld [vmem:[%s4 + $0x214] sm:$0xf]
      %v4450 = vld [vmem:[%s4 + $0x218] sm:$0xf]
      %v4451 = vld [vmem:[%s4 + $0x21c] sm:$0xf]
      %v4452 = vld [vmem:[%s4 + $0x220] sm:$0xf]
      %v4453 = vld [vmem:[%s4 + $0x224] sm:$0xf]
      %v4454 = vld [vmem:[%s4 + $0x228] sm:$0xf]
      %v4455 = vld [vmem:[%s4 + $0x22c] sm:$0xf]
      %v4456 = vld [vmem:[%s4 + $0x230] sm:$0xf]
      %v4457 = vld [vmem:[%s4 + $0x234] sm:$0xf]
      %v4458 = vld [vmem:[%s4 + $0x238] sm:$0xf]
      %v4459 = vld [vmem:[%s4 + $0x23c] sm:$0xf]
      %v4460 = vld [vmem:[%s4 + $0x240] sm:$0xf]
      %v4461 = vld [vmem:[%s4 + $0x244] sm:$0xf]
      %v4462 = vld [vmem:[%s4 + $0x248] sm:$0xf]
      %v4463 = vld [vmem:[%s4 + $0x24c] sm:$0xf]
      %v4464 = vld [vmem:[%s4 + $0x250] sm:$0xf]
      %v4465 = vld [vmem:[%s4 + $0x254] sm:$0xf]
      %v4466 = vld [vmem:[%s4 + $0x258] sm:$0xf]
      %v4467 = vld [vmem:[%s4 + $0x25c] sm:$0xf]
      %v4468 = vld [vmem:[%s4 + $0x260] sm:$0xf]
      %v4469 = vld [vmem:[%s4 + $0x264] sm:$0xf]
      %v4470 = vld [vmem:[%s4 + $0x268] sm:$0xf]
      %v4471 = vld [vmem:[%s4 + $0x26c] sm:$0xf]
      %v4472 = vld [vmem:[%s4 + $0x270] sm:$0xf]
      %v4473 = vld [vmem:[%s4 + $0x274] sm:$0xf]
      %v4474 = vld [vmem:[%s4 + $0x278] sm:$0xf]
      %v4475 = vld [vmem:[%s4 + $0x27c] sm:$0xf]
      %v4476 = vld [vmem:[%s4 + $0x280] sm:$0xf]
      %v4477 = vld [vmem:[%s4 + $0x284] sm:$0xf]
      %v4478 = vld [vmem:[%s4 + $0x288] sm:$0xf]
      %v4479 = vld [vmem:[%s4 + $0x28c] sm:$0xf]
      %v4480 = vld [vmem:[%s4 + $0x290] sm:$0xf]
      %v4481 = vld [vmem:[%s4 + $0x294] sm:$0xf]
      %v4482 = vld [vmem:[%s4 + $0x298] sm:$0xf]
      %v4483 = vld [vmem:[%s4 + $0x29c] sm:$0xf]
      %v4484 = vld [vmem:[%s4 + $0x2a0] sm:$0xf]
      %v4485 = vld [vmem:[%s4 + $0x2a4] sm:$0xf]
      %v4486 = vld [vmem:[%s4 + $0x2a8] sm:$0xf]
      %v4487 = vld [vmem:[%s4 + $0x2ac] sm:$0xf]
      %v4488 = vld [vmem:[%s4 + $0x2b0] sm:$0xf]
      %v4489 = vld [vmem:[%s4 + $0x2b4] sm:$0xf]
      %v4490 = vld [vmem:[%s4 + $0x2b8] sm:$0xf]
      %v4491 = vld [vmem:[%s4 + $0x2bc] sm:$0xf]
      %v4492 = vld [vmem:[%s4 + $0x2c0] sm:$0xf]
      %v4493 = vld [vmem:[%s4 + $0x2c4] sm:$0xf]
      %v4494 = vld [vmem:[%s4 + $0x2c8] sm:$0xf]
      %v4495 = vld [vmem:[%s4 + $0x2cc] sm:$0xf]
      %v4496 = vld [vmem:[%s4 + $0x2d0] sm:$0xf]
      %v4497 = vld [vmem:[%s4 + $0x2d4] sm:$0xf]
      %v4498 = vld [vmem:[%s4 + $0x2d8] sm:$0xf]
      %v4499 = vld [vmem:[%s4 + $0x2dc] sm:$0xf]
      %v4500 = vld [vmem:[%s4 + $0x2e0] sm:$0xf]
      %v4501 = vld [vmem:[%s4 + $0x2e4] sm:$0xf]
      %v4502 = vld [vmem:[%s4 + $0x2e8] sm:$0xf]
      %v4503 = vld [vmem:[%s4 + $0x2ec] sm:$0xf]
      %v4504 = vld [vmem:[%s4 + $0x2f0] sm:$0xf]
      %v4505 = vld [vmem:[%s4 + $0x2f4] sm:$0xf]
      %v4506 = vld [vmem:[%s4 + $0x2f8] sm:$0xf]
      %v4507 = vld [vmem:[%s4 + $0x2fc] sm:$0xf]
      %v4508 = vld [vmem:[%s4 + $0x300] sm:$0xf]
      %v4509 = vld [vmem:[%s4 + $0x304] sm:$0xf]
      %v4510 = vld [vmem:[%s4 + $0x308] sm:$0xf]
      %v4511 = vld [vmem:[%s4 + $0x30c] sm:$0xf]
      %v4512 = vld [vmem:[%s4 + $0x310] sm:$0xf]
      %v4513 = vld [vmem:[%s4 + $0x314] sm:$0xf]
      %v4514 = vld [vmem:[%s4 + $0x318] sm:$0xf]
      %v4515 = vld [vmem:[%s4 + $0x31c] sm:$0xf]
      %v4516 = vld [vmem:[%s4 + $0x320] sm:$0xf]
      %v4517 = vld [vmem:[%s4 + $0x324] sm:$0xf]
      %v4518 = vld [vmem:[%s4 + $0x328] sm:$0xf]
      %v4519 = vld [vmem:[%s4 + $0x32c] sm:$0xf]
      %v4520 = vld [vmem:[%s4 + $0x330] sm:$0xf]
      %v4521 = vld [vmem:[%s4 + $0x334] sm:$0xf]
      %v4522 = vld [vmem:[%s4 + $0x338] sm:$0xf]
      %v4523 = vld [vmem:[%s4 + $0x33c] sm:$0xf]
      %v4524 = vld [vmem:[%s4 + $0x340] sm:$0xf]
      %v4525 = vld [vmem:[%s4 + $0x344] sm:$0xf]
      %v4526 = vld [vmem:[%s4 + $0x348] sm:$0xf]
      %v4527 = vld [vmem:[%s4 + $0x34c] sm:$0xf]
      %v4528 = vld [vmem:[%s4 + $0x350] sm:$0xf]
      %v4529 = vld [vmem:[%s4 + $0x354] sm:$0xf]
      %v4530 = vld [vmem:[%s4 + $0x358] sm:$0xf]
      %v4531 = vld [vmem:[%s4 + $0x35c] sm:$0xf]
      %v4532 = vld [vmem:[%s4 + $0x360] sm:$0xf]
      %v4533 = vld [vmem:[%s4 + $0x364] sm:$0xf]
      %v4534 = vld [vmem:[%s4 + $0x368] sm:$0xf]
      %v4535 = vld [vmem:[%s4 + $0x36c] sm:$0xf]
      %v4536 = vld [vmem:[%s4 + $0x370] sm:$0xf]
      %v4537 = vld [vmem:[%s4 + $0x374] sm:$0xf]
      %v4538 = vld [vmem:[%s4 + $0x378] sm:$0xf]
      %v4539 = vld [vmem:[%s4 + $0x37c] sm:$0xf]
      %v4540 = vld [vmem:[%s4 + $0x380] sm:$0xf]
      %v4541 = vld [vmem:[%s4 + $0x384] sm:$0xf]
      %v4542 = vld [vmem:[%s4 + $0x388] sm:$0xf]
      %v4543 = vld [vmem:[%s4 + $0x38c] sm:$0xf]
      %v4544 = vld [vmem:[%s4 + $0x390] sm:$0xf]
      %v4545 = vld [vmem:[%s4 + $0x394] sm:$0xf]
      %v4546 = vld [vmem:[%s4 + $0x398] sm:$0xf]
      %v4547 = vld [vmem:[%s4 + $0x39c] sm:$0xf]
      %v4548 = vld [vmem:[%s4 + $0x3a0] sm:$0xf]
      %v4549 = vld [vmem:[%s4 + $0x3a4] sm:$0xf]
      %v4550 = vld [vmem:[%s4 + $0x3a8] sm:$0xf]
      %v4551 = vld [vmem:[%s4 + $0x3ac] sm:$0xf]
      %v4552 = vld [vmem:[%s4 + $0x3b0] sm:$0xf]
      %v4553 = vld [vmem:[%s4 + $0x3b4] sm:$0xf]
      %v4554 = vld [vmem:[%s4 + $0x3b8] sm:$0xf]
      %v4555 = vld [vmem:[%s4 + $0x3bc] sm:$0xf]
      %v4556 = vld [vmem:[%s4 + $0x3c0] sm:$0xf]
      %v4557 = vld [vmem:[%s4 + $0x3c4] sm:$0xf]
      %v4558 = vld [vmem:[%s4 + $0x3c8] sm:$0xf]
      %v4559 = vld [vmem:[%s4 + $0x3cc] sm:$0xf]
      %v4560 = vld [vmem:[%s4 + $0x3d0] sm:$0xf]
      %v4561 = vld [vmem:[%s4 + $0x3d4] sm:$0xf]
      %v4562 = vld [vmem:[%s4 + $0x3d8] sm:$0xf]
      %v4563 = vld [vmem:[%s4 + $0x3dc] sm:$0xf]
      %v4564 = vld [vmem:[%s4 + $0x3e0] sm:$0xf]
      %v4565 = vld [vmem:[%s4 + $0x3e4] sm:$0xf]
      %v4566 = vld [vmem:[%s4 + $0x3e8] sm:$0xf]
      %v4567 = vld [vmem:[%s4 + $0x3ec] sm:$0xf]
      %v4568 = vld [vmem:[%s4 + $0x3f0] sm:$0xf]
      %v4569 = vld [vmem:[%s4 + $0x3f4] sm:$0xf]
      %v4570 = vld [vmem:[%s4 + $0x3f8] sm:$0xf]
      %v4571 = vld [vmem:[%s4 + $0x3fc] sm:$0xf]
      %v4828 = vunpack.c.l.b16 %v4316
      %v4829 = vunpack.c.l.b16 %v4317
      %v4830 = vunpack.c.l.b16 %v4318
      %v4831 = vunpack.c.l.b16 %v4319
      %v4832 = vunpack.c.l.b16 %v4320
      %v4833 = vunpack.c.l.b16 %v4321
      %v4834 = vunpack.c.l.b16 %v4322
      %v4835 = vunpack.c.l.b16 %v4323
      %v4836 = vunpack.c.l.b16 %v4324
      %v4837 = vunpack.c.l.b16 %v4325
      %v4838 = vunpack.c.l.b16 %v4326
      %v4839 = vunpack.c.l.b16 %v4327
      %v4840 = vunpack.c.l.b16 %v4328
      %v4841 = vunpack.c.l.b16 %v4329
      %v4842 = vunpack.c.l.b16 %v4330
      %v4843 = vunpack.c.l.b16 %v4331
      %v4844 = vunpack.c.l.b16 %v4332
      %v4845 = vunpack.c.l.b16 %v4333
      %v4846 = vunpack.c.l.b16 %v4334
      %v4847 = vunpack.c.l.b16 %v4335
      %v4848 = vunpack.c.l.b16 %v4336
      %v4849 = vunpack.c.l.b16 %v4337
      %v4850 = vunpack.c.l.b16 %v4338
      %v4851 = vunpack.c.l.b16 %v4339
      %v4852 = vunpack.c.l.b16 %v4340
      %v4853 = vunpack.c.l.b16 %v4341
      %v4854 = vunpack.c.l.b16 %v4342
      %v4855 = vunpack.c.l.b16 %v4343
      %v4856 = vunpack.c.l.b16 %v4344
      %v4857 = vunpack.c.l.b16 %v4345
      %v4858 = vunpack.c.l.b16 %v4346
      %v4859 = vunpack.c.l.b16 %v4347
      %v4860 = vunpack.c.l.b16 %v4348
      %v4861 = vunpack.c.l.b16 %v4349
      %v4862 = vunpack.c.l.b16 %v4350
      %v4863 = vunpack.c.l.b16 %v4351
      %v4864 = vunpack.c.l.b16 %v4352
      %v4865 = vunpack.c.l.b16 %v4353
      %v4866 = vunpack.c.l.b16 %v4354
      %v4867 = vunpack.c.l.b16 %v4355
      %v4868 = vunpack.c.l.b16 %v4356
      %v4869 = vunpack.c.l.b16 %v4357
      %v4870 = vunpack.c.l.b16 %v4358
      %v4871 = vunpack.c.l.b16 %v4359
      %v4872 = vunpack.c.l.b16 %v4360
      %v4873 = vunpack.c.l.b16 %v4361
      %v4874 = vunpack.c.l.b16 %v4362
      %v4875 = vunpack.c.l.b16 %v4363
      %v4876 = vunpack.c.l.b16 %v4364
      %v4877 = vunpack.c.l.b16 %v4365
      %v4878 = vunpack.c.l.b16 %v4366
      %v4879 = vunpack.c.l.b16 %v4367
      %v4880 = vunpack.c.l.b16 %v4368
      %v4881 = vunpack.c.l.b16 %v4369
      %v4882 = vunpack.c.l.b16 %v4370
      %v4883 = vunpack.c.l.b16 %v4371
      %v4884 = vunpack.c.l.b16 %v4372
      %v4885 = vunpack.c.l.b16 %v4373
      %v4886 = vunpack.c.l.b16 %v4374
      %v4887 = vunpack.c.l.b16 %v4375
      %v4888 = vunpack.c.l.b16 %v4376
      %v4889 = vunpack.c.l.b16 %v4377
      %v4890 = vunpack.c.l.b16 %v4378
      %v4891 = vunpack.c.l.b16 %v4379
      %v4892 = vunpack.c.l.b16 %v4380
      %v4893 = vunpack.c.l.b16 %v4381
      %v4894 = vunpack.c.l.b16 %v4382
      %v4895 = vunpack.c.l.b16 %v4383
      %v4896 = vunpack.c.l.b16 %v4384
      %v4897 = vunpack.c.l.b16 %v4385
      %v4898 = vunpack.c.l.b16 %v4386
      %v4899 = vunpack.c.l.b16 %v4387
      %v4900 = vunpack.c.l.b16 %v4388
      %v4901 = vunpack.c.l.b16 %v4389
      %v4902 = vunpack.c.l.b16 %v4390
      %v4903 = vunpack.c.l.b16 %v4391
      %v4904 = vunpack.c.l.b16 %v4392
      %v4905 = vunpack.c.l.b16 %v4393
      %v4906 = vunpack.c.l.b16 %v4394
      %v4907 = vunpack.c.l.b16 %v4395
      %v4908 = vunpack.c.l.b16 %v4396
      %v4909 = vunpack.c.l.b16 %v4397
      %v4910 = vunpack.c.l.b16 %v4398
      %v4911 = vunpack.c.l.b16 %v4399
      %v4912 = vunpack.c.l.b16 %v4400
      %v4913 = vunpack.c.l.b16 %v4401
      %v4914 = vunpack.c.l.b16 %v4402
      %v4915 = vunpack.c.l.b16 %v4403
      %v4916 = vunpack.c.l.b16 %v4404
      %v4917 = vunpack.c.l.b16 %v4405
      %v4918 = vunpack.c.l.b16 %v4406
      %v4919 = vunpack.c.l.b16 %v4407
      %v4920 = vunpack.c.l.b16 %v4408
      %v4921 = vunpack.c.l.b16 %v4409
      %v4922 = vunpack.c.l.b16 %v4410
      %v4923 = vunpack.c.l.b16 %v4411
      %v4924 = vunpack.c.l.b16 %v4412
      %v4925 = vunpack.c.l.b16 %v4413
      %v4926 = vunpack.c.l.b16 %v4414
      %v4927 = vunpack.c.l.b16 %v4415
      %v4928 = vunpack.c.l.b16 %v4416
      %v4929 = vunpack.c.l.b16 %v4417
      %v4930 = vunpack.c.l.b16 %v4418
      %v4931 = vunpack.c.l.b16 %v4419
      %v4932 = vunpack.c.l.b16 %v4420
      %v4933 = vunpack.c.l.b16 %v4421
      %v4934 = vunpack.c.l.b16 %v4422
      %v4935 = vunpack.c.l.b16 %v4423
      %v4936 = vunpack.c.l.b16 %v4424
      %v4937 = vunpack.c.l.b16 %v4425
      %v4938 = vunpack.c.l.b16 %v4426
      %v4939 = vunpack.c.l.b16 %v4427
      %v4940 = vunpack.c.l.b16 %v4428
      %v4941 = vunpack.c.l.b16 %v4429
      %v4942 = vunpack.c.l.b16 %v4430
      %v4943 = vunpack.c.l.b16 %v4431
      %v4944 = vunpack.c.l.b16 %v4432
      %v4945 = vunpack.c.l.b16 %v4433
      %v4946 = vunpack.c.l.b16 %v4434
      %v4947 = vunpack.c.l.b16 %v4435
      %v4948 = vunpack.c.l.b16 %v4436
      %v4949 = vunpack.c.l.b16 %v4437
      %v4950 = vunpack.c.l.b16 %v4438
      %v4951 = vunpack.c.l.b16 %v4439
      %v4952 = vunpack.c.l.b16 %v4440
      %v4953 = vunpack.c.l.b16 %v4441
      %v4954 = vunpack.c.l.b16 %v4442
      %v4955 = vunpack.c.l.b16 %v4443
      %v4956 = vunpack.c.l.b16 %v4444
      %v4957 = vunpack.c.l.b16 %v4445
      %v4958 = vunpack.c.l.b16 %v4446
      %v4959 = vunpack.c.l.b16 %v4447
      %v4960 = vunpack.c.l.b16 %v4448
      %v4961 = vunpack.c.l.b16 %v4449
      %v4962 = vunpack.c.l.b16 %v4450
      %v4963 = vunpack.c.l.b16 %v4451
      %v4964 = vunpack.c.l.b16 %v4452
      %v4965 = vunpack.c.l.b16 %v4453
      %v4966 = vunpack.c.l.b16 %v4454
      %v4967 = vunpack.c.l.b16 %v4455
      %v4968 = vunpack.c.l.b16 %v4456
      %v4969 = vunpack.c.l.b16 %v4457
      %v4970 = vunpack.c.l.b16 %v4458
      %v4971 = vunpack.c.l.b16 %v4459
      %v4972 = vunpack.c.l.b16 %v4460
      %v4973 = vunpack.c.l.b16 %v4461
      %v4974 = vunpack.c.l.b16 %v4462
      %v4975 = vunpack.c.l.b16 %v4463
      %v4976 = vunpack.c.l.b16 %v4464
      %v4977 = vunpack.c.l.b16 %v4465
      %v4978 = vunpack.c.l.b16 %v4466
      %v4979 = vunpack.c.l.b16 %v4467
      %v4980 = vunpack.c.l.b16 %v4468
      %v4981 = vunpack.c.l.b16 %v4469
      %v4982 = vunpack.c.l.b16 %v4470
      %v4983 = vunpack.c.l.b16 %v4471
      %v4984 = vunpack.c.l.b16 %v4472
      %v4985 = vunpack.c.l.b16 %v4473
      %v4986 = vunpack.c.l.b16 %v4474
      %v4987 = vunpack.c.l.b16 %v4475
      %v4988 = vunpack.c.l.b16 %v4476
      %v4989 = vunpack.c.l.b16 %v4477
      %v4990 = vunpack.c.l.b16 %v4478
      %v4991 = vunpack.c.l.b16 %v4479
      %v4992 = vunpack.c.l.b16 %v4480
      %v4993 = vunpack.c.l.b16 %v4481
      %v4994 = vunpack.c.l.b16 %v4482
      %v4995 = vunpack.c.l.b16 %v4483
      %v4996 = vunpack.c.l.b16 %v4484
      %v4997 = vunpack.c.l.b16 %v4485
      %v4998 = vunpack.c.l.b16 %v4486
      %v4999 = vunpack.c.l.b16 %v4487
      %v5000 = vunpack.c.l.b16 %v4488
      %v5001 = vunpack.c.l.b16 %v4489
      %v5002 = vunpack.c.l.b16 %v4490
      %v5003 = vunpack.c.l.b16 %v4491
      %v5004 = vunpack.c.l.b16 %v4492
      %v5005 = vunpack.c.l.b16 %v4493
      %v5006 = vunpack.c.l.b16 %v4494
      %v5007 = vunpack.c.l.b16 %v4495
      %v5008 = vunpack.c.l.b16 %v4496
      %v5009 = vunpack.c.l.b16 %v4497
      %v5010 = vunpack.c.l.b16 %v4498
      %v5011 = vunpack.c.l.b16 %v4499
      %v5012 = vunpack.c.l.b16 %v4500
      %v5013 = vunpack.c.l.b16 %v4501
      %v5014 = vunpack.c.l.b16 %v4502
      %v5015 = vunpack.c.l.b16 %v4503
      %v5016 = vunpack.c.l.b16 %v4504
      %v5017 = vunpack.c.l.b16 %v4505
      %v5018 = vunpack.c.l.b16 %v4506
      %v5019 = vunpack.c.l.b16 %v4507
      %v5020 = vunpack.c.l.b16 %v4508
      %v5021 = vunpack.c.l.b16 %v4509
      %v5022 = vunpack.c.l.b16 %v4510
      %v5023 = vunpack.c.l.b16 %v4511
      %v5024 = vunpack.c.l.b16 %v4512
      %v5025 = vunpack.c.l.b16 %v4513
      %v5026 = vunpack.c.l.b16 %v4514
      %v5027 = vunpack.c.l.b16 %v4515
      %v5028 = vunpack.c.l.b16 %v4516
      %v5029 = vunpack.c.l.b16 %v4517
      %v5030 = vunpack.c.l.b16 %v4518
      %v5031 = vunpack.c.l.b16 %v4519
      %v5032 = vunpack.c.l.b16 %v4520
      %v5033 = vunpack.c.l.b16 %v4521
      %v5034 = vunpack.c.l.b16 %v4522
      %v5035 = vunpack.c.l.b16 %v4523
      %v5036 = vunpack.c.l.b16 %v4524
      %v5037 = vunpack.c.l.b16 %v4525
      %v5038 = vunpack.c.l.b16 %v4526
      %v5039 = vunpack.c.l.b16 %v4527
      %v5040 = vunpack.c.l.b16 %v4528
      %v5041 = vunpack.c.l.b16 %v4529
      %v5042 = vunpack.c.l.b16 %v4530
      %v5043 = vunpack.c.l.b16 %v4531
      %v5044 = vunpack.c.l.b16 %v4532
      %v5045 = vunpack.c.l.b16 %v4533
      %v5046 = vunpack.c.l.b16 %v4534
      %v5047 = vunpack.c.l.b16 %v4535
      %v5048 = vunpack.c.l.b16 %v4536
      %v5049 = vunpack.c.l.b16 %v4537
      %v5050 = vunpack.c.l.b16 %v4538
      %v5051 = vunpack.c.l.b16 %v4539
      %v5052 = vunpack.c.l.b16 %v4540
      %v5053 = vunpack.c.l.b16 %v4541
      %v5054 = vunpack.c.l.b16 %v4542
      %v5055 = vunpack.c.l.b16 %v4543
      %v5056 = vunpack.c.l.b16 %v4544
      %v5057 = vunpack.c.l.b16 %v4545
      %v5058 = vunpack.c.l.b16 %v4546
      %v5059 = vunpack.c.l.b16 %v4547
      %v5060 = vunpack.c.l.b16 %v4548
      %v5061 = vunpack.c.l.b16 %v4549
      %v5062 = vunpack.c.l.b16 %v4550
      %v5063 = vunpack.c.l.b16 %v4551
      %v5064 = vunpack.c.l.b16 %v4552
      %v5065 = vunpack.c.l.b16 %v4553
      %v5066 = vunpack.c.l.b16 %v4554
      %v5067 = vunpack.c.l.b16 %v4555
      %v5068 = vunpack.c.l.b16 %v4556
      %v5069 = vunpack.c.l.b16 %v4557
      %v5070 = vunpack.c.l.b16 %v4558
      %v5071 = vunpack.c.l.b16 %v4559
      %v5072 = vunpack.c.l.b16 %v4560
      %v5073 = vunpack.c.l.b16 %v4561
      %v5074 = vunpack.c.l.b16 %v4562
      %v5075 = vunpack.c.l.b16 %v4563
      %v5076 = vunpack.c.l.b16 %v4564
      %v5077 = vunpack.c.l.b16 %v4565
      %v5078 = vunpack.c.l.b16 %v4566
      %v5079 = vunpack.c.l.b16 %v4567
      %v5080 = vunpack.c.l.b16 %v4568
      %v5081 = vunpack.c.l.b16 %v4569
      %v5082 = vunpack.c.l.b16 %v4570
      %v5083 = vunpack.c.l.b16 %v4571
      %v5084 = vpack.c.b16 %v4829, %v4828
      %v5085 = vpack.c.b16 %v4831, %v4830
      %v5086 = vpack.c.b16 %v4833, %v4832
      %v5087 = vpack.c.b16 %v4835, %v4834
      %v5088 = vpack.c.b16 %v4837, %v4836
      %v5089 = vpack.c.b16 %v4839, %v4838
      %v5090 = vpack.c.b16 %v4841, %v4840
      %v5091 = vpack.c.b16 %v4843, %v4842
      %v5092 = vpack.c.b16 %v4845, %v4844
      %v5093 = vpack.c.b16 %v4847, %v4846
      %v5094 = vpack.c.b16 %v4849, %v4848
      %v5095 = vpack.c.b16 %v4851, %v4850
      %v5096 = vpack.c.b16 %v4853, %v4852
      %v5097 = vpack.c.b16 %v4855, %v4854
      %v5098 = vpack.c.b16 %v4857, %v4856
      %v5099 = vpack.c.b16 %v4859, %v4858
      %v5100 = vpack.c.b16 %v4861, %v4860
      %v5101 = vpack.c.b16 %v4863, %v4862
      %v5102 = vpack.c.b16 %v4865, %v4864
      %v5103 = vpack.c.b16 %v4867, %v4866
      %v5104 = vpack.c.b16 %v4869, %v4868
      %v5105 = vpack.c.b16 %v4871, %v4870
      %v5106 = vpack.c.b16 %v4873, %v4872
      %v5107 = vpack.c.b16 %v4875, %v4874
      %v5108 = vpack.c.b16 %v4877, %v4876
      %v5109 = vpack.c.b16 %v4879, %v4878
      %v5110 = vpack.c.b16 %v4881, %v4880
      %v5111 = vpack.c.b16 %v4883, %v4882
      %v5112 = vpack.c.b16 %v4885, %v4884
      %v5113 = vpack.c.b16 %v4887, %v4886
      %v5114 = vpack.c.b16 %v4889, %v4888
      %v5115 = vpack.c.b16 %v4891, %v4890
      %v5116 = vpack.c.b16 %v4893, %v4892
      %v5117 = vpack.c.b16 %v4895, %v4894
      %v5118 = vpack.c.b16 %v4897, %v4896
      %v5119 = vpack.c.b16 %v4899, %v4898
      %v5120 = vpack.c.b16 %v4901, %v4900
      %v5121 = vpack.c.b16 %v4903, %v4902
      %v5122 = vpack.c.b16 %v4905, %v4904
      %v5123 = vpack.c.b16 %v4907, %v4906
      %v5124 = vpack.c.b16 %v4909, %v4908
      %v5125 = vpack.c.b16 %v4911, %v4910
      %v5126 = vpack.c.b16 %v4913, %v4912
      %v5127 = vpack.c.b16 %v4915, %v4914
      %v5128 = vpack.c.b16 %v4917, %v4916
      %v5129 = vpack.c.b16 %v4919, %v4918
      %v5130 = vpack.c.b16 %v4921, %v4920
      %v5131 = vpack.c.b16 %v4923, %v4922
      %v5132 = vpack.c.b16 %v4925, %v4924
      %v5133 = vpack.c.b16 %v4927, %v4926
      %v5134 = vpack.c.b16 %v4929, %v4928
      %v5135 = vpack.c.b16 %v4931, %v4930
      %v5136 = vpack.c.b16 %v4933, %v4932
      %v5137 = vpack.c.b16 %v4935, %v4934
      %v5138 = vpack.c.b16 %v4937, %v4936
      %v5139 = vpack.c.b16 %v4939, %v4938
      %v5140 = vpack.c.b16 %v4941, %v4940
      %v5141 = vpack.c.b16 %v4943, %v4942
      %v5142 = vpack.c.b16 %v4945, %v4944
      %v5143 = vpack.c.b16 %v4947, %v4946
      %v5144 = vpack.c.b16 %v4949, %v4948
      %v5145 = vpack.c.b16 %v4951, %v4950
      %v5146 = vpack.c.b16 %v4953, %v4952
      %v5147 = vpack.c.b16 %v4955, %v4954
      %v5148 = vpack.c.b16 %v4957, %v4956
      %v5149 = vpack.c.b16 %v4959, %v4958
      %v5150 = vpack.c.b16 %v4961, %v4960
      %v5151 = vpack.c.b16 %v4963, %v4962
      %v5152 = vpack.c.b16 %v4965, %v4964
      %v5153 = vpack.c.b16 %v4967, %v4966
      %v5154 = vpack.c.b16 %v4969, %v4968
      %v5155 = vpack.c.b16 %v4971, %v4970
      %v5156 = vpack.c.b16 %v4973, %v4972
      %v5157 = vpack.c.b16 %v4975, %v4974
      %v5158 = vpack.c.b16 %v4977, %v4976
      %v5159 = vpack.c.b16 %v4979, %v4978
      %v5160 = vpack.c.b16 %v4981, %v4980
      %v5161 = vpack.c.b16 %v4983, %v4982
      %v5162 = vpack.c.b16 %v4985, %v4984
      %v5163 = vpack.c.b16 %v4987, %v4986
      %v5164 = vpack.c.b16 %v4989, %v4988
      %v5165 = vpack.c.b16 %v4991, %v4990
      %v5166 = vpack.c.b16 %v4993, %v4992
      %v5167 = vpack.c.b16 %v4995, %v4994
      %v5168 = vpack.c.b16 %v4997, %v4996
      %v5169 = vpack.c.b16 %v4999, %v4998
      %v5170 = vpack.c.b16 %v5001, %v5000
      %v5171 = vpack.c.b16 %v5003, %v5002
      %v5172 = vpack.c.b16 %v5005, %v5004
      %v5173 = vpack.c.b16 %v5007, %v5006
      %v5174 = vpack.c.b16 %v5009, %v5008
      %v5175 = vpack.c.b16 %v5011, %v5010
      %v5176 = vpack.c.b16 %v5013, %v5012
      %v5177 = vpack.c.b16 %v5015, %v5014
      %v5178 = vpack.c.b16 %v5017, %v5016
      %v5179 = vpack.c.b16 %v5019, %v5018
      %v5180 = vpack.c.b16 %v5021, %v5020
      %v5181 = vpack.c.b16 %v5023, %v5022
      %v5182 = vpack.c.b16 %v5025, %v5024
      %v5183 = vpack.c.b16 %v5027, %v5026
      %v5184 = vpack.c.b16 %v5029, %v5028
      %v5185 = vpack.c.b16 %v5031, %v5030
      %v5186 = vpack.c.b16 %v5033, %v5032
      %v5187 = vpack.c.b16 %v5035, %v5034
      %v5188 = vpack.c.b16 %v5037, %v5036
      %v5189 = vpack.c.b16 %v5039, %v5038
      %v5190 = vpack.c.b16 %v5041, %v5040
      %v5191 = vpack.c.b16 %v5043, %v5042
      %v5192 = vpack.c.b16 %v5045, %v5044
      %v5193 = vpack.c.b16 %v5047, %v5046
      %v5194 = vpack.c.b16 %v5049, %v5048
      %v5195 = vpack.c.b16 %v5051, %v5050
      %v5196 = vpack.c.b16 %v5053, %v5052
      %v5197 = vpack.c.b16 %v5055, %v5054
      %v5198 = vpack.c.b16 %v5057, %v5056
      %v5199 = vpack.c.b16 %v5059, %v5058
      %v5200 = vpack.c.b16 %v5061, %v5060
      %v5201 = vpack.c.b16 %v5063, %v5062
      %v5202 = vpack.c.b16 %v5065, %v5064
      %v5203 = vpack.c.b16 %v5067, %v5066
      %v5204 = vpack.c.b16 %v5069, %v5068
      %v5205 = vpack.c.b16 %v5071, %v5070
      %v5206 = vpack.c.b16 %v5073, %v5072
      %v5207 = vpack.c.b16 %v5075, %v5074
      %v5208 = vpack.c.b16 %v5077, %v5076
      %v5209 = vpack.c.b16 %v5079, %v5078
      %v5210 = vpack.c.b16 %v5081, %v5080
      %v5211 = vpack.c.b16 %v5083, %v5082
      %5340 = vmatprep.subr.bf16.mxu0 0
      %5341 = vmatpush1.bf16.msra.mxu0 %v5084
      %5342 = vmatprep.subr.bf16.mxu0 0
      %5343 = vmatpush1.bf16.msra.mxu0 %v5085
      %5344 = vmatprep.subr.bf16.mxu0 0
      %5345 = vmatpush1.bf16.msra.mxu0 %v5086
      %5346 = vmatprep.subr.bf16.mxu0 0
      %5347 = vmatpush1.bf16.msra.mxu0 %v5087
      %5348 = vmatprep.subr.bf16.mxu0 0
      %5349 = vmatpush1.bf16.msra.mxu0 %v5088
      %5350 = vmatprep.subr.bf16.mxu0 0
      %5351 = vmatpush1.bf16.msra.mxu0 %v5089
      %5352 = vmatprep.subr.bf16.mxu0 0
      %5353 = vmatpush1.bf16.msra.mxu0 %v5090
      %5354 = vmatprep.subr.bf16.mxu0 0
      %5355 = vmatpush1.bf16.msra.mxu0 %v5091
      %5356 = vmatprep.subr.bf16.mxu0 0
      %5357 = vmatpush1.bf16.msra.mxu0 %v5092
      %5358 = vmatprep.subr.bf16.mxu0 0
      %5359 = vmatpush1.bf16.msra.mxu0 %v5093
      %5360 = vmatprep.subr.bf16.mxu0 0
      %5361 = vmatpush1.bf16.msra.mxu0 %v5094
      %5362 = vmatprep.subr.bf16.mxu0 0
      %5363 = vmatpush1.bf16.msra.mxu0 %v5095
      %5364 = vmatprep.subr.bf16.mxu0 0
      %5365 = vmatpush1.bf16.msra.mxu0 %v5096
      %5366 = vmatprep.subr.bf16.mxu0 0
      %5367 = vmatpush1.bf16.msra.mxu0 %v5097
      %5368 = vmatprep.subr.bf16.mxu0 0
      %5369 = vmatpush1.bf16.msra.mxu0 %v5098
      %5370 = vmatprep.subr.bf16.mxu0 0
      %5371 = vmatpush1.bf16.msra.mxu0 %v5099
      %5372 = vmatprep.mubr.bf16.mxu0 %v4109
      %5373 = vmatmul.mubr.bf16.gmra.mrb[0].mxu0 %v4108
      %v5374 = vpop.f32.mrb[0].mxu0
      %v5375 = vadd.f32 0.0, %v5374
      %v5376 = vpop.f32.mrb[0].mxu0
      %v5377 = vpop.f32.mrb[0].mxu0
      %v5378 = vadd.f32 0.0, %v5377
      %v5379 = vpop.f32.mrb[0].mxu0
      %5380 = vmatprep.mubr.bf16.mxu0 %v4125
      %5381 = vmatmul.mubr.bf16.gmra.mrb[0].mxu0 %v4124
      %v5382 = vpop.f32.mrb[0].mxu0
      %v5383 = vadd.f32 0.0, %v5382
      %v5384 = vpop.f32.mrb[0].mxu0
      %v5385 = vpop.f32.mrb[0].mxu0
      %v5386 = vadd.f32 0.0, %v5385
      %v5387 = vpop.f32.mrb[0].mxu0
      %5388 = vmatprep.mubr.bf16.mxu0 %v4141
      %5389 = vmatmul.mubr.bf16.gmra.mrb[0].mxu0 %v4140
      %v5390 = vpop.f32.mrb[0].mxu0
      %v5391 = vadd.f32 0.0, %v5390
      %v5392 = vpop.f32.mrb[0].mxu0
      %v5393 = vpop.f32.mrb[0].mxu0
      %v5394 = vadd.f32 0.0, %v5393
      %v5395 = vpop.f32.mrb[0].mxu0
      %5396 = vmatprep.mubr.bf16.mxu0 %v4157
      %5397 = vmatmul.mubr.bf16.gmra.mrb[0].mxu0 %v4156
      %v5398 = vpop.f32.mrb[0].mxu0
      %v5399 = vadd.f32 0.0, %v5398
      %v5400 = vpop.f32.mrb[0].mxu0
      %v5401 = vpop.f32.mrb[0].mxu0
      %v5402 = vadd.f32 0.0, %v5401
      %v5403 = vpop.f32.mrb[0].mxu0
      %5404 = vmatprep.mubr.bf16.mxu0 %v4173
      %5405 = vmatmul.mubr.bf16.gmra.mrb[0].mxu0 %v4172
      %v5406 = vpop.f32.mrb[0].mxu0
      %v5407 = vadd.f32 0.0, %v5406
      %v5408 = vpop.f32.mrb[0].mxu0
      %v5409 = vpop.f32.mrb[0].mxu0
      %v5410 = vadd.f32 0.0, %v5409
      %v5411 = vpop.f32.mrb[0].mxu0
      %5412 = vmatprep.mubr.bf16.mxu0 %v4189
      %5413 = vmatmul.mubr.bf16.gmra.mrb[0].mxu0 %v4188
      %v5414 = vpop.f32.mrb[0].mxu0
      %v5415 = vadd.f32 0.0, %v5414
      %v5416 = vpop.f32.mrb[0].mxu0
      %v5417 = vpop.f32.mrb[0].mxu0
      %v5418 = vadd.f32 0.0, %v5417
      %v5419 = vpop.f32.mrb[0].mxu0
      %5420 = vmatprep.mubr.bf16.mxu0 %v4205
      %5421 = vmatmul.mubr.bf16.gmra.mrb[0].mxu0 %v4204
      %v5422 = vpop.f32.mrb[0].mxu0
      %v5423 = vadd.f32 0.0, %v5422
      %v5424 = vpop.f32.mrb[0].mxu0
      %v5425 = vpop.f32.mrb[0].mxu0
      %v5426 = vadd.f32 0.0, %v5425
      %v5427 = vpop.f32.mrb[0].mxu0
      %5428 = vmatprep.mubr.bf16.mxu0 %v4221
      %5429 = vmatmul.mubr.bf16.gmra.mrb[0].mxu0 %v4220
      %v5430 = vpop.f32.mrb[0].mxu0
      %v5431 = vadd.f32 0.0, %v5430
      %v5432 = vpop.f32.mrb[0].mxu0
      %v5433 = vpop.f32.mrb[0].mxu0
      %v5434 = vadd.f32 0.0, %v5433
      %v5435 = vpop.f32.mrb[0].mxu0
      %5436 = vmatprep.mubr.bf16.mxu0 %v4237
      %5437 = vmatmul.mubr.bf16.gmra.mrb[0].mxu0 %v4236
      %v5438 = vpop.f32.mrb[0].mxu0
      %v5439 = vadd.f32 0.0, %v5438
      %v5440 = vpop.f32.mrb[0].mxu0
      %v5441 = vpop.f32.mrb[0].mxu0
      %v5442 = vadd.f32 0.0, %v5441
      %v5443 = vpop.f32.mrb[0].mxu0
      %5444 = vmatprep.mubr.bf16.mxu0 %v4253
      %5445 = vmatmul.mubr.bf16.gmra.mrb[0].mxu0 %v4252
      %v5446 = vpop.f32.mrb[0].mxu0
      %v5447 = vadd.f32 0.0, %v5446
      %v5448 = vpop.f32.mrb[0].mxu0
      %v5449 = vpop.f32.mrb[0].mxu0
      %v5450 = vadd.f32 0.0, %v5449
      %v5451 = vpop.f32.mrb[0].mxu0
      %5452 = vmatprep.mubr.bf16.mxu0 %v4269
      %5453 = vmatmul.mubr.bf16.gmra.mrb[0].mxu0 %v4268
      %v5454 = vpop.f32.mrb[0].mxu0
      %v5455 = vadd.f32 0.0, %v5454
      %v5456 = vpop.f32.mrb[0].mxu0
      %v5457 = vpop.f32.mrb[0].mxu0
      %v5458 = vadd.f32 0.0, %v5457
      %v5459 = vpop.f32.mrb[0].mxu0
      %5460 = vmatprep.mubr.bf16.mxu0 %v4285
      %5461 = vmatmul.mubr.bf16.gmra.mrb[0].mxu0 %v4284
      %v5462 = vpop.f32.mrb[0].mxu0
      %v5463 = vadd.f32 0.0, %v5462
      %v5464 = vpop.f32.mrb[0].mxu0
      %v5465 = vpop.f32.mrb[0].mxu0
      %v5466 = vadd.f32 0.0, %v5465
      %v5467 = vpop.f32.mrb[0].mxu0
      %5468 = vmatprep.mubr.bf16.mxu0 %v4301
      %5469 = vmatmul.mubr.bf16.gmra.mrb[0].mxu0 %v4300
      %v5470 = vpop.f32.mrb[0].mxu0
      %v5471 = vadd.f32 0.0, %v5470
      %v5472 = vpop.f32.mrb[0].mxu0
      %v5473 = vpop.f32.mrb[0].mxu0
      %v5474 = vpop.f32.mrb[0].mxu0
      %5475 = vdwg.mxu0
      %5476 = vmatprep.subr.bf16.mxu0 0
      %5477 = vmatpush1.bf16.msra.mxu0 %v5100
      %5478 = vmatprep.subr.bf16.mxu0 0
      %5479 = vmatpush1.bf16.msra.mxu0 %v5101
      %5480 = vmatprep.subr.bf16.mxu0 0
      %5481 = vmatpush1.bf16.msra.mxu0 %v5102
      %5482 = vmatprep.subr.bf16.mxu0 0
      %5483 = vmatpush1.bf16.msra.mxu0 %v5103
      %5484 = vmatprep.subr.bf16.mxu0 0
      %5485 = vmatpush1.bf16.msra.mxu0 %v5104
      %5486 = vmatprep.subr.bf16.mxu0 0
      %5487 = vmatpush1.bf16.msra.mxu0 %v5105
      %5488 = vmatprep.subr.bf16.mxu0 0
      %5489 = vmatpush1.bf16.msra.mxu0 %v5106
      %5490 = vmatprep.subr.bf16.mxu0 0
      %5491 = vmatpush1.bf16.msra.mxu0 %v5107
      %5492 = vmatprep.subr.bf16.mxu0 0
      %5493 = vmatpush1.bf16.msra.mxu0 %v5108
      %5494 = vmatprep.subr.bf16.mxu0 0
      %5495 = vmatpush1.bf16.msra.mxu0 %v5109
      %5496 = vmatprep.subr.bf16.mxu0 0
      %5497 = vmatpush1.bf16.msra.mxu0 %v5110
      %5498 = vmatprep.subr.bf16.mxu0 0
      %5499 = vmatpush1.bf16.msra.mxu0 %v5111
      %5500 = vmatprep.subr.bf16.mxu0 0
      %5501 = vmatpush1.bf16.msra.mxu0 %v5112
      %5502 = vmatprep.subr.bf16.mxu0 0
      %5503 = vmatpush1.bf16.msra.mxu0 %v5113
      %5504 = vmatprep.subr.bf16.mxu0 0
      %5505 = vmatpush1.bf16.msra.mxu0 %v5114
      %5506 = vmatprep.subr.bf16.mxu0 0
      %5507 = vmatpush1.bf16.msra.mxu0 %v5115
      %5508 = vmatprep.mubr.bf16.mxu0 %v4111
      %5509 = vmatmul.mubr.bf16.gmra.mrb[0].mxu0 %v4110
      %v5510 = vpop.f32.mrb[0].mxu0
      %v5511 = vadd.f32 %v5375, %v5510
      %v5512 = vpop.f32.mrb[0].mxu0
      %v5513 = vpop.f32.mrb[0].mxu0
      %v5514 = vadd.f32 %v5378, %v5513
      %v5515 = vpop.f32.mrb[0].mxu0
      %5516 = vmatprep.mubr.bf16.mxu0 %v4127
      %5517 = vmatmul.mubr.bf16.gmra.mrb[0].mxu0 %v4126
      %v5518 = vpop.f32.mrb[0].mxu0
      %v5519 = vadd.f32 %v5383, %v5518
      %v5520 = vpop.f32.mrb[0].mxu0
      %v5521 = vpop.f32.mrb[0].mxu0
      %v5522 = vadd.f32 %v5386, %v5521
      %v5523 = vpop.f32.mrb[0].mxu0
      %5524 = vmatprep.mubr.bf16.mxu0 %v4143
      %5525 = vmatmul.mubr.bf16.gmra.mrb[0].mxu0 %v4142
      %v5526 = vpop.f32.mrb[0].mxu0
      %v5527 = vadd.f32 %v5391, %v5526
      %v5528 = vpop.f32.mrb[0].mxu0
      %v5529 = vpop.f32.mrb[0].mxu0
      %v5530 = vadd.f32 %v5394, %v5529
      %v5531 = vpop.f32.mrb[0].mxu0
      %5532 = vmatprep.mubr.bf16.mxu0 %v4159
      %5533 = vmatmul.mubr.bf16.gmra.mrb[0].mxu0 %v4158
      %v5534 = vpop.f32.mrb[0].mxu0
      %v5535 = vadd.f32 %v5399, %v5534
      %v5536 = vpop.f32.mrb[0].mxu0
      %v5537 = vpop.f32.mrb[0].mxu0
      %v5538 = vadd.f32 %v5402, %v5537
      %v5539 = vpop.f32.mrb[0].mxu0
      %5540 = vmatprep.mubr.bf16.mxu0 %v4175
      %5541 = vmatmul.mubr.bf16.gmra.mrb[0].mxu0 %v4174
      %v5542 = vpop.f32.mrb[0].mxu0
      %v5543 = vadd.f32 %v5407, %v5542
      %v5544 = vpop.f32.mrb[0].mxu0
      %v5545 = vpop.f32.mrb[0].mxu0
      %v5546 = vadd.f32 %v5410, %v5545
      %v5547 = vpop.f32.mrb[0].mxu0
      %5548 = vmatprep.mubr.bf16.mxu0 %v4191
      %5549 = vmatmul.mubr.bf16.gmra.mrb[0].mxu0 %v4190
      %v5550 = vpop.f32.mrb[0].mxu0
      %v5551 = vadd.f32 %v5415, %v5550
      %v5552 = vpop.f32.mrb[0].mxu0
      %v5553 = vpop.f32.mrb[0].mxu0
      %v5554 = vadd.f32 %v5418, %v5553
      %v5555 = vpop.f32.mrb[0].mxu0
      %5556 = vmatprep.mubr.bf16.mxu0 %v4207
      %5557 = vmatmul.mubr.bf16.gmra.mrb[0].mxu0 %v4206
      %v5558 = vpop.f32.mrb[0].mxu0
      %v5559 = vadd.f32 %v5423, %v5558
      %v5560 = vpop.f32.mrb[0].mxu0
      %v5561 = vpop.f32.mrb[0].mxu0
      %v5562 = vadd.f32 %v5426, %v5561
      %v5563 = vpop.f32.mrb[0].mxu0
      %5564 = vmatprep.mubr.bf16.mxu0 %v4223
      %5565 = vmatmul.mubr.bf16.gmra.mrb[0].mxu0 %v4222
      %v5566 = vpop.f32.mrb[0].mxu0
      %v5567 = vadd.f32 %v5431, %v5566
      %v5568 = vpop.f32.mrb[0].mxu0
      %v5569 = vpop.f32.mrb[0].mxu0
      %v5570 = vadd.f32 %v5434, %v5569
      %v5571 = vpop.f32.mrb[0].mxu0
      %5572 = vmatprep.mubr.bf16.mxu0 %v4239
      %5573 = vmatmul.mubr.bf16.gmra.mrb[0].mxu0 %v4238
      %v5574 = vpop.f32.mrb[0].mxu0
      %v5575 = vadd.f32 %v5439, %v5574
      %v5576 = vpop.f32.mrb[0].mxu0
      %v5577 = vpop.f32.mrb[0].mxu0
      %v5578 = vadd.f32 %v5442, %v5577
      %v5579 = vpop.f32.mrb[0].mxu0
      %5580 = vmatprep.mubr.bf16.mxu0 %v4255
      %5581 = vmatmul.mubr.bf16.gmra.mrb[0].mxu0 %v4254
      %v5582 = vpop.f32.mrb[0].mxu0
      %v5583 = vadd.f32 %v5447, %v5582
      %v5584 = vpop.f32.mrb[0].mxu0
      %v5585 = vpop.f32.mrb[0].mxu0
      %v5586 = vadd.f32 %v5450, %v5585
      %v5587 = vpop.f32.mrb[0].mxu0
      %5588 = vmatprep.mubr.bf16.mxu0 %v4271
      %5589 = vmatmul.mubr.bf16.gmra.mrb[0].mxu0 %v4270
      %v5590 = vpop.f32.mrb[0].mxu0
      %v5591 = vadd.f32 %v5455, %v5590
      %v5592 = vpop.f32.mrb[0].mxu0
      %v5593 = vpop.f32.mrb[0].mxu0
      %v5594 = vadd.f32 %v5458, %v5593
      %v5595 = vpop.f32.mrb[0].mxu0
      %5596 = vmatprep.mubr.bf16.mxu0 %v4287
      %5597 = vmatmul.mubr.bf16.gmra.mrb[0].mxu0 %v4286
      %v5598 = vpop.f32.mrb[0].mxu0
      %v5599 = vadd.f32 %v5463, %v5598
      %v5600 = vpop.f32.mrb[0].mxu0
      %v5601 = vpop.f32.mrb[0].mxu0
      %v5602 = vadd.f32 %v5466, %v5601
      %v5603 = vpop.f32.mrb[0].mxu0
      %5604 = vmatprep.mubr.bf16.mxu0 %v4303
      %5605 = vmatmul.mubr.bf16.gmra.mrb[0].mxu0 %v4302
      %v5606 = vpop.f32.mrb[0].mxu0
      %v5607 = vadd.f32 %v5471, %v5606
      %v5608 = vpop.f32.mrb[0].mxu0
      %v5609 = vpop.f32.mrb[0].mxu0
      %v5610 = vpop.f32.mrb[0].mxu0
      %5611 = vdwg.mxu0
      %5612 = vmatprep.subr.bf16.mxu0 0
      %5613 = vmatpush1.bf16.msra.mxu0 %v5116
      %5614 = vmatprep.subr.bf16.mxu0 0
      %5615 = vmatpush1.bf16.msra.mxu0 %v5117
      %5616 = vmatprep.subr.bf16.mxu0 0
      %5617 = vmatpush1.bf16.msra.mxu0 %v5118
      %5618 = vmatprep.subr.bf16.mxu0 0
      %5619 = vmatpush1.bf16.msra.mxu0 %v5119
      %5620 = vmatprep.subr.bf16.mxu0 0
      %5621 = vmatpush1.bf16.msra.mxu0 %v5120
      %5622 = vmatprep.subr.bf16.mxu0 0
      %5623 = vmatpush1.bf16.msra.mxu0 %v5121
      %5624 = vmatprep.subr.bf16.mxu0 0
      %5625 = vmatpush1.bf16.msra.mxu0 %v5122
      %5626 = vmatprep.subr.bf16.mxu0 0
      %5627 = vmatpush1.bf16.msra.mxu0 %v5123
      %5628 = vmatprep.subr.bf16.mxu0 0
      %5629 = vmatpush1.bf16.msra.mxu0 %v5124
      %5630 = vmatprep.subr.bf16.mxu0 0
      %5631 = vmatpush1.bf16.msra.mxu0 %v5125
      %5632 = vmatprep.subr.bf16.mxu0 0
      %5633 = vmatpush1.bf16.msra.mxu0 %v5126
      %5634 = vmatprep.subr.bf16.mxu0 0
      %5635 = vmatpush1.bf16.msra.mxu0 %v5127
      %5636 = vmatprep.subr.bf16.mxu0 0
      %5637 = vmatpush1.bf16.msra.mxu0 %v5128
      %5638 = vmatprep.subr.bf16.mxu0 0
      %5639 = vmatpush1.bf16.msra.mxu0 %v5129
      %5640 = vmatprep.subr.bf16.mxu0 0
      %5641 = vmatpush1.bf16.msra.mxu0 %v5130
      %5642 = vmatprep.subr.bf16.mxu0 0
      %5643 = vmatpush1.bf16.msra.mxu0 %v5131
      %5644 = vmatprep.mubr.bf16.mxu0 %v4113
      %5645 = vmatmul.mubr.bf16.gmra.mrb[0].mxu0 %v4112
      %v5646 = vpop.f32.mrb[0].mxu0
      %v5647 = vadd.f32 %v5511, %v5646
      %v5648 = vpop.f32.mrb[0].mxu0
      %v5649 = vpop.f32.mrb[0].mxu0
      %v5650 = vadd.f32 %v5514, %v5649
      %v5651 = vpop.f32.mrb[0].mxu0
      %5652 = vmatprep.mubr.bf16.mxu0 %v4129
      %5653 = vmatmul.mubr.bf16.gmra.mrb[0].mxu0 %v4128
      %v5654 = vpop.f32.mrb[0].mxu0
      %v5655 = vadd.f32 %v5519, %v5654
      %v5656 = vpop.f32.mrb[0].mxu0
      %v5657 = vpop.f32.mrb[0].mxu0
      %v5658 = vadd.f32 %v5522, %v5657
      %v5659 = vpop.f32.mrb[0].mxu0
      %5660 = vmatprep.mubr.bf16.mxu0 %v4145
      %5661 = vmatmul.mubr.bf16.gmra.mrb[0].mxu0 %v4144
      %v5662 = vpop.f32.mrb[0].mxu0
      %v5663 = vadd.f32 %v5527, %v5662
      %v5664 = vpop.f32.mrb[0].mxu0
      %v5665 = vpop.f32.mrb[0].mxu0
      %v5666 = vadd.f32 %v5530, %v5665
      %v5667 = vpop.f32.mrb[0].mxu0
      %5668 = vmatprep.mubr.bf16.mxu0 %v4161
      %5669 = vmatmul.mubr.bf16.gmra.mrb[0].mxu0 %v4160
      %v5670 = vpop.f32.mrb[0].mxu0
      %v5671 = vadd.f32 %v5535, %v5670
      %v5672 = vpop.f32.mrb[0].mxu0
      %v5673 = vpop.f32.mrb[0].mxu0
      %v5674 = vadd.f32 %v5538, %v5673
      %v5675 = vpop.f32.mrb[0].mxu0
      %5676 = vmatprep.mubr.bf16.mxu0 %v4177
      %5677 = vmatmul.mubr.bf16.gmra.mrb[0].mxu0 %v4176
      %v5678 = vpop.f32.mrb[0].mxu0
      %v5679 = vadd.f32 %v5543, %v5678
      %v5680 = vpop.f32.mrb[0].mxu0
      %v5681 = vpop.f32.mrb[0].mxu0
      %v5682 = vadd.f32 %v5546, %v5681
      %v5683 = vpop.f32.mrb[0].mxu0
      %5684 = vmatprep.mubr.bf16.mxu0 %v4193
      %5685 = vmatmul.mubr.bf16.gmra.mrb[0].mxu0 %v4192
      %v5686 = vpop.f32.mrb[0].mxu0
      %v5687 = vadd.f32 %v5551, %v5686
      %v5688 = vpop.f32.mrb[0].mxu0
      %v5689 = vpop.f32.mrb[0].mxu0
      %v5690 = vadd.f32 %v5554, %v5689
      %v5691 = vpop.f32.mrb[0].mxu0
      %5692 = vmatprep.mubr.bf16.mxu0 %v4209
      %5693 = vmatmul.mubr.bf16.gmra.mrb[0].mxu0 %v4208
      %v5694 = vpop.f32.mrb[0].mxu0
      %v5695 = vadd.f32 %v5559, %v5694
      %v5696 = vpop.f32.mrb[0].mxu0
      %v5697 = vpop.f32.mrb[0].mxu0
      %v5698 = vadd.f32 %v5562, %v5697
      %v5699 = vpop.f32.mrb[0].mxu0
      %5700 = vmatprep.mubr.bf16.mxu0 %v4225
      %5701 = vmatmul.mubr.bf16.gmra.mrb[0].mxu0 %v4224
      %v5702 = vpop.f32.mrb[0].mxu0
      %v5703 = vadd.f32 %v5567, %v5702
      %v5704 = vpop.f32.mrb[0].mxu0
      %v5705 = vpop.f32.mrb[0].mxu0
      %v5706 = vadd.f32 %v5570, %v5705
      %v5707 = vpop.f32.mrb[0].mxu0
      %5708 = vmatprep.mubr.bf16.mxu0 %v4241
      %5709 = vmatmul.mubr.bf16.gmra.mrb[0].mxu0 %v4240
      %v5710 = vpop.f32.mrb[0].mxu0
      %v5711 = vadd.f32 %v5575, %v5710
      %v5712 = vpop.f32.mrb[0].mxu0
      %v5713 = vpop.f32.mrb[0].mxu0
      %v5714 = vadd.f32 %v5578, %v5713
      %v5715 = vpop.f32.mrb[0].mxu0
      %5716 = vmatprep.mubr.bf16.mxu0 %v4257
      %5717 = vmatmul.mubr.bf16.gmra.mrb[0].mxu0 %v4256
      %v5718 = vpop.f32.mrb[0].mxu0
      %v5719 = vadd.f32 %v5583, %v5718
      %v5720 = vpop.f32.mrb[0].mxu0
      %v5721 = vpop.f32.mrb[0].mxu0
      %v5722 = vadd.f32 %v5586, %v5721
      %v5723 = vpop.f32.mrb[0].mxu0
      %5724 = vmatprep.mubr.bf16.mxu0 %v4273
      %5725 = vmatmul.mubr.bf16.gmra.mrb[0].mxu0 %v4272
      %v5726 = vpop.f32.mrb[0].mxu0
      %v5727 = vadd.f32 %v5591, %v5726
      %v5728 = vpop.f32.mrb[0].mxu0
      %v5729 = vpop.f32.mrb[0].mxu0
      %v5730 = vadd.f32 %v5594, %v5729
      %v5731 = vpop.f32.mrb[0].mxu0
      %5732 = vmatprep.mubr.bf16.mxu0 %v4289
      %5733 = vmatmul.mubr.bf16.gmra.mrb[0].mxu0 %v4288
      %v5734 = vpop.f32.mrb[0].mxu0
      %v5735 = vadd.f32 %v5599, %v5734
      %v5736 = vpop.f32.mrb[0].mxu0
      %v5737 = vpop.f32.mrb[0].mxu0
      %v5738 = vadd.f32 %v5602, %v5737
      %v5739 = vpop.f32.mrb[0].mxu0
      %5740 = vmatprep.mubr.bf16.mxu0 %v4305
      %5741 = vmatmul.mubr.bf16.gmra.mrb[0].mxu0 %v4304
      %v5742 = vpop.f32.mrb[0].mxu0
      %v5743 = vadd.f32 %v5607, %v5742
      %v5744 = vpop.f32.mrb[0].mxu0
      %v5745 = vpop.f32.mrb[0].mxu0
      %v5746 = vpop.f32.mrb[0].mxu0
      %5747 = vdwg.mxu0
      %5748 = vmatprep.subr.bf16.mxu0 0
      %5749 = vmatpush1.bf16.msra.mxu0 %v5132
      %5750 = vmatprep.subr.bf16.mxu0 0
      %5751 = vmatpush1.bf16.msra.mxu0 %v5133
      %5752 = vmatprep.subr.bf16.mxu0 0
      %5753 = vmatpush1.bf16.msra.mxu0 %v5134
      %5754 = vmatprep.subr.bf16.mxu0 0
      %5755 = vmatpush1.bf16.msra.mxu0 %v5135
      %5756 = vmatprep.subr.bf16.mxu0 0
      %5757 = vmatpush1.bf16.msra.mxu0 %v5136
      %5758 = vmatprep.subr.bf16.mxu0 0
      %5759 = vmatpush1.bf16.msra.mxu0 %v5137
      %5760 = vmatprep.subr.bf16.mxu0 0
      %5761 = vmatpush1.bf16.msra.mxu0 %v5138
      %5762 = vmatprep.subr.bf16.mxu0 0
      %5763 = vmatpush1.bf16.msra.mxu0 %v5139
      %5764 = vmatprep.subr.bf16.mxu0 0
      %5765 = vmatpush1.bf16.msra.mxu0 %v5140
      %5766 = vmatprep.subr.bf16.mxu0 0
      %5767 = vmatpush1.bf16.msra.mxu0 %v5141
      %5768 = vmatprep.subr.bf16.mxu0 0
      %5769 = vmatpush1.bf16.msra.mxu0 %v5142
      %5770 = vmatprep.subr.bf16.mxu0 0
      %5771 = vmatpush1.bf16.msra.mxu0 %v5143
      %5772 = vmatprep.subr.bf16.mxu0 0
      %5773 = vmatpush1.bf16.msra.mxu0 %v5144
      %5774 = vmatprep.subr.bf16.mxu0 0
      %5775 = vmatpush1.bf16.msra.mxu0 %v5145
      %5776 = vmatprep.subr.bf16.mxu0 0
      %5777 = vmatpush1.bf16.msra.mxu0 %v5146
      %5778 = vmatprep.subr.bf16.mxu0 0
      %5779 = vmatpush1.bf16.msra.mxu0 %v5147
      %5780 = vmatprep.mubr.bf16.mxu0 %v4115
      %5781 = vmatmul.mubr.bf16.gmra.mrb[0].mxu0 %v4114
      %v5782 = vpop.f32.mrb[0].mxu0
      %v5783 = vadd.f32 %v5647, %v5782
      %v5784 = vpop.f32.mrb[0].mxu0
      %v5785 = vpop.f32.mrb[0].mxu0
      %v5786 = vadd.f32 %v5650, %v5785
      %v5787 = vpop.f32.mrb[0].mxu0
      %5788 = vmatprep.mubr.bf16.mxu0 %v4131
      %5789 = vmatmul.mubr.bf16.gmra.mrb[0].mxu0 %v4130
      %v5790 = vpop.f32.mrb[0].mxu0
      %v5791 = vadd.f32 %v5655, %v5790
      %v5792 = vpop.f32.mrb[0].mxu0
      %v5793 = vpop.f32.mrb[0].mxu0
      %v5794 = vadd.f32 %v5658, %v5793
      %v5795 = vpop.f32.mrb[0].mxu0
      %5796 = vmatprep.mubr.bf16.mxu0 %v4147
      %5797 = vmatmul.mubr.bf16.gmra.mrb[0].mxu0 %v4146
      %v5798 = vpop.f32.mrb[0].mxu0
      %v5799 = vadd.f32 %v5663, %v5798
      %v5800 = vpop.f32.mrb[0].mxu0
      %v5801 = vpop.f32.mrb[0].mxu0
      %v5802 = vadd.f32 %v5666, %v5801
      %v5803 = vpop.f32.mrb[0].mxu0
      %5804 = vmatprep.mubr.bf16.mxu0 %v4163
      %5805 = vmatmul.mubr.bf16.gmra.mrb[0].mxu0 %v4162
      %v5806 = vpop.f32.mrb[0].mxu0
      %v5807 = vadd.f32 %v5671, %v5806
      %v5808 = vpop.f32.mrb[0].mxu0
      %v5809 = vpop.f32.mrb[0].mxu0
      %v5810 = vadd.f32 %v5674, %v5809
      %v5811 = vpop.f32.mrb[0].mxu0
      %5812 = vmatprep.mubr.bf16.mxu0 %v4179
      %5813 = vmatmul.mubr.bf16.gmra.mrb[0].mxu0 %v4178
      %v5814 = vpop.f32.mrb[0].mxu0
      %v5815 = vadd.f32 %v5679, %v5814
      %v5816 = vpop.f32.mrb[0].mxu0
      %v5817 = vpop.f32.mrb[0].mxu0
      %v5818 = vadd.f32 %v5682, %v5817
      %v5819 = vpop.f32.mrb[0].mxu0
      %5820 = vmatprep.mubr.bf16.mxu0 %v4195
      %5821 = vmatmul.mubr.bf16.gmra.mrb[0].mxu0 %v4194
      %v5822 = vpop.f32.mrb[0].mxu0
      %v5823 = vadd.f32 %v5687, %v5822
      %v5824 = vpop.f32.mrb[0].mxu0
      %v5825 = vpop.f32.mrb[0].mxu0
      %v5826 = vadd.f32 %v5690, %v5825
      %v5827 = vpop.f32.mrb[0].mxu0
      %5828 = vmatprep.mubr.bf16.mxu0 %v4211
      %5829 = vmatmul.mubr.bf16.gmra.mrb[0].mxu0 %v4210
      %v5830 = vpop.f32.mrb[0].mxu0
      %v5831 = vadd.f32 %v5695, %v5830
      %v5832 = vpop.f32.mrb[0].mxu0
      %v5833 = vpop.f32.mrb[0].mxu0
      %v5834 = vadd.f32 %v5698, %v5833
      %v5835 = vpop.f32.mrb[0].mxu0
      %5836 = vmatprep.mubr.bf16.mxu0 %v4227
      %5837 = vmatmul.mubr.bf16.gmra.mrb[0].mxu0 %v4226
      %v5838 = vpop.f32.mrb[0].mxu0
      %v5839 = vadd.f32 %v5703, %v5838
      %v5840 = vpop.f32.mrb[0].mxu0
      %v5841 = vpop.f32.mrb[0].mxu0
      %v5842 = vadd.f32 %v5706, %v5841
      %v5843 = vpop.f32.mrb[0].mxu0
      %5844 = vmatprep.mubr.bf16.mxu0 %v4243
      %5845 = vmatmul.mubr.bf16.gmra.mrb[0].mxu0 %v4242
      %v5846 = vpop.f32.mrb[0].mxu0
      %v5847 = vadd.f32 %v5711, %v5846
      %v5848 = vpop.f32.mrb[0].mxu0
      %v5849 = vpop.f32.mrb[0].mxu0
      %v5850 = vadd.f32 %v5714, %v5849
      %v5851 = vpop.f32.mrb[0].mxu0
      %5852 = vmatprep.mubr.bf16.mxu0 %v4259
      %5853 = vmatmul.mubr.bf16.gmra.mrb[0].mxu0 %v4258
      %v5854 = vpop.f32.mrb[0].mxu0
      %v5855 = vadd.f32 %v5719, %v5854
      %v5856 = vpop.f32.mrb[0].mxu0
      %v5857 = vpop.f32.mrb[0].mxu0
      %v5858 = vadd.f32 %v5722, %v5857
      %v5859 = vpop.f32.mrb[0].mxu0
      %5860 = vmatprep.mubr.bf16.mxu0 %v4275
      %5861 = vmatmul.mubr.bf16.gmra.mrb[0].mxu0 %v4274
      %v5862 = vpop.f32.mrb[0].mxu0
      %v5863 = vadd.f32 %v5727, %v5862
      %v5864 = vpop.f32.mrb[0].mxu0
      %v5865 = vpop.f32.mrb[0].mxu0
      %v5866 = vadd.f32 %v5730, %v5865
      %v5867 = vpop.f32.mrb[0].mxu0
      %5868 = vmatprep.mubr.bf16.mxu0 %v4291
      %5869 = vmatmul.mubr.bf16.gmra.mrb[0].mxu0 %v4290
      %v5870 = vpop.f32.mrb[0].mxu0
      %v5871 = vadd.f32 %v5735, %v5870
      %v5872 = vpop.f32.mrb[0].mxu0
      %v5873 = vpop.f32.mrb[0].mxu0
      %v5874 = vadd.f32 %v5738, %v5873
      %v5875 = vpop.f32.mrb[0].mxu0
      %5876 = vmatprep.mubr.bf16.mxu0 %v4307
      %5877 = vmatmul.mubr.bf16.gmra.mrb[0].mxu0 %v4306
      %v5878 = vpop.f32.mrb[0].mxu0
      %v5879 = vadd.f32 %v5743, %v5878
      %v5880 = vpop.f32.mrb[0].mxu0
      %v5881 = vpop.f32.mrb[0].mxu0
      %v5882 = vpop.f32.mrb[0].mxu0
      %5883 = vdwg.mxu0
      %5884 = vmatprep.subr.bf16.mxu0 0
      %5885 = vmatpush1.bf16.msra.mxu0 %v5148
      %5886 = vmatprep.subr.bf16.mxu0 0
      %5887 = vmatpush1.bf16.msra.mxu0 %v5149
      %5888 = vmatprep.subr.bf16.mxu0 0
      %5889 = vmatpush1.bf16.msra.mxu0 %v5150
      %5890 = vmatprep.subr.bf16.mxu0 0
      %5891 = vmatpush1.bf16.msra.mxu0 %v5151
      %5892 = vmatprep.subr.bf16.mxu0 0
      %5893 = vmatpush1.bf16.msra.mxu0 %v5152
      %5894 = vmatprep.subr.bf16.mxu0 0
      %5895 = vmatpush1.bf16.msra.mxu0 %v5153
      %5896 = vmatprep.subr.bf16.mxu0 0
      %5897 = vmatpush1.bf16.msra.mxu0 %v5154
      %5898 = vmatprep.subr.bf16.mxu0 0
      %5899 = vmatpush1.bf16.msra.mxu0 %v5155
      %5900 = vmatprep.subr.bf16.mxu0 0
      %5901 = vmatpush1.bf16.msra.mxu0 %v5156
      %5902 = vmatprep.subr.bf16.mxu0 0
      %5903 = vmatpush1.bf16.msra.mxu0 %v5157
      %5904 = vmatprep.subr.bf16.mxu0 0
      %5905 = vmatpush1.bf16.msra.mxu0 %v5158
      %5906 = vmatprep.subr.bf16.mxu0 0
      %5907 = vmatpush1.bf16.msra.mxu0 %v5159
      %5908 = vmatprep.subr.bf16.mxu0 0
      %5909 = vmatpush1.bf16.msra.mxu0 %v5160
      %5910 = vmatprep.subr.bf16.mxu0 0
      %5911 = vmatpush1.bf16.msra.mxu0 %v5161
      %5912 = vmatprep.subr.bf16.mxu0 0
      %5913 = vmatpush1.bf16.msra.mxu0 %v5162
      %5914 = vmatprep.subr.bf16.mxu0 0
      %5915 = vmatpush1.bf16.msra.mxu0 %v5163
      %5916 = vmatprep.mubr.bf16.mxu0 %v4117
      %5917 = vmatmul.mubr.bf16.gmra.mrb[0].mxu0 %v4116
      %v5918 = vpop.f32.mrb[0].mxu0
      %v5919 = vadd.f32 %v5783, %v5918
      %v5920 = vpop.f32.mrb[0].mxu0
      %v5921 = vpop.f32.mrb[0].mxu0
      %v5922 = vadd.f32 %v5786, %v5921
      %v5923 = vpop.f32.mrb[0].mxu0
      %5924 = vmatprep.mubr.bf16.mxu0 %v4133
      %5925 = vmatmul.mubr.bf16.gmra.mrb[0].mxu0 %v4132
      %v5926 = vpop.f32.mrb[0].mxu0
      %v5927 = vadd.f32 %v5791, %v5926
      %v5928 = vpop.f32.mrb[0].mxu0
      %v5929 = vpop.f32.mrb[0].mxu0
      %v5930 = vadd.f32 %v5794, %v5929
      %v5931 = vpop.f32.mrb[0].mxu0
      %5932 = vmatprep.mubr.bf16.mxu0 %v4149
      %5933 = vmatmul.mubr.bf16.gmra.mrb[0].mxu0 %v4148
      %v5934 = vpop.f32.mrb[0].mxu0
      %v5935 = vadd.f32 %v5799, %v5934
      %v5936 = vpop.f32.mrb[0].mxu0
      %v5937 = vpop.f32.mrb[0].mxu0
      %v5938 = vadd.f32 %v5802, %v5937
      %v5939 = vpop.f32.mrb[0].mxu0
      %5940 = vmatprep.mubr.bf16.mxu0 %v4165
      %5941 = vmatmul.mubr.bf16.gmra.mrb[0].mxu0 %v4164
      %v5942 = vpop.f32.mrb[0].mxu0
      %v5943 = vadd.f32 %v5807, %v5942
      %v5944 = vpop.f32.mrb[0].mxu0
      %v5945 = vpop.f32.mrb[0].mxu0
      %v5946 = vadd.f32 %v5810, %v5945
      %v5947 = vpop.f32.mrb[0].mxu0
      %5948 = vmatprep.mubr.bf16.mxu0 %v4181
      %5949 = vmatmul.mubr.bf16.gmra.mrb[0].mxu0 %v4180
      %v5950 = vpop.f32.mrb[0].mxu0
      %v5951 = vadd.f32 %v5815, %v5950
      %v5952 = vpop.f32.mrb[0].mxu0
      %v5953 = vpop.f32.mrb[0].mxu0
      %v5954 = vadd.f32 %v5818, %v5953
      %v5955 = vpop.f32.mrb[0].mxu0
      %5956 = vmatprep.mubr.bf16.mxu0 %v4197
      %5957 = vmatmul.mubr.bf16.gmra.mrb[0].mxu0 %v4196
      %v5958 = vpop.f32.mrb[0].mxu0
      %v5959 = vadd.f32 %v5823, %v5958
      %v5960 = vpop.f32.mrb[0].mxu0
      %v5961 = vpop.f32.mrb[0].mxu0
      %v5962 = vadd.f32 %v5826, %v5961
      %v5963 = vpop.f32.mrb[0].mxu0
      %5964 = vmatprep.mubr.bf16.mxu0 %v4213
      %5965 = vmatmul.mubr.bf16.gmra.mrb[0].mxu0 %v4212
      %v5966 = vpop.f32.mrb[0].mxu0
      %v5967 = vadd.f32 %v5831, %v5966
      %v5968 = vpop.f32.mrb[0].mxu0
      %v5969 = vpop.f32.mrb[0].mxu0
      %v5970 = vadd.f32 %v5834, %v5969
      %v5971 = vpop.f32.mrb[0].mxu0
      %5972 = vmatprep.mubr.bf16.mxu0 %v4229
      %5973 = vmatmul.mubr.bf16.gmra.mrb[0].mxu0 %v4228
      %v5974 = vpop.f32.mrb[0].mxu0
      %v5975 = vadd.f32 %v5839, %v5974
      %v5976 = vpop.f32.mrb[0].mxu0
      %v5977 = vpop.f32.mrb[0].mxu0
      %v5978 = vadd.f32 %v5842, %v5977
      %v5979 = vpop.f32.mrb[0].mxu0
      %5980 = vmatprep.mubr.bf16.mxu0 %v4245
      %5981 = vmatmul.mubr.bf16.gmra.mrb[0].mxu0 %v4244
      %v5982 = vpop.f32.mrb[0].mxu0
      %v5983 = vadd.f32 %v5847, %v5982
      %v5984 = vpop.f32.mrb[0].mxu0
      %v5985 = vpop.f32.mrb[0].mxu0
      %v5986 = vadd.f32 %v5850, %v5985
      %v5987 = vpop.f32.mrb[0].mxu0
      %5988 = vmatprep.mubr.bf16.mxu0 %v4261
      %5989 = vmatmul.mubr.bf16.gmra.mrb[0].mxu0 %v4260
      %v5990 = vpop.f32.mrb[0].mxu0
      %v5991 = vadd.f32 %v5855, %v5990
      %v5992 = vpop.f32.mrb[0].mxu0
      %v5993 = vpop.f32.mrb[0].mxu0
      %v5994 = vadd.f32 %v5858, %v5993
      %v5995 = vpop.f32.mrb[0].mxu0
      %5996 = vmatprep.mubr.bf16.mxu0 %v4277
      %5997 = vmatmul.mubr.bf16.gmra.mrb[0].mxu0 %v4276
      %v5998 = vpop.f32.mrb[0].mxu0
      %v5999 = vadd.f32 %v5863, %v5998
      %v6000 = vpop.f32.mrb[0].mxu0
      %v6001 = vpop.f32.mrb[0].mxu0
      %v6002 = vadd.f32 %v5866, %v6001
      %v6003 = vpop.f32.mrb[0].mxu0
      %6004 = vmatprep.mubr.bf16.mxu0 %v4293
      %6005 = vmatmul.mubr.bf16.gmra.mrb[0].mxu0 %v4292
      %v6006 = vpop.f32.mrb[0].mxu0
      %v6007 = vadd.f32 %v5871, %v6006
      %v6008 = vpop.f32.mrb[0].mxu0
      %v6009 = vpop.f32.mrb[0].mxu0
      %v6010 = vadd.f32 %v5874, %v6009
      %v6011 = vpop.f32.mrb[0].mxu0
      %6012 = vmatprep.mubr.bf16.mxu0 %v4309
      %6013 = vmatmul.mubr.bf16.gmra.mrb[0].mxu0 %v4308
      %v6014 = vpop.f32.mrb[0].mxu0
      %v6015 = vadd.f32 %v5879, %v6014
      %v6016 = vpop.f32.mrb[0].mxu0
      %v6017 = vpop.f32.mrb[0].mxu0
      %v6018 = vpop.f32.mrb[0].mxu0
      %6019 = vdwg.mxu0
      %6020 = vmatprep.subr.bf16.mxu0 0
      %6021 = vmatpush1.bf16.msra.mxu0 %v5164
      %6022 = vmatprep.subr.bf16.mxu0 0
      %6023 = vmatpush1.bf16.msra.mxu0 %v5165
      %6024 = vmatprep.subr.bf16.mxu0 0
      %6025 = vmatpush1.bf16.msra.mxu0 %v5166
      %6026 = vmatprep.subr.bf16.mxu0 0
      %6027 = vmatpush1.bf16.msra.mxu0 %v5167
      %6028 = vmatprep.subr.bf16.mxu0 0
      %6029 = vmatpush1.bf16.msra.mxu0 %v5168
      %6030 = vmatprep.subr.bf16.mxu0 0
      %6031 = vmatpush1.bf16.msra.mxu0 %v5169
      %6032 = vmatprep.subr.bf16.mxu0 0
      %6033 = vmatpush1.bf16.msra.mxu0 %v5170
      %6034 = vmatprep.subr.bf16.mxu0 0
      %6035 = vmatpush1.bf16.msra.mxu0 %v5171
      %6036 = vmatprep.subr.bf16.mxu0 0
      %6037 = vmatpush1.bf16.msra.mxu0 %v5172
      %6038 = vmatprep.subr.bf16.mxu0 0
      %6039 = vmatpush1.bf16.msra.mxu0 %v5173
      %6040 = vmatprep.subr.bf16.mxu0 0
      %6041 = vmatpush1.bf16.msra.mxu0 %v5174
      %6042 = vmatprep.subr.bf16.mxu0 0
      %6043 = vmatpush1.bf16.msra.mxu0 %v5175
      %6044 = vmatprep.subr.bf16.mxu0 0
      %6045 = vmatpush1.bf16.msra.mxu0 %v5176
      %6046 = vmatprep.subr.bf16.mxu0 0
      %6047 = vmatpush1.bf16.msra.mxu0 %v5177
      %6048 = vmatprep.subr.bf16.mxu0 0
      %6049 = vmatpush1.bf16.msra.mxu0 %v5178
      %6050 = vmatprep.subr.bf16.mxu0 0
      %6051 = vmatpush1.bf16.msra.mxu0 %v5179
      %6052 = vmatprep.mubr.bf16.mxu0 %v4119
      %6053 = vmatmul.mubr.bf16.gmra.mrb[0].mxu0 %v4118
      %v6054 = vpop.f32.mrb[0].mxu0
      %v6055 = vadd.f32 %v5919, %v6054
      %v6056 = vpop.f32.mrb[0].mxu0
      %v6057 = vpop.f32.mrb[0].mxu0
      %v6058 = vadd.f32 %v5922, %v6057
      %v6059 = vpop.f32.mrb[0].mxu0
      %6060 = vmatprep.mubr.bf16.mxu0 %v4135
      %6061 = vmatmul.mubr.bf16.gmra.mrb[0].mxu0 %v4134
      %v6062 = vpop.f32.mrb[0].mxu0
      %v6063 = vadd.f32 %v5927, %v6062
      %v6064 = vpop.f32.mrb[0].mxu0
      %v6065 = vpop.f32.mrb[0].mxu0
      %v6066 = vadd.f32 %v5930, %v6065
      %v6067 = vpop.f32.mrb[0].mxu0
      %6068 = vmatprep.mubr.bf16.mxu0 %v4151
      %6069 = vmatmul.mubr.bf16.gmra.mrb[0].mxu0 %v4150
      %v6070 = vpop.f32.mrb[0].mxu0
      %v6071 = vadd.f32 %v5935, %v6070
      %v6072 = vpop.f32.mrb[0].mxu0
      %v6073 = vpop.f32.mrb[0].mxu0
      %v6074 = vadd.f32 %v5938, %v6073
      %v6075 = vpop.f32.mrb[0].mxu0
      %6076 = vmatprep.mubr.bf16.mxu0 %v4167
      %6077 = vmatmul.mubr.bf16.gmra.mrb[0].mxu0 %v4166
      %v6078 = vpop.f32.mrb[0].mxu0
      %v6079 = vadd.f32 %v5943, %v6078
      %v6080 = vpop.f32.mrb[0].mxu0
      %v6081 = vpop.f32.mrb[0].mxu0
      %v6082 = vadd.f32 %v5946, %v6081
      %v6083 = vpop.f32.mrb[0].mxu0
      %6084 = vmatprep.mubr.bf16.mxu0 %v4183
      %6085 = vmatmul.mubr.bf16.gmra.mrb[0].mxu0 %v4182
      %v6086 = vpop.f32.mrb[0].mxu0
      %v6087 = vadd.f32 %v5951, %v6086
      %v6088 = vpop.f32.mrb[0].mxu0
      %v6089 = vpop.f32.mrb[0].mxu0
      %v6090 = vadd.f32 %v5954, %v6089
      %v6091 = vpop.f32.mrb[0].mxu0
      %6092 = vmatprep.mubr.bf16.mxu0 %v4199
      %6093 = vmatmul.mubr.bf16.gmra.mrb[0].mxu0 %v4198
      %v6094 = vpop.f32.mrb[0].mxu0
      %v6095 = vadd.f32 %v5959, %v6094
      %v6096 = vpop.f32.mrb[0].mxu0
      %v6097 = vpop.f32.mrb[0].mxu0
      %v6098 = vadd.f32 %v5962, %v6097
      %v6099 = vpop.f32.mrb[0].mxu0
      %6100 = vmatprep.mubr.bf16.mxu0 %v4215
      %6101 = vmatmul.mubr.bf16.gmra.mrb[0].mxu0 %v4214
      %v6102 = vpop.f32.mrb[0].mxu0
      %v6103 = vadd.f32 %v5967, %v6102
      %v6104 = vpop.f32.mrb[0].mxu0
      %v6105 = vpop.f32.mrb[0].mxu0
      %v6106 = vadd.f32 %v5970, %v6105
      %v6107 = vpop.f32.mrb[0].mxu0
      %6108 = vmatprep.mubr.bf16.mxu0 %v4231
      %6109 = vmatmul.mubr.bf16.gmra.mrb[0].mxu0 %v4230
      %v6110 = vpop.f32.mrb[0].mxu0
      %v6111 = vadd.f32 %v5975, %v6110
      %v6112 = vpop.f32.mrb[0].mxu0
      %v6113 = vpop.f32.mrb[0].mxu0
      %v6114 = vadd.f32 %v5978, %v6113
      %v6115 = vpop.f32.mrb[0].mxu0
      %6116 = vmatprep.mubr.bf16.mxu0 %v4247
      %6117 = vmatmul.mubr.bf16.gmra.mrb[0].mxu0 %v4246
      %v6118 = vpop.f32.mrb[0].mxu0
      %v6119 = vadd.f32 %v5983, %v6118
      %v6120 = vpop.f32.mrb[0].mxu0
      %v6121 = vpop.f32.mrb[0].mxu0
      %v6122 = vadd.f32 %v5986, %v6121
      %v6123 = vpop.f32.mrb[0].mxu0
      %6124 = vmatprep.mubr.bf16.mxu0 %v4263
      %6125 = vmatmul.mubr.bf16.gmra.mrb[0].mxu0 %v4262
      %v6126 = vpop.f32.mrb[0].mxu0
      %v6127 = vadd.f32 %v5991, %v6126
      %v6128 = vpop.f32.mrb[0].mxu0
      %v6129 = vpop.f32.mrb[0].mxu0
      %v6130 = vadd.f32 %v5994, %v6129
      %v6131 = vpop.f32.mrb[0].mxu0
      %6132 = vmatprep.mubr.bf16.mxu0 %v4279
      %6133 = vmatmul.mubr.bf16.gmra.mrb[0].mxu0 %v4278
      %v6134 = vpop.f32.mrb[0].mxu0
      %v6135 = vadd.f32 %v5999, %v6134
      %v6136 = vpop.f32.mrb[0].mxu0
      %v6137 = vpop.f32.mrb[0].mxu0
      %v6138 = vadd.f32 %v6002, %v6137
      %v6139 = vpop.f32.mrb[0].mxu0
      %6140 = vmatprep.mubr.bf16.mxu0 %v4295
      %6141 = vmatmul.mubr.bf16.gmra.mrb[0].mxu0 %v4294
      %v6142 = vpop.f32.mrb[0].mxu0
      %v6143 = vadd.f32 %v6007, %v6142
      %v6144 = vpop.f32.mrb[0].mxu0
      %v6145 = vpop.f32.mrb[0].mxu0
      %v6146 = vadd.f32 %v6010, %v6145
      %v6147 = vpop.f32.mrb[0].mxu0
      %6148 = vmatprep.mubr.bf16.mxu0 %v4311
      %6149 = vmatmul.mubr.bf16.gmra.mrb[0].mxu0 %v4310
      %v6150 = vpop.f32.mrb[0].mxu0
      %v6151 = vadd.f32 %v6015, %v6150
      %v6152 = vpop.f32.mrb[0].mxu0
      %v6153 = vpop.f32.mrb[0].mxu0
      %v6154 = vpop.f32.mrb[0].mxu0
      %6155 = vdwg.mxu0
      %6156 = vmatprep.subr.bf16.mxu0 0
      %6157 = vmatpush1.bf16.msra.mxu0 %v5180
      %6158 = vmatprep.subr.bf16.mxu0 0
      %6159 = vmatpush1.bf16.msra.mxu0 %v5181
      %6160 = vmatprep.subr.bf16.mxu0 0
      %6161 = vmatpush1.bf16.msra.mxu0 %v5182
      %6162 = vmatprep.subr.bf16.mxu0 0
      %6163 = vmatpush1.bf16.msra.mxu0 %v5183
      %6164 = vmatprep.subr.bf16.mxu0 0
      %6165 = vmatpush1.bf16.msra.mxu0 %v5184
      %6166 = vmatprep.subr.bf16.mxu0 0
      %6167 = vmatpush1.bf16.msra.mxu0 %v5185
      %6168 = vmatprep.subr.bf16.mxu0 0
      %6169 = vmatpush1.bf16.msra.mxu0 %v5186
      %6170 = vmatprep.subr.bf16.mxu0 0
      %6171 = vmatpush1.bf16.msra.mxu0 %v5187
      %6172 = vmatprep.subr.bf16.mxu0 0
      %6173 = vmatpush1.bf16.msra.mxu0 %v5188
      %6174 = vmatprep.subr.bf16.mxu0 0
      %6175 = vmatpush1.bf16.msra.mxu0 %v5189
      %6176 = vmatprep.subr.bf16.mxu0 0
      %6177 = vmatpush1.bf16.msra.mxu0 %v5190
      %6178 = vmatprep.subr.bf16.mxu0 0
      %6179 = vmatpush1.bf16.msra.mxu0 %v5191
      %6180 = vmatprep.subr.bf16.mxu0 0
      %6181 = vmatpush1.bf16.msra.mxu0 %v5192
      %6182 = vmatprep.subr.bf16.mxu0 0
      %6183 = vmatpush1.bf16.msra.mxu0 %v5193
      %6184 = vmatprep.subr.bf16.mxu0 0
      %6185 = vmatpush1.bf16.msra.mxu0 %v5194
      %6186 = vmatprep.subr.bf16.mxu0 0
      %6187 = vmatpush1.bf16.msra.mxu0 %v5195
      %6188 = vmatprep.mubr.bf16.mxu0 %v4121
      %6189 = vmatmul.mubr.bf16.gmra.mrb[0].mxu0 %v4120
      %v6190 = vpop.f32.mrb[0].mxu0
      %v6191 = vadd.f32 %v6055, %v6190
      %v6192 = vpop.f32.mrb[0].mxu0
      %v6193 = vpop.f32.mrb[0].mxu0
      %v6194 = vadd.f32 %v6058, %v6193
      %v6195 = vpop.f32.mrb[0].mxu0
      %6196 = vmatprep.mubr.bf16.mxu0 %v4137
      %6197 = vmatmul.mubr.bf16.gmra.mrb[0].mxu0 %v4136
      %v6198 = vpop.f32.mrb[0].mxu0
      %v6199 = vadd.f32 %v6063, %v6198
      %v6200 = vpop.f32.mrb[0].mxu0
      %v6201 = vpop.f32.mrb[0].mxu0
      %v6202 = vadd.f32 %v6066, %v6201
      %v6203 = vpop.f32.mrb[0].mxu0
      %6204 = vmatprep.mubr.bf16.mxu0 %v4153
      %6205 = vmatmul.mubr.bf16.gmra.mrb[0].mxu0 %v4152
      %v6206 = vpop.f32.mrb[0].mxu0
      %v6207 = vadd.f32 %v6071, %v6206
      %v6208 = vpop.f32.mrb[0].mxu0
      %v6209 = vpop.f32.mrb[0].mxu0
      %v6210 = vadd.f32 %v6074, %v6209
      %v6211 = vpop.f32.mrb[0].mxu0
      %6212 = vmatprep.mubr.bf16.mxu0 %v4169
      %6213 = vmatmul.mubr.bf16.gmra.mrb[0].mxu0 %v4168
      %v6214 = vpop.f32.mrb[0].mxu0
      %v6215 = vadd.f32 %v6079, %v6214
      %v6216 = vpop.f32.mrb[0].mxu0
      %v6217 = vpop.f32.mrb[0].mxu0
      %v6218 = vadd.f32 %v6082, %v6217
      %v6219 = vpop.f32.mrb[0].mxu0
      %6220 = vmatprep.mubr.bf16.mxu0 %v4185
      %6221 = vmatmul.mubr.bf16.gmra.mrb[0].mxu0 %v4184
      %v6222 = vpop.f32.mrb[0].mxu0
      %v6223 = vadd.f32 %v6087, %v6222
      %v6224 = vpop.f32.mrb[0].mxu0
      %v6225 = vpop.f32.mrb[0].mxu0
      %v6226 = vadd.f32 %v6090, %v6225
      %v6227 = vpop.f32.mrb[0].mxu0
      %6228 = vmatprep.mubr.bf16.mxu0 %v4201
      %6229 = vmatmul.mubr.bf16.gmra.mrb[0].mxu0 %v4200
      %v6230 = vpop.f32.mrb[0].mxu0
      %v6231 = vadd.f32 %v6095, %v6230
      %v6232 = vpop.f32.mrb[0].mxu0
      %v6233 = vpop.f32.mrb[0].mxu0
      %v6234 = vadd.f32 %v6098, %v6233
      %v6235 = vpop.f32.mrb[0].mxu0
      %6236 = vmatprep.mubr.bf16.mxu0 %v4217
      %6237 = vmatmul.mubr.bf16.gmra.mrb[0].mxu0 %v4216
      %v6238 = vpop.f32.mrb[0].mxu0
      %v6239 = vadd.f32 %v6103, %v6238
      %v6240 = vpop.f32.mrb[0].mxu0
      %v6241 = vpop.f32.mrb[0].mxu0
      %v6242 = vadd.f32 %v6106, %v6241
      %v6243 = vpop.f32.mrb[0].mxu0
      %6244 = vmatprep.mubr.bf16.mxu0 %v4233
      %6245 = vmatmul.mubr.bf16.gmra.mrb[0].mxu0 %v4232
      %v6246 = vpop.f32.mrb[0].mxu0
      %v6247 = vadd.f32 %v6111, %v6246
      %v6248 = vpop.f32.mrb[0].mxu0
      %v6249 = vpop.f32.mrb[0].mxu0
      %v6250 = vadd.f32 %v6114, %v6249
      %v6251 = vpop.f32.mrb[0].mxu0
      %6252 = vmatprep.mubr.bf16.mxu0 %v4249
      %6253 = vmatmul.mubr.bf16.gmra.mrb[0].mxu0 %v4248
      %v6254 = vpop.f32.mrb[0].mxu0
      %v6255 = vadd.f32 %v6119, %v6254
      %v6256 = vpop.f32.mrb[0].mxu0
      %v6257 = vpop.f32.mrb[0].mxu0
      %v6258 = vadd.f32 %v6122, %v6257
      %v6259 = vpop.f32.mrb[0].mxu0
      %6260 = vmatprep.mubr.bf16.mxu0 %v4265
      %6261 = vmatmul.mubr.bf16.gmra.mrb[0].mxu0 %v4264
      %v6262 = vpop.f32.mrb[0].mxu0
      %v6263 = vadd.f32 %v6127, %v6262
      %v6264 = vpop.f32.mrb[0].mxu0
      %v6265 = vpop.f32.mrb[0].mxu0
      %v6266 = vadd.f32 %v6130, %v6265
      %v6267 = vpop.f32.mrb[0].mxu0
      %6268 = vmatprep.mubr.bf16.mxu0 %v4281
      %6269 = vmatmul.mubr.bf16.gmra.mrb[0].mxu0 %v4280
      %v6270 = vpop.f32.mrb[0].mxu0
      %v6271 = vadd.f32 %v6135, %v6270
      %v6272 = vpop.f32.mrb[0].mxu0
      %v6273 = vpop.f32.mrb[0].mxu0
      %v6274 = vadd.f32 %v6138, %v6273
      %v6275 = vpop.f32.mrb[0].mxu0
      %6276 = vmatprep.mubr.bf16.mxu0 %v4297
      %6277 = vmatmul.mubr.bf16.gmra.mrb[0].mxu0 %v4296
      %v6278 = vpop.f32.mrb[0].mxu0
      %v6279 = vadd.f32 %v6143, %v6278
      %v6280 = vpop.f32.mrb[0].mxu0
      %v6281 = vpop.f32.mrb[0].mxu0
      %v6282 = vadd.f32 %v6146, %v6281
      %v6283 = vpop.f32.mrb[0].mxu0
      %6284 = vmatprep.mubr.bf16.mxu0 %v4313
      %6285 = vmatmul.mubr.bf16.gmra.mrb[0].mxu0 %v4312
      %v6286 = vpop.f32.mrb[0].mxu0
      %v6287 = vadd.f32 %v6151, %v6286
      %v6288 = vpop.f32.mrb[0].mxu0
      %v6289 = vpop.f32.mrb[0].mxu0
      %v6290 = vpop.f32.mrb[0].mxu0
      %6291 = vdwg.mxu0
      %6292 = vmatprep.subr.bf16.mxu0 0
      %6293 = vmatpush1.bf16.msra.mxu0 %v5196
      %6294 = vmatprep.subr.bf16.mxu0 0
      %6295 = vmatpush1.bf16.msra.mxu0 %v5197
      %6296 = vmatprep.subr.bf16.mxu0 0
      %6297 = vmatpush1.bf16.msra.mxu0 %v5198
      %6298 = vmatprep.subr.bf16.mxu0 0
      %6299 = vmatpush1.bf16.msra.mxu0 %v5199
      %6300 = vmatprep.subr.bf16.mxu0 0
      %6301 = vmatpush1.bf16.msra.mxu0 %v5200
      %6302 = vmatprep.subr.bf16.mxu0 0
      %6303 = vmatpush1.bf16.msra.mxu0 %v5201
      %6304 = vmatprep.subr.bf16.mxu0 0
      %6305 = vmatpush1.bf16.msra.mxu0 %v5202
      %6306 = vmatprep.subr.bf16.mxu0 0
      %6307 = vmatpush1.bf16.msra.mxu0 %v5203
      %6308 = vmatprep.subr.bf16.mxu0 0
      %6309 = vmatpush1.bf16.msra.mxu0 %v5204
      %6310 = vmatprep.subr.bf16.mxu0 0
      %6311 = vmatpush1.bf16.msra.mxu0 %v5205
      %6312 = vmatprep.subr.bf16.mxu0 0
      %6313 = vmatpush1.bf16.msra.mxu0 %v5206
      %6314 = vmatprep.subr.bf16.mxu0 0
      %6315 = vmatpush1.bf16.msra.mxu0 %v5207
      %6316 = vmatprep.subr.bf16.mxu0 0
      %6317 = vmatpush1.bf16.msra.mxu0 %v5208
      %6318 = vmatprep.subr.bf16.mxu0 0
      %6319 = vmatpush1.bf16.msra.mxu0 %v5209
      %6320 = vmatprep.subr.bf16.mxu0 0
      %6321 = vmatpush1.bf16.msra.mxu0 %v5210
      %6322 = vmatprep.subr.bf16.mxu0 0
      %6323 = vmatpush1.bf16.msra.mxu0 %v5211
      %6324 = vmatprep.mubr.bf16.mxu0 %v4123
      %6325 = vmatmul.mubr.bf16.gmra.mrb[0].mxu0 %v4122
      %v6326 = vpop.f32.mrb[0].mxu0
      %v6327 = vadd.f32 %v6191, %v6326
      %v6328 = vpop.f32.mrb[0].mxu0
      %v6329 = vpop.f32.mrb[0].mxu0
      %v6330 = vadd.f32 %v6194, %v6329
      %v6331 = vpop.f32.mrb[0].mxu0
      %6332 = vmatprep.mubr.bf16.mxu0 %v4139
      %6333 = vmatmul.mubr.bf16.gmra.mrb[0].mxu0 %v4138
      %v6334 = vpop.f32.mrb[0].mxu0
      %v6335 = vadd.f32 %v6199, %v6334
      %v6336 = vpop.f32.mrb[0].mxu0
      %v6337 = vpop.f32.mrb[0].mxu0
      %v6338 = vadd.f32 %v6202, %v6337
      %v6339 = vpop.f32.mrb[0].mxu0
      %6340 = vmatprep.mubr.bf16.mxu0 %v4155
      %6341 = vmatmul.mubr.bf16.gmra.mrb[0].mxu0 %v4154
      %v6342 = vpop.f32.mrb[0].mxu0
      %v6343 = vadd.f32 %v6207, %v6342
      %v6344 = vpop.f32.mrb[0].mxu0
      %v6345 = vpop.f32.mrb[0].mxu0
      %v6346 = vadd.f32 %v6210, %v6345
      %v6347 = vpop.f32.mrb[0].mxu0
      %6348 = vmatprep.mubr.bf16.mxu0 %v4171
      %6349 = vmatmul.mubr.bf16.gmra.mrb[0].mxu0 %v4170
      %v6350 = vpop.f32.mrb[0].mxu0
      %v6351 = vadd.f32 %v6215, %v6350
      %v6352 = vpop.f32.mrb[0].mxu0
      %v6353 = vpop.f32.mrb[0].mxu0
      %v6354 = vadd.f32 %v6218, %v6353
      %v6355 = vpop.f32.mrb[0].mxu0
      %6356 = vmatprep.mubr.bf16.mxu0 %v4187
      %6357 = vmatmul.mubr.bf16.gmra.mrb[0].mxu0 %v4186
      %v6358 = vpop.f32.mrb[0].mxu0
      %v6359 = vadd.f32 %v6223, %v6358
      %v6360 = vpop.f32.mrb[0].mxu0
      %v6361 = vpop.f32.mrb[0].mxu0
      %v6362 = vadd.f32 %v6226, %v6361
      %v6363 = vpop.f32.mrb[0].mxu0
      %6364 = vmatprep.mubr.bf16.mxu0 %v4203
      %6365 = vmatmul.mubr.bf16.gmra.mrb[0].mxu0 %v4202
      %v6366 = vpop.f32.mrb[0].mxu0
      %v6367 = vadd.f32 %v6231, %v6366
      %v6368 = vpop.f32.mrb[0].mxu0
      %v6369 = vpop.f32.mrb[0].mxu0
      %v6370 = vadd.f32 %v6234, %v6369
      %v6371 = vpop.f32.mrb[0].mxu0
      %6372 = vmatprep.mubr.bf16.mxu0 %v4219
      %6373 = vmatmul.mubr.bf16.gmra.mrb[0].mxu0 %v4218
      %v6374 = vpop.f32.mrb[0].mxu0
      %v6375 = vadd.f32 %v6239, %v6374
      %v6376 = vpop.f32.mrb[0].mxu0
      %v6377 = vpop.f32.mrb[0].mxu0
      %v6378 = vadd.f32 %v6242, %v6377
      %v6379 = vpop.f32.mrb[0].mxu0
      %6380 = vmatprep.mubr.bf16.mxu0 %v4235
      %6381 = vmatmul.mubr.bf16.gmra.mrb[0].mxu0 %v4234
      %v6382 = vpop.f32.mrb[0].mxu0
      %v6383 = vadd.f32 %v6247, %v6382
      %v6384 = vpop.f32.mrb[0].mxu0
      %v6385 = vpop.f32.mrb[0].mxu0
      %v6386 = vadd.f32 %v6250, %v6385
      %v6387 = vpop.f32.mrb[0].mxu0
      %6388 = vmatprep.mubr.bf16.mxu0 %v4251
      %6389 = vmatmul.mubr.bf16.gmra.mrb[0].mxu0 %v4250
      %v6390 = vpop.f32.mrb[0].mxu0
      %v6391 = vadd.f32 %v6255, %v6390
      %v6392 = vpop.f32.mrb[0].mxu0
      %v6393 = vpop.f32.mrb[0].mxu0
      %v6394 = vadd.f32 %v6258, %v6393
      %v6395 = vpop.f32.mrb[0].mxu0
      %6396 = vmatprep.mubr.bf16.mxu0 %v4267
      %6397 = vmatmul.mubr.bf16.gmra.mrb[0].mxu0 %v4266
      %v6398 = vpop.f32.mrb[0].mxu0
      %v6399 = vadd.f32 %v6263, %v6398
      %v6400 = vpop.f32.mrb[0].mxu0
      %v6401 = vpop.f32.mrb[0].mxu0
      %v6402 = vadd.f32 %v6266, %v6401
      %v6403 = vpop.f32.mrb[0].mxu0
      %6404 = vmatprep.mubr.bf16.mxu0 %v4283
      %6405 = vmatmul.mubr.bf16.gmra.mrb[0].mxu0 %v4282
      %v6406 = vpop.f32.mrb[0].mxu0
      %v6407 = vadd.f32 %v6271, %v6406
      %v6408 = vpop.f32.mrb[0].mxu0
      %v6409 = vpop.f32.mrb[0].mxu0
      %v6410 = vadd.f32 %v6274, %v6409
      %v6411 = vpop.f32.mrb[0].mxu0
      %6412 = vmatprep.mubr.bf16.mxu0 %v4299
      %6413 = vmatmul.mubr.bf16.gmra.mrb[0].mxu0 %v4298
      %v6414 = vpop.f32.mrb[0].mxu0
      %v6415 = vadd.f32 %v6279, %v6414
      %v6416 = vpop.f32.mrb[0].mxu0
      %v6417 = vpop.f32.mrb[0].mxu0
      %v6418 = vadd.f32 %v6282, %v6417
      %v6419 = vpop.f32.mrb[0].mxu0
      %6420 = vmatprep.mubr.bf16.mxu0 %v4315
      %6421 = vmatmul.mubr.bf16.gmra.mrb[0].mxu0 %v4314
      %v6422 = vpop.f32.mrb[0].mxu0
      %v6423 = vadd.f32 %v6287, %v6422
      %v6424 = vpop.f32.mrb[0].mxu0
      %v6425 = vpop.f32.mrb[0].mxu0
      %v6426 = vpop.f32.mrb[0].mxu0
      %6427 = vdwg.mxu0
      %v6428 = vld [vmem:[%s5] sm:$0x1]
      %v6430 = vlaneseq
      %v6431 = vshrl.u32 %v6430, 7
      %v6432 = vsub.s32 0, %v6431
      %v6433 = vrot.slane %v6428, %v6432
      %v6435 = vmul.f32 %v6327, %v6433
      %v6436 = vmul.f32 %v6330, %v6433
      %v6437 = vmul.f32 %v6335, %v6433
      %v6438 = vmul.f32 %v6338, %v6433
      %v6439 = vmul.f32 %v6343, %v6433
      %v6440 = vmul.f32 %v6346, %v6433
      %v6441 = vmul.f32 %v6351, %v6433
      %v6442 = vmul.f32 %v6354, %v6433
      %v6443 = vmul.f32 %v6359, %v6433
      %v6444 = vmul.f32 %v6362, %v6433
      %v6445 = vmul.f32 %v6367, %v6433
      %v6446 = vmul.f32 %v6370, %v6433
      %v6447 = vmul.f32 %v6375, %v6433
      %v6448 = vmul.f32 %v6378, %v6433
      %v6449 = vmul.f32 %v6383, %v6433
      %v6450 = vmul.f32 %v6386, %v6433
      %v6451 = vmul.f32 %v6391, %v6433
      %v6452 = vmul.f32 %v6394, %v6433
      %v6453 = vmul.f32 %v6399, %v6433
      %v6454 = vmul.f32 %v6402, %v6433
      %v6455 = vmul.f32 %v6407, %v6433
      %v6456 = vmul.f32 %v6410, %v6433
      %v6457 = vmul.f32 %v6415, %v6433
      %v6458 = vmul.f32 %v6418, %v6433
      %v6459 = vmul.f32 %v6423, %v6433
      %v6460 = vld [vmem:[%s6] sm:$0x1]
      %v6462 = vlaneseq
      %v6463 = vshrl.u32 %v6462, 7
      %v6464 = vsub.s32 0, %v6463
      %v6465 = vrot.slane %v6460, %v6464
      %v6467 = vadd.f32 %v6435, %v6465
      %v6468 = vadd.f32 %v6436, %v6465
      %v6469 = vadd.f32 %v6437, %v6465
      %v6470 = vadd.f32 %v6438, %v6465
      %v6471 = vadd.f32 %v6439, %v6465
      %v6472 = vadd.f32 %v6440, %v6465
      %v6473 = vadd.f32 %v6441, %v6465
      %v6474 = vadd.f32 %v6442, %v6465
      %v6475 = vadd.f32 %v6443, %v6465
      %v6476 = vadd.f32 %v6444, %v6465
      %v6477 = vadd.f32 %v6445, %v6465
      %v6478 = vadd.f32 %v6446, %v6465
      %v6479 = vadd.f32 %v6447, %v6465
      %v6480 = vadd.f32 %v6448, %v6465
      %v6481 = vadd.f32 %v6449, %v6465
      %v6482 = vadd.f32 %v6450, %v6465
      %v6483 = vadd.f32 %v6451, %v6465
      %v6484 = vadd.f32 %v6452, %v6465
      %v6485 = vadd.f32 %v6453, %v6465
      %v6486 = vadd.f32 %v6454, %v6465
      %v6487 = vadd.f32 %v6455, %v6465
      %v6488 = vadd.f32 %v6456, %v6465
      %v6489 = vadd.f32 %v6457, %v6465
      %v6490 = vadd.f32 %v6458, %v6465
      %v6491 = vadd.f32 %v6459, %v6465
      %v6492 = vmax.f32 %v6467, 0.0
      %v6493 = vmax.f32 %v6468, 0.0
      %v6494 = vmax.f32 %v6469, 0.0
      %v6495 = vmax.f32 %v6470, 0.0
      %v6496 = vmax.f32 %v6471, 0.0
      %v6497 = vmax.f32 %v6472, 0.0
      %v6498 = vmax.f32 %v6473, 0.0
      %v6499 = vmax.f32 %v6474, 0.0
      %v6500 = vmax.f32 %v6475, 0.0
      %v6501 = vmax.f32 %v6476, 0.0
      %v6502 = vmax.f32 %v6477, 0.0
      %v6503 = vmax.f32 %v6478, 0.0
      %v6504 = vmax.f32 %v6479, 0.0
      %v6505 = vmax.f32 %v6480, 0.0
      %v6506 = vmax.f32 %v6481, 0.0
      %v6507 = vmax.f32 %v6482, 0.0
      %v6508 = vmax.f32 %v6483, 0.0
      %v6509 = vmax.f32 %v6484, 0.0
      %v6510 = vmax.f32 %v6485, 0.0
      %v6511 = vmax.f32 %v6486, 0.0
      %v6512 = vmax.f32 %v6487, 0.0
      %v6513 = vmax.f32 %v6488, 0.0
      %v6514 = vmax.f32 %v6489, 0.0
      %v6515 = vmax.f32 %v6490, 0.0
      %v6516 = vmax.f32 %v6491, 0.0
      %v6517 = vld [vmem:[%s7] sm:$0x1]
      %v6519 = vlaneseq
      %v6520 = vshrl.u32 %v6519, 7
      %v6521 = vsub.s32 0, %v6520
      %v6522 = vrot.slane %v6517, %v6521
      %v6524 = vmul.f32 %v6492, %v6522
      %v6525 = vmul.f32 %v6493, %v6522
      %v6526 = vmul.f32 %v6494, %v6522
      %v6527 = vmul.f32 %v6495, %v6522
      %v6528 = vmul.f32 %v6496, %v6522
      %v6529 = vmul.f32 %v6497, %v6522
      %v6530 = vmul.f32 %v6498, %v6522
      %v6531 = vmul.f32 %v6499, %v6522
      %v6532 = vmul.f32 %v6500, %v6522
      %v6533 = vmul.f32 %v6501, %v6522
      %v6534 = vmul.f32 %v6502, %v6522
      %v6535 = vmul.f32 %v6503, %v6522
      %v6536 = vmul.f32 %v6504, %v6522
      %v6537 = vmul.f32 %v6505, %v6522
      %v6538 = vmul.f32 %v6506, %v6522
      %v6539 = vmul.f32 %v6507, %v6522
      %v6540 = vmul.f32 %v6508, %v6522
      %v6541 = vmul.f32 %v6509, %v6522
      %v6542 = vmul.f32 %v6510, %v6522
      %v6543 = vmul.f32 %v6511, %v6522
      %v6544 = vmul.f32 %v6512, %v6522
      %v6545 = vmul.f32 %v6513, %v6522
      %v6546 = vmul.f32 %v6514, %v6522
      %v6547 = vmul.f32 %v6515, %v6522
      %v6548 = vmul.f32 %v6516, %v6522
      %vm6549 = vcmask 523264
      %v6550 = vsel %vm6549, %v6524, 0.0
      %6551 = vadd.xlane.f32.xlu0 %v6550
      %v6552 = vpop.xlane.xlu0 %6551
      %v6553 = vsel %vm6549, %v6525, 0.0
      %6554 = vadd.xlane.f32.xlu0 %v6553
      %v6555 = vpop.xlane.xlu0 %6554
      %v6556 = vsel %vm6549, %v6526, 0.0
      %6557 = vadd.xlane.f32.xlu0 %v6556
      %v6558 = vpop.xlane.xlu0 %6557
      %v6559 = vsel %vm6549, %v6527, 0.0
      %6560 = vadd.xlane.f32.xlu0 %v6559
      %v6561 = vpop.xlane.xlu0 %6560
      %v6562 = vsel %vm6549, %v6528, 0.0
      %6563 = vadd.xlane.f32.xlu0 %v6562
      %v6564 = vpop.xlane.xlu0 %6563
      %v6565 = vsel %vm6549, %v6529, 0.0
      %6566 = vadd.xlane.f32.xlu0 %v6565
      %v6567 = vpop.xlane.xlu0 %6566
      %v6568 = vsel %vm6549, %v6530, 0.0
      %6569 = vadd.xlane.f32.xlu0 %v6568
      %v6570 = vpop.xlane.xlu0 %6569
      %v6571 = vsel %vm6549, %v6531, 0.0
      %6572 = vadd.xlane.f32.xlu0 %v6571
      %v6573 = vpop.xlane.xlu0 %6572
      %v6574 = vsel %vm6549, %v6532, 0.0
      %6575 = vadd.xlane.f32.xlu0 %v6574
      %v6576 = vpop.xlane.xlu0 %6575
      %v6577 = vsel %vm6549, %v6533, 0.0
      %6578 = vadd.xlane.f32.xlu0 %v6577
      %v6579 = vpop.xlane.xlu0 %6578
      %v6580 = vsel %vm6549, %v6534, 0.0
      %6581 = vadd.xlane.f32.xlu0 %v6580
      %v6582 = vpop.xlane.xlu0 %6581
      %v6583 = vsel %vm6549, %v6535, 0.0
      %6584 = vadd.xlane.f32.xlu0 %v6583
      %v6585 = vpop.xlane.xlu0 %6584
      %v6586 = vsel %vm6549, %v6536, 0.0
      %6587 = vadd.xlane.f32.xlu0 %v6586
      %v6588 = vpop.xlane.xlu0 %6587
      %v6589 = vsel %vm6549, %v6537, 0.0
      %6590 = vadd.xlane.f32.xlu0 %v6589
      %v6591 = vpop.xlane.xlu0 %6590
      %v6592 = vsel %vm6549, %v6538, 0.0
      %6593 = vadd.xlane.f32.xlu0 %v6592
      %v6594 = vpop.xlane.xlu0 %6593
      %v6595 = vsel %vm6549, %v6539, 0.0
      %6596 = vadd.xlane.f32.xlu0 %v6595
      %v6597 = vpop.xlane.xlu0 %6596
      %v6598 = vsel %vm6549, %v6540, 0.0
      %6599 = vadd.xlane.f32.xlu0 %v6598
      %v6600 = vpop.xlane.xlu0 %6599
      %v6601 = vsel %vm6549, %v6541, 0.0
      %6602 = vadd.xlane.f32.xlu0 %v6601
      %v6603 = vpop.xlane.xlu0 %6602
      %v6604 = vsel %vm6549, %v6542, 0.0
      %6605 = vadd.xlane.f32.xlu0 %v6604
      %v6606 = vpop.xlane.xlu0 %6605
      %v6607 = vsel %vm6549, %v6543, 0.0
      %6608 = vadd.xlane.f32.xlu0 %v6607
      %v6609 = vpop.xlane.xlu0 %6608
      %v6610 = vsel %vm6549, %v6544, 0.0
      %6611 = vadd.xlane.f32.xlu0 %v6610
      %v6612 = vpop.xlane.xlu0 %6611
      %v6613 = vsel %vm6549, %v6545, 0.0
      %6614 = vadd.xlane.f32.xlu0 %v6613
      %v6615 = vpop.xlane.xlu0 %6614
      %v6616 = vsel %vm6549, %v6546, 0.0
      %6617 = vadd.xlane.f32.xlu0 %v6616
      %v6618 = vpop.xlane.xlu0 %6617
      %v6619 = vsel %vm6549, %v6547, 0.0
      %6620 = vadd.xlane.f32.xlu0 %v6619
      %v6621 = vpop.xlane.xlu0 %6620
      %v6622 = vsel %vm6549, %v6548, 0.0
      %6623 = vadd.xlane.f32.xlu0 %v6622
      %v6624 = vpop.xlane.xlu0 %6623
      %v6625 = vld [vmem:[#allocation2] sm:$0x1]
      %v6627 = vlaneseq
      %v6628 = vshrl.u32 %v6627, 7
      %v6629 = vsub.s32 0, %v6628
      %v6630 = vrot.slane %v6625, %v6629
      %v6632 = vadd.f32 %v6552, %v6630
      %v6633 = vadd.f32 %v6555, %v6630
      %v6634 = vadd.f32 %v6558, %v6630
      %v6635 = vadd.f32 %v6561, %v6630
      %v6636 = vadd.f32 %v6564, %v6630
      %v6637 = vadd.f32 %v6567, %v6630
      %v6638 = vadd.f32 %v6570, %v6630
      %v6639 = vadd.f32 %v6573, %v6630
      %v6640 = vadd.f32 %v6576, %v6630
      %v6641 = vadd.f32 %v6579, %v6630
      %v6642 = vadd.f32 %v6582, %v6630
      %v6643 = vadd.f32 %v6585, %v6630
      %v6644 = vadd.f32 %v6588, %v6630
      %v6645 = vadd.f32 %v6591, %v6630
      %v6646 = vadd.f32 %v6594, %v6630
      %v6647 = vadd.f32 %v6597, %v6630
      %v6648 = vadd.f32 %v6600, %v6630
      %v6649 = vadd.f32 %v6603, %v6630
      %v6650 = vadd.f32 %v6606, %v6630
      %v6651 = vadd.f32 %v6609, %v6630
      %v6652 = vadd.f32 %v6612, %v6630
      %v6653 = vadd.f32 %v6615, %v6630
      %v6654 = vadd.f32 %v6618, %v6630
      %v6655 = vadd.f32 %v6621, %v6630
      %v6656 = vadd.f32 %v6624, %v6630
      %vm6657 = vcmask 7168
      %6658 = vst.msk [vmem:[%s336] sm:$0xff] %vm6657, %v6632
      %6659 = vst.msk [vmem:[%s336 + $0x8] sm:$0xff] %vm6657, %v6633
      %6660 = vst.msk [vmem:[%s336 + $0x10] sm:$0xff] %vm6657, %v6634
      %6661 = vst.msk [vmem:[%s336 + $0x18] sm:$0xff] %vm6657, %v6635
      %6662 = vst.msk [vmem:[%s336 + $0x20] sm:$0xff] %vm6657, %v6636
      %6663 = vst.msk [vmem:[%s336 + $0x28] sm:$0xff] %vm6657, %v6637
      %6664 = vst.msk [vmem:[%s336 + $0x30] sm:$0xff] %vm6657, %v6638
      %6665 = vst.msk [vmem:[%s336 + $0x38] sm:$0xff] %vm6657, %v6639
      %6666 = vst.msk [vmem:[%s336 + $0x40] sm:$0xff] %vm6657, %v6640
      %6667 = vst.msk [vmem:[%s336 + $0x48] sm:$0xff] %vm6657, %v6641
      %6668 = vst.msk [vmem:[%s336 + $0x50] sm:$0xff] %vm6657, %v6642
      %6669 = vst.msk [vmem:[%s336 + $0x58] sm:$0xff] %vm6657, %v6643
      %6670 = vst.msk [vmem:[%s336 + $0x60] sm:$0xff] %vm6657, %v6644
      %6671 = vst.msk [vmem:[%s336 + $0x68] sm:$0xff] %vm6657, %v6645
      %6672 = vst.msk [vmem:[%s336 + $0x70] sm:$0xff] %vm6657, %v6646
      %6673 = vst.msk [vmem:[%s336 + $0x78] sm:$0xff] %vm6657, %v6647
      %6674 = vst.msk [vmem:[%s336 + $0x80] sm:$0xff] %vm6657, %v6648
      %6675 = vst.msk [vmem:[%s336 + $0x88] sm:$0xff] %vm6657, %v6649
      %6676 = vst.msk [vmem:[%s336 + $0x90] sm:$0xff] %vm6657, %v6650
      %6677 = vst.msk [vmem:[%s336 + $0x98] sm:$0xff] %vm6657, %v6651
      %6678 = vst.msk [vmem:[%s336 + $0xa0] sm:$0xff] %vm6657, %v6652
      %6679 = vst.msk [vmem:[%s336 + $0xa8] sm:$0xff] %vm6657, %v6653
      %6680 = vst.msk [vmem:[%s336 + $0xb0] sm:$0xff] %vm6657, %v6654
      %6681 = vst.msk [vmem:[%s336 + $0xb8] sm:$0xff] %vm6657, %v6655
      %6682 = vst.msk [vmem:[%s336 + $0xc0] sm:$0xff] %vm6657, %v6656
      %s6683 = smul.u32 25, %s22
      %p6684 = scmp.lt.s32.totalorder %s6683, 49
      %s6685 = scalar_select %p6684, %s6683, 49
      %s6686 = smul.addr %s6685, 8
      %s6687 = scalar_lea.vmem %s9, %s6686
      // Predicated region
      $region57: #{_lambda_.2} parent=55 // pred_check
        %p6688 = pneg %p234
      $region58: #{_lambda_.2} parent=55 // pred_check_branch
        %6690 = sbr.rel (%p6688) target = $region60
      $region59: #{_lambda_.2} parent=55 // pred_region
        %s6691 = smul.u32 25, %s22
      $region60: #{_lambda_.2} parent=55 // pred_fallthru
        _
    $region56: #{_lambda_.2} parent=5 // pred_fallthru
      _
    %p6692 = scmp.le.s32.totalorder 2, %s17
    // Predicated region
    $region61: #{_lambda_.2} parent=5 // pred_check
      %p6693 = pneg %p6692
    $region62: #{_lambda_.2} parent=5 // pred_check_branch
      %6695 = sbr.rel (%p6693) target = $region64
    $region63: #{_lambda_.2} parent=5 // pred_region
      %s6696 = ssub.s32 %s17, 2
      // Predicated region
      $region65: #{_lambda_.2} parent=63 // pred_check
        %p6697 = pneg %p240
      $region66: #{_lambda_.2} parent=63 // pred_check_branch
        %6699 = sbr.rel (%p6697) target = $region68
      $region67: #{_lambda_.2} parent=63 // pred_region
        %s6700 = smul.u32 25, %s23
        %p6701 = scmp.lt.s32.totalorder %s6700, 49
        %s6702 = scalar_select %p6701, %s6700, 49
        %s6703 = smul.addr %s6702, 8
        %s6704 = scalar_lea.vmem %s9, %s6703
      $region68: #{_lambda_.2} parent=63 // pred_fallthru
        _
    $region64: #{_lambda_.2} parent=5 // pred_fallthru
      _
  $region6: #{_lambda_.2} parent=0 // loop_footer
    %s21 = sadd.s32 1, %s17
  $region7: #{_lambda_.2} parent=0 // loop_footer_branch
    %16 = sbr.rel target = $region3
  $region8: #{_lambda_.2} parent=0 // loop_exit
    _

// kernel: _lambda_.3
$region0: #{_lambda_.3}
  #allocation0 [shape = 'u32[]', space=smem, size = 0x4, offset = 0x4, fixed_abs, tag = 'smem constant byte address 0x4 - core index']
  #allocation1 [shape = 'u32[144,128]{1,0:T(1,128)}', space=vmem, size = 0x12000, scoped, tag = 'internal scratch']
  %s0 = inlined_call_operand.vmem [shape: f32[320,128], index: 0, kind: input, shape index: {}]
  %s1 = inlined_call_operand.vmem [shape: f32[128,128], index: 1, kind: input, shape index: {}]
  %s2 = inlined_call_operand.vmem [shape: f32[128,320], index: 2, kind: input, shape index: {}]
  %s3 = inlined_call_operand.vmem [shape: f32[320,320], index: 3, kind: output, shape index: {}]
  %s4 = sld [smem:[#allocation0]]
  $region45: #{_lambda_.3} parent=0
    _
  %s6 = ssub.s32 1, %s4
  %s7 = scalar_select 0, %s6, %s4
  loop: start=0, step=1, limit=4
  $region2: #{_lambda_.3} parent=0 // loop_pre_header
    _
  $region3: #{_lambda_.3} parent=0 // loop_header
    %s9 = sphi 0, %s13
    %p10 = scmp.ge.s32.totalorder %s9, 4
    %s19 = sphi 0, %s21
    %s22 = sphi 0, %s19
    %s23 = sphi 0, %s22
    %s39 = sphi 0, %s23
    %s43 = sphi 0, %s43
    %s45 = sphi 0, %s43
    %s46 = sphi 0, %s45
    %s60 = sphi 0, %s46
    %s64 = sphi 0, %s64
    %s66 = sphi 0, %s64
    %s67 = sphi 0, %s66
    %s81 = sphi 0, %s67
    %s87 = sphi 0, %s89
    %s90 = sphi 0, %s87
    %s91 = sphi 0, %s90
    %s107 = sphi 0, %s91
  $region4: #{_lambda_.3} parent=0 // loop_header_branch
    %12 = sbr.rel (%p10) target = $region8
  $region5: #{_lambda_.3} parent=0 // loop_body
    %s14 = ssub.s32 %s9, 1
    %s15 = ssub.s32 %s9, 2
    %s16 = sadd.s32 %s9, 1
    %s17 = ssub.s32 %s9, %s16
    %p18 = scmp.eq.s32.totalorder %s17, 0
    %s20 = sadd.s32 %s19, 1
    %s21 = scalar_select %p18, %s19, %s20
    %p24 = pneg %p18
    %p25 = scmp.eq.s32.totalorder %s9, 1
    %p26 = por %p24, %p25
    %p27 = scmp.ne.s32.totalorder %s19, %s22
    %p28 = scmp.eq.s32.totalorder %s9, 0
    %p29 = por %p27, %p28
    %p30 = scmp.ne.s32.totalorder %s19, %s22
    %p31 = scmp.eq.s32.totalorder %s14, 1
    %p32 = por %p30, %p31
    %p33 = scmp.ne.s32.totalorder %s22, %s23
    %p34 = scmp.eq.s32.totalorder %s14, 0
    %p35 = por %p33, %p34
    %p36 = scmp.ne.s32.totalorder %s22, %s23
    %p37 = scmp.eq.s32.totalorder %s15, 1
    %p38 = por %p36, %p37
    %p40 = scmp.ne.s32.totalorder %s23, %s39
    %p41 = scmp.eq.s32.totalorder %s15, 0
    %p42 = por %p40, %p41
    %s44 = sadd.s32 %s43, 1
    %p47 = scmp.eq.s32.totalorder %s9, 1
    %p48 = scmp.ne.s32.totalorder %s43, %s45
    %p49 = scmp.eq.s32.totalorder %s9, 0
    %p50 = por %p48, %p49
    %p51 = scmp.ne.s32.totalorder %s43, %s45
    %p52 = scmp.eq.s32.totalorder %s14, 1
    %p53 = por %p51, %p52
    %p54 = scmp.ne.s32.totalorder %s45, %s46
    %p55 = scmp.eq.s32.totalorder %s14, 0
    %p56 = por %p54, %p55
    %p57 = scmp.ne.s32.totalorder %s45, %s46
    %p58 = scmp.eq.s32.totalorder %s15, 1
    %p59 = por %p57, %p58
    %p61 = scmp.ne.s32.totalorder %s46, %s60
    %p62 = scmp.eq.s32.totalorder %s15, 0
    %p63 = por %p61, %p62
    %s65 = sadd.s32 %s64, 1
    %p68 = scmp.eq.s32.totalorder %s9, 1
    %p69 = scmp.ne.s32.totalorder %s64, %s66
    %p70 = scmp.eq.s32.totalorder %s9, 0
    %p71 = por %p69, %p70
    %p72 = scmp.ne.s32.totalorder %s64, %s66
    %p73 = scmp.eq.s32.totalorder %s14, 1
    %p74 = por %p72, %p73
    %p75 = scmp.ne.s32.totalorder %s66, %s67
    %p76 = scmp.eq.s32.totalorder %s14, 0
    %p77 = por %p75, %p76
    %p78 = scmp.ne.s32.totalorder %s66, %s67
    %p79 = scmp.eq.s32.totalorder %s15, 1
    %p80 = por %p78, %p79
    %p82 = scmp.ne.s32.totalorder %s67, %s81
    %p83 = scmp.eq.s32.totalorder %s15, 0
    %p84 = por %p82, %p83
    %s85 = ssub.s32 %s9, %s16
    %p86 = scmp.eq.s32.totalorder %s85, 0
    %s88 = sadd.s32 %s87, 1
    %s89 = scalar_select %p86, %s87, %s88
    %p92 = pneg %p86
    %p93 = scmp.eq.s32.totalorder %s9, 1
    %p94 = por %p92, %p93
    %p95 = scmp.ne.s32.totalorder %s87, %s90
    %p96 = scmp.eq.s32.totalorder %s9, 0
    %p97 = por %p95, %p96
    %p98 = scmp.ne.s32.totalorder %s87, %s90
    %p99 = scmp.eq.s32.totalorder %s14, 1
    %p100 = por %p98, %p99
    %p101 = scmp.ne.s32.totalorder %s90, %s91
    %p102 = scmp.eq.s32.totalorder %s14, 0
    %p103 = por %p101, %p102
    %p104 = scmp.ne.s32.totalorder %s90, %s91
    %p105 = scmp.eq.s32.totalorder %s15, 1
    %p106 = por %p104, %p105
    %p108 = scmp.ne.s32.totalorder %s91, %s107
    %p109 = scmp.eq.s32.totalorder %s15, 0
    %p110 = por %p108, %p109
    %p111 = scmp.le.s32.totalorder 1, %s9
    %p112 = scmp.lt.s32.totalorder %s9, 3
    %p113 = pnand %p111, %p112
    %p114 = pneg %p113
    // Predicated region
    $region9: #{_lambda_.3} parent=5 // pred_check
      _
    $region10: #{_lambda_.3} parent=5 // pred_check_branch
      %116 = sbr.rel (%p113) target = $region12
    $region11: #{_lambda_.3} parent=5 // pred_region
      %s117 = ssub.s32 %s9, 1
      // Predicated region
      $region13: #{_lambda_.3} parent=11 // pred_check
        %p118 = pneg %p56
      $region14: #{_lambda_.3} parent=11 // pred_check_branch
        %120 = sbr.rel (%p118) target = $region16
      $region15: #{_lambda_.3} parent=11 // pred_region
        _
      $region16: #{_lambda_.3} parent=11 // pred_fallthru
        _
      // Predicated region
      $region17: #{_lambda_.3} parent=11 // pred_check
        %p121 = pneg %p77
      $region18: #{_lambda_.3} parent=11 // pred_check_branch
        %123 = sbr.rel (%p121) target = $region20
      $region19: #{_lambda_.3} parent=11 // pred_region
        _
      $region20: #{_lambda_.3} parent=11 // pred_fallthru
        _
    $region12: #{_lambda_.3} parent=5 // pred_fallthru
      _
    %p124 = scmp.lt.s32.totalorder %s9, 2
    // Predicated region
    $region21: #{_lambda_.3} parent=5 // pred_check
      %p125 = pneg %p124
    $region22: #{_lambda_.3} parent=5 // pred_check_branch
      %127 = sbr.rel (%p125) target = $region24
    $region23: #{_lambda_.3} parent=5 // pred_region
      // Predicated region
      $region25: #{_lambda_.3} parent=23 // pred_check
        %p128 = pneg %p29
      $region26: #{_lambda_.3} parent=23 // pred_check_branch
        %130 = sbr.rel (%p128) target = $region28
      $region27: #{_lambda_.3} parent=23 // pred_region
        %s131 = smul.u32 20, %s9
        %p132 = scmp.lt.s32.totalorder %s131, 39
        %s133 = scalar_select %p132, %s131, 39
        %s134 = smul.addr %s133, 8
        %s135 = scalar_lea.vmem %s0, %s134
        %s136 = smul.u32 20, %s9
      $region28: #{_lambda_.3} parent=23 // pred_fallthru
        _
    $region24: #{_lambda_.3} parent=5 // pred_fallthru
      _
    %p137 = scmp.le.s32.totalorder 1, %s9
    %p138 = scmp.lt.s32.totalorder %s9, 3
    %p139 = pnand %p137, %p138
    %p140 = pneg %p139
    // Predicated region
    $region29: #{_lambda_.3} parent=5 // pred_check
      _
    $region30: #{_lambda_.3} parent=5 // pred_check_branch
      %142 = sbr.rel (%p139) target = $region32
    $region31: #{_lambda_.3} parent=5 // pred_region
      %s143 = ssub.s32 %s9, 1
      %s144 = smul.u32 20, %s14
      %p145 = scmp.lt.s32.totalorder %s144, 39
      %s146 = scalar_select %p145, %s144, 39
      %s147 = smul.addr %s146, 8
      %s148 = scalar_lea.vmem %s0, %s147
      %p149 = pneg %p35
      %p150 = pneg %p32
      %p151 = pneg %p56
      %p152 = pneg %p53
      %p153 = pneg %p77
      %p154 = pneg %p74
      %p155 = pneg %p103
      %p156 = pneg %p100
      %s157 = smul.u32 20, %s14
      %p158 = scmp.lt.s32.totalorder %s157, 39
      %s159 = scalar_select %p158, %s157, 39
      %s160 = smul.addr %s159, 3
      %s161 = smul.addr %s160, 8
      %s162 = scalar_lea.vmem %s3, %s161
      %s163 = smul.u32 20, %s14
      %p164 = scmp.lt.s32.totalorder %s163, 39
      %s165 = scalar_select %p164, %s163, 39
      %s166 = smul.addr %s165, 8
      %s167 = scalar_lea.vmem %s0, %s166
      %s168 = smul.u32 20, %s14
      %s169 = smul.u32 20, %s14
      %p170 = scmp.lt.s32.totalorder %s169, 39
      %s171 = scalar_select %p170, %s169, 39
      %s172 = smul.addr %s171, 3
      %s173 = smul.addr %s172, 8
      %s174 = scalar_lea.vmem %s3, %s173
      %s175 = smul.u32 20, %s14
      %v176 = vld [vmem:[%s167] sm:$0xff]
      %v177 = vld [vmem:[%s167 + $0x8] sm:$0xff]
      %v178 = vld [vmem:[%s167 + $0x10] sm:$0xff]
      %v179 = vld [vmem:[%s167 + $0x18] sm:$0xff]
      %v180 = vld [vmem:[%s167 + $0x20] sm:$0xff]
      %v181 = vld [vmem:[%s167 + $0x28] sm:$0xff]
      %v182 = vld [vmem:[%s167 + $0x30] sm:$0xff]
      %v183 = vld [vmem:[%s167 + $0x38] sm:$0xff]
      %v184 = vld [vmem:[%s167 + $0x40] sm:$0xff]
      %v185 = vld [vmem:[%s167 + $0x48] sm:$0xff]
      %v186 = vld [vmem:[%s167 + $0x50] sm:$0xff]
      %v187 = vld [vmem:[%s167 + $0x58] sm:$0xff]
      %v188 = vld [vmem:[%s167 + $0x60] sm:$0xff]
      %v189 = vld [vmem:[%s167 + $0x68] sm:$0xff]
      %v190 = vld [vmem:[%s167 + $0x70] sm:$0xff]
      %v191 = vld [vmem:[%s167 + $0x78] sm:$0xff]
      %v192 = vld [vmem:[%s167 + $0x80] sm:$0xff]
      %v193 = vld [vmem:[%s167 + $0x88] sm:$0xff]
      %v194 = vld [vmem:[%s167 + $0x90] sm:$0xff]
      %v195 = vld [vmem:[%s167 + $0x98] sm:$0xff]
      %v196 = vld [vmem:[%s1] sm:$0xff]
      %v197 = vld [vmem:[%s1 + $0x8] sm:$0xff]
      %v198 = vld [vmem:[%s1 + $0x10] sm:$0xff]
      %v199 = vld [vmem:[%s1 + $0x18] sm:$0xff]
      %v200 = vld [vmem:[%s1 + $0x20] sm:$0xff]
      %v201 = vld [vmem:[%s1 + $0x28] sm:$0xff]
      %v202 = vld [vmem:[%s1 + $0x30] sm:$0xff]
      %v203 = vld [vmem:[%s1 + $0x38] sm:$0xff]
      %v204 = vld [vmem:[%s1 + $0x40] sm:$0xff]
      %v205 = vld [vmem:[%s1 + $0x48] sm:$0xff]
      %v206 = vld [vmem:[%s1 + $0x50] sm:$0xff]
      %v207 = vld [vmem:[%s1 + $0x58] sm:$0xff]
      %v208 = vld [vmem:[%s1 + $0x60] sm:$0xff]
      %v209 = vld [vmem:[%s1 + $0x68] sm:$0xff]
      %v210 = vld [vmem:[%s1 + $0x70] sm:$0xff]
      %v211 = vld [vmem:[%s1 + $0x78] sm:$0xff]
      %212 = vmatprep.subr.mxu0 0.0
      %213 = vmatpush1.msra.mxu0 %v196
      %214 = vmatprep.subr.mxu0 0.0
      %215 = vmatpush1.msra.mxu0 %v197
      %216 = vmatprep.subr.mxu0 0.0
      %217 = vmatpush1.msra.mxu0 %v198
      %218 = vmatprep.subr.mxu0 0.0
      %219 = vmatpush1.msra.mxu0 %v199
      %220 = vmatprep.subr.mxu0 0.0
      %221 = vmatpush1.msra.mxu0 %v200
      %222 = vmatprep.subr.mxu0 0.0
      %223 = vmatpush1.msra.mxu0 %v201
      %224 = vmatprep.subr.mxu0 0.0
      %225 = vmatpush1.msra.mxu0 %v202
      %226 = vmatprep.subr.mxu0 0.0
      %227 = vmatpush1.msra.mxu0 %v203
      %228 = vmatprep.subr.mxu0 0.0
      %229 = vmatpush1.msra.mxu0 %v204
      %230 = vmatprep.subr.mxu0 0.0
      %231 = vmatpush1.msra.mxu0 %v205
      %232 = vmatprep.subr.mxu0 0.0
      %233 = vmatpush1.msra.mxu0 %v206
      %234 = vmatprep.subr.mxu0 0.0
      %235 = vmatpush1.msra.mxu0 %v207
      %236 = vmatprep.subr.mxu0 0.0
      %237 = vmatpush1.msra.mxu0 %v208
      %238 = vmatprep.subr.mxu0 0.0
      %239 = vmatpush1.msra.mxu0 %v209
      %240 = vmatprep.subr.mxu0 0.0
      %241 = vmatpush1.msra.mxu0 %v210
      %242 = vmatprep.subr.mxu0 0.0
      %243 = vmatpush1.msra.mxu0 %v211
      %244 = vmatprep.subr.mxu0 0.0
      %245 = vmatpush1.msra.mxu0 0.0
      %246 = vmatprep.subr.mxu0 0.0
      %247 = vmatpush1.msra.mxu0 0.0
      %248 = vmatprep.subr.mxu0 0.0
      %249 = vmatpush1.msra.mxu0 0.0
      %250 = vmatprep.subr.mxu0 0.0
      %251 = vmatpush1.msra.mxu0 0.0
      %252 = vmatprep.subr.mxu0 0.0
      %253 = vmatpush1.msra.mxu0 0.0
      %254 = vmatprep.subr.mxu0 0.0
      %255 = vmatpush1.msra.mxu0 0.0
      %256 = vmatprep.subr.mxu0 0.0
      %257 = vmatpush1.msra.mxu0 0.0
      %258 = vmatprep.subr.mxu0 0.0
      %259 = vmatpush1.msra.mxu0 0.0
      %260 = vmatprep.subr.mxu0 0.0
      %261 = vmatpush1.msra.mxu0 0.0
      %262 = vmatprep.subr.mxu0 0.0
      %263 = vmatpush1.msra.mxu0 0.0
      %264 = vmatprep.subr.mxu0 0.0
      %265 = vmatpush1.msra.mxu0 0.0
      %266 = vmatprep.subr.mxu0 0.0
      %267 = vmatpush1.msra.mxu0 0.0
      %268 = vmatprep.subr.mxu0 0.0
      %269 = vmatpush1.msra.mxu0 0.0
      %270 = vmatprep.subr.mxu0 0.0
      %271 = vmatpush1.msra.mxu0 0.0
      %272 = vmatprep.subr.mxu0 0.0
      %273 = vmatpush1.msra.mxu0 0.0
      %274 = vmatprep.subr.mxu0 0.0
      %275 = vmatpush1.msra.mxu0 0.0
      %276 = vmatprep.mubr.f32.mxu0 0.0
      %277 = vmatmul.mubr.f32.gmra.mrb[0].mxu0 %v176
      %v278 = vpop.f32.mrb[0].mxu0
      %v279 = vadd.f32 0.0, %v278
      %v280 = vpop.f32.mrb[0].mxu0
      %281 = vmatprep.mubr.f32.mxu0 0.0
      %282 = vmatmul.mubr.f32.gmra.mrb[0].mxu0 %v177
      %v283 = vpop.f32.mrb[0].mxu0
      %v284 = vadd.f32 0.0, %v283
      %v285 = vpop.f32.mrb[0].mxu0
      %286 = vmatprep.mubr.f32.mxu0 0.0
      %287 = vmatmul.mubr.f32.gmra.mrb[0].mxu0 %v178
      %v288 = vpop.f32.mrb[0].mxu0
      %v289 = vadd.f32 0.0, %v288
      %v290 = vpop.f32.mrb[0].mxu0
      %291 = vmatprep.mubr.f32.mxu0 0.0
      %292 = vmatmul.mubr.f32.gmra.mrb[0].mxu0 %v179
      %v293 = vpop.f32.mrb[0].mxu0
      %v294 = vadd.f32 0.0, %v293
      %v295 = vpop.f32.mrb[0].mxu0
      %296 = vmatprep.mubr.f32.mxu0 0.0
      %297 = vmatmul.mubr.f32.gmra.mrb[0].mxu0 %v180
      %v298 = vpop.f32.mrb[0].mxu0
      %v299 = vadd.f32 0.0, %v298
      %v300 = vpop.f32.mrb[0].mxu0
      %301 = vmatprep.mubr.f32.mxu0 0.0
      %302 = vmatmul.mubr.f32.gmra.mrb[0].mxu0 %v181
      %v303 = vpop.f32.mrb[0].mxu0
      %v304 = vadd.f32 0.0, %v303
      %v305 = vpop.f32.mrb[0].mxu0
      %306 = vmatprep.mubr.f32.mxu0 0.0
      %307 = vmatmul.mubr.f32.gmra.mrb[0].mxu0 %v182
      %v308 = vpop.f32.mrb[0].mxu0
      %v309 = vadd.f32 0.0, %v308
      %v310 = vpop.f32.mrb[0].mxu0
      %311 = vmatprep.mubr.f32.mxu0 0.0
      %312 = vmatmul.mubr.f32.gmra.mrb[0].mxu0 %v183
      %v313 = vpop.f32.mrb[0].mxu0
      %v314 = vadd.f32 0.0, %v313
      %v315 = vpop.f32.mrb[0].mxu0
      %316 = vmatprep.mubr.f32.mxu0 0.0
      %317 = vmatmul.mubr.f32.gmra.mrb[0].mxu0 %v184
      %v318 = vpop.f32.mrb[0].mxu0
      %v319 = vadd.f32 0.0, %v318
      %v320 = vpop.f32.mrb[0].mxu0
      %321 = vmatprep.mubr.f32.mxu0 0.0
      %322 = vmatmul.mubr.f32.gmra.mrb[0].mxu0 %v185
      %v323 = vpop.f32.mrb[0].mxu0
      %v324 = vadd.f32 0.0, %v323
      %v325 = vpop.f32.mrb[0].mxu0
      %326 = vmatprep.mubr.f32.mxu0 0.0
      %327 = vmatmul.mubr.f32.gmra.mrb[0].mxu0 %v186
      %v328 = vpop.f32.mrb[0].mxu0
      %v329 = vadd.f32 0.0, %v328
      %v330 = vpop.f32.mrb[0].mxu0
      %331 = vmatprep.mubr.f32.mxu0 0.0
      %332 = vmatmul.mubr.f32.gmra.mrb[0].mxu0 %v187
      %v333 = vpop.f32.mrb[0].mxu0
      %v334 = vadd.f32 0.0, %v333
      %v335 = vpop.f32.mrb[0].mxu0
      %336 = vmatprep.mubr.f32.mxu0 0.0
      %337 = vmatmul.mubr.f32.gmra.mrb[0].mxu0 %v188
      %v338 = vpop.f32.mrb[0].mxu0
      %v339 = vadd.f32 0.0, %v338
      %v340 = vpop.f32.mrb[0].mxu0
      %341 = vmatprep.mubr.f32.mxu0 0.0
      %342 = vmatmul.mubr.f32.gmra.mrb[0].mxu0 %v189
      %v343 = vpop.f32.mrb[0].mxu0
      %v344 = vadd.f32 0.0, %v343
      %v345 = vpop.f32.mrb[0].mxu0
      %346 = vmatprep.mubr.f32.mxu0 0.0
      %347 = vmatmul.mubr.f32.gmra.mrb[0].mxu0 %v190
      %v348 = vpop.f32.mrb[0].mxu0
      %v349 = vadd.f32 0.0, %v348
      %v350 = vpop.f32.mrb[0].mxu0
      %351 = vmatprep.mubr.f32.mxu0 0.0
      %352 = vmatmul.mubr.f32.gmra.mrb[0].mxu0 %v191
      %v353 = vpop.f32.mrb[0].mxu0
      %v354 = vadd.f32 0.0, %v353
      %v355 = vpop.f32.mrb[0].mxu0
      %356 = vmatprep.mubr.f32.mxu0 0.0
      %357 = vmatmul.mubr.f32.gmra.mrb[0].mxu0 %v192
      %v358 = vpop.f32.mrb[0].mxu0
      %v359 = vadd.f32 0.0, %v358
      %v360 = vpop.f32.mrb[0].mxu0
      %361 = vmatprep.mubr.f32.mxu0 0.0
      %362 = vmatmul.mubr.f32.gmra.mrb[0].mxu0 %v193
      %v363 = vpop.f32.mrb[0].mxu0
      %v364 = vadd.f32 0.0, %v363
      %v365 = vpop.f32.mrb[0].mxu0
      %366 = vmatprep.mubr.f32.mxu0 0.0
      %367 = vmatmul.mubr.f32.gmra.mrb[0].mxu0 %v194
      %v368 = vpop.f32.mrb[0].mxu0
      %v369 = vadd.f32 0.0, %v368
      %v370 = vpop.f32.mrb[0].mxu0
      %371 = vmatprep.mubr.f32.mxu0 0.0
      %372 = vmatmul.mubr.f32.gmra.mrb[0].mxu0 %v195
      %v373 = vpop.f32.mrb[0].mxu0
      %v374 = vadd.f32 0.0, %v373
      %v375 = vpop.f32.mrb[0].mxu0
      %376 = vdwg.mxu0
      %v377 = vld [vmem:[%s2] sm:$0xff]
      %v378 = vld [vmem:[%s2 + $0x8] sm:$0xff]
      %v379 = vld [vmem:[%s2 + $0x10] sm:$0xff]
      %v380 = vld [vmem:[%s2 + $0x18] sm:$0xff]
      %v381 = vld [vmem:[%s2 + $0x20] sm:$0xff]
      %v382 = vld [vmem:[%s2 + $0x28] sm:$0xff]
      %v383 = vld [vmem:[%s2 + $0x30] sm:$0xff]
      %v384 = vld [vmem:[%s2 + $0x38] sm:$0xff]
      %v385 = vld [vmem:[%s2 + $0x40] sm:$0xff]
      %v386 = vld [vmem:[%s2 + $0x48] sm:$0xff]
      %v387 = vld [vmem:[%s2 + $0x50] sm:$0xff]
      %v388 = vld [vmem:[%s2 + $0x58] sm:$0xff]
      %v389 = vld [vmem:[%s2 + $0x60] sm:$0xff]
      %v390 = vld [vmem:[%s2 + $0x68] sm:$0xff]
      %v391 = vld [vmem:[%s2 + $0x70] sm:$0xff]
      %v392 = vld [vmem:[%s2 + $0x78] sm:$0xff]
      %v393 = vld [vmem:[%s2 + $0x80] sm:$0xff]
      %v394 = vld [vmem:[%s2 + $0x88] sm:$0xff]
      %v395 = vld [vmem:[%s2 + $0x90] sm:$0xff]
      %v396 = vld [vmem:[%s2 + $0x98] sm:$0xff]
      %v397 = vld [vmem:[%s2 + $0xa0] sm:$0xff]
      %v398 = vld [vmem:[%s2 + $0xa8] sm:$0xff]
      %v399 = vld [vmem:[%s2 + $0xb0] sm:$0xff]
      %v400 = vld [vmem:[%s2 + $0xb8] sm:$0xff]
      %v401 = vld [vmem:[%s2 + $0xc0] sm:$0xff]
      %v402 = vld [vmem:[%s2 + $0xc8] sm:$0xff]
      %v403 = vld [vmem:[%s2 + $0xd0] sm:$0xff]
      %v404 = vld [vmem:[%s2 + $0xd8] sm:$0xff]
      %v405 = vld [vmem:[%s2 + $0xe0] sm:$0xff]
      %v406 = vld [vmem:[%s2 + $0xe8] sm:$0xff]
      %v407 = vld [vmem:[%s2 + $0xf0] sm:$0xff]
      %v408 = vld [vmem:[%s2 + $0xf8] sm:$0xff]
      %v409 = vld [vmem:[%s2 + $0x100] sm:$0xff]
      %v410 = vld [vmem:[%s2 + $0x108] sm:$0xff]
      %v411 = vld [vmem:[%s2 + $0x110] sm:$0xff]
      %v412 = vld [vmem:[%s2 + $0x118] sm:$0xff]
      %v413 = vld [vmem:[%s2 + $0x120] sm:$0xff]
      %v414 = vld [vmem:[%s2 + $0x128] sm:$0xff]
      %v415 = vld [vmem:[%s2 + $0x130] sm:$0xff]
      %v416 = vld [vmem:[%s2 + $0x138] sm:$0xff]
      %v417 = vld [vmem:[%s2 + $0x140] sm:$0xff]
      %v418 = vld [vmem:[%s2 + $0x148] sm:$0xff]
      %v419 = vld [vmem:[%s2 + $0x150] sm:$0xff]
      %v420 = vld [vmem:[%s2 + $0x158] sm:$0xff]
      %v421 = vld [vmem:[%s2 + $0x160] sm:$0xff]
      %v422 = vld [vmem:[%s2 + $0x168] sm:$0xff]
      %v423 = vld [vmem:[%s2 + $0x170] sm:$0xff]
      %v424 = vld [vmem:[%s2 + $0x178] sm:$0xff]
      %425 = vmatprep.subr.mxu0 %v378
      %426 = vmatpush1.msra.mxu0 %v377
      %427 = vmatprep.subr.mxu0 %v381
      %428 = vmatpush1.msra.mxu0 %v380
      %429 = vmatprep.subr.mxu0 %v384
      %430 = vmatpush1.msra.mxu0 %v383
      %431 = vmatprep.subr.mxu0 %v387
      %432 = vmatpush1.msra.mxu0 %v386
      %433 = vmatprep.subr.mxu0 %v390
      %434 = vmatpush1.msra.mxu0 %v389
      %435 = vmatprep.subr.mxu0 %v393
      %436 = vmatpush1.msra.mxu0 %v392
      %437 = vmatprep.subr.mxu0 %v396
      %438 = vmatpush1.msra.mxu0 %v395
      %439 = vmatprep.subr.mxu0 %v399
      %440 = vmatpush1.msra.mxu0 %v398
      %441 = vmatprep.subr.mxu0 %v402
      %442 = vmatpush1.msra.mxu0 %v401
      %443 = vmatprep.subr.mxu0 %v405
      %444 = vmatpush1.msra.mxu0 %v404
      %445 = vmatprep.subr.mxu0 %v408
      %446 = vmatpush1.msra.mxu0 %v407
      %447 = vmatprep.subr.mxu0 %v411
      %448 = vmatpush1.msra.mxu0 %v410
      %449 = vmatprep.subr.mxu0 %v414
      %450 = vmatpush1.msra.mxu0 %v413
      %451 = vmatprep.subr.mxu0 %v417
      %452 = vmatpush1.msra.mxu0 %v416
      %453 = vmatprep.subr.mxu0 %v420
      %454 = vmatpush1.msra.mxu0 %v419
      %455 = vmatprep.subr.mxu0 %v423
      %456 = vmatpush1.msra.mxu0 %v422
      %457 = vmatprep.subr.mxu0 0.0
      %458 = vmatpush1.msra.mxu0 0.0
      %459 = vmatprep.subr.mxu0 0.0
      %460 = vmatpush1.msra.mxu0 0.0
      %461 = vmatprep.subr.mxu0 0.0
      %462 = vmatpush1.msra.mxu0 0.0
      %463 = vmatprep.subr.mxu0 0.0
      %464 = vmatpush1.msra.mxu0 0.0
      %465 = vmatprep.subr.mxu0 0.0
      %466 = vmatpush1.msra.mxu0 0.0
      %467 = vmatprep.subr.mxu0 0.0
      %468 = vmatpush1.msra.mxu0 0.0
      %469 = vmatprep.subr.mxu0 0.0
      %470 = vmatpush1.msra.mxu0 0.0
      %471 = vmatprep.subr.mxu0 0.0
      %472 = vmatpush1.msra.mxu0 0.0
      %473 = vmatprep.subr.mxu0 0.0
      %474 = vmatpush1.msra.mxu0 0.0
      %475 = vmatprep.subr.mxu0 0.0
      %476 = vmatpush1.msra.mxu0 0.0
      %477 = vmatprep.subr.mxu0 0.0
      %478 = vmatpush1.msra.mxu0 0.0
      %479 = vmatprep.subr.mxu0 0.0
      %480 = vmatpush1.msra.mxu0 0.0
      %481 = vmatprep.subr.mxu0 0.0
      %482 = vmatpush1.msra.mxu0 0.0
      %483 = vmatprep.subr.mxu0 0.0
      %484 = vmatpush1.msra.mxu0 0.0
      %485 = vmatprep.subr.mxu0 0.0
      %486 = vmatpush1.msra.mxu0 0.0
      %487 = vmatprep.subr.mxu0 0.0
      %488 = vmatpush1.msra.mxu0 0.0
      %489 = vmatprep.mubr.f32.mxu0 0.0
      %490 = vmatmul.mubr.f32.gmra.mrb[0].mxu0 %v279
      %v491 = vpop.f32.mrb[0].mxu0
      %v492 = vadd.f32 0.0, %v491
      %v493 = vpop.f32.mrb[0].mxu0
      %v494 = vadd.f32 0.0, %v493
      %495 = vmatprep.mubr.f32.mxu0 0.0
      %496 = vmatmul.mubr.f32.gmra.mrb[0].mxu0 %v284
      %v497 = vpop.f32.mrb[0].mxu0
      %v498 = vadd.f32 0.0, %v497
      %v499 = vpop.f32.mrb[0].mxu0
      %v500 = vadd.f32 0.0, %v499
      %501 = vmatprep.mubr.f32.mxu0 0.0
      %502 = vmatmul.mubr.f32.gmra.mrb[0].mxu0 %v289
      %v503 = vpop.f32.mrb[0].mxu0
      %v504 = vadd.f32 0.0, %v503
      %v505 = vpop.f32.mrb[0].mxu0
      %v506 = vadd.f32 0.0, %v505
      %507 = vmatprep.mubr.f32.mxu0 0.0
      %508 = vmatmul.mubr.f32.gmra.mrb[0].mxu0 %v294
      %v509 = vpop.f32.mrb[0].mxu0
      %v510 = vadd.f32 0.0, %v509
      %v511 = vpop.f32.mrb[0].mxu0
      %v512 = vadd.f32 0.0, %v511
      %513 = vmatprep.mubr.f32.mxu0 0.0
      %514 = vmatmul.mubr.f32.gmra.mrb[0].mxu0 %v299
      %v515 = vpop.f32.mrb[0].mxu0
      %v516 = vadd.f32 0.0, %v515
      %v517 = vpop.f32.mrb[0].mxu0
      %v518 = vadd.f32 0.0, %v517
      %519 = vmatprep.mubr.f32.mxu0 0.0
      %520 = vmatmul.mubr.f32.gmra.mrb[0].mxu0 %v304
      %v521 = vpop.f32.mrb[0].mxu0
      %v522 = vadd.f32 0.0, %v521
      %v523 = vpop.f32.mrb[0].mxu0
      %v524 = vadd.f32 0.0, %v523
      %525 = vmatprep.mubr.f32.mxu0 0.0
      %526 = vmatmul.mubr.f32.gmra.mrb[0].mxu0 %v309
      %v527 = vpop.f32.mrb[0].mxu0
      %v528 = vadd.f32 0.0, %v527
      %v529 = vpop.f32.mrb[0].mxu0
      %v530 = vadd.f32 0.0, %v529
      %531 = vmatprep.mubr.f32.mxu0 0.0
      %532 = vmatmul.mubr.f32.gmra.mrb[0].mxu0 %v314
      %v533 = vpop.f32.mrb[0].mxu0
      %v534 = vadd.f32 0.0, %v533
      %v535 = vpop.f32.mrb[0].mxu0
      %v536 = vadd.f32 0.0, %v535
      %537 = vmatprep.mubr.f32.mxu0 0.0
      %538 = vmatmul.mubr.f32.gmra.mrb[0].mxu0 %v319
      %v539 = vpop.f32.mrb[0].mxu0
      %v540 = vadd.f32 0.0, %v539
      %v541 = vpop.f32.mrb[0].mxu0
      %v542 = vadd.f32 0.0, %v541
      %543 = vmatprep.mubr.f32.mxu0 0.0
      %544 = vmatmul.mubr.f32.gmra.mrb[0].mxu0 %v324
      %v545 = vpop.f32.mrb[0].mxu0
      %v546 = vadd.f32 0.0, %v545
      %v547 = vpop.f32.mrb[0].mxu0
      %v548 = vadd.f32 0.0, %v547
      %549 = vmatprep.mubr.f32.mxu0 0.0
      %550 = vmatmul.mubr.f32.gmra.mrb[0].mxu0 %v329
      %v551 = vpop.f32.mrb[0].mxu0
      %v552 = vadd.f32 0.0, %v551
      %v553 = vpop.f32.mrb[0].mxu0
      %v554 = vadd.f32 0.0, %v553
      %555 = vmatprep.mubr.f32.mxu0 0.0
      %556 = vmatmul.mubr.f32.gmra.mrb[0].mxu0 %v334
      %v557 = vpop.f32.mrb[0].mxu0
      %v558 = vadd.f32 0.0, %v557
      %v559 = vpop.f32.mrb[0].mxu0
      %v560 = vadd.f32 0.0, %v559
      %561 = vmatprep.mubr.f32.mxu0 0.0
      %562 = vmatmul.mubr.f32.gmra.mrb[0].mxu0 %v339
      %v563 = vpop.f32.mrb[0].mxu0
      %v564 = vadd.f32 0.0, %v563
      %v565 = vpop.f32.mrb[0].mxu0
      %v566 = vadd.f32 0.0, %v565
      %567 = vmatprep.mubr.f32.mxu0 0.0
      %568 = vmatmul.mubr.f32.gmra.mrb[0].mxu0 %v344
      %v569 = vpop.f32.mrb[0].mxu0
      %v570 = vadd.f32 0.0, %v569
      %v571 = vpop.f32.mrb[0].mxu0
      %v572 = vadd.f32 0.0, %v571
      %573 = vmatprep.mubr.f32.mxu0 0.0
      %574 = vmatmul.mubr.f32.gmra.mrb[0].mxu0 %v349
      %v575 = vpop.f32.mrb[0].mxu0
      %v576 = vadd.f32 0.0, %v575
      %v577 = vpop.f32.mrb[0].mxu0
      %v578 = vadd.f32 0.0, %v577
      %579 = vmatprep.mubr.f32.mxu0 0.0
      %580 = vmatmul.mubr.f32.gmra.mrb[0].mxu0 %v354
      %v581 = vpop.f32.mrb[0].mxu0
      %v582 = vadd.f32 0.0, %v581
      %v583 = vpop.f32.mrb[0].mxu0
      %v584 = vadd.f32 0.0, %v583
      %585 = vmatprep.mubr.f32.mxu0 0.0
      %586 = vmatmul.mubr.f32.gmra.mrb[0].mxu0 %v359
      %v587 = vpop.f32.mrb[0].mxu0
      %v588 = vadd.f32 0.0, %v587
      %v589 = vpop.f32.mrb[0].mxu0
      %v590 = vadd.f32 0.0, %v589
      %591 = vmatprep.mubr.f32.mxu0 0.0
      %592 = vmatmul.mubr.f32.gmra.mrb[0].mxu0 %v364
      %v593 = vpop.f32.mrb[0].mxu0
      %v594 = vadd.f32 0.0, %v593
      %v595 = vpop.f32.mrb[0].mxu0
      %v596 = vadd.f32 0.0, %v595
      %597 = vmatprep.mubr.f32.mxu0 0.0
      %598 = vmatmul.mubr.f32.gmra.mrb[0].mxu0 %v369
      %v599 = vpop.f32.mrb[0].mxu0
      %v600 = vadd.f32 0.0, %v599
      %v601 = vpop.f32.mrb[0].mxu0
      %v602 = vadd.f32 0.0, %v601
      %603 = vmatprep.mubr.f32.mxu0 0.0
      %604 = vmatmul.mubr.f32.gmra.mrb[0].mxu0 %v374
      %v605 = vpop.f32.mrb[0].mxu0
      %v606 = vadd.f32 0.0, %v605
      %v607 = vpop.f32.mrb[0].mxu0
      %v608 = vadd.f32 0.0, %v607
      %609 = vdwg.mxu0
      %610 = vmatprep.subr.mxu0 0.0
      %611 = vmatpush1.msra.mxu0 %v379
      %612 = vmatprep.subr.mxu0 0.0
      %613 = vmatpush1.msra.mxu0 %v382
      %614 = vmatprep.subr.mxu0 0.0
      %615 = vmatpush1.msra.mxu0 %v385
      %616 = vmatprep.subr.mxu0 0.0
      %617 = vmatpush1.msra.mxu0 %v388
      %618 = vmatprep.subr.mxu0 0.0
      %619 = vmatpush1.msra.mxu0 %v391
      %620 = vmatprep.subr.mxu0 0.0
      %621 = vmatpush1.msra.mxu0 %v394
      %622 = vmatprep.subr.mxu0 0.0
      %623 = vmatpush1.msra.mxu0 %v397
      %624 = vmatprep.subr.mxu0 0.0
      %625 = vmatpush1.msra.mxu0 %v400
      %626 = vmatprep.subr.mxu0 0.0
      %627 = vmatpush1.msra.mxu0 %v403
      %628 = vmatprep.subr.mxu0 0.0
      %629 = vmatpush1.msra.mxu0 %v406
      %630 = vmatprep.subr.mxu0 0.0
      %631 = vmatpush1.msra.mxu0 %v409
      %632 = vmatprep.subr.mxu0 0.0
      %633 = vmatpush1.msra.mxu0 %v412
      %634 = vmatprep.subr.mxu0 0.0
      %635 = vmatpush1.msra.mxu0 %v415
      %636 = vmatprep.subr.mxu0 0.0
      %637 = vmatpush1.msra.mxu0 %v418
      %638 = vmatprep.subr.mxu0 0.0
      %639 = vmatpush1.msra.mxu0 %v421
      %640 = vmatprep.subr.mxu0 0.0
      %641 = vmatpush1.msra.mxu0 %v424
      %642 = vmatprep.subr.mxu0 0.0
      %643 = vmatpush1.msra.mxu0 0.0
      %644 = vmatprep.subr.mxu0 0.0
      %645 = vmatpush1.msra.mxu0 0.0
      %646 = vmatprep.subr.mxu0 0.0
      %647 = vmatpush1.msra.mxu0 0.0
      %648 = vmatprep.subr.mxu0 0.0
      %649 = vmatpush1.msra.mxu0 0.0
      %650 = vmatprep.subr.mxu0 0.0
      %651 = vmatpush1.msra.mxu0 0.0
      %652 = vmatprep.subr.mxu0 0.0
      %653 = vmatpush1.msra.mxu0 0.0
      %654 = vmatprep.subr.mxu0 0.0
      %655 = vmatpush1.msra.mxu0 0.0
      %656 = vmatprep.subr.mxu0 0.0
      %657 = vmatpush1.msra.mxu0 0.0
      %658 = vmatprep.subr.mxu0 0.0
      %659 = vmatpush1.msra.mxu0 0.0
      %660 = vmatprep.subr.mxu0 0.0
      %661 = vmatpush1.msra.mxu0 0.0
      %662 = vmatprep.subr.mxu0 0.0
      %663 = vmatpush1.msra.mxu0 0.0
      %664 = vmatprep.subr.mxu0 0.0
      %665 = vmatpush1.msra.mxu0 0.0
      %666 = vmatprep.subr.mxu0 0.0
      %667 = vmatpush1.msra.mxu0 0.0
      %668 = vmatprep.subr.mxu0 0.0
      %669 = vmatpush1.msra.mxu0 0.0
      %670 = vmatprep.subr.mxu0 0.0
      %671 = vmatpush1.msra.mxu0 0.0
      %672 = vmatprep.subr.mxu0 0.0
      %673 = vmatpush1.msra.mxu0 0.0
      %674 = vmatprep.mubr.f32.mxu0 0.0
      %675 = vmatmul.mubr.f32.gmra.mrb[0].mxu0 %v279
      %v676 = vpop.f32.mrb[0].mxu0
      %v677 = vadd.f32 0.0, %v676
      %v678 = vpop.f32.mrb[0].mxu0
      %679 = vmatprep.mubr.f32.mxu0 0.0
      %680 = vmatmul.mubr.f32.gmra.mrb[0].mxu0 %v284
      %v681 = vpop.f32.mrb[0].mxu0
      %v682 = vadd.f32 0.0, %v681
      %v683 = vpop.f32.mrb[0].mxu0
      %684 = vmatprep.mubr.f32.mxu0 0.0
      %685 = vmatmul.mubr.f32.gmra.mrb[0].mxu0 %v289
      %v686 = vpop.f32.mrb[0].mxu0
      %v687 = vadd.f32 0.0, %v686
      %v688 = vpop.f32.mrb[0].mxu0
      %689 = vmatprep.mubr.f32.mxu0 0.0
      %690 = vmatmul.mubr.f32.gmra.mrb[0].mxu0 %v294
      %v691 = vpop.f32.mrb[0].mxu0
      %v692 = vadd.f32 0.0, %v691
      %v693 = vpop.f32.mrb[0].mxu0
      %694 = vmatprep.mubr.f32.mxu0 0.0
      %695 = vmatmul.mubr.f32.gmra.mrb[0].mxu0 %v299
      %v696 = vpop.f32.mrb[0].mxu0
      %v697 = vadd.f32 0.0, %v696
      %v698 = vpop.f32.mrb[0].mxu0
      %699 = vmatprep.mubr.f32.mxu0 0.0
      %700 = vmatmul.mubr.f32.gmra.mrb[0].mxu0 %v304
      %v701 = vpop.f32.mrb[0].mxu0
      %v702 = vadd.f32 0.0, %v701
      %v703 = vpop.f32.mrb[0].mxu0
      %704 = vmatprep.mubr.f32.mxu0 0.0
      %705 = vmatmul.mubr.f32.gmra.mrb[0].mxu0 %v309
      %v706 = vpop.f32.mrb[0].mxu0
      %v707 = vadd.f32 0.0, %v706
      %v708 = vpop.f32.mrb[0].mxu0
      %709 = vmatprep.mubr.f32.mxu0 0.0
      %710 = vmatmul.mubr.f32.gmra.mrb[0].mxu0 %v314
      %v711 = vpop.f32.mrb[0].mxu0
      %v712 = vadd.f32 0.0, %v711
      %v713 = vpop.f32.mrb[0].mxu0
      %714 = vmatprep.mubr.f32.mxu0 0.0
      %715 = vmatmul.mubr.f32.gmra.mrb[0].mxu0 %v319
      %v716 = vpop.f32.mrb[0].mxu0
      %v717 = vadd.f32 0.0, %v716
      %v718 = vpop.f32.mrb[0].mxu0
      %719 = vmatprep.mubr.f32.mxu0 0.0
      %720 = vmatmul.mubr.f32.gmra.mrb[0].mxu0 %v324
      %v721 = vpop.f32.mrb[0].mxu0
      %v722 = vadd.f32 0.0, %v721
      %v723 = vpop.f32.mrb[0].mxu0
      %724 = vmatprep.mubr.f32.mxu0 0.0
      %725 = vmatmul.mubr.f32.gmra.mrb[0].mxu0 %v329
      %v726 = vpop.f32.mrb[0].mxu0
      %v727 = vadd.f32 0.0, %v726
      %v728 = vpop.f32.mrb[0].mxu0
      %729 = vmatprep.mubr.f32.mxu0 0.0
      %730 = vmatmul.mubr.f32.gmra.mrb[0].mxu0 %v334
      %v731 = vpop.f32.mrb[0].mxu0
      %v732 = vadd.f32 0.0, %v731
      %v733 = vpop.f32.mrb[0].mxu0
      %734 = vmatprep.mubr.f32.mxu0 0.0
      %735 = vmatmul.mubr.f32.gmra.mrb[0].mxu0 %v339
      %v736 = vpop.f32.mrb[0].mxu0
      %v737 = vadd.f32 0.0, %v736
      %v738 = vpop.f32.mrb[0].mxu0
      %739 = vmatprep.mubr.f32.mxu0 0.0
      %740 = vmatmul.mubr.f32.gmra.mrb[0].mxu0 %v344
      %v741 = vpop.f32.mrb[0].mxu0
      %v742 = vadd.f32 0.0, %v741
      %v743 = vpop.f32.mrb[0].mxu0
      %744 = vmatprep.mubr.f32.mxu0 0.0
      %745 = vmatmul.mubr.f32.gmra.mrb[0].mxu0 %v349
      %v746 = vpop.f32.mrb[0].mxu0
      %v747 = vadd.f32 0.0, %v746
      %v748 = vpop.f32.mrb[0].mxu0
      %749 = vmatprep.mubr.f32.mxu0 0.0
      %750 = vmatmul.mubr.f32.gmra.mrb[0].mxu0 %v354
      %v751 = vpop.f32.mrb[0].mxu0
      %v752 = vadd.f32 0.0, %v751
      %v753 = vpop.f32.mrb[0].mxu0
      %754 = vmatprep.mubr.f32.mxu0 0.0
      %755 = vmatmul.mubr.f32.gmra.mrb[0].mxu0 %v359
      %v756 = vpop.f32.mrb[0].mxu0
      %v757 = vadd.f32 0.0, %v756
      %v758 = vpop.f32.mrb[0].mxu0
      %759 = vmatprep.mubr.f32.mxu0 0.0
      %760 = vmatmul.mubr.f32.gmra.mrb[0].mxu0 %v364
      %v761 = vpop.f32.mrb[0].mxu0
      %v762 = vadd.f32 0.0, %v761
      %v763 = vpop.f32.mrb[0].mxu0
      %764 = vmatprep.mubr.f32.mxu0 0.0
      %765 = vmatmul.mubr.f32.gmra.mrb[0].mxu0 %v369
      %v766 = vpop.f32.mrb[0].mxu0
      %v767 = vadd.f32 0.0, %v766
      %v768 = vpop.f32.mrb[0].mxu0
      %769 = vmatprep.mubr.f32.mxu0 0.0
      %770 = vmatmul.mubr.f32.gmra.mrb[0].mxu0 %v374
      %v771 = vpop.f32.mrb[0].mxu0
      %v772 = vadd.f32 0.0, %v771
      %v773 = vpop.f32.mrb[0].mxu0
      %774 = vdwg.mxu0
      %775 = vst [vmem:[%s174] sm:$0xff] %v492
      %776 = vst [vmem:[%s174 + $0x8] sm:$0xff] %v494
      %vm777 = vcmask 523264
      %778 = vst.msk [vmem:[%s174 + $0x10] sm:$0xff] %vm777, %v677
      %779 = vst [vmem:[%s174 + $0x18] sm:$0xff] %v498
      %780 = vst [vmem:[%s174 + $0x20] sm:$0xff] %v500
      %781 = vst.msk [vmem:[%s174 + $0x28] sm:$0xff] %vm777, %v682
      %782 = vst [vmem:[%s174 + $0x30] sm:$0xff] %v504
      %783 = vst [vmem:[%s174 + $0x38] sm:$0xff] %v506
      %784 = vst.msk [vmem:[%s174 + $0x40] sm:$0xff] %vm777, %v687
      %785 = vst [vmem:[%s174 + $0x48] sm:$0xff] %v510
      %786 = vst [vmem:[%s174 + $0x50] sm:$0xff] %v512
      %787 = vst.msk [vmem:[%s174 + $0x58] sm:$0xff] %vm777, %v692
      %788 = vst [vmem:[%s174 + $0x60] sm:$0xff] %v516
      %789 = vst [vmem:[%s174 + $0x68] sm:$0xff] %v518
      %790 = vst.msk [vmem:[%s174 + $0x70] sm:$0xff] %vm777, %v697
      %791 = vst [vmem:[%s174 + $0x78] sm:$0xff] %v522
      %792 = vst [vmem:[%s174 + $0x80] sm:$0xff] %v524
      %793 = vst.msk [vmem:[%s174 + $0x88] sm:$0xff] %vm777, %v702
      %794 = vst [vmem:[%s174 + $0x90] sm:$0xff] %v528
      %795 = vst [vmem:[%s174 + $0x98] sm:$0xff] %v530
      %796 = vst.msk [vmem:[%s174 + $0xa0] sm:$0xff] %vm777, %v707
      %797 = vst [vmem:[%s174 + $0xa8] sm:$0xff] %v534
      %798 = vst [vmem:[%s174 + $0xb0] sm:$0xff] %v536
      %799 = vst.msk [vmem:[%s174 + $0xb8] sm:$0xff] %vm777, %v712
      %800 = vst [vmem:[%s174 + $0xc0] sm:$0xff] %v540
      %801 = vst [vmem:[%s174 + $0xc8] sm:$0xff] %v542
      %802 = vst.msk [vmem:[%s174 + $0xd0] sm:$0xff] %vm777, %v717
      %803 = vst [vmem:[%s174 + $0xd8] sm:$0xff] %v546
      %804 = vst [vmem:[%s174 + $0xe0] sm:$0xff] %v548
      %805 = vst.msk [vmem:[%s174 + $0xe8] sm:$0xff] %vm777, %v722
      %806 = vst [vmem:[%s174 + $0xf0] sm:$0xff] %v552
      %807 = vst [vmem:[%s174 + $0xf8] sm:$0xff] %v554
      %808 = vst.msk [vmem:[%s174 + $0x100] sm:$0xff] %vm777, %v727
      %809 = vst [vmem:[%s174 + $0x108] sm:$0xff] %v558
      %810 = vst [vmem:[%s174 + $0x110] sm:$0xff] %v560
      %811 = vst.msk [vmem:[%s174 + $0x118] sm:$0xff] %vm777, %v732
      %812 = vst [vmem:[%s174 + $0x120] sm:$0xff] %v564
      %813 = vst [vmem:[%s174 + $0x128] sm:$0xff] %v566
      %814 = vst.msk [vmem:[%s174 + $0x130] sm:$0xff] %vm777, %v737
      %815 = vst [vmem:[%s174 + $0x138] sm:$0xff] %v570
      %816 = vst [vmem:[%s174 + $0x140] sm:$0xff] %v572
      %817 = vst.msk [vmem:[%s174 + $0x148] sm:$0xff] %vm777, %v742
      %818 = vst [vmem:[%s174 + $0x150] sm:$0xff] %v576
      %819 = vst [vmem:[%s174 + $0x158] sm:$0xff] %v578
      %820 = vst.msk [vmem:[%s174 + $0x160] sm:$0xff] %vm777, %v747
      %821 = vst [vmem:[%s174 + $0x168] sm:$0xff] %v582
      %822 = vst [vmem:[%s174 + $0x170] sm:$0xff] %v584
      %823 = vst.msk [vmem:[%s174 + $0x178] sm:$0xff] %vm777, %v752
      %824 = vst [vmem:[%s174 + $0x180] sm:$0xff] %v588
      %825 = vst [vmem:[%s174 + $0x188] sm:$0xff] %v590
      %826 = vst.msk [vmem:[%s174 + $0x190] sm:$0xff] %vm777, %v757
      %827 = vst [vmem:[%s174 + $0x198] sm:$0xff] %v594
      %828 = vst [vmem:[%s174 + $0x1a0] sm:$0xff] %v596
      %829 = vst.msk [vmem:[%s174 + $0x1a8] sm:$0xff] %vm777, %v762
      %830 = vst [vmem:[%s174 + $0x1b0] sm:$0xff] %v600
      %831 = vst [vmem:[%s174 + $0x1b8] sm:$0xff] %v602
      %832 = vst.msk [vmem:[%s174 + $0x1c0] sm:$0xff] %vm777, %v767
      %833 = vst [vmem:[%s174 + $0x1c8] sm:$0xff] %v606
      %834 = vst [vmem:[%s174 + $0x1d0] sm:$0xff] %v608
      %835 = vst.msk [vmem:[%s174 + $0x1d8] sm:$0xff] %vm777, %v772
      %s836 = smul.u32 20, %s14
      %p837 = scmp.lt.s32.totalorder %s836, 39
      %s838 = scalar_select %p837, %s836, 39
      %s839 = smul.addr %s838, 3
      %s840 = smul.addr %s839, 8
      %s841 = scalar_lea.vmem %s3, %s840
      // Predicated region
      $region33: #{_lambda_.3} parent=31 // pred_check
        %p842 = pneg %p100
      $region34: #{_lambda_.3} parent=31 // pred_check_branch
        %844 = sbr.rel (%p842) target = $region36
      $region35: #{_lambda_.3} parent=31 // pred_region
        %s845 = smul.u32 20, %s14
      $region36: #{_lambda_.3} parent=31 // pred_fallthru
        _
    $region32: #{_lambda_.3} parent=5 // pred_fallthru
      _
    %p846 = scmp.le.s32.totalorder 2, %s9
    // Predicated region
    $region37: #{_lambda_.3} parent=5 // pred_check
      %p847 = pneg %p846
    $region38: #{_lambda_.3} parent=5 // pred_check_branch
      %849 = sbr.rel (%p847) target = $region40
    $region39: #{_lambda_.3} parent=5 // pred_region
      %s850 = ssub.s32 %s9, 2
      // Predicated region
      $region41: #{_lambda_.3} parent=39 // pred_check
        %p851 = pneg %p106
      $region42: #{_lambda_.3} parent=39 // pred_check_branch
        %853 = sbr.rel (%p851) target = $region44
      $region43: #{_lambda_.3} parent=39 // pred_region
        %s854 = smul.u32 20, %s15
        %p855 = scmp.lt.s32.totalorder %s854, 39
        %s856 = scalar_select %p855, %s854, 39
        %s857 = smul.addr %s856, 3
        %s858 = smul.addr %s857, 8
        %s859 = scalar_lea.vmem %s3, %s858
      $region44: #{_lambda_.3} parent=39 // pred_fallthru
        _
    $region40: #{_lambda_.3} parent=5 // pred_fallthru
      _
  $region6: #{_lambda_.3} parent=0 // loop_footer
    %s13 = sadd.s32 1, %s9
  $region7: #{_lambda_.3} parent=0 // loop_footer_branch
    %8 = sbr.rel target = $region3
  $region8: #{_lambda_.3} parent=0 // loop_exit
    _

</llo_original>
